<compile_context>
chip_gen: v7x
topology: tpu7x:2x2x1
jax: 0.10.0
libtpu: 0.0.40
codegen_flags: <defaults>
</compile_context>

<pallas_src>
import math
from functools import partial

import numpy as np
import jax
import jax.numpy as jnp
from jax.experimental import pallas as pl
from jax.experimental.pallas import tpu as pltpu

EPS = 1e-5                        # BatchNorm2d default eps
TM_MAX = 512                      # rows per M tile (HBM-roofline friendly)
VMEM_LIMIT = 48 * 1024 * 1024     # explicit scoped-VMEM budget (v5e default is 16 MiB)
ACT_DTYPE = jnp.bfloat16          # activations live in bf16 end-to-end


def _round_up(x, m):
    return (x + m - 1) // m * m


def _pick_tile(m):
    """Return (tile_rows, padded_m); prefer a tile that divides m exactly."""
    if m <= TM_MAX:
        return m, m                       # single block == full array (always legal)
    for tm in range(TM_MAX, 127, -8):
        if m % tm == 0:
            return tm, m                  # no pad / slice passes needed
    mp = _round_up(m, TM_MAX)
    return TM_MAX, mp                     # rare fallback: pad + mask last tile


# ----------------------------- Pallas kernels ------------------------------

def _gated_conv_kernel(p_ref, w_ref, b_ref, o_ref, *, cout):
    # p: (TM, K) bf16 im2col patches; w: (K, 2*Cout) bf16 = [wf | wg];
    # b: (1, 2*Cout) f32 = [bf | bg].  One MXU dot, split, gate, bf16 store.
    y = jnp.dot(p_ref[...], w_ref[...],
                preferred_element_type=jnp.float32) + b_ref[...]
    f = y[:, :cout]
    g = y[:, cout:]
    gate = pl.reciprocal(1.0 + jnp.exp(-g), approx=True)   # sigmoid on the EUP
    o_ref[...] = (f * gate).astype(o_ref.dtype)


def _conv1x1_stats_kernel(*refs, n_in, tm, m_actual, mask):
    # Pass 1: y = sum_j x_j @ w_j + b per tile; accumulate per-channel sum and
    # sum-of-squares into resident (1, Cout) outputs across the grid.
    # No (M, Cout) intermediate is ever written to HBM.
    xs = refs[:n_in]
    ws = refs[n_in:2 * n_in]
    b_ref = refs[2 * n_in]
    s_ref = refs[2 * n_in + 1]
    ss_ref = refs[2 * n_in + 2]

    i = pl.program_id(0)
    acc = jnp.dot(xs[0][...], ws[0][...], preferred_element_type=jnp.float32)
    for j in range(1, n_in):
        acc += jnp.dot(xs[j][...], ws[j][...], preferred_element_type=jnp.float32)
    y = acc + b_ref[...]

    @pl.when(i == 0)
    def _():
        s_ref[...] = jnp.zeros_like(s_ref)
        ss_ref[...] = jnp.zeros_like(ss_ref)

    if mask:
        # Only the last grid step can hold padded rows; mask only there.
        last = pl.num_programs(0) - 1

        @pl.when(i != last)
        def _():
            s_ref[...] += jnp.sum(y, axis=0, keepdims=True)
            ss_ref[...] += jnp.sum(y * y, axis=0, keepdims=True)

        @pl.when(i == last)
        def _():
            rows = jax.lax.broadcasted_iota(jnp.int32, y.shape, 0) + i * tm
            ym = jnp.where(rows < m_actual, y, 0.0)
            s_ref[...] += jnp.sum(ym, axis=0, keepdims=True)
            ss_ref[...] += jnp.sum(ym * ym, axis=0, keepdims=True)
    else:
        s_ref[...] += jnp.sum(y, axis=0, keepdims=True)
        ss_ref[...] += jnp.sum(y * y, axis=0, keepdims=True)


def _bn_norm_kernel(*refs, n_in, m_actual, apply_tanh):
    # Pass 2: recompute y = sum_j x_j @ w_j + b for this tile and normalize
    # with the global batch statistics. bf16 output.
    xs = refs[:n_in]
    ws = refs[n_in:2 * n_in]
    b_ref, s_ref, ss_ref, g_ref, beta_ref = refs[2 * n_in:2 * n_in + 5]
    o_ref = refs[2 * n_in + 5]

    acc = jnp.dot(xs[0][...], ws[0][...], preferred_element_type=jnp.float32)
    for j in range(1, n_in):
        acc += jnp.dot(xs[j][...], ws[j][...], preferred_element_type=jnp.float32)
    y = acc + b_ref[...]

    inv_m = 1.0 / float(m_actual)
    mean = s_ref[...] * inv_m
    var = jnp.maximum(ss_ref[...] * inv_m - mean * mean, 0.0)
    scale = jax.lax.rsqrt(var + EPS) * g_ref[...]
    out = (y - mean) * scale + beta_ref[...]
    if apply_tanh:
        out = jnp.tanh(out)
    o_ref[...] = out.astype(o_ref.dtype)


# ----------------------------- kernel wrappers ------------------------------

def gated_conv_matmul(patches, w, b, cout):
    m, k = patches.shape
    tm, mp = _pick_tile(m)
    grid = mp // tm
    p = patches if mp == m else jnp.pad(patches, ((0, mp - m), (0, 0)))

    out = pl.pallas_call(
        partial(_gated_conv_kernel, cout=cout),
        out_shape=jax.ShapeDtypeStruct((mp, cout), ACT_DTYPE),
        grid=(grid,),
        in_specs=[pl.BlockSpec((tm, k), lambda i: (i, 0)),
                  pl.BlockSpec((k, 2 * cout), lambda i: (0, 0)),
                  pl.BlockSpec((1, 2 * cout), lambda i: (0, 0))],
        out_specs=pl.BlockSpec((tm, cout), lambda i: (i, 0)),
        compiler_params=pltpu.CompilerParams(
            dimension_semantics=("parallel",),
            vmem_limit_bytes=VMEM_LIMIT),
    )(p, w, b)
    return out if mp == m else out[:m]


def conv1x1_bn(xs, ws, b, gamma, beta, apply_tanh=False):
    # xs: list of (M, c_j) bf16 activations (skip connections stay separate);
    # ws: matching list of (c_j, Cout) bf16 weight row-slices.
    m = xs[0].shape[0]
    cout = ws[0].shape[1]
    n_in = len(xs)
    tm, mp = _pick_tile(m)
    grid = mp // tm
    needs_mask = mp != m
    if needs_mask:
        xs = [jnp.pad(x, ((0, mp - m), (0, 0))) for x in xs]

    x_specs = [pl.BlockSpec((tm, x.shape[1]), lambda i: (i, 0)) for x in xs]
    w_specs = [pl.BlockSpec((w.shape[0], cout), lambda i: (0, 0)) for w in ws]
    vec_spec = pl.BlockSpec((1, cout), lambda i: (0, 0))

    # Pass 1: stats accumulation (reduction over M -> single "arbitrary" axis).
    s, ss = pl.pallas_call(
        partial(_conv1x1_stats_kernel, n_in=n_in, tm=tm, m_actual=m,
                mask=needs_mask),
        out_shape=(jax.ShapeDtypeStruct((1, cout), jnp.float32),
                   jax.ShapeDtypeStruct((1, cout), jnp.float32)),
        grid=(grid,),
        in_specs=x_specs + w_specs + [vec_spec],
        out_specs=(vec_spec, vec_spec),
        compiler_params=pltpu.CompilerParams(
            dimension_semantics=("arbitrary",),
            vmem_limit_bytes=VMEM_LIMIT),
    )(*xs, *ws, b)

    # Pass 2: recompute matmul + normalize (+ optional tanh), fully parallel.
    out = pl.pallas_call(
        partial(_bn_norm_kernel, n_in=n_in, m_actual=m, apply_tanh=apply_tanh),
        out_shape=jax.ShapeDtypeStruct((mp, cout), ACT_DTYPE),
        grid=(grid,),
        in_specs=x_specs + w_specs + [vec_spec] * 5,
        out_specs=pl.BlockSpec((tm, cout), lambda i: (i, 0)),
        compiler_params=pltpu.CompilerParams(
            dimension_semantics=("parallel",),
            vmem_limit_bytes=VMEM_LIMIT),
    )(*xs, *ws, b, s, ss, gamma, beta)
    return out[:m] if needs_mask else out


# ------------------------------ JAX glue ops --------------------------------

def extract_patches_3x3_s2(x):
    # x: (N, H, W, C) bf16 -> (N, H//2, W//2, 9*C)  (kernel=3, stride=2, pad=1)
    # TODO(synk): replace with in-kernel row DMA (index_map over source rows).
    n, h, w, c = x.shape
    assert h % 2 == 0 and w % 2 == 0, "even spatial dims expected"
    ho, wo = h // 2, w // 2
    xp = jnp.pad(x, ((0, 0), (1, 1), (1, 1), (0, 0)))
    taps = []
    for kh in range(3):
        for kw in range(3):
            taps.append(xp[:, kh:kh + 2 * ho - 1:2, kw:kw + 2 * wo - 1:2, :])
    return jnp.concatenate(taps, axis=-1)


def gated_down(x, p):
    n, h, w, c = x.shape
    ho, wo = h // 2, w // 2
    patches = extract_patches_3x3_s2(x).reshape(n * ho * wo, 9 * c)
    cout = p["w"].shape[1] // 2
    y = gated_conv_matmul(patches, p["w"], p["b"], cout)
    return y.reshape(n, ho, wo, cout)


def _interp_matrix(n_in, n_out):
    # Static bilinear interpolation matrix, align_corners=True
    # (matches nn.UpsamplingBilinear2d).
    if n_in == 1:
        return np.ones((n_out, 1), np.float32)
    src = np.arange(n_out, dtype=np.float64) * (n_in - 1) / (n_out - 1)
    i0 = np.clip(np.floor(src).astype(np.int64), 0, n_in - 2)
    frac = (src - i0).astype(np.float32)
    m = np.zeros((n_out, n_in), np.float32)
    m[np.arange(n_out), i0] += 1.0 - frac
    m[np.arange(n_out), i0 + 1] += frac
    return m


def upsample_bilinear_2x(x):
    # Matmul-based (MXU-friendly) bilinear x2 in bf16 — no gathers, half the
    # HBM bytes of the f32 version.
    n, h, w, c = x.shape
    ah = jnp.asarray(_interp_matrix(h, 2 * h), ACT_DTYPE)
    aw = jnp.asarray(_interp_matrix(w, 2 * w), ACT_DTYPE)
    x = jnp.einsum('ih,nhwc->niwc', ah, x)
    x = jnp.einsum('jw,nhwc->nhjc', aw, x)
    return x


def up_block(xs, p, apply_tanh=False):
    # xs: list of branch activations (e.g. [up_path, skip]); no concatenate.
    ups = [upsample_bilinear_2x(x) for x in xs]
    n, h, w, _ = ups[0].shape
    flats = [u.reshape(n * h * w, u.shape[-1]) for u in ups]
    y = conv1x1_bn(flats, list(p["ws"]), p["b"], p["gamma"], p["beta"],
                   apply_tanh=apply_tanh)
    return y.reshape(n, h, w, -1)


# ------------------------------- parameters ---------------------------------

def init_params(key, dim=32):
    keys = iter(jax.random.split(key, 64))

    def conv_w(cin, cout, kh, kw):
        # kaiming_normal_(mode='fan_out', nonlinearity='relu'): std = sqrt(2/fan_out)
        fan_out = cout * kh * kw
        std = math.sqrt(2.0 / fan_out)
        w = std * jax.random.normal(next(keys), (kh * kw * cin, cout), jnp.float32)
        fan_in = cin * kh * kw
        bound = 1.0 / math.sqrt(fan_in)
        b = jax.random.uniform(next(keys), (1, cout), jnp.float32, -bound, bound)
        return w, b

    def gated(cin, cout):
        wf, bf = conv_w(cin, cout, 3, 3)
        wg, bg = conv_w(cin, cout, 3, 3)
        # Fused feature||gate weights -> single MXU pass; bf16 operands.
        w = jnp.concatenate([wf, wg], axis=1).astype(ACT_DTYPE)
        b = jnp.concatenate([bf, bg], axis=1)
        return dict(w=w, b=b)

    def up(cins, cout):
        cin = sum(cins)
        w, b = conv_w(cin, cout, 1, 1)
        ws, off = [], 0
        for c in cins:                       # split weight rows per branch
            ws.append(w[off:off + c].astype(ACT_DTYPE))
            off += c
        return dict(ws=tuple(ws), b=b,
                    gamma=jnp.ones((1, cout), jnp.float32),
                    beta=jnp.zeros((1, cout), jnp.float32))

    return dict(
        down1=gated(1, dim),
        down2=gated(dim, 2 * dim),
        down3=gated(2 * dim, 4 * dim),
        down4=gated(4 * dim, 8 * dim),
        up1=up([8 * dim], 4 * dim),
        up2=up([4 * dim, 4 * dim], 2 * dim),
        up3=up([2 * dim, 2 * dim], dim),
        out=up([dim, dim], 1),
    )


def generator_forward(x, params):
    x = x.astype(ACT_DTYPE)
    x1 = gated_down(x, params["down1"])
    x2 = gated_down(x1, params["down2"])
    x3 = gated_down(x2, params["down3"])
    x4 = gated_down(x3, params["down4"])
    x5 = up_block([x4], params["up1"])
    # Skip connections passed as separate kernel inputs (no jnp.concatenate).
    x6 = up_block([x5, x3], params["up2"])
    x7 = up_block([x6, x2], params["up3"])
    x8 = up_block([x7, x1], params["out"], apply_tanh=True)
    return x8.astype(jnp.float32)


if __name__ == "__main__":
    key = jax.random.PRNGKey(0)
    kx, kp = jax.random.split(key)
    N, H, W = 2, 16, 16
    x = jax.random.normal(kx, (N, H, W, 1), jnp.float32)
    params = init_params(kp, dim=32)

    out = jax.jit(generator_forward)(x, params)
    out = jax.block_until_ready(out)

    assert out.shape == (N, H, W, 1), out.shape
    assert bool(jnp.all(jnp.isfinite(out)))
    assert bool(jnp.all(jnp.abs(out) <= 1.0))  # tanh output range
    print("KERNEL_OK")
</pallas_src>

<mosaic_0001>
module attributes {stable_mosaic.version = 11 : i64} {
  func.func @_gated_conv_kernel(%arg0: i32, %arg1: memref<128x9xbf16, #tpu.memory_space<vmem>>, %arg2: memref<9x64xbf16, #tpu.memory_space<vmem>>, %arg3: memref<1x64xf32, #tpu.memory_space<vmem>>, %arg4: memref<128x32xbf16, #tpu.memory_space<vmem>>) attributes {dimension_semantics = [#tpu.dimension_semantics<parallel>], iteration_bounds = array<i64: 1>, scalar_prefetch = 0 : i64, scratch_operands = 0 : i64, tpu.core_type = #tpu.core_type<tc>, window_params = [{transform_indices = @transform_0, window_bounds = array<i64: 128, 9>}, {pipeline_mode = #tpu.pipeline_mode<synchronous>, transform_indices = @transform_1, window_bounds = array<i64: 9, 64>}, {pipeline_mode = #tpu.pipeline_mode<synchronous>, transform_indices = @transform_2, window_bounds = array<i64: 1, 64>}, {transform_indices = @transform_3, window_bounds = array<i64: 128, 32>}]} {
    %c0 = arith.constant 0 : index
    %c0_0 = arith.constant 0 : index
    %0 = vector.load %arg1[%c0, %c0_0] : memref<128x9xbf16, #tpu.memory_space<vmem>>, vector<128x9xbf16>
    %c0_1 = arith.constant 0 : index
    %c0_2 = arith.constant 0 : index
    %1 = vector.load %arg2[%c0_1, %c0_2] : memref<9x64xbf16, #tpu.memory_space<vmem>>, vector<9x64xbf16>
    %cst = arith.constant dense<0.000000e+00> : vector<128x64xf32>
    %2 = tpu.matmul %0, %1, %cst {dimension_numbers = #tpu.dot_dimension_numbers<[1], [0], [0], [1], [0, 0, 1, 1], [], []>} : vector<128x9xbf16>, vector<9x64xbf16>, vector<128x64xf32> -> vector<128x64xf32>
    %c0_3 = arith.constant 0 : index
    %c0_4 = arith.constant 0 : index
    %3 = vector.load %arg3[%c0_3, %c0_4] : memref<1x64xf32, #tpu.memory_space<vmem>>, vector<1x64xf32>
    %4 = vector.broadcast %3 : vector<1x64xf32> to vector<128x64xf32>
    %5 = arith.addf %2, %4 : vector<128x64xf32>
    %6 = vector.extract_strided_slice %5 {offsets = [0, 0], sizes = [128, 32], strides = [1, 1]} : vector<128x64xf32> to vector<128x32xf32>
    %7 = vector.extract_strided_slice %5 {offsets = [0, 32], sizes = [128, 32], strides = [1, 1]} : vector<128x64xf32> to vector<128x32xf32>
    %cst_5 = arith.constant 0.000000e+00 : f32
    %8 = vector.broadcast %cst_5 : f32 to vector<128x32xf32>
    %9 = arith.subf %8, %7 : vector<128x32xf32>
    %10 = math.exp %9 : vector<128x32xf32>
    %cst_6 = arith.constant 1.000000e+00 : f32
    %11 = vector.broadcast %cst_6 : f32 to vector<128x32xf32>
    %12 = arith.addf %11, %10 : vector<128x32xf32>
    %13 = tpu.reciprocal %12 {approx = true} : vector<128x32xf32> -> vector<128x32xf32>
    %14 = arith.mulf %6, %13 : vector<128x32xf32>
    %15 = arith.truncf %14 : vector<128x32xf32> to vector<128x32xbf16>
    %c0_7 = arith.constant 0 : index
    %c0_8 = arith.constant 0 : index
    %16 = vector.load %arg4[%c0_7, %c0_8] : memref<128x32xbf16, #tpu.memory_space<vmem>>, vector<128x32xbf16>
    tpu.vector_store %arg4[%c0_7, %c0_8], %15 {strides = array<i32>} : memref<128x32xbf16, #tpu.memory_space<vmem>>, vector<128x32xbf16>,
    return
  }
  func.func @transform_0(%arg0: i32) -> (i32, i32) {
    %c0_i32 = arith.constant 0 : i32
    %c0_i32_0 = arith.constant 0 : i32
    return %arg0, %c0_i32 : i32, i32
  }
  func.func @transform_1(%arg0: i32) -> (i32, i32) {
    %c0_i32 = arith.constant 0 : i32
    %c0_i32_0 = arith.constant 0 : i32
    %c0_i32_1 = arith.constant 0 : i32
    return %c0_i32, %c0_i32_0 : i32, i32
  }
  func.func @transform_2(%arg0: i32) -> (i32, i32) {
    %c0_i32 = arith.constant 0 : i32
    %c0_i32_0 = arith.constant 0 : i32
    %c0_i32_1 = arith.constant 0 : i32
    return %c0_i32, %c0_i32_0 : i32, i32
  }
  func.func @transform_3(%arg0: i32) -> (i32, i32) {
    %c0_i32 = arith.constant 0 : i32
    %c0_i32_0 = arith.constant 0 : i32
    return %arg0, %c0_i32 : i32, i32
  }
}

module attributes {stable_mosaic.version = 11 : i64} {
  func.func @_gated_conv_kernel(%arg0: i32, %arg1: memref<32x288xbf16, #tpu.memory_space<vmem>>, %arg2: memref<288x128xbf16, #tpu.memory_space<vmem>>, %arg3: memref<1x128xf32, #tpu.memory_space<vmem>>, %arg4: memref<32x64xbf16, #tpu.memory_space<vmem>>) attributes {dimension_semantics = [#tpu.dimension_semantics<parallel>], iteration_bounds = array<i64: 1>, scalar_prefetch = 0 : i64, scratch_operands = 0 : i64, tpu.core_type = #tpu.core_type<tc>, window_params = [{transform_indices = @transform_0, window_bounds = array<i64: 32, 288>}, {pipeline_mode = #tpu.pipeline_mode<synchronous>, transform_indices = @transform_1, window_bounds = array<i64: 288, 128>}, {pipeline_mode = #tpu.pipeline_mode<synchronous>, transform_indices = @transform_2, window_bounds = array<i64: 1, 128>}, {transform_indices = @transform_3, window_bounds = array<i64: 32, 64>}]} {
    %c0 = arith.constant 0 : index
    %c0_0 = arith.constant 0 : index
    %0 = vector.load %arg1[%c0, %c0_0] : memref<32x288xbf16, #tpu.memory_space<vmem>>, vector<32x288xbf16>
    %c0_1 = arith.constant 0 : index
    %c0_2 = arith.constant 0 : index
    %1 = vector.load %arg2[%c0_1, %c0_2] : memref<288x128xbf16, #tpu.memory_space<vmem>>, vector<288x128xbf16>
    %cst = arith.constant dense<0.000000e+00> : vector<32x128xf32>
    %2 = tpu.matmul %0, %1, %cst {dimension_numbers = #tpu.dot_dimension_numbers<[1], [0], [0], [1], [0, 0, 1, 1], [], []>} : vector<32x288xbf16>, vector<288x128xbf16>, vector<32x128xf32> -> vector<32x128xf32>
    %c0_3 = arith.constant 0 : index
    %c0_4 = arith.constant 0 : index
    %3 = vector.load %arg3[%c0_3, %c0_4] : memref<1x128xf32, #tpu.memory_space<vmem>>, vector<1x128xf32>
    %4 = vector.broadcast %3 : vector<1x128xf32> to vector<32x128xf32>
    %5 = arith.addf %2, %4 : vector<32x128xf32>
    %6 = vector.extract_strided_slice %5 {offsets = [0, 0], sizes = [32, 64], strides = [1, 1]} : vector<32x128xf32> to vector<32x64xf32>
    %7 = vector.extract_strided_slice %5 {offsets = [0, 64], sizes = [32, 64], strides = [1, 1]} : vector<32x128xf32> to vector<32x64xf32>
    %cst_5 = arith.constant 0.000000e+00 : f32
    %8 = vector.broadcast %cst_5 : f32 to vector<32x64xf32>
    %9 = arith.subf %8, %7 : vector<32x64xf32>
    %10 = math.exp %9 : vector<32x64xf32>
    %cst_6 = arith.constant 1.000000e+00 : f32
    %11 = vector.broadcast %cst_6 : f32 to vector<32x64xf32>
    %12 = arith.addf %11, %10 : vector<32x64xf32>
    %13 = tpu.reciprocal %12 {approx = true} : vector<32x64xf32> -> vector<32x64xf32>
    %14 = arith.mulf %6, %13 : vector<32x64xf32>
    %15 = arith.truncf %14 : vector<32x64xf32> to vector<32x64xbf16>
    %c0_7 = arith.constant 0 : index
    %c0_8 = arith.constant 0 : index
    %16 = vector.load %arg4[%c0_7, %c0_8] : memref<32x64xbf16, #tpu.memory_space<vmem>>, vector<32x64xbf16>
    tpu.vector_store %arg4[%c0_7, %c0_8], %15 {strides = array<i32>} : memref<32x64xbf16, #tpu.memory_space<vmem>>, vector<32x64xbf16>,
    return
  }
  func.func @transform_0(%arg0: i32) -> (i32, i32) {
    %c0_i32 = arith.constant 0 : i32
    %c0_i32_0 = arith.constant 0 : i32
    return %arg0, %c0_i32 : i32, i32
  }
  func.func @transform_1(%arg0: i32) -> (i32, i32) {
    %c0_i32 = arith.constant 0 : i32
    %c0_i32_0 = arith.constant 0 : i32
    %c0_i32_1 = arith.constant 0 : i32
    return %c0_i32, %c0_i32_0 : i32, i32
  }
  func.func @transform_2(%arg0: i32) -> (i32, i32) {
    %c0_i32 = arith.constant 0 : i32
    %c0_i32_0 = arith.constant 0 : i32
    %c0_i32_1 = arith.constant 0 : i32
    return %c0_i32, %c0_i32_0 : i32, i32
  }
  func.func @transform_3(%arg0: i32) -> (i32, i32) {
    %c0_i32 = arith.constant 0 : i32
    %c0_i32_0 = arith.constant 0 : i32
    return %arg0, %c0_i32 : i32, i32
  }
}

module attributes {stable_mosaic.version = 11 : i64} {
  func.func @_gated_conv_kernel(%arg0: i32, %arg1: memref<2x1152xbf16, #tpu.memory_space<vmem>>, %arg2: memref<1152x512xbf16, #tpu.memory_space<vmem>>, %arg3: memref<1x512xf32, #tpu.memory_space<vmem>>, %arg4: memref<2x256xbf16, #tpu.memory_space<vmem>>) attributes {dimension_semantics = [#tpu.dimension_semantics<parallel>], iteration_bounds = array<i64: 1>, scalar_prefetch = 0 : i64, scratch_operands = 0 : i64, tpu.core_type = #tpu.core_type<tc>, window_params = [{transform_indices = @transform_0, window_bounds = array<i64: 2, 1152>}, {pipeline_mode = #tpu.pipeline_mode<synchronous>, transform_indices = @transform_1, window_bounds = array<i64: 1152, 512>}, {pipeline_mode = #tpu.pipeline_mode<synchronous>, transform_indices = @transform_2, window_bounds = array<i64: 1, 512>}, {transform_indices = @transform_3, window_bounds = array<i64: 2, 256>}]} {
    %c0 = arith.constant 0 : index
    %c0_0 = arith.constant 0 : index
    %0 = vector.load %arg1[%c0, %c0_0] : memref<2x1152xbf16, #tpu.memory_space<vmem>>, vector<2x1152xbf16>
    %c0_1 = arith.constant 0 : index
    %c0_2 = arith.constant 0 : index
    %1 = vector.load %arg2[%c0_1, %c0_2] : memref<1152x512xbf16, #tpu.memory_space<vmem>>, vector<1152x512xbf16>
    %cst = arith.constant dense<0.000000e+00> : vector<2x512xf32>
    %2 = tpu.matmul %0, %1, %cst {dimension_numbers = #tpu.dot_dimension_numbers<[1], [0], [0], [1], [0, 0, 1, 1], [], []>} : vector<2x1152xbf16>, vector<1152x512xbf16>, vector<2x512xf32> -> vector<2x512xf32>
    %c0_3 = arith.constant 0 : index
    %c0_4 = arith.constant 0 : index
    %3 = vector.load %arg3[%c0_3, %c0_4] : memref<1x512xf32, #tpu.memory_space<vmem>>, vector<1x512xf32>
    %4 = vector.broadcast %3 : vector<1x512xf32> to vector<2x512xf32>
    %5 = arith.addf %2, %4 : vector<2x512xf32>
    %6 = vector.extract_strided_slice %5 {offsets = [0, 0], sizes = [2, 256], strides = [1, 1]} : vector<2x512xf32> to vector<2x256xf32>
    %7 = vector.extract_strided_slice %5 {offsets = [0, 256], sizes = [2, 256], strides = [1, 1]} : vector<2x512xf32> to vector<2x256xf32>
    %cst_5 = arith.constant 0.000000e+00 : f32
    %8 = vector.broadcast %cst_5 : f32 to vector<2x256xf32>
    %9 = arith.subf %8, %7 : vector<2x256xf32>
    %10 = math.exp %9 : vector<2x256xf32>
    %cst_6 = arith.constant 1.000000e+00 : f32
    %11 = vector.broadcast %cst_6 : f32 to vector<2x256xf32>
    %12 = arith.addf %11, %10 : vector<2x256xf32>
    %13 = tpu.reciprocal %12 {approx = true} : vector<2x256xf32> -> vector<2x256xf32>
    %14 = arith.mulf %6, %13 : vector<2x256xf32>
    %15 = arith.truncf %14 : vector<2x256xf32> to vector<2x256xbf16>
    %c0_7 = arith.constant 0 : index
    %c0_8 = arith.constant 0 : index
    %16 = vector.load %arg4[%c0_7, %c0_8] : memref<2x256xbf16, #tpu.memory_space<vmem>>, vector<2x256xbf16>
    tpu.vector_store %arg4[%c0_7, %c0_8], %15 {strides = array<i32>} : memref<2x256xbf16, #tpu.memory_space<vmem>>, vector<2x256xbf16>,
    return
  }
  func.func @transform_0(%arg0: i32) -> (i32, i32) {
    %c0_i32 = arith.constant 0 : i32
    %c0_i32_0 = arith.constant 0 : i32
    return %arg0, %c0_i32 : i32, i32
  }
  func.func @transform_1(%arg0: i32) -> (i32, i32) {
    %c0_i32 = arith.constant 0 : i32
    %c0_i32_0 = arith.constant 0 : i32
    %c0_i32_1 = arith.constant 0 : i32
    return %c0_i32, %c0_i32_0 : i32, i32
  }
  func.func @transform_2(%arg0: i32) -> (i32, i32) {
    %c0_i32 = arith.constant 0 : i32
    %c0_i32_0 = arith.constant 0 : i32
    %c0_i32_1 = arith.constant 0 : i32
    return %c0_i32, %c0_i32_0 : i32, i32
  }
  func.func @transform_3(%arg0: i32) -> (i32, i32) {
    %c0_i32 = arith.constant 0 : i32
    %c0_i32_0 = arith.constant 0 : i32
    return %arg0, %c0_i32 : i32, i32
  }
}

module attributes {stable_mosaic.version = 11 : i64} {
  func.func @_gated_conv_kernel(%arg0: i32, %arg1: memref<8x576xbf16, #tpu.memory_space<vmem>>, %arg2: memref<576x256xbf16, #tpu.memory_space<vmem>>, %arg3: memref<1x256xf32, #tpu.memory_space<vmem>>, %arg4: memref<8x128xbf16, #tpu.memory_space<vmem>>) attributes {dimension_semantics = [#tpu.dimension_semantics<parallel>], iteration_bounds = array<i64: 1>, scalar_prefetch = 0 : i64, scratch_operands = 0 : i64, tpu.core_type = #tpu.core_type<tc>, window_params = [{transform_indices = @transform_0, window_bounds = array<i64: 8, 576>}, {pipeline_mode = #tpu.pipeline_mode<synchronous>, transform_indices = @transform_1, window_bounds = array<i64: 576, 256>}, {pipeline_mode = #tpu.pipeline_mode<synchronous>, transform_indices = @transform_2, window_bounds = array<i64: 1, 256>}, {transform_indices = @transform_3, window_bounds = array<i64: 8, 128>}]} {
    %c0 = arith.constant 0 : index
    %c0_0 = arith.constant 0 : index
    %0 = vector.load %arg1[%c0, %c0_0] : memref<8x576xbf16, #tpu.memory_space<vmem>>, vector<8x576xbf16>
    %c0_1 = arith.constant 0 : index
    %c0_2 = arith.constant 0 : index
    %1 = vector.load %arg2[%c0_1, %c0_2] : memref<576x256xbf16, #tpu.memory_space<vmem>>, vector<576x256xbf16>
    %cst = arith.constant dense<0.000000e+00> : vector<8x256xf32>
    %2 = tpu.matmul %0, %1, %cst {dimension_numbers = #tpu.dot_dimension_numbers<[1], [0], [0], [1], [0, 0, 1, 1], [], []>} : vector<8x576xbf16>, vector<576x256xbf16>, vector<8x256xf32> -> vector<8x256xf32>
    %c0_3 = arith.constant 0 : index
    %c0_4 = arith.constant 0 : index
    %3 = vector.load %arg3[%c0_3, %c0_4] : memref<1x256xf32, #tpu.memory_space<vmem>>, vector<1x256xf32>
    %4 = vector.broadcast %3 : vector<1x256xf32> to vector<8x256xf32>
    %5 = arith.addf %2, %4 : vector<8x256xf32>
    %6 = vector.extract_strided_slice %5 {offsets = [0, 0], sizes = [8, 128], strides = [1, 1]} : vector<8x256xf32> to vector<8x128xf32>
    %7 = vector.extract_strided_slice %5 {offsets = [0, 128], sizes = [8, 128], strides = [1, 1]} : vector<8x256xf32> to vector<8x128xf32>
    %cst_5 = arith.constant 0.000000e+00 : f32
    %8 = vector.broadcast %cst_5 : f32 to vector<8x128xf32>
    %9 = arith.subf %8, %7 : vector<8x128xf32>
    %10 = math.exp %9 : vector<8x128xf32>
    %cst_6 = arith.constant 1.000000e+00 : f32
    %11 = vector.broadcast %cst_6 : f32 to vector<8x128xf32>
    %12 = arith.addf %11, %10 : vector<8x128xf32>
    %13 = tpu.reciprocal %12 {approx = true} : vector<8x128xf32> -> vector<8x128xf32>
    %14 = arith.mulf %6, %13 : vector<8x128xf32>
    %15 = arith.truncf %14 : vector<8x128xf32> to vector<8x128xbf16>
    %c0_7 = arith.constant 0 : index
    %c0_8 = arith.constant 0 : index
    %16 = vector.load %arg4[%c0_7, %c0_8] : memref<8x128xbf16, #tpu.memory_space<vmem>>, vector<8x128xbf16>
    tpu.vector_store %arg4[%c0_7, %c0_8], %15 {strides = array<i32>} : memref<8x128xbf16, #tpu.memory_space<vmem>>, vector<8x128xbf16>,
    return
  }
  func.func @transform_0(%arg0: i32) -> (i32, i32) {
    %c0_i32 = arith.constant 0 : i32
    %c0_i32_0 = arith.constant 0 : i32
    return %arg0, %c0_i32 : i32, i32
  }
  func.func @transform_1(%arg0: i32) -> (i32, i32) {
    %c0_i32 = arith.constant 0 : i32
    %c0_i32_0 = arith.constant 0 : i32
    %c0_i32_1 = arith.constant 0 : i32
    return %c0_i32, %c0_i32_0 : i32, i32
  }
  func.func @transform_2(%arg0: i32) -> (i32, i32) {
    %c0_i32 = arith.constant 0 : i32
    %c0_i32_0 = arith.constant 0 : i32
    %c0_i32_1 = arith.constant 0 : i32
    return %c0_i32, %c0_i32_0 : i32, i32
  }
  func.func @transform_3(%arg0: i32) -> (i32, i32) {
    %c0_i32 = arith.constant 0 : i32
    %c0_i32_0 = arith.constant 0 : i32
    return %arg0, %c0_i32 : i32, i32
  }
}

module attributes {stable_mosaic.version = 11 : i64} {
  func.func @_bn_norm_kernel(%arg0: i32, %arg1: memref<8x256xbf16, #tpu.memory_space<vmem>>, %arg2: memref<256x128xbf16, #tpu.memory_space<vmem>>, %arg3: memref<1x128xf32, #tpu.memory_space<vmem>>, %arg4: memref<1x128xf32, #tpu.memory_space<vmem>>, %arg5: memref<1x128xf32, #tpu.memory_space<vmem>>, %arg6: memref<1x128xf32, #tpu.memory_space<vmem>>, %arg7: memref<1x128xf32, #tpu.memory_space<vmem>>, %arg8: memref<8x128xbf16, #tpu.memory_space<vmem>>) attributes {dimension_semantics = [#tpu.dimension_semantics<parallel>], iteration_bounds = array<i64: 1>, scalar_prefetch = 0 : i64, scratch_operands = 0 : i64, tpu.core_type = #tpu.core_type<tc>, window_params = [{transform_indices = @transform_0, window_bounds = array<i64: 8, 256>}, {pipeline_mode = #tpu.pipeline_mode<synchronous>, transform_indices = @transform_1, window_bounds = array<i64: 256, 128>}, {pipeline_mode = #tpu.pipeline_mode<synchronous>, transform_indices = @transform_2, window_bounds = array<i64: 1, 128>}, {pipeline_mode = #tpu.pipeline_mode<synchronous>, transform_indices = @transform_3, window_bounds = array<i64: 1, 128>}, {pipeline_mode = #tpu.pipeline_mode<synchronous>, transform_indices = @transform_4, window_bounds = array<i64: 1, 128>}, {pipeline_mode = #tpu.pipeline_mode<synchronous>, transform_indices = @transform_5, window_bounds = array<i64: 1, 128>}, {pipeline_mode = #tpu.pipeline_mode<synchronous>, transform_indices = @transform_6, window_bounds = array<i64: 1, 128>}, {transform_indices = @transform_7, window_bounds = array<i64: 8, 128>}]} {
    %c0 = arith.constant 0 : index
    %c0_0 = arith.constant 0 : index
    %0 = vector.load %arg1[%c0, %c0_0] : memref<8x256xbf16, #tpu.memory_space<vmem>>, vector<8x256xbf16>
    %c0_1 = arith.constant 0 : index
    %c0_2 = arith.constant 0 : index
    %1 = vector.load %arg2[%c0_1, %c0_2] : memref<256x128xbf16, #tpu.memory_space<vmem>>, vector<256x128xbf16>
    %cst = arith.constant dense<0.000000e+00> : vector<8x128xf32>
    %2 = tpu.matmul %0, %1, %cst {dimension_numbers = #tpu.dot_dimension_numbers<[1], [0], [0], [1], [0, 0, 1, 1], [], []>} : vector<8x256xbf16>, vector<256x128xbf16>, vector<8x128xf32> -> vector<8x128xf32>
    %c0_3 = arith.constant 0 : index
    %c0_4 = arith.constant 0 : index
    %3 = vector.load %arg3[%c0_3, %c0_4] : memref<1x128xf32, #tpu.memory_space<vmem>>, vector<1x128xf32>
    %4 = vector.broadcast %3 : vector<1x128xf32> to vector<8x128xf32>
    %5 = arith.addf %2, %4 : vector<8x128xf32>
    %c0_5 = arith.constant 0 : index
    %c0_6 = arith.constant 0 : index
    %6 = vector.load %arg4[%c0_5, %c0_6] : memref<1x128xf32, #tpu.memory_space<vmem>>, vector<1x128xf32>
    %cst_7 = arith.constant 1.250000e-01 : f32
    %7 = vector.broadcast %cst_7 : f32 to vector<1x128xf32>
    %8 = arith.mulf %6, %7 : vector<1x128xf32>
    %c0_8 = arith.constant 0 : index
    %c0_9 = arith.constant 0 : index
    %9 = vector.load %arg5[%c0_8, %c0_9] : memref<1x128xf32, #tpu.memory_space<vmem>>, vector<1x128xf32>
    %cst_10 = arith.constant 1.250000e-01 : f32
    %10 = vector.broadcast %cst_10 : f32 to vector<1x128xf32>
    %11 = arith.mulf %9, %10 : vector<1x128xf32>
    %12 = arith.mulf %8, %8 : vector<1x128xf32>
    %13 = arith.subf %11, %12 : vector<1x128xf32>
    %cst_11 = arith.constant 0.000000e+00 : f32
    %14 = vector.broadcast %cst_11 : f32 to vector<1x128xf32>
    %15 = arith.maximumf %13, %14 : vector<1x128xf32>
    %cst_12 = arith.constant 9.99999974E-6 : f32
    %16 = vector.broadcast %cst_12 : f32 to vector<1x128xf32>
    %17 = arith.addf %15, %16 : vector<1x128xf32>
    %18 = math.rsqrt %17 : vector<1x128xf32>
    %c0_13 = arith.constant 0 : index
    %c0_14 = arith.constant 0 : index
    %19 = vector.load %arg6[%c0_13, %c0_14] : memref<1x128xf32, #tpu.memory_space<vmem>>, vector<1x128xf32>
    %20 = arith.mulf %18, %19 : vector<1x128xf32>
    %21 = vector.broadcast %8 : vector<1x128xf32> to vector<8x128xf32>
    %22 = arith.subf %5, %21 : vector<8x128xf32>
    %23 = vector.broadcast %20 : vector<1x128xf32> to vector<8x128xf32>
    %24 = arith.mulf %22, %23 : vector<8x128xf32>
    %c0_15 = arith.constant 0 : index
    %c0_16 = arith.constant 0 : index
    %25 = vector.load %arg7[%c0_15, %c0_16] : memref<1x128xf32, #tpu.memory_space<vmem>>, vector<1x128xf32>
    %26 = vector.broadcast %25 : vector<1x128xf32> to vector<8x128xf32>
    %27 = arith.addf %24, %26 : vector<8x128xf32>
    %28 = arith.truncf %27 : vector<8x128xf32> to vector<8x128xbf16>
    %c0_17 = arith.constant 0 : index
    %c0_18 = arith.constant 0 : index
    %29 = vector.load %arg8[%c0_17, %c0_18] : memref<8x128xbf16, #tpu.memory_space<vmem>>, vector<8x128xbf16>
    tpu.vector_store %arg8[%c0_17, %c0_18], %28 {strides = array<i32>} : memref<8x128xbf16, #tpu.memory_space<vmem>>, vector<8x128xbf16>,
    return
  }
  func.func @transform_0(%arg0: i32) -> (i32, i32) {
    %c0_i32 = arith.constant 0 : i32
    %c0_i32_0 = arith.constant 0 : i32
    return %arg0, %c0_i32 : i32, i32
  }
  func.func @transform_1(%arg0: i32) -> (i32, i32) {
    %c0_i32 = arith.constant 0 : i32
    %c0_i32_0 = arith.constant 0 : i32
    %c0_i32_1 = arith.constant 0 : i32
    return %c0_i32, %c0_i32_0 : i32, i32
  }
  func.func @transform_2(%arg0: i32) -> (i32, i32) {
    %c0_i32 = arith.constant 0 : i32
    %c0_i32_0 = arith.constant 0 : i32
    %c0_i32_1 = arith.constant 0 : i32
    return %c0_i32, %c0_i32_0 : i32, i32
  }
  func.func @transform_3(%arg0: i32) -> (i32, i32) {
    %c0_i32 = arith.constant 0 : i32
    %c0_i32_0 = arith.constant 0 : i32
    %c0_i32_1 = arith.constant 0 : i32
    return %c0_i32, %c0_i32_0 : i32, i32
  }
  func.func @transform_4(%arg0: i32) -> (i32, i32) {
    %c0_i32 = arith.constant 0 : i32
    %c0_i32_0 = arith.constant 0 : i32
    %c0_i32_1 = arith.constant 0 : i32
    return %c0_i32, %c0_i32_0 : i32, i32
  }
  func.func @transform_5(%arg0: i32) -> (i32, i32) {
    %c0_i32 = arith.constant 0 : i32
    %c0_i32_0 = arith.constant 0 : i32
    %c0_i32_1 = arith.constant 0 : i32
    return %c0_i32, %c0_i32_0 : i32, i32
  }
  func.func @transform_6(%arg0: i32) -> (i32, i32) {
    %c0_i32 = arith.constant 0 : i32
    %c0_i32_0 = arith.constant 0 : i32
    %c0_i32_1 = arith.constant 0 : i32
    return %c0_i32, %c0_i32_0 : i32, i32
  }
  func.func @transform_7(%arg0: i32) -> (i32, i32) {
    %c0_i32 = arith.constant 0 : i32
    %c0_i32_0 = arith.constant 0 : i32
    return %arg0, %c0_i32 : i32, i32
  }
}

module attributes {stable_mosaic.version = 11 : i64} {
  func.func @_conv1x1_stats_kernel(%arg0: i32, %arg1: memref<8x256xbf16, #tpu.memory_space<vmem>>, %arg2: memref<256x128xbf16, #tpu.memory_space<vmem>>, %arg3: memref<1x128xf32, #tpu.memory_space<vmem>>, %arg4: memref<1x128xf32, #tpu.memory_space<vmem>>, %arg5: memref<1x128xf32, #tpu.memory_space<vmem>>) attributes {dimension_semantics = [#tpu.dimension_semantics<arbitrary>], iteration_bounds = array<i64: 1>, scalar_prefetch = 0 : i64, scratch_operands = 0 : i64, tpu.core_type = #tpu.core_type<tc>, window_params = [{transform_indices = @transform_0, window_bounds = array<i64: 8, 256>}, {pipeline_mode = #tpu.pipeline_mode<synchronous>, transform_indices = @transform_1, window_bounds = array<i64: 256, 128>}, {pipeline_mode = #tpu.pipeline_mode<synchronous>, transform_indices = @transform_2, window_bounds = array<i64: 1, 128>}, {pipeline_mode = #tpu.pipeline_mode<synchronous>, transform_indices = @transform_3, window_bounds = array<i64: 1, 128>}, {pipeline_mode = #tpu.pipeline_mode<synchronous>, transform_indices = @transform_4, window_bounds = array<i64: 1, 128>}]} {
    %c0 = arith.constant 0 : index
    %c0_0 = arith.constant 0 : index
    %0 = vector.load %arg1[%c0, %c0_0] : memref<8x256xbf16, #tpu.memory_space<vmem>>, vector<8x256xbf16>
    %c0_1 = arith.constant 0 : index
    %c0_2 = arith.constant 0 : index
    %1 = vector.load %arg2[%c0_1, %c0_2] : memref<256x128xbf16, #tpu.memory_space<vmem>>, vector<256x128xbf16>
    %cst = arith.constant dense<0.000000e+00> : vector<8x128xf32>
    %2 = tpu.matmul %0, %1, %cst {dimension_numbers = #tpu.dot_dimension_numbers<[1], [0], [0], [1], [0, 0, 1, 1], [], []>} : vector<8x256xbf16>, vector<256x128xbf16>, vector<8x128xf32> -> vector<8x128xf32>
    %c0_3 = arith.constant 0 : index
    %c0_4 = arith.constant 0 : index
    %3 = vector.load %arg3[%c0_3, %c0_4] : memref<1x128xf32, #tpu.memory_space<vmem>>, vector<1x128xf32>
    %4 = vector.broadcast %3 : vector<1x128xf32> to vector<8x128xf32>
    %5 = arith.addf %2, %4 : vector<8x128xf32>
    %c0_i32 = arith.constant 0 : i32
    %6 = arith.cmpi eq, %arg0, %c0_i32 : i32
    %7 = arith.extui %6 : i1 to i32
    %c0_i32_5 = arith.constant 0 : i32
    %8 = arith.cmpi ne, %7, %c0_i32_5 : i32
    scf.if %8 {
      %cst_16 = arith.constant 0.000000e+00 : f32
      %20 = vector.broadcast %cst_16 : f32 to vector<1x128xf32>
      %c0_17 = arith.constant 0 : index
      %c0_18 = arith.constant 0 : index
      %21 = vector.load %arg4[%c0_17, %c0_18] : memref<1x128xf32, #tpu.memory_space<vmem>>, vector<1x128xf32>
      tpu.vector_store %arg4[%c0_17, %c0_18], %20 {strides = array<i32>} : memref<1x128xf32, #tpu.memory_space<vmem>>, vector<1x128xf32>,
      %cst_19 = arith.constant 0.000000e+00 : f32
      %22 = vector.broadcast %cst_19 : f32 to vector<1x128xf32>
      %c0_20 = arith.constant 0 : index
      %c0_21 = arith.constant 0 : index
      %23 = vector.load %arg5[%c0_20, %c0_21] : memref<1x128xf32, #tpu.memory_space<vmem>>, vector<1x128xf32>
      tpu.vector_store %arg5[%c0_20, %c0_21], %22 {strides = array<i32>} : memref<1x128xf32, #tpu.memory_space<vmem>>, vector<1x128xf32>,
    } else {
    }
    %c0_6 = arith.constant 0 : index
    %c0_7 = arith.constant 0 : index
    %9 = vector.load %arg4[%c0_6, %c0_7] : memref<1x128xf32, #tpu.memory_space<vmem>>, vector<1x128xf32>
    %cst_8 = arith.constant dense<0.000000e+00> : vector<128xf32>
    %10 = vector.multi_reduction <add>, %5, %cst_8 [0] : vector<8x128xf32> to vector<128xf32>
    %11 = vector.shape_cast %10 : vector<128xf32> to vector<1x128xf32>
    %12 = arith.addf %9, %11 : vector<1x128xf32>
    %c0_9 = arith.constant 0 : index
    %c0_10 = arith.constant 0 : index
    %13 = vector.load %arg4[%c0_9, %c0_10] : memref<1x128xf32, #tpu.memory_space<vmem>>, vector<1x128xf32>
    tpu.vector_store %arg4[%c0_9, %c0_10], %12 {strides = array<i32>} : memref<1x128xf32, #tpu.memory_space<vmem>>, vector<1x128xf32>,
    %c0_11 = arith.constant 0 : index
    %c0_12 = arith.constant 0 : index
    %14 = vector.load %arg5[%c0_11, %c0_12] : memref<1x128xf32, #tpu.memory_space<vmem>>, vector<1x128xf32>
    %15 = arith.mulf %5, %5 : vector<8x128xf32>
    %cst_13 = arith.constant dense<0.000000e+00> : vector<128xf32>
    %16 = vector.multi_reduction <add>, %15, %cst_13 [0] : vector<8x128xf32> to vector<128xf32>
    %17 = vector.shape_cast %16 : vector<128xf32> to vector<1x128xf32>
    %18 = arith.addf %14, %17 : vector<1x128xf32>
    %c0_14 = arith.constant 0 : index
    %c0_15 = arith.constant 0 : index
    %19 = vector.load %arg5[%c0_14, %c0_15] : memref<1x128xf32, #tpu.memory_space<vmem>>, vector<1x128xf32>
    tpu.vector_store %arg5[%c0_14, %c0_15], %18 {strides = array<i32>} : memref<1x128xf32, #tpu.memory_space<vmem>>, vector<1x128xf32>,
    return
  }
  func.func @transform_0(%arg0: i32) -> (i32, i32) {
    %c0_i32 = arith.constant 0 : i32
    %c0_i32_0 = arith.constant 0 : i32
    return %arg0, %c0_i32 : i32, i32
  }
  func.func @transform_1(%arg0: i32) -> (i32, i32) {
    %c0_i32 = arith.constant 0 : i32
    %c0_i32_0 = arith.constant 0 : i32
    %c0_i32_1 = arith.constant 0 : i32
    return %c0_i32, %c0_i32_0 : i32, i32
  }
  func.func @transform_2(%arg0: i32) -> (i32, i32) {
    %c0_i32 = arith.constant 0 : i32
    %c0_i32_0 = arith.constant 0 : i32
    %c0_i32_1 = arith.constant 0 : i32
    return %c0_i32, %c0_i32_0 : i32, i32
  }
  func.func @transform_3(%arg0: i32) -> (i32, i32) {
    %c0_i32 = arith.constant 0 : i32
    %c0_i32_0 = arith.constant 0 : i32
    %c0_i32_1 = arith.constant 0 : i32
    return %c0_i32, %c0_i32_0 : i32, i32
  }
  func.func @transform_4(%arg0: i32) -> (i32, i32) {
    %c0_i32 = arith.constant 0 : i32
    %c0_i32_0 = arith.constant 0 : i32
    %c0_i32_1 = arith.constant 0 : i32
    return %c0_i32, %c0_i32_0 : i32, i32
  }
}

module attributes {stable_mosaic.version = 11 : i64} {
  func.func @_conv1x1_stats_kernel(%arg0: i32, %arg1: memref<32x128xbf16, #tpu.memory_space<vmem>>, %arg2: memref<32x128xbf16, #tpu.memory_space<vmem>>, %arg3: memref<128x64xbf16, #tpu.memory_space<vmem>>, %arg4: memref<128x64xbf16, #tpu.memory_space<vmem>>, %arg5: memref<1x64xf32, #tpu.memory_space<vmem>>, %arg6: memref<1x64xf32, #tpu.memory_space<vmem>>, %arg7: memref<1x64xf32, #tpu.memory_space<vmem>>) attributes {dimension_semantics = [#tpu.dimension_semantics<arbitrary>], iteration_bounds = array<i64: 1>, scalar_prefetch = 0 : i64, scratch_operands = 0 : i64, tpu.core_type = #tpu.core_type<tc>, window_params = [{transform_indices = @transform_0, window_bounds = array<i64: 32, 128>}, {transform_indices = @transform_1, window_bounds = array<i64: 32, 128>}, {pipeline_mode = #tpu.pipeline_mode<synchronous>, transform_indices = @transform_2, window_bounds = array<i64: 128, 64>}, {pipeline_mode = #tpu.pipeline_mode<synchronous>, transform_indices = @transform_3, window_bounds = array<i64: 128, 64>}, {pipeline_mode = #tpu.pipeline_mode<synchronous>, transform_indices = @transform_4, window_bounds = array<i64: 1, 64>}, {pipeline_mode = #tpu.pipeline_mode<synchronous>, transform_indices = @transform_5, window_bounds = array<i64: 1, 64>}, {pipeline_mode = #tpu.pipeline_mode<synchronous>, transform_indices = @transform_6, window_bounds = array<i64: 1, 64>}]} {
    %c0 = arith.constant 0 : index
    %c0_0 = arith.constant 0 : index
    %0 = vector.load %arg1[%c0, %c0_0] : memref<32x128xbf16, #tpu.memory_space<vmem>>, vector<32x128xbf16>
    %c0_1 = arith.constant 0 : index
    %c0_2 = arith.constant 0 : index
    %1 = vector.load %arg3[%c0_1, %c0_2] : memref<128x64xbf16, #tpu.memory_space<vmem>>, vector<128x64xbf16>
    %cst = arith.constant dense<0.000000e+00> : vector<32x64xf32>
    %2 = tpu.matmul %0, %1, %cst {dimension_numbers = #tpu.dot_dimension_numbers<[1], [0], [0], [1], [0, 0, 1, 1], [], []>} : vector<32x128xbf16>, vector<128x64xbf16>, vector<32x64xf32> -> vector<32x64xf32>
    %c0_3 = arith.constant 0 : index
    %c0_4 = arith.constant 0 : index
    %3 = vector.load %arg2[%c0_3, %c0_4] : memref<32x128xbf16, #tpu.memory_space<vmem>>, vector<32x128xbf16>
    %c0_5 = arith.constant 0 : index
    %c0_6 = arith.constant 0 : index
    %4 = vector.load %arg4[%c0_5, %c0_6] : memref<128x64xbf16, #tpu.memory_space<vmem>>, vector<128x64xbf16>
    %cst_7 = arith.constant dense<0.000000e+00> : vector<32x64xf32>
    %5 = tpu.matmul %3, %4, %cst_7 {dimension_numbers = #tpu.dot_dimension_numbers<[1], [0], [0], [1], [0, 0, 1, 1], [], []>} : vector<32x128xbf16>, vector<128x64xbf16>, vector<32x64xf32> -> vector<32x64xf32>
    %6 = arith.addf %2, %5 : vector<32x64xf32>
    %c0_8 = arith.constant 0 : index
    %c0_9 = arith.constant 0 : index
    %7 = vector.load %arg5[%c0_8, %c0_9] : memref<1x64xf32, #tpu.memory_space<vmem>>, vector<1x64xf32>
    %8 = vector.broadcast %7 : vector<1x64xf32> to vector<32x64xf32>
    %9 = arith.addf %6, %8 : vector<32x64xf32>
    %c0_i32 = arith.constant 0 : i32
    %10 = arith.cmpi eq, %arg0, %c0_i32 : i32
    %11 = arith.extui %10 : i1 to i32
    %c0_i32_10 = arith.constant 0 : i32
    %12 = arith.cmpi ne, %11, %c0_i32_10 : i32
    scf.if %12 {
      %cst_21 = arith.constant 0.000000e+00 : f32
      %24 = vector.broadcast %cst_21 : f32 to vector<1x64xf32>
      %c0_22 = arith.constant 0 : index
      %c0_23 = arith.constant 0 : index
      %25 = vector.load %arg6[%c0_22, %c0_23] : memref<1x64xf32, #tpu.memory_space<vmem>>, vector<1x64xf32>
      tpu.vector_store %arg6[%c0_22, %c0_23], %24 {strides = array<i32>} : memref<1x64xf32, #tpu.memory_space<vmem>>, vector<1x64xf32>,
      %cst_24 = arith.constant 0.000000e+00 : f32
      %26 = vector.broadcast %cst_24 : f32 to vector<1x64xf32>
      %c0_25 = arith.constant 0 : index
      %c0_26 = arith.constant 0 : index
      %27 = vector.load %arg7[%c0_25, %c0_26] : memref<1x64xf32, #tpu.memory_space<vmem>>, vector<1x64xf32>
      tpu.vector_store %arg7[%c0_25, %c0_26], %26 {strides = array<i32>} : memref<1x64xf32, #tpu.memory_space<vmem>>, vector<1x64xf32>,
    } else {
    }
    %c0_11 = arith.constant 0 : index
    %c0_12 = arith.constant 0 : index
    %13 = vector.load %arg6[%c0_11, %c0_12] : memref<1x64xf32, #tpu.memory_space<vmem>>, vector<1x64xf32>
    %cst_13 = arith.constant dense<0.000000e+00> : vector<64xf32>
    %14 = vector.multi_reduction <add>, %9, %cst_13 [0] : vector<32x64xf32> to vector<64xf32>
    %15 = vector.shape_cast %14 : vector<64xf32> to vector<1x64xf32>
    %16 = arith.addf %13, %15 : vector<1x64xf32>
    %c0_14 = arith.constant 0 : index
    %c0_15 = arith.constant 0 : index
    %17 = vector.load %arg6[%c0_14, %c0_15] : memref<1x64xf32, #tpu.memory_space<vmem>>, vector<1x64xf32>
    tpu.vector_store %arg6[%c0_14, %c0_15], %16 {strides = array<i32>} : memref<1x64xf32, #tpu.memory_space<vmem>>, vector<1x64xf32>,
    %c0_16 = arith.constant 0 : index
    %c0_17 = arith.constant 0 : index
    %18 = vector.load %arg7[%c0_16, %c0_17] : memref<1x64xf32, #tpu.memory_space<vmem>>, vector<1x64xf32>
    %19 = arith.mulf %9, %9 : vector<32x64xf32>
    %cst_18 = arith.constant dense<0.000000e+00> : vector<64xf32>
    %20 = vector.multi_reduction <add>, %19, %cst_18 [0] : vector<32x64xf32> to vector<64xf32>
    %21 = vector.shape_cast %20 : vector<64xf32> to vector<1x64xf32>
    %22 = arith.addf %18, %21 : vector<1x64xf32>
    %c0_19 = arith.constant 0 : index
    %c0_20 = arith.constant 0 : index
    %23 = vector.load %arg7[%c0_19, %c0_20] : memref<1x64xf32, #tpu.memory_space<vmem>>, vector<1x64xf32>
    tpu.vector_store %arg7[%c0_19, %c0_20], %22 {strides = array<i32>} : memref<1x64xf32, #tpu.memory_space<vmem>>, vector<1x64xf32>,
    return
  }
  func.func @transform_0(%arg0: i32) -> (i32, i32) {
    %c0_i32 = arith.constant 0 : i32
    %c0_i32_0 = arith.constant 0 : i32
    return %arg0, %c0_i32 : i32, i32
  }
  func.func @transform_1(%arg0: i32) -> (i32, i32) {
    %c0_i32 = arith.constant 0 : i32
    %c0_i32_0 = arith.constant 0 : i32
    return %arg0, %c0_i32 : i32, i32
  }
  func.func @transform_2(%arg0: i32) -> (i32, i32) {
    %c0_i32 = arith.constant 0 : i32
    %c0_i32_0 = arith.constant 0 : i32
    %c0_i32_1 = arith.constant 0 : i32
    return %c0_i32, %c0_i32_0 : i32, i32
  }
  func.func @transform_3(%arg0: i32) -> (i32, i32) {
    %c0_i32 = arith.constant 0 : i32
    %c0_i32_0 = arith.constant 0 : i32
    %c0_i32_1 = arith.constant 0 : i32
    return %c0_i32, %c0_i32_0 : i32, i32
  }
  func.func @transform_4(%arg0: i32) -> (i32, i32) {
    %c0_i32 = arith.constant 0 : i32
    %c0_i32_0 = arith.constant 0 : i32
    %c0_i32_1 = arith.constant 0 : i32
    return %c0_i32, %c0_i32_0 : i32, i32
  }
  func.func @transform_5(%arg0: i32) -> (i32, i32) {
    %c0_i32 = arith.constant 0 : i32
    %c0_i32_0 = arith.constant 0 : i32
    %c0_i32_1 = arith.constant 0 : i32
    return %c0_i32, %c0_i32_0 : i32, i32
  }
  func.func @transform_6(%arg0: i32) -> (i32, i32) {
    %c0_i32 = arith.constant 0 : i32
    %c0_i32_0 = arith.constant 0 : i32
    %c0_i32_1 = arith.constant 0 : i32
    return %c0_i32, %c0_i32_0 : i32, i32
  }
}

module attributes {stable_mosaic.version = 11 : i64} {
  func.func @_conv1x1_stats_kernel(%arg0: i32, %arg1: memref<128x64xbf16, #tpu.memory_space<vmem>>, %arg2: memref<128x64xbf16, #tpu.memory_space<vmem>>, %arg3: memref<64x32xbf16, #tpu.memory_space<vmem>>, %arg4: memref<64x32xbf16, #tpu.memory_space<vmem>>, %arg5: memref<1x32xf32, #tpu.memory_space<vmem>>, %arg6: memref<1x32xf32, #tpu.memory_space<vmem>>, %arg7: memref<1x32xf32, #tpu.memory_space<vmem>>) attributes {dimension_semantics = [#tpu.dimension_semantics<arbitrary>], iteration_bounds = array<i64: 1>, scalar_prefetch = 0 : i64, scratch_operands = 0 : i64, tpu.core_type = #tpu.core_type<tc>, window_params = [{transform_indices = @transform_0, window_bounds = array<i64: 128, 64>}, {transform_indices = @transform_1, window_bounds = array<i64: 128, 64>}, {pipeline_mode = #tpu.pipeline_mode<synchronous>, transform_indices = @transform_2, window_bounds = array<i64: 64, 32>}, {pipeline_mode = #tpu.pipeline_mode<synchronous>, transform_indices = @transform_3, window_bounds = array<i64: 64, 32>}, {pipeline_mode = #tpu.pipeline_mode<synchronous>, transform_indices = @transform_4, window_bounds = array<i64: 1, 32>}, {pipeline_mode = #tpu.pipeline_mode<synchronous>, transform_indices = @transform_5, window_bounds = array<i64: 1, 32>}, {pipeline_mode = #tpu.pipeline_mode<synchronous>, transform_indices = @transform_6, window_bounds = array<i64: 1, 32>}]} {
    %c0 = arith.constant 0 : index
    %c0_0 = arith.constant 0 : index
    %0 = vector.load %arg1[%c0, %c0_0] : memref<128x64xbf16, #tpu.memory_space<vmem>>, vector<128x64xbf16>
    %c0_1 = arith.constant 0 : index
    %c0_2 = arith.constant 0 : index
    %1 = vector.load %arg3[%c0_1, %c0_2] : memref<64x32xbf16, #tpu.memory_space<vmem>>, vector<64x32xbf16>
    %cst = arith.constant dense<0.000000e+00> : vector<128x32xf32>
    %2 = tpu.matmul %0, %1, %cst {dimension_numbers = #tpu.dot_dimension_numbers<[1], [0], [0], [1], [0, 0, 1, 1], [], []>} : vector<128x64xbf16>, vector<64x32xbf16>, vector<128x32xf32> -> vector<128x32xf32>
    %c0_3 = arith.constant 0 : index
    %c0_4 = arith.constant 0 : index
    %3 = vector.load %arg2[%c0_3, %c0_4] : memref<128x64xbf16, #tpu.memory_space<vmem>>, vector<128x64xbf16>
    %c0_5 = arith.constant 0 : index
    %c0_6 = arith.constant 0 : index
    %4 = vector.load %arg4[%c0_5, %c0_6] : memref<64x32xbf16, #tpu.memory_space<vmem>>, vector<64x32xbf16>
    %cst_7 = arith.constant dense<0.000000e+00> : vector<128x32xf32>
    %5 = tpu.matmul %3, %4, %cst_7 {dimension_numbers = #tpu.dot_dimension_numbers<[1], [0], [0], [1], [0, 0, 1, 1], [], []>} : vector<128x64xbf16>, vector<64x32xbf16>, vector<128x32xf32> -> vector<128x32xf32>
    %6 = arith.addf %2, %5 : vector<128x32xf32>
    %c0_8 = arith.constant 0 : index
    %c0_9 = arith.constant 0 : index
    %7 = vector.load %arg5[%c0_8, %c0_9] : memref<1x32xf32, #tpu.memory_space<vmem>>, vector<1x32xf32>
    %8 = vector.broadcast %7 : vector<1x32xf32> to vector<128x32xf32>
    %9 = arith.addf %6, %8 : vector<128x32xf32>
    %c0_i32 = arith.constant 0 : i32
    %10 = arith.cmpi eq, %arg0, %c0_i32 : i32
    %11 = arith.extui %10 : i1 to i32
    %c0_i32_10 = arith.constant 0 : i32
    %12 = arith.cmpi ne, %11, %c0_i32_10 : i32
    scf.if %12 {
      %cst_21 = arith.constant 0.000000e+00 : f32
      %24 = vector.broadcast %cst_21 : f32 to vector<1x32xf32>
      %c0_22 = arith.constant 0 : index
      %c0_23 = arith.constant 0 : index
      %25 = vector.load %arg6[%c0_22, %c0_23] : memref<1x32xf32, #tpu.memory_space<vmem>>, vector<1x32xf32>
      tpu.vector_store %arg6[%c0_22, %c0_23], %24 {strides = array<i32>} : memref<1x32xf32, #tpu.memory_space<vmem>>, vector<1x32xf32>,
      %cst_24 = arith.constant 0.000000e+00 : f32
      %26 = vector.broadcast %cst_24 : f32 to vector<1x32xf32>
      %c0_25 = arith.constant 0 : index
      %c0_26 = arith.constant 0 : index
      %27 = vector.load %arg7[%c0_25, %c0_26] : memref<1x32xf32, #tpu.memory_space<vmem>>, vector<1x32xf32>
      tpu.vector_store %arg7[%c0_25, %c0_26], %26 {strides = array<i32>} : memref<1x32xf32, #tpu.memory_space<vmem>>, vector<1x32xf32>,
    } else {
    }
    %c0_11 = arith.constant 0 : index
    %c0_12 = arith.constant 0 : index
    %13 = vector.load %arg6[%c0_11, %c0_12] : memref<1x32xf32, #tpu.memory_space<vmem>>, vector<1x32xf32>
    %cst_13 = arith.constant dense<0.000000e+00> : vector<32xf32>
    %14 = vector.multi_reduction <add>, %9, %cst_13 [0] : vector<128x32xf32> to vector<32xf32>
    %15 = vector.shape_cast %14 : vector<32xf32> to vector<1x32xf32>
    %16 = arith.addf %13, %15 : vector<1x32xf32>
    %c0_14 = arith.constant 0 : index
    %c0_15 = arith.constant 0 : index
    %17 = vector.load %arg6[%c0_14, %c0_15] : memref<1x32xf32, #tpu.memory_space<vmem>>, vector<1x32xf32>
    tpu.vector_store %arg6[%c0_14, %c0_15], %16 {strides = array<i32>} : memref<1x32xf32, #tpu.memory_space<vmem>>, vector<1x32xf32>,
    %c0_16 = arith.constant 0 : index
    %c0_17 = arith.constant 0 : index
    %18 = vector.load %arg7[%c0_16, %c0_17] : memref<1x32xf32, #tpu.memory_space<vmem>>, vector<1x32xf32>
    %19 = arith.mulf %9, %9 : vector<128x32xf32>
    %cst_18 = arith.constant dense<0.000000e+00> : vector<32xf32>
    %20 = vector.multi_reduction <add>, %19, %cst_18 [0] : vector<128x32xf32> to vector<32xf32>
    %21 = vector.shape_cast %20 : vector<32xf32> to vector<1x32xf32>
    %22 = arith.addf %18, %21 : vector<1x32xf32>
    %c0_19 = arith.constant 0 : index
    %c0_20 = arith.constant 0 : index
    %23 = vector.load %arg7[%c0_19, %c0_20] : memref<1x32xf32, #tpu.memory_space<vmem>>, vector<1x32xf32>
    tpu.vector_store %arg7[%c0_19, %c0_20], %22 {strides = array<i32>} : memref<1x32xf32, #tpu.memory_space<vmem>>, vector<1x32xf32>,
    return
  }
  func.func @transform_0(%arg0: i32) -> (i32, i32) {
    %c0_i32 = arith.constant 0 : i32
    %c0_i32_0 = arith.constant 0 : i32
    return %arg0, %c0_i32 : i32, i32
  }
  func.func @transform_1(%arg0: i32) -> (i32, i32) {
    %c0_i32 = arith.constant 0 : i32
    %c0_i32_0 = arith.constant 0 : i32
    return %arg0, %c0_i32 : i32, i32
  }
  func.func @transform_2(%arg0: i32) -> (i32, i32) {
    %c0_i32 = arith.constant 0 : i32
    %c0_i32_0 = arith.constant 0 : i32
    %c0_i32_1 = arith.constant 0 : i32
    return %c0_i32, %c0_i32_0 : i32, i32
  }
  func.func @transform_3(%arg0: i32) -> (i32, i32) {
    %c0_i32 = arith.constant 0 : i32
    %c0_i32_0 = arith.constant 0 : i32
    %c0_i32_1 = arith.constant 0 : i32
    return %c0_i32, %c0_i32_0 : i32, i32
  }
  func.func @transform_4(%arg0: i32) -> (i32, i32) {
    %c0_i32 = arith.constant 0 : i32
    %c0_i32_0 = arith.constant 0 : i32
    %c0_i32_1 = arith.constant 0 : i32
    return %c0_i32, %c0_i32_0 : i32, i32
  }
  func.func @transform_5(%arg0: i32) -> (i32, i32) {
    %c0_i32 = arith.constant 0 : i32
    %c0_i32_0 = arith.constant 0 : i32
    %c0_i32_1 = arith.constant 0 : i32
    return %c0_i32, %c0_i32_0 : i32, i32
  }
  func.func @transform_6(%arg0: i32) -> (i32, i32) {
    %c0_i32 = arith.constant 0 : i32
    %c0_i32_0 = arith.constant 0 : i32
    %c0_i32_1 = arith.constant 0 : i32
    return %c0_i32, %c0_i32_0 : i32, i32
  }
}

module attributes {stable_mosaic.version = 11 : i64} {
  func.func @_bn_norm_kernel(%arg0: i32, %arg1: memref<32x128xbf16, #tpu.memory_space<vmem>>, %arg2: memref<32x128xbf16, #tpu.memory_space<vmem>>, %arg3: memref<128x64xbf16, #tpu.memory_space<vmem>>, %arg4: memref<128x64xbf16, #tpu.memory_space<vmem>>, %arg5: memref<1x64xf32, #tpu.memory_space<vmem>>, %arg6: memref<1x64xf32, #tpu.memory_space<vmem>>, %arg7: memref<1x64xf32, #tpu.memory_space<vmem>>, %arg8: memref<1x64xf32, #tpu.memory_space<vmem>>, %arg9: memref<1x64xf32, #tpu.memory_space<vmem>>, %arg10: memref<32x64xbf16, #tpu.memory_space<vmem>>) attributes {dimension_semantics = [#tpu.dimension_semantics<parallel>], iteration_bounds = array<i64: 1>, scalar_prefetch = 0 : i64, scratch_operands = 0 : i64, tpu.core_type = #tpu.core_type<tc>, window_params = [{transform_indices = @transform_0, window_bounds = array<i64: 32, 128>}, {transform_indices = @transform_1, window_bounds = array<i64: 32, 128>}, {pipeline_mode = #tpu.pipeline_mode<synchronous>, transform_indices = @transform_2, window_bounds = array<i64: 128, 64>}, {pipeline_mode = #tpu.pipeline_mode<synchronous>, transform_indices = @transform_3, window_bounds = array<i64: 128, 64>}, {pipeline_mode = #tpu.pipeline_mode<synchronous>, transform_indices = @transform_4, window_bounds = array<i64: 1, 64>}, {pipeline_mode = #tpu.pipeline_mode<synchronous>, transform_indices = @transform_5, window_bounds = array<i64: 1, 64>}, {pipeline_mode = #tpu.pipeline_mode<synchronous>, transform_indices = @transform_6, window_bounds = array<i64: 1, 64>}, {pipeline_mode = #tpu.pipeline_mode<synchronous>, transform_indices = @transform_7, window_bounds = array<i64: 1, 64>}, {pipeline_mode = #tpu.pipeline_mode<synchronous>, transform_indices = @transform_8, window_bounds = array<i64: 1, 64>}, {transform_indices = @transform_9, window_bounds = array<i64: 32, 64>}]} {
    %c0 = arith.constant 0 : index
    %c0_0 = arith.constant 0 : index
    %0 = vector.load %arg1[%c0, %c0_0] : memref<32x128xbf16, #tpu.memory_space<vmem>>, vector<32x128xbf16>
    %c0_1 = arith.constant 0 : index
    %c0_2 = arith.constant 0 : index
    %1 = vector.load %arg3[%c0_1, %c0_2] : memref<128x64xbf16, #tpu.memory_space<vmem>>, vector<128x64xbf16>
    %cst = arith.constant dense<0.000000e+00> : vector<32x64xf32>
    %2 = tpu.matmul %0, %1, %cst {dimension_numbers = #tpu.dot_dimension_numbers<[1], [0], [0], [1], [0, 0, 1, 1], [], []>} : vector<32x128xbf16>, vector<128x64xbf16>, vector<32x64xf32> -> vector<32x64xf32>
    %c0_3 = arith.constant 0 : index
    %c0_4 = arith.constant 0 : index
    %3 = vector.load %arg2[%c0_3, %c0_4] : memref<32x128xbf16, #tpu.memory_space<vmem>>, vector<32x128xbf16>
    %c0_5 = arith.constant 0 : index
    %c0_6 = arith.constant 0 : index
    %4 = vector.load %arg4[%c0_5, %c0_6] : memref<128x64xbf16, #tpu.memory_space<vmem>>, vector<128x64xbf16>
    %cst_7 = arith.constant dense<0.000000e+00> : vector<32x64xf32>
    %5 = tpu.matmul %3, %4, %cst_7 {dimension_numbers = #tpu.dot_dimension_numbers<[1], [0], [0], [1], [0, 0, 1, 1], [], []>} : vector<32x128xbf16>, vector<128x64xbf16>, vector<32x64xf32> -> vector<32x64xf32>
    %6 = arith.addf %2, %5 : vector<32x64xf32>
    %c0_8 = arith.constant 0 : index
    %c0_9 = arith.constant 0 : index
    %7 = vector.load %arg5[%c0_8, %c0_9] : memref<1x64xf32, #tpu.memory_space<vmem>>, vector<1x64xf32>
    %8 = vector.broadcast %7 : vector<1x64xf32> to vector<32x64xf32>
    %9 = arith.addf %6, %8 : vector<32x64xf32>
    %c0_10 = arith.constant 0 : index
    %c0_11 = arith.constant 0 : index
    %10 = vector.load %arg6[%c0_10, %c0_11] : memref<1x64xf32, #tpu.memory_space<vmem>>, vector<1x64xf32>
    %cst_12 = arith.constant 3.125000e-02 : f32
    %11 = vector.broadcast %cst_12 : f32 to vector<1x64xf32>
    %12 = arith.mulf %10, %11 : vector<1x64xf32>
    %c0_13 = arith.constant 0 : index
    %c0_14 = arith.constant 0 : index
    %13 = vector.load %arg7[%c0_13, %c0_14] : memref<1x64xf32, #tpu.memory_space<vmem>>, vector<1x64xf32>
    %cst_15 = arith.constant 3.125000e-02 : f32
    %14 = vector.broadcast %cst_15 : f32 to vector<1x64xf32>
    %15 = arith.mulf %13, %14 : vector<1x64xf32>
    %16 = arith.mulf %12, %12 : vector<1x64xf32>
    %17 = arith.subf %15, %16 : vector<1x64xf32>
    %cst_16 = arith.constant 0.000000e+00 : f32
    %18 = vector.broadcast %cst_16 : f32 to vector<1x64xf32>
    %19 = arith.maximumf %17, %18 : vector<1x64xf32>
    %cst_17 = arith.constant 9.99999974E-6 : f32
    %20 = vector.broadcast %cst_17 : f32 to vector<1x64xf32>
    %21 = arith.addf %19, %20 : vector<1x64xf32>
    %22 = math.rsqrt %21 : vector<1x64xf32>
    %c0_18 = arith.constant 0 : index
    %c0_19 = arith.constant 0 : index
    %23 = vector.load %arg8[%c0_18, %c0_19] : memref<1x64xf32, #tpu.memory_space<vmem>>, vector<1x64xf32>
    %24 = arith.mulf %22, %23 : vector<1x64xf32>
    %25 = vector.broadcast %12 : vector<1x64xf32> to vector<32x64xf32>
    %26 = arith.subf %9, %25 : vector<32x64xf32>
    %27 = vector.broadcast %24 : vector<1x64xf32> to vector<32x64xf32>
    %28 = arith.mulf %26, %27 : vector<32x64xf32>
    %c0_20 = arith.constant 0 : index
    %c0_21 = arith.constant 0 : index
    %29 = vector.load %arg9[%c0_20, %c0_21] : memref<1x64xf32, #tpu.memory_space<vmem>>, vector<1x64xf32>
    %30 = vector.broadcast %29 : vector<1x64xf32> to vector<32x64xf32>
    %31 = arith.addf %28, %30 : vector<32x64xf32>
    %32 = arith.truncf %31 : vector<32x64xf32> to vector<32x64xbf16>
    %c0_22 = arith.constant 0 : index
    %c0_23 = arith.constant 0 : index
    %33 = vector.load %arg10[%c0_22, %c0_23] : memref<32x64xbf16, #tpu.memory_space<vmem>>, vector<32x64xbf16>
    tpu.vector_store %arg10[%c0_22, %c0_23], %32 {strides = array<i32>} : memref<32x64xbf16, #tpu.memory_space<vmem>>, vector<32x64xbf16>,
    return
  }
  func.func @transform_0(%arg0: i32) -> (i32, i32) {
    %c0_i32 = arith.constant 0 : i32
    %c0_i32_0 = arith.constant 0 : i32
    return %arg0, %c0_i32 : i32, i32
  }
  func.func @transform_1(%arg0: i32) -> (i32, i32) {
    %c0_i32 = arith.constant 0 : i32
    %c0_i32_0 = arith.constant 0 : i32
    return %arg0, %c0_i32 : i32, i32
  }
  func.func @transform_2(%arg0: i32) -> (i32, i32) {
    %c0_i32 = arith.constant 0 : i32
    %c0_i32_0 = arith.constant 0 : i32
    %c0_i32_1 = arith.constant 0 : i32
    return %c0_i32, %c0_i32_0 : i32, i32
  }
  func.func @transform_3(%arg0: i32) -> (i32, i32) {
    %c0_i32 = arith.constant 0 : i32
    %c0_i32_0 = arith.constant 0 : i32
    %c0_i32_1 = arith.constant 0 : i32
    return %c0_i32, %c0_i32_0 : i32, i32
  }
  func.func @transform_4(%arg0: i32) -> (i32, i32) {
    %c0_i32 = arith.constant 0 : i32
    %c0_i32_0 = arith.constant 0 : i32
    %c0_i32_1 = arith.constant 0 : i32
    return %c0_i32, %c0_i32_0 : i32, i32
  }
  func.func @transform_5(%arg0: i32) -> (i32, i32) {
    %c0_i32 = arith.constant 0 : i32
    %c0_i32_0 = arith.constant 0 : i32
    %c0_i32_1 = arith.constant 0 : i32
    return %c0_i32, %c0_i32_0 : i32, i32
  }
  func.func @transform_6(%arg0: i32) -> (i32, i32) {
    %c0_i32 = arith.constant 0 : i32
    %c0_i32_0 = arith.constant 0 : i32
    %c0_i32_1 = arith.constant 0 : i32
    return %c0_i32, %c0_i32_0 : i32, i32
  }
  func.func @transform_7(%arg0: i32) -> (i32, i32) {
    %c0_i32 = arith.constant 0 : i32
    %c0_i32_0 = arith.constant 0 : i32
    %c0_i32_1 = arith.constant 0 : i32
    return %c0_i32, %c0_i32_0 : i32, i32
  }
  func.func @transform_8(%arg0: i32) -> (i32, i32) {
    %c0_i32 = arith.constant 0 : i32
    %c0_i32_0 = arith.constant 0 : i32
    %c0_i32_1 = arith.constant 0 : i32
    return %c0_i32, %c0_i32_0 : i32, i32
  }
  func.func @transform_9(%arg0: i32) -> (i32, i32) {
    %c0_i32 = arith.constant 0 : i32
    %c0_i32_0 = arith.constant 0 : i32
    return %arg0, %c0_i32 : i32, i32
  }
}

module attributes {stable_mosaic.version = 11 : i64} {
  func.func @_bn_norm_kernel(%arg0: i32, %arg1: memref<128x64xbf16, #tpu.memory_space<vmem>>, %arg2: memref<128x64xbf16, #tpu.memory_space<vmem>>, %arg3: memref<64x32xbf16, #tpu.memory_space<vmem>>, %arg4: memref<64x32xbf16, #tpu.memory_space<vmem>>, %arg5: memref<1x32xf32, #tpu.memory_space<vmem>>, %arg6: memref<1x32xf32, #tpu.memory_space<vmem>>, %arg7: memref<1x32xf32, #tpu.memory_space<vmem>>, %arg8: memref<1x32xf32, #tpu.memory_space<vmem>>, %arg9: memref<1x32xf32, #tpu.memory_space<vmem>>, %arg10: memref<128x32xbf16, #tpu.memory_space<vmem>>) attributes {dimension_semantics = [#tpu.dimension_semantics<parallel>], iteration_bounds = array<i64: 1>, scalar_prefetch = 0 : i64, scratch_operands = 0 : i64, tpu.core_type = #tpu.core_type<tc>, window_params = [{transform_indices = @transform_0, window_bounds = array<i64: 128, 64>}, {transform_indices = @transform_1, window_bounds = array<i64: 128, 64>}, {pipeline_mode = #tpu.pipeline_mode<synchronous>, transform_indices = @transform_2, window_bounds = array<i64: 64, 32>}, {pipeline_mode = #tpu.pipeline_mode<synchronous>, transform_indices = @transform_3, window_bounds = array<i64: 64, 32>}, {pipeline_mode = #tpu.pipeline_mode<synchronous>, transform_indices = @transform_4, window_bounds = array<i64: 1, 32>}, {pipeline_mode = #tpu.pipeline_mode<synchronous>, transform_indices = @transform_5, window_bounds = array<i64: 1, 32>}, {pipeline_mode = #tpu.pipeline_mode<synchronous>, transform_indices = @transform_6, window_bounds = array<i64: 1, 32>}, {pipeline_mode = #tpu.pipeline_mode<synchronous>, transform_indices = @transform_7, window_bounds = array<i64: 1, 32>}, {pipeline_mode = #tpu.pipeline_mode<synchronous>, transform_indices = @transform_8, window_bounds = array<i64: 1, 32>}, {transform_indices = @transform_9, window_bounds = array<i64: 128, 32>}]} {
    %c0 = arith.constant 0 : index
    %c0_0 = arith.constant 0 : index
    %0 = vector.load %arg1[%c0, %c0_0] : memref<128x64xbf16, #tpu.memory_space<vmem>>, vector<128x64xbf16>
    %c0_1 = arith.constant 0 : index
    %c0_2 = arith.constant 0 : index
    %1 = vector.load %arg3[%c0_1, %c0_2] : memref<64x32xbf16, #tpu.memory_space<vmem>>, vector<64x32xbf16>
    %cst = arith.constant dense<0.000000e+00> : vector<128x32xf32>
    %2 = tpu.matmul %0, %1, %cst {dimension_numbers = #tpu.dot_dimension_numbers<[1], [0], [0], [1], [0, 0, 1, 1], [], []>} : vector<128x64xbf16>, vector<64x32xbf16>, vector<128x32xf32> -> vector<128x32xf32>
    %c0_3 = arith.constant 0 : index
    %c0_4 = arith.constant 0 : index
    %3 = vector.load %arg2[%c0_3, %c0_4] : memref<128x64xbf16, #tpu.memory_space<vmem>>, vector<128x64xbf16>
    %c0_5 = arith.constant 0 : index
    %c0_6 = arith.constant 0 : index
    %4 = vector.load %arg4[%c0_5, %c0_6] : memref<64x32xbf16, #tpu.memory_space<vmem>>, vector<64x32xbf16>
    %cst_7 = arith.constant dense<0.000000e+00> : vector<128x32xf32>
    %5 = tpu.matmul %3, %4, %cst_7 {dimension_numbers = #tpu.dot_dimension_numbers<[1], [0], [0], [1], [0, 0, 1, 1], [], []>} : vector<128x64xbf16>, vector<64x32xbf16>, vector<128x32xf32> -> vector<128x32xf32>
    %6 = arith.addf %2, %5 : vector<128x32xf32>
    %c0_8 = arith.constant 0 : index
    %c0_9 = arith.constant 0 : index
    %7 = vector.load %arg5[%c0_8, %c0_9] : memref<1x32xf32, #tpu.memory_space<vmem>>, vector<1x32xf32>
    %8 = vector.broadcast %7 : vector<1x32xf32> to vector<128x32xf32>
    %9 = arith.addf %6, %8 : vector<128x32xf32>
    %c0_10 = arith.constant 0 : index
    %c0_11 = arith.constant 0 : index
    %10 = vector.load %arg6[%c0_10, %c0_11] : memref<1x32xf32, #tpu.memory_space<vmem>>, vector<1x32xf32>
    %cst_12 = arith.constant 7.812500e-03 : f32
    %11 = vector.broadcast %cst_12 : f32 to vector<1x32xf32>
    %12 = arith.mulf %10, %11 : vector<1x32xf32>
    %c0_13 = arith.constant 0 : index
    %c0_14 = arith.constant 0 : index
    %13 = vector.load %arg7[%c0_13, %c0_14] : memref<1x32xf32, #tpu.memory_space<vmem>>, vector<1x32xf32>
    %cst_15 = arith.constant 7.812500e-03 : f32
    %14 = vector.broadcast %cst_15 : f32 to vector<1x32xf32>
    %15 = arith.mulf %13, %14 : vector<1x32xf32>
    %16 = arith.mulf %12, %12 : vector<1x32xf32>
    %17 = arith.subf %15, %16 : vector<1x32xf32>
    %cst_16 = arith.constant 0.000000e+00 : f32
    %18 = vector.broadcast %cst_16 : f32 to vector<1x32xf32>
    %19 = arith.maximumf %17, %18 : vector<1x32xf32>
    %cst_17 = arith.constant 9.99999974E-6 : f32
    %20 = vector.broadcast %cst_17 : f32 to vector<1x32xf32>
    %21 = arith.addf %19, %20 : vector<1x32xf32>
    %22 = math.rsqrt %21 : vector<1x32xf32>
    %c0_18 = arith.constant 0 : index
    %c0_19 = arith.constant 0 : index
    %23 = vector.load %arg8[%c0_18, %c0_19] : memref<1x32xf32, #tpu.memory_space<vmem>>, vector<1x32xf32>
    %24 = arith.mulf %22, %23 : vector<1x32xf32>
    %25 = vector.broadcast %12 : vector<1x32xf32> to vector<128x32xf32>
    %26 = arith.subf %9, %25 : vector<128x32xf32>
    %27 = vector.broadcast %24 : vector<1x32xf32> to vector<128x32xf32>
    %28 = arith.mulf %26, %27 : vector<128x32xf32>
    %c0_20 = arith.constant 0 : index
    %c0_21 = arith.constant 0 : index
    %29 = vector.load %arg9[%c0_20, %c0_21] : memref<1x32xf32, #tpu.memory_space<vmem>>, vector<1x32xf32>
    %30 = vector.broadcast %29 : vector<1x32xf32> to vector<128x32xf32>
    %31 = arith.addf %28, %30 : vector<128x32xf32>
    %32 = arith.truncf %31 : vector<128x32xf32> to vector<128x32xbf16>
    %c0_22 = arith.constant 0 : index
    %c0_23 = arith.constant 0 : index
    %33 = vector.load %arg10[%c0_22, %c0_23] : memref<128x32xbf16, #tpu.memory_space<vmem>>, vector<128x32xbf16>
    tpu.vector_store %arg10[%c0_22, %c0_23], %32 {strides = array<i32>} : memref<128x32xbf16, #tpu.memory_space<vmem>>, vector<128x32xbf16>,
    return
  }
  func.func @transform_0(%arg0: i32) -> (i32, i32) {
    %c0_i32 = arith.constant 0 : i32
    %c0_i32_0 = arith.constant 0 : i32
    return %arg0, %c0_i32 : i32, i32
  }
  func.func @transform_1(%arg0: i32) -> (i32, i32) {
    %c0_i32 = arith.constant 0 : i32
    %c0_i32_0 = arith.constant 0 : i32
    return %arg0, %c0_i32 : i32, i32
  }
  func.func @transform_2(%arg0: i32) -> (i32, i32) {
    %c0_i32 = arith.constant 0 : i32
    %c0_i32_0 = arith.constant 0 : i32
    %c0_i32_1 = arith.constant 0 : i32
    return %c0_i32, %c0_i32_0 : i32, i32
  }
  func.func @transform_3(%arg0: i32) -> (i32, i32) {
    %c0_i32 = arith.constant 0 : i32
    %c0_i32_0 = arith.constant 0 : i32
    %c0_i32_1 = arith.constant 0 : i32
    return %c0_i32, %c0_i32_0 : i32, i32
  }
  func.func @transform_4(%arg0: i32) -> (i32, i32) {
    %c0_i32 = arith.constant 0 : i32
    %c0_i32_0 = arith.constant 0 : i32
    %c0_i32_1 = arith.constant 0 : i32
    return %c0_i32, %c0_i32_0 : i32, i32
  }
  func.func @transform_5(%arg0: i32) -> (i32, i32) {
    %c0_i32 = arith.constant 0 : i32
    %c0_i32_0 = arith.constant 0 : i32
    %c0_i32_1 = arith.constant 0 : i32
    return %c0_i32, %c0_i32_0 : i32, i32
  }
  func.func @transform_6(%arg0: i32) -> (i32, i32) {
    %c0_i32 = arith.constant 0 : i32
    %c0_i32_0 = arith.constant 0 : i32
    %c0_i32_1 = arith.constant 0 : i32
    return %c0_i32, %c0_i32_0 : i32, i32
  }
  func.func @transform_7(%arg0: i32) -> (i32, i32) {
    %c0_i32 = arith.constant 0 : i32
    %c0_i32_0 = arith.constant 0 : i32
    %c0_i32_1 = arith.constant 0 : i32
    return %c0_i32, %c0_i32_0 : i32, i32
  }
  func.func @transform_8(%arg0: i32) -> (i32, i32) {
    %c0_i32 = arith.constant 0 : i32
    %c0_i32_0 = arith.constant 0 : i32
    %c0_i32_1 = arith.constant 0 : i32
    return %c0_i32, %c0_i32_0 : i32, i32
  }
  func.func @transform_9(%arg0: i32) -> (i32, i32) {
    %c0_i32 = arith.constant 0 : i32
    %c0_i32_0 = arith.constant 0 : i32
    return %arg0, %c0_i32 : i32, i32
  }
}

module attributes {stable_mosaic.version = 11 : i64} {
  func.func @_bn_norm_kernel(%arg0: i32, %arg1: memref<512x32xbf16, #tpu.memory_space<vmem>>, %arg2: memref<512x32xbf16, #tpu.memory_space<vmem>>, %arg3: memref<32x1xbf16, #tpu.memory_space<vmem>>, %arg4: memref<32x1xbf16, #tpu.memory_space<vmem>>, %arg5: memref<1x1xf32, #tpu.memory_space<vmem>>, %arg6: memref<1x1xf32, #tpu.memory_space<vmem>>, %arg7: memref<1x1xf32, #tpu.memory_space<vmem>>, %arg8: memref<1x1xf32, #tpu.memory_space<vmem>>, %arg9: memref<1x1xf32, #tpu.memory_space<vmem>>, %arg10: memref<512x1xbf16, #tpu.memory_space<vmem>>) attributes {dimension_semantics = [#tpu.dimension_semantics<parallel>], iteration_bounds = array<i64: 1>, scalar_prefetch = 0 : i64, scratch_operands = 0 : i64, tpu.core_type = #tpu.core_type<tc>, window_params = [{transform_indices = @transform_0, window_bounds = array<i64: 512, 32>}, {transform_indices = @transform_1, window_bounds = array<i64: 512, 32>}, {pipeline_mode = #tpu.pipeline_mode<synchronous>, transform_indices = @transform_2, window_bounds = array<i64: 32, 1>}, {pipeline_mode = #tpu.pipeline_mode<synchronous>, transform_indices = @transform_3, window_bounds = array<i64: 32, 1>}, {pipeline_mode = #tpu.pipeline_mode<synchronous>, transform_indices = @transform_4, window_bounds = array<i64: 1, 1>}, {pipeline_mode = #tpu.pipeline_mode<synchronous>, transform_indices = @transform_5, window_bounds = array<i64: 1, 1>}, {pipeline_mode = #tpu.pipeline_mode<synchronous>, transform_indices = @transform_6, window_bounds = array<i64: 1, 1>}, {pipeline_mode = #tpu.pipeline_mode<synchronous>, transform_indices = @transform_7, window_bounds = array<i64: 1, 1>}, {pipeline_mode = #tpu.pipeline_mode<synchronous>, transform_indices = @transform_8, window_bounds = array<i64: 1, 1>}, {transform_indices = @transform_9, window_bounds = array<i64: 512, 1>}]} {
    %c0 = arith.constant 0 : index
    %c0_0 = arith.constant 0 : index
    %0 = vector.load %arg1[%c0, %c0_0] : memref<512x32xbf16, #tpu.memory_space<vmem>>, vector<512x32xbf16>
    %c0_1 = arith.constant 0 : index
    %c0_2 = arith.constant 0 : index
    %1 = vector.load %arg3[%c0_1, %c0_2] : memref<32x1xbf16, #tpu.memory_space<vmem>>, vector<32x1xbf16>
    %cst = arith.constant dense<0.000000e+00> : vector<512x1xf32>
    %2 = tpu.matmul %0, %1, %cst {dimension_numbers = #tpu.dot_dimension_numbers<[1], [0], [0], [1], [0, 0, 1, 1], [], []>} : vector<512x32xbf16>, vector<32x1xbf16>, vector<512x1xf32> -> vector<512x1xf32>
    %c0_3 = arith.constant 0 : index
    %c0_4 = arith.constant 0 : index
    %3 = vector.load %arg2[%c0_3, %c0_4] : memref<512x32xbf16, #tpu.memory_space<vmem>>, vector<512x32xbf16>
    %c0_5 = arith.constant 0 : index
    %c0_6 = arith.constant 0 : index
    %4 = vector.load %arg4[%c0_5, %c0_6] : memref<32x1xbf16, #tpu.memory_space<vmem>>, vector<32x1xbf16>
    %cst_7 = arith.constant dense<0.000000e+00> : vector<512x1xf32>
    %5 = tpu.matmul %3, %4, %cst_7 {dimension_numbers = #tpu.dot_dimension_numbers<[1], [0], [0], [1], [0, 0, 1, 1], [], []>} : vector<512x32xbf16>, vector<32x1xbf16>, vector<512x1xf32> -> vector<512x1xf32>
    %6 = arith.addf %2, %5 : vector<512x1xf32>
    %c0_8 = arith.constant 0 : index
    %c0_9 = arith.constant 0 : index
    %7 = vector.load %arg5[%c0_8, %c0_9] : memref<1x1xf32, #tpu.memory_space<vmem>>, vector<1x1xf32>
    %8 = vector.broadcast %7 : vector<1x1xf32> to vector<512x1xf32>
    %9 = arith.addf %6, %8 : vector<512x1xf32>
    %c0_10 = arith.constant 0 : index
    %c0_11 = arith.constant 0 : index
    %10 = vector.load %arg6[%c0_10, %c0_11] : memref<1x1xf32, #tpu.memory_space<vmem>>, vector<1x1xf32>
    %cst_12 = arith.constant 0.001953125 : f32
    %11 = vector.broadcast %cst_12 : f32 to vector<1x1xf32>
    %12 = arith.mulf %10, %11 : vector<1x1xf32>
    %c0_13 = arith.constant 0 : index
    %c0_14 = arith.constant 0 : index
    %13 = vector.load %arg7[%c0_13, %c0_14] : memref<1x1xf32, #tpu.memory_space<vmem>>, vector<1x1xf32>
    %cst_15 = arith.constant 0.001953125 : f32
    %14 = vector.broadcast %cst_15 : f32 to vector<1x1xf32>
    %15 = arith.mulf %13, %14 : vector<1x1xf32>
    %16 = arith.mulf %12, %12 : vector<1x1xf32>
    %17 = arith.subf %15, %16 : vector<1x1xf32>
    %cst_16 = arith.constant 0.000000e+00 : f32
    %18 = vector.broadcast %cst_16 : f32 to vector<1x1xf32>
    %19 = arith.maximumf %17, %18 : vector<1x1xf32>
    %cst_17 = arith.constant 9.99999974E-6 : f32
    %20 = vector.broadcast %cst_17 : f32 to vector<1x1xf32>
    %21 = arith.addf %19, %20 : vector<1x1xf32>
    %22 = math.rsqrt %21 : vector<1x1xf32>
    %c0_18 = arith.constant 0 : index
    %c0_19 = arith.constant 0 : index
    %23 = vector.load %arg8[%c0_18, %c0_19] : memref<1x1xf32, #tpu.memory_space<vmem>>, vector<1x1xf32>
    %24 = arith.mulf %22, %23 : vector<1x1xf32>
    %25 = vector.broadcast %12 : vector<1x1xf32> to vector<512x1xf32>
    %26 = arith.subf %9, %25 : vector<512x1xf32>
    %27 = vector.broadcast %24 : vector<1x1xf32> to vector<512x1xf32>
    %28 = arith.mulf %26, %27 : vector<512x1xf32>
    %c0_20 = arith.constant 0 : index
    %c0_21 = arith.constant 0 : index
    %29 = vector.load %arg9[%c0_20, %c0_21] : memref<1x1xf32, #tpu.memory_space<vmem>>, vector<1x1xf32>
    %30 = vector.broadcast %29 : vector<1x1xf32> to vector<512x1xf32>
    %31 = arith.addf %28, %30 : vector<512x1xf32>
    %32 = math.tanh %31 : vector<512x1xf32>
    %33 = arith.truncf %32 : vector<512x1xf32> to vector<512x1xbf16>
    %c0_22 = arith.constant 0 : index
    %c0_23 = arith.constant 0 : index
    %34 = vector.load %arg10[%c0_22, %c0_23] : memref<512x1xbf16, #tpu.memory_space<vmem>>, vector<512x1xbf16>
    tpu.vector_store %arg10[%c0_22, %c0_23], %33 {strides = array<i32>} : memref<512x1xbf16, #tpu.memory_space<vmem>>, vector<512x1xbf16>,
    return
  }
  func.func @transform_0(%arg0: i32) -> (i32, i32) {
    %c0_i32 = arith.constant 0 : i32
    %c0_i32_0 = arith.constant 0 : i32
    return %arg0, %c0_i32 : i32, i32
  }
  func.func @transform_1(%arg0: i32) -> (i32, i32) {
    %c0_i32 = arith.constant 0 : i32
    %c0_i32_0 = arith.constant 0 : i32
    return %arg0, %c0_i32 : i32, i32
  }
  func.func @transform_2(%arg0: i32) -> (i32, i32) {
    %c0_i32 = arith.constant 0 : i32
    %c0_i32_0 = arith.constant 0 : i32
    %c0_i32_1 = arith.constant 0 : i32
    return %c0_i32, %c0_i32_0 : i32, i32
  }
  func.func @transform_3(%arg0: i32) -> (i32, i32) {
    %c0_i32 = arith.constant 0 : i32
    %c0_i32_0 = arith.constant 0 : i32
    %c0_i32_1 = arith.constant 0 : i32
    return %c0_i32, %c0_i32_0 : i32, i32
  }
  func.func @transform_4(%arg0: i32) -> (i32, i32) {
    %c0_i32 = arith.constant 0 : i32
    %c0_i32_0 = arith.constant 0 : i32
    %c0_i32_1 = arith.constant 0 : i32
    return %c0_i32, %c0_i32_0 : i32, i32
  }
  func.func @transform_5(%arg0: i32) -> (i32, i32) {
    %c0_i32 = arith.constant 0 : i32
    %c0_i32_0 = arith.constant 0 : i32
    %c0_i32_1 = arith.constant 0 : i32
    return %c0_i32, %c0_i32_0 : i32, i32
  }
  func.func @transform_6(%arg0: i32) -> (i32, i32) {
    %c0_i32 = arith.constant 0 : i32
    %c0_i32_0 = arith.constant 0 : i32
    %c0_i32_1 = arith.constant 0 : i32
    return %c0_i32, %c0_i32_0 : i32, i32
  }
  func.func @transform_7(%arg0: i32) -> (i32, i32) {
    %c0_i32 = arith.constant 0 : i32
    %c0_i32_0 = arith.constant 0 : i32
    %c0_i32_1 = arith.constant 0 : i32
    return %c0_i32, %c0_i32_0 : i32, i32
  }
  func.func @transform_8(%arg0: i32) -> (i32, i32) {
    %c0_i32 = arith.constant 0 : i32
    %c0_i32_0 = arith.constant 0 : i32
    %c0_i32_1 = arith.constant 0 : i32
    return %c0_i32, %c0_i32_0 : i32, i32
  }
  func.func @transform_9(%arg0: i32) -> (i32, i32) {
    %c0_i32 = arith.constant 0 : i32
    %c0_i32_0 = arith.constant 0 : i32
    return %arg0, %c0_i32 : i32, i32
  }
}

module attributes {stable_mosaic.version = 11 : i64} {
  func.func @_conv1x1_stats_kernel(%arg0: i32, %arg1: memref<512x32xbf16, #tpu.memory_space<vmem>>, %arg2: memref<512x32xbf16, #tpu.memory_space<vmem>>, %arg3: memref<32x1xbf16, #tpu.memory_space<vmem>>, %arg4: memref<32x1xbf16, #tpu.memory_space<vmem>>, %arg5: memref<1x1xf32, #tpu.memory_space<vmem>>, %arg6: memref<1x1xf32, #tpu.memory_space<vmem>>, %arg7: memref<1x1xf32, #tpu.memory_space<vmem>>) attributes {dimension_semantics = [#tpu.dimension_semantics<arbitrary>], iteration_bounds = array<i64: 1>, scalar_prefetch = 0 : i64, scratch_operands = 0 : i64, tpu.core_type = #tpu.core_type<tc>, window_params = [{transform_indices = @transform_0, window_bounds = array<i64: 512, 32>}, {transform_indices = @transform_1, window_bounds = array<i64: 512, 32>}, {pipeline_mode = #tpu.pipeline_mode<synchronous>, transform_indices = @transform_2, window_bounds = array<i64: 32, 1>}, {pipeline_mode = #tpu.pipeline_mode<synchronous>, transform_indices = @transform_3, window_bounds = array<i64: 32, 1>}, {pipeline_mode = #tpu.pipeline_mode<synchronous>, transform_indices = @transform_4, window_bounds = array<i64: 1, 1>}, {pipeline_mode = #tpu.pipeline_mode<synchronous>, transform_indices = @transform_5, window_bounds = array<i64: 1, 1>}, {pipeline_mode = #tpu.pipeline_mode<synchronous>, transform_indices = @transform_6, window_bounds = array<i64: 1, 1>}]} {
    %c0 = arith.constant 0 : index
    %c0_0 = arith.constant 0 : index
    %0 = vector.load %arg1[%c0, %c0_0] : memref<512x32xbf16, #tpu.memory_space<vmem>>, vector<512x32xbf16>
    %c0_1 = arith.constant 0 : index
    %c0_2 = arith.constant 0 : index
    %1 = vector.load %arg3[%c0_1, %c0_2] : memref<32x1xbf16, #tpu.memory_space<vmem>>, vector<32x1xbf16>
    %cst = arith.constant dense<0.000000e+00> : vector<512x1xf32>
    %2 = tpu.matmul %0, %1, %cst {dimension_numbers = #tpu.dot_dimension_numbers<[1], [0], [0], [1], [0, 0, 1, 1], [], []>} : vector<512x32xbf16>, vector<32x1xbf16>, vector<512x1xf32> -> vector<512x1xf32>
    %c0_3 = arith.constant 0 : index
    %c0_4 = arith.constant 0 : index
    %3 = vector.load %arg2[%c0_3, %c0_4] : memref<512x32xbf16, #tpu.memory_space<vmem>>, vector<512x32xbf16>
    %c0_5 = arith.constant 0 : index
    %c0_6 = arith.constant 0 : index
    %4 = vector.load %arg4[%c0_5, %c0_6] : memref<32x1xbf16, #tpu.memory_space<vmem>>, vector<32x1xbf16>
    %cst_7 = arith.constant dense<0.000000e+00> : vector<512x1xf32>
    %5 = tpu.matmul %3, %4, %cst_7 {dimension_numbers = #tpu.dot_dimension_numbers<[1], [0], [0], [1], [0, 0, 1, 1], [], []>} : vector<512x32xbf16>, vector<32x1xbf16>, vector<512x1xf32> -> vector<512x1xf32>
    %6 = arith.addf %2, %5 : vector<512x1xf32>
    %c0_8 = arith.constant 0 : index
    %c0_9 = arith.constant 0 : index
    %7 = vector.load %arg5[%c0_8, %c0_9] : memref<1x1xf32, #tpu.memory_space<vmem>>, vector<1x1xf32>
    %8 = vector.broadcast %7 : vector<1x1xf32> to vector<512x1xf32>
    %9 = arith.addf %6, %8 : vector<512x1xf32>
    %c0_i32 = arith.constant 0 : i32
    %10 = arith.cmpi eq, %arg0, %c0_i32 : i32
    %11 = arith.extui %10 : i1 to i32
    %c0_i32_10 = arith.constant 0 : i32
    %12 = arith.cmpi ne, %11, %c0_i32_10 : i32
    scf.if %12 {
      %cst_21 = arith.constant 0.000000e+00 : f32
      %24 = vector.broadcast %cst_21 : f32 to vector<1x1xf32>
      %c0_22 = arith.constant 0 : index
      %c0_23 = arith.constant 0 : index
      %25 = vector.load %arg6[%c0_22, %c0_23] : memref<1x1xf32, #tpu.memory_space<vmem>>, vector<1x1xf32>
      tpu.vector_store %arg6[%c0_22, %c0_23], %24 {strides = array<i32>} : memref<1x1xf32, #tpu.memory_space<vmem>>, vector<1x1xf32>,
      %cst_24 = arith.constant 0.000000e+00 : f32
      %26 = vector.broadcast %cst_24 : f32 to vector<1x1xf32>
      %c0_25 = arith.constant 0 : index
      %c0_26 = arith.constant 0 : index
      %27 = vector.load %arg7[%c0_25, %c0_26] : memref<1x1xf32, #tpu.memory_space<vmem>>, vector<1x1xf32>
      tpu.vector_store %arg7[%c0_25, %c0_26], %26 {strides = array<i32>} : memref<1x1xf32, #tpu.memory_space<vmem>>, vector<1x1xf32>,
    } else {
    }
    %c0_11 = arith.constant 0 : index
    %c0_12 = arith.constant 0 : index
    %13 = vector.load %arg6[%c0_11, %c0_12] : memref<1x1xf32, #tpu.memory_space<vmem>>, vector<1x1xf32>
    %cst_13 = arith.constant dense<0.000000e+00> : vector<1xf32>
    %14 = vector.multi_reduction <add>, %9, %cst_13 [0] : vector<512x1xf32> to vector<1xf32>
    %15 = vector.shape_cast %14 : vector<1xf32> to vector<1x1xf32>
    %16 = arith.addf %13, %15 : vector<1x1xf32>
    %c0_14 = arith.constant 0 : index
    %c0_15 = arith.constant 0 : index
    %17 = vector.load %arg6[%c0_14, %c0_15] : memref<1x1xf32, #tpu.memory_space<vmem>>, vector<1x1xf32>
    tpu.vector_store %arg6[%c0_14, %c0_15], %16 {strides = array<i32>} : memref<1x1xf32, #tpu.memory_space<vmem>>, vector<1x1xf32>,
    %c0_16 = arith.constant 0 : index
    %c0_17 = arith.constant 0 : index
    %18 = vector.load %arg7[%c0_16, %c0_17] : memref<1x1xf32, #tpu.memory_space<vmem>>, vector<1x1xf32>
    %19 = arith.mulf %9, %9 : vector<512x1xf32>
    %cst_18 = arith.constant dense<0.000000e+00> : vector<1xf32>
    %20 = vector.multi_reduction <add>, %19, %cst_18 [0] : vector<512x1xf32> to vector<1xf32>
    %21 = vector.shape_cast %20 : vector<1xf32> to vector<1x1xf32>
    %22 = arith.addf %18, %21 : vector<1x1xf32>
    %c0_19 = arith.constant 0 : index
    %c0_20 = arith.constant 0 : index
    %23 = vector.load %arg7[%c0_19, %c0_20] : memref<1x1xf32, #tpu.memory_space<vmem>>, vector<1x1xf32>
    tpu.vector_store %arg7[%c0_19, %c0_20], %22 {strides = array<i32>} : memref<1x1xf32, #tpu.memory_space<vmem>>, vector<1x1xf32>,
    return
  }
  func.func @transform_0(%arg0: i32) -> (i32, i32) {
    %c0_i32 = arith.constant 0 : i32
    %c0_i32_0 = arith.constant 0 : i32
    return %arg0, %c0_i32 : i32, i32
  }
  func.func @transform_1(%arg0: i32) -> (i32, i32) {
    %c0_i32 = arith.constant 0 : i32
    %c0_i32_0 = arith.constant 0 : i32
    return %arg0, %c0_i32 : i32, i32
  }
  func.func @transform_2(%arg0: i32) -> (i32, i32) {
    %c0_i32 = arith.constant 0 : i32
    %c0_i32_0 = arith.constant 0 : i32
    %c0_i32_1 = arith.constant 0 : i32
    return %c0_i32, %c0_i32_0 : i32, i32
  }
  func.func @transform_3(%arg0: i32) -> (i32, i32) {
    %c0_i32 = arith.constant 0 : i32
    %c0_i32_0 = arith.constant 0 : i32
    %c0_i32_1 = arith.constant 0 : i32
    return %c0_i32, %c0_i32_0 : i32, i32
  }
  func.func @transform_4(%arg0: i32) -> (i32, i32) {
    %c0_i32 = arith.constant 0 : i32
    %c0_i32_0 = arith.constant 0 : i32
    %c0_i32_1 = arith.constant 0 : i32
    return %c0_i32, %c0_i32_0 : i32, i32
  }
  func.func @transform_5(%arg0: i32) -> (i32, i32) {
    %c0_i32 = arith.constant 0 : i32
    %c0_i32_0 = arith.constant 0 : i32
    %c0_i32_1 = arith.constant 0 : i32
    return %c0_i32, %c0_i32_0 : i32, i32
  }
  func.func @transform_6(%arg0: i32) -> (i32, i32) {
    %c0_i32 = arith.constant 0 : i32
    %c0_i32_0 = arith.constant 0 : i32
    %c0_i32_1 = arith.constant 0 : i32
    return %c0_i32, %c0_i32_0 : i32, i32
  }
}

</mosaic_0001>

<llo_original>
// kernel: generator_forward.13
$region0: #{generator_forward.13}
  #allocation0 [shape = 'u32[]', space=smem, size = 0x4, offset = 0x4, fixed_abs, tag = 'smem constant byte address 0x4 - core index']
  #allocation1 [shape = 'u32[144,128]{1,0:T(1,128)}', space=vmem, size = 0x12000, scoped, tag = 'internal scratch']
  %s0 = inlined_call_operand.vmem [shape: bf16[32,288], index: 0, kind: input, shape index: {}]
  %s1 = inlined_call_operand.hbm [shape: bf16[288,128], index: 1, kind: input, shape index: {}]
  %s2 = inlined_call_operand.hbm [shape: f32[1,128], index: 2, kind: input, shape index: {}]
  %s3 = inlined_call_operand.vmem [shape: bf16[32,64], index: 3, kind: output, shape index: {}]
  %s4 = sld [smem:[#allocation0]]
  $region30: #{generator_forward.13} parent=0
    _
  %s6 = ssub.s32 1, %s4
  %s7 = scalar_select 0, %s6, %s4
  $region1: #{generator_forward.13} parent=0
    #allocation2 [shape = 'u8[73728]{0}', space=vmem, size = 0x12000, scoped, tag = 'input window, operand 1, single buffered']
    #allocation3 [shape = 's32[1]{0}', space=sflag, size = 0x4, scoped, tag = 'scoped memory for generator_forward.13']
    #allocation4 [shape = 'u8[512]{0}', space=vmem, size = 0x400, scoped, tag = 'input window, operand 2, single buffered']
    #allocation5 [shape = 's32[1]{0}', space=sflag, size = 0x4, scoped, tag = 'scoped memory for generator_forward.13']
    %8 = vsyncpa [#allocation3], 0
    %9 = vsyncpa [#allocation5], 0
    // Predicated region
    $region2: #{generator_forward.13} parent=1 // pred_check
      _
    $region3: #{generator_forward.13} parent=1 // pred_check_branch
      %11 = sbr.rel (0) target = $region5
    $region4: #{generator_forward.13} parent=1 // pred_region
      _
    $region5: #{generator_forward.13} parent=1 // pred_fallthru
      _
    // Predicated region
    $region6: #{generator_forward.13} parent=1 // pred_check
      _
    $region7: #{generator_forward.13} parent=1 // pred_check_branch
      %13 = sbr.rel (0) target = $region9
    $region8: #{generator_forward.13} parent=1 // pred_region
      %s15 = ssub.s32 2304, 2304
      %16 = vsyncadd [#allocation3], %s15
      %s17 = sshll.u32 [#allocation2], 4
      %s18 = int_to_ptr.vmem [resolvable:$true] %s17
      %23 = dma.hbm_to_vmem [thread:$0]  %s1, 2304, %s18, [#allocation3], 64, 64, 4
    $region9: #{generator_forward.13} parent=1 // pred_fallthru
      _
    // Predicated region
    $region10: #{generator_forward.13} parent=1 // pred_check
      _
    $region11: #{generator_forward.13} parent=1 // pred_check_branch
      %25 = sbr.rel (0) target = $region13
    $region12: #{generator_forward.13} parent=1 // pred_region
      %s27 = ssub.s32 16, 16
      %28 = vsyncadd [#allocation5], %s27
      %s30 = sshll.u32 [#allocation4], 4
      %s31 = int_to_ptr.vmem [resolvable:$true] %s30
      %33 = dma.hbm_to_vmem [thread:$0]  %s2, 16, %s31, [#allocation5]
    $region13: #{generator_forward.13} parent=1 // pred_fallthru
      _
    // Predicated region
    $region14: #{generator_forward.13} parent=1 // pred_check
      _
    $region15: #{generator_forward.13} parent=1 // pred_check_branch
      %35 = sbr.rel (0) target = $region17
    $region16: #{generator_forward.13} parent=1 // pred_region
      %36 = dma.done [#allocation3], 2304
    $region17: #{generator_forward.13} parent=1 // pred_fallthru
      _
    // Predicated region
    $region18: #{generator_forward.13} parent=1 // pred_check
      _
    $region19: #{generator_forward.13} parent=1 // pred_check_branch
      %38 = sbr.rel (0) target = $region21
    $region20: #{generator_forward.13} parent=1 // pred_region
      %39 = dma.done [#allocation5], 16
    $region21: #{generator_forward.13} parent=1 // pred_fallthru
      _
    %v41 = vld [vmem:[%s0] sm:$0xff]
    %v42 = vld [vmem:[%s0 + $0x8] sm:$0xf]
    %v43 = vld [vmem:[%s0 + $0xc] sm:$0xff]
    %v44 = vld [vmem:[%s0 + $0x14] sm:$0xf]
    %v45 = vld [vmem:[%s0 + $0x18] sm:$0xff]
    %v46 = vld [vmem:[%s0 + $0x20] sm:$0xf]
    %v47 = vld [vmem:[%s0 + $0x24] sm:$0xff]
    %v48 = vld [vmem:[%s0 + $0x2c] sm:$0xf]
    %v49 = vld [vmem:[#allocation2] sm:$0xf]
    %v50 = vld [vmem:[#allocation2 + $0x4] sm:$0xf]
    %v51 = vld [vmem:[#allocation2 + $0x8] sm:$0xf]
    %v52 = vld [vmem:[#allocation2 + $0xc] sm:$0xf]
    %v53 = vld [vmem:[#allocation2 + $0x10] sm:$0xf]
    %v54 = vld [vmem:[#allocation2 + $0x14] sm:$0xf]
    %v55 = vld [vmem:[#allocation2 + $0x18] sm:$0xf]
    %v56 = vld [vmem:[#allocation2 + $0x1c] sm:$0xf]
    %v57 = vld [vmem:[#allocation2 + $0x20] sm:$0xf]
    %v58 = vld [vmem:[#allocation2 + $0x24] sm:$0xf]
    %v59 = vld [vmem:[#allocation2 + $0x28] sm:$0xf]
    %v60 = vld [vmem:[#allocation2 + $0x2c] sm:$0xf]
    %v61 = vld [vmem:[#allocation2 + $0x30] sm:$0xf]
    %v62 = vld [vmem:[#allocation2 + $0x34] sm:$0xf]
    %v63 = vld [vmem:[#allocation2 + $0x38] sm:$0xf]
    %v64 = vld [vmem:[#allocation2 + $0x3c] sm:$0xf]
    %v65 = vld [vmem:[#allocation2 + $0x40] sm:$0xf]
    %v66 = vld [vmem:[#allocation2 + $0x44] sm:$0xf]
    %v67 = vld [vmem:[#allocation2 + $0x48] sm:$0xf]
    %v68 = vld [vmem:[#allocation2 + $0x4c] sm:$0xf]
    %v69 = vld [vmem:[#allocation2 + $0x50] sm:$0xf]
    %v70 = vld [vmem:[#allocation2 + $0x54] sm:$0xf]
    %v71 = vld [vmem:[#allocation2 + $0x58] sm:$0xf]
    %v72 = vld [vmem:[#allocation2 + $0x5c] sm:$0xf]
    %v73 = vld [vmem:[#allocation2 + $0x60] sm:$0xf]
    %v74 = vld [vmem:[#allocation2 + $0x64] sm:$0xf]
    %v75 = vld [vmem:[#allocation2 + $0x68] sm:$0xf]
    %v76 = vld [vmem:[#allocation2 + $0x6c] sm:$0xf]
    %v77 = vld [vmem:[#allocation2 + $0x70] sm:$0xf]
    %v78 = vld [vmem:[#allocation2 + $0x74] sm:$0xf]
    %v79 = vld [vmem:[#allocation2 + $0x78] sm:$0xf]
    %v80 = vld [vmem:[#allocation2 + $0x7c] sm:$0xf]
    %v81 = vld [vmem:[#allocation2 + $0x80] sm:$0xf]
    %v82 = vld [vmem:[#allocation2 + $0x84] sm:$0xf]
    %v83 = vld [vmem:[#allocation2 + $0x88] sm:$0xf]
    %v84 = vld [vmem:[#allocation2 + $0x8c] sm:$0xf]
    %v85 = vld [vmem:[#allocation4] sm:$0x1]
    %v87 = vlaneseq
    %v88 = vshrl.u32 %v87, 7
    %v89 = vsub.s32 0, %v88
    %v90 = vrot.slane %v85, %v89
    %v100 = vunpack.c.l.b16 %v41
    %v101 = vunpack.c.h.b16 %v41
    %v102 = vunpack.c.l.b16 %v42
    %v103 = vunpack.c.l.b16 %v43
    %v104 = vunpack.c.h.b16 %v43
    %v105 = vunpack.c.l.b16 %v44
    %v106 = vunpack.c.l.b16 %v45
    %v107 = vunpack.c.h.b16 %v45
    %v108 = vunpack.c.l.b16 %v46
    %v109 = vunpack.c.l.b16 %v47
    %v110 = vunpack.c.h.b16 %v47
    %v111 = vunpack.c.l.b16 %v48
    %v112 = vpack.c.b16 %v103, %v100
    %v113 = vpack.c.b16 %v104, %v101
    %v114 = vpack.c.b16 %v105, %v102
    %v115 = vpack.c.b16 %v109, %v106
    %v116 = vpack.c.b16 %v110, %v107
    %v117 = vpack.c.b16 %v111, %v108
    %v158 = vunpack.c.l.b16 %v49
    %v159 = vunpack.c.l.b16 %v50
    %v160 = vunpack.c.l.b16 %v51
    %v161 = vunpack.c.l.b16 %v52
    %v162 = vunpack.c.l.b16 %v53
    %v163 = vunpack.c.l.b16 %v54
    %v164 = vunpack.c.l.b16 %v55
    %v165 = vunpack.c.l.b16 %v56
    %v166 = vunpack.c.l.b16 %v57
    %v167 = vunpack.c.l.b16 %v58
    %v168 = vunpack.c.l.b16 %v59
    %v169 = vunpack.c.l.b16 %v60
    %v170 = vunpack.c.l.b16 %v61
    %v171 = vunpack.c.l.b16 %v62
    %v172 = vunpack.c.l.b16 %v63
    %v173 = vunpack.c.l.b16 %v64
    %v174 = vunpack.c.l.b16 %v65
    %v175 = vunpack.c.l.b16 %v66
    %v176 = vunpack.c.l.b16 %v67
    %v177 = vunpack.c.l.b16 %v68
    %v178 = vunpack.c.l.b16 %v69
    %v179 = vunpack.c.l.b16 %v70
    %v180 = vunpack.c.l.b16 %v71
    %v181 = vunpack.c.l.b16 %v72
    %v182 = vunpack.c.l.b16 %v73
    %v183 = vunpack.c.l.b16 %v74
    %v184 = vunpack.c.l.b16 %v75
    %v185 = vunpack.c.l.b16 %v76
    %v186 = vunpack.c.l.b16 %v77
    %v187 = vunpack.c.l.b16 %v78
    %v188 = vunpack.c.l.b16 %v79
    %v189 = vunpack.c.l.b16 %v80
    %v190 = vunpack.c.l.b16 %v81
    %v191 = vunpack.c.l.b16 %v82
    %v192 = vunpack.c.l.b16 %v83
    %v193 = vunpack.c.l.b16 %v84
    %v194 = vpack.c.b16 %v159, %v158
    %v195 = vpack.c.b16 %v161, %v160
    %v196 = vpack.c.b16 %v163, %v162
    %v197 = vpack.c.b16 %v165, %v164
    %v198 = vpack.c.b16 %v167, %v166
    %v199 = vpack.c.b16 %v169, %v168
    %v200 = vpack.c.b16 %v171, %v170
    %v201 = vpack.c.b16 %v173, %v172
    %v202 = vpack.c.b16 %v175, %v174
    %v203 = vpack.c.b16 %v177, %v176
    %v204 = vpack.c.b16 %v179, %v178
    %v205 = vpack.c.b16 %v181, %v180
    %v206 = vpack.c.b16 %v183, %v182
    %v207 = vpack.c.b16 %v185, %v184
    %v208 = vpack.c.b16 %v187, %v186
    %v209 = vpack.c.b16 %v189, %v188
    %v210 = vpack.c.b16 %v191, %v190
    %v211 = vpack.c.b16 %v193, %v192
    %vm230 = vcmask 261120
    %v232 = vsel %vm230, %v114, 0
    %v235 = vsel %vm230, %v117, 0
    %237 = vmatprep.subr.bf16.mxu0 0
    %238 = vmatpush1.bf16.msra.mxu0 %v194
    %239 = vmatprep.subr.bf16.mxu0 0
    %240 = vmatpush1.bf16.msra.mxu0 %v195
    %241 = vmatprep.subr.bf16.mxu0 0
    %242 = vmatpush1.bf16.msra.mxu0 %v196
    %243 = vmatprep.subr.bf16.mxu0 0
    %244 = vmatpush1.bf16.msra.mxu0 %v197
    %245 = vmatprep.subr.bf16.mxu0 0
    %246 = vmatpush1.bf16.msra.mxu0 %v198
    %247 = vmatprep.subr.bf16.mxu0 0
    %248 = vmatpush1.bf16.msra.mxu0 %v199
    %249 = vmatprep.subr.bf16.mxu0 0
    %250 = vmatpush1.bf16.msra.mxu0 %v200
    %251 = vmatprep.subr.bf16.mxu0 0
    %252 = vmatpush1.bf16.msra.mxu0 %v201
    %253 = vmatprep.subr.bf16.mxu0 0
    %254 = vmatpush1.bf16.msra.mxu0 %v202
    %255 = vmatprep.subr.bf16.mxu0 0
    %256 = vmatpush1.bf16.msra.mxu0 %v203
    %257 = vmatprep.subr.bf16.mxu0 0
    %258 = vmatpush1.bf16.msra.mxu0 %v204
    %259 = vmatprep.subr.bf16.mxu0 0
    %260 = vmatpush1.bf16.msra.mxu0 %v205
    %261 = vmatprep.subr.bf16.mxu0 0
    %262 = vmatpush1.bf16.msra.mxu0 %v206
    %263 = vmatprep.subr.bf16.mxu0 0
    %264 = vmatpush1.bf16.msra.mxu0 %v207
    %265 = vmatprep.subr.bf16.mxu0 0
    %266 = vmatpush1.bf16.msra.mxu0 %v208
    %267 = vmatprep.subr.bf16.mxu0 0
    %268 = vmatpush1.bf16.msra.mxu0 %v209
    %269 = vmatprep.mubr.bf16.mxu0 %v113
    %270 = vmatmul.mubr.bf16.gmra.mrb[0].mxu0 %v112
    %v271 = vpop.f32.mrb[0].mxu0
    %v272 = vadd.f32 %v90, %v271
    %v273 = vpop.f32.mrb[0].mxu0
    %v274 = vpop.f32.mrb[0].mxu0
    %v275 = vadd.f32 %v90, %v274
    %v276 = vpop.f32.mrb[0].mxu0
    %277 = vmatprep.mubr.bf16.mxu0 %v116
    %278 = vmatmul.mubr.bf16.gmra.mrb[0].mxu0 %v115
    %v279 = vpop.f32.mrb[0].mxu0
    %v280 = vadd.f32 %v90, %v279
    %v281 = vpop.f32.mrb[0].mxu0
    %v282 = vpop.f32.mrb[0].mxu0
    %v283 = vadd.f32 %v90, %v282
    %v284 = vpop.f32.mrb[0].mxu0
    %285 = vdwg.mxu0
    %286 = vmatprep.subr.bf16.mxu0 0
    %287 = vmatpush1.bf16.msra.mxu0 %v210
    %288 = vmatprep.subr.bf16.mxu0 0
    %289 = vmatpush1.bf16.msra.mxu0 %v211
    %290 = vmatprep.subr.bf16.mxu0 0
    %291 = vmatpush1.bf16.msra.mxu0 0
    %292 = vmatprep.subr.bf16.mxu0 0
    %293 = vmatpush1.bf16.msra.mxu0 0
    %294 = vmatprep.subr.bf16.mxu0 0
    %295 = vmatpush1.bf16.msra.mxu0 0
    %296 = vmatprep.subr.bf16.mxu0 0
    %297 = vmatpush1.bf16.msra.mxu0 0
    %298 = vmatprep.subr.bf16.mxu0 0
    %299 = vmatpush1.bf16.msra.mxu0 0
    %300 = vmatprep.subr.bf16.mxu0 0
    %301 = vmatpush1.bf16.msra.mxu0 0
    %302 = vmatprep.subr.bf16.mxu0 0
    %303 = vmatpush1.bf16.msra.mxu0 0
    %304 = vmatprep.subr.bf16.mxu0 0
    %305 = vmatpush1.bf16.msra.mxu0 0
    %306 = vmatprep.subr.bf16.mxu0 0
    %307 = vmatpush1.bf16.msra.mxu0 0
    %308 = vmatprep.subr.bf16.mxu0 0
    %309 = vmatpush1.bf16.msra.mxu0 0
    %310 = vmatprep.subr.bf16.mxu0 0
    %311 = vmatpush1.bf16.msra.mxu0 0
    %312 = vmatprep.subr.bf16.mxu0 0
    %313 = vmatpush1.bf16.msra.mxu0 0
    %314 = vmatprep.subr.bf16.mxu0 0
    %315 = vmatpush1.bf16.msra.mxu0 0
    %316 = vmatprep.subr.bf16.mxu0 0
    %317 = vmatpush1.bf16.msra.mxu0 0
    %318 = vmatprep.mubr.bf16.mxu0 0
    %319 = vmatmul.mubr.bf16.gmra.mrb[0].mxu0 %v232
    %v320 = vpop.f32.mrb[0].mxu0
    %v321 = vadd.f32 %v272, %v320
    %v322 = vpop.f32.mrb[0].mxu0
    %v323 = vpop.f32.mrb[0].mxu0
    %v324 = vadd.f32 %v275, %v323
    %v325 = vpop.f32.mrb[0].mxu0
    %326 = vmatprep.mubr.bf16.mxu0 0
    %327 = vmatmul.mubr.bf16.gmra.mrb[0].mxu0 %v235
    %v328 = vpop.f32.mrb[0].mxu0
    %v329 = vadd.f32 %v280, %v328
    %v330 = vpop.f32.mrb[0].mxu0
    %v331 = vpop.f32.mrb[0].mxu0
    %v332 = vadd.f32 %v283, %v331
    %v333 = vpop.f32.mrb[0].mxu0
    %334 = vdwg.mxu0
    %v335 = vsub.f32 0.0, %v321
    %v336 = vsub.f32 0.0, %v324
    %v337 = vsub.f32 0.0, %v329
    %v338 = vsub.f32 0.0, %v332
    %v339 = vmul.f32 %v335, 1.442695
    %v340 = vpow.pop %v339
    %v341 = vmul.f32 %v336, 1.442695
    %v342 = vpow.pop %v341
    %v343 = vmul.f32 %v337, 1.442695
    %v344 = vpow.pop %v343
    %v345 = vmul.f32 %v338, 1.442695
    %v346 = vpow.pop %v345
    %v347 = vadd.f32 %v340, 1.0
    %v348 = vadd.f32 %v342, 1.0
    %v349 = vadd.f32 %v344, 1.0
    %v350 = vadd.f32 %v346, 1.0
    %v351 = vrcp.pop %v347
    %v352 = vrcp.pop %v348
    %v353 = vrcp.pop %v349
    %v354 = vrcp.pop %v350
    %359 = vrot.lane.b32.xlu0 %v351, 64
    %v360 = vpop.permute.xlu0 %359
    %361 = vrot.lane.b32.xlu0 %v352, 64
    %v362 = vpop.permute.xlu0 %361
    %363 = vrot.lane.b32.xlu0 %v353, 64
    %v364 = vpop.permute.xlu0 %363
    %365 = vrot.lane.b32.xlu0 %v354, 64
    %v366 = vpop.permute.xlu0 %365
    %v371 = vmul.f32 %v321, %v360
    %v372 = vmul.f32 %v324, %v362
    %v373 = vmul.f32 %v329, %v364
    %v374 = vmul.f32 %v332, %v366
    %v375 = vpack.c.bf16 %v372, %v371
    %v376 = vpack.c.bf16 %v374, %v373
    %v379 = vunpack.c.l.b16 %v375
    %v380 = vunpack.c.h.b16 %v375
    %v381 = vunpack.c.l.b16 %v376
    %v382 = vunpack.c.h.b16 %v376
    %v383 = vpack.c.b16 %v379, %v379
    %v384 = vpack.c.b16 %v380, %v380
    %v385 = vpack.c.b16 %v381, %v381
    %v386 = vpack.c.b16 %v382, %v382
    %vm391 = vcmask 519168
    %392 = vst.msk [vmem:[%s3] sm:$0xf] %vm391, %v383
    %393 = vst.msk [vmem:[%s3 + $0x4] sm:$0xf] %vm391, %v384
    %394 = vst.msk [vmem:[%s3 + $0x8] sm:$0xf] %vm391, %v385
    %395 = vst.msk [vmem:[%s3 + $0xc] sm:$0xf] %vm391, %v386
    // Predicated region
    $region22: #{generator_forward.13} parent=1 // pred_check
      _
    $region23: #{generator_forward.13} parent=1 // pred_check_branch
      %397 = sbr.rel (0) target = $region25
    $region24: #{generator_forward.13} parent=1 // pred_region
      _
    $region25: #{generator_forward.13} parent=1 // pred_fallthru
      _
    // Predicated region
    $region26: #{generator_forward.13} parent=1 // pred_check
      _
    $region27: #{generator_forward.13} parent=1 // pred_check_branch
      %399 = sbr.rel (0) target = $region29
    $region28: #{generator_forward.13} parent=1 // pred_region
      _
    $region29: #{generator_forward.13} parent=1 // pred_fallthru
      _
    %400 = vsyncpa [#allocation3], 1
    %401 = vsyncpa [#allocation5], 1

// kernel: generator_forward.12
$region0: #{generator_forward.12}
  #allocation0 [shape = 'u32[]', space=smem, size = 0x4, offset = 0x4, fixed_abs, tag = 'smem constant byte address 0x4 - core index']
  #allocation1 [shape = 'u32[144,128]{1,0:T(1,128)}', space=vmem, size = 0x12000, scoped, tag = 'internal scratch']
  %s0 = inlined_call_operand.vmem [shape: bf16[128,9], index: 0, kind: input, shape index: {}]
  %s1 = inlined_call_operand.hbm [shape: bf16[9,64], index: 1, kind: input, shape index: {}]
  %s2 = inlined_call_operand.hbm [shape: f32[1,64], index: 2, kind: input, shape index: {}]
  %s3 = inlined_call_operand.vmem [shape: bf16[128,32], index: 3, kind: output, shape index: {}]
  %s4 = sld [smem:[#allocation0]]
  $region30: #{generator_forward.12} parent=0
    _
  %s6 = ssub.s32 1, %s4
  %s7 = scalar_select 0, %s6, %s4
  $region1: #{generator_forward.12} parent=0
    #allocation2 [shape = 'u8[4096]{0}', space=vmem, size = 0x1000, scoped, tag = 'input window, operand 1, single buffered']
    #allocation3 [shape = 's32[1]{0}', space=sflag, size = 0x4, scoped, tag = 'scoped memory for generator_forward.12']
    #allocation4 [shape = 'u8[512]{0}', space=vmem, size = 0x400, scoped, tag = 'input window, operand 2, single buffered']
    #allocation5 [shape = 's32[1]{0}', space=sflag, size = 0x4, scoped, tag = 'scoped memory for generator_forward.12']
    %8 = vsyncpa [#allocation3], 0
    %9 = vsyncpa [#allocation5], 0
    // Predicated region
    $region2: #{generator_forward.12} parent=1 // pred_check
      _
    $region3: #{generator_forward.12} parent=1 // pred_check_branch
      %11 = sbr.rel (0) target = $region5
    $region4: #{generator_forward.12} parent=1 // pred_region
      _
    $region5: #{generator_forward.12} parent=1 // pred_fallthru
      _
    // Predicated region
    $region6: #{generator_forward.12} parent=1 // pred_check
      _
    $region7: #{generator_forward.12} parent=1 // pred_check_branch
      %13 = sbr.rel (0) target = $region9
    $region8: #{generator_forward.12} parent=1 // pred_region
      %s15 = ssub.s32 128, 128
      %16 = vsyncadd [#allocation3], %s15
      %s17 = sshll.u32 [#allocation2], 4
      %s18 = int_to_ptr.vmem [resolvable:$true] %s17
      %23 = dma.hbm_to_vmem [thread:$0]  %s1, 128, %s18, [#allocation3], 64, 64, 4
    $region9: #{generator_forward.12} parent=1 // pred_fallthru
      _
    // Predicated region
    $region10: #{generator_forward.12} parent=1 // pred_check
      _
    $region11: #{generator_forward.12} parent=1 // pred_check_branch
      %25 = sbr.rel (0) target = $region13
    $region12: #{generator_forward.12} parent=1 // pred_region
      %s27 = ssub.s32 16, 16
      %28 = vsyncadd [#allocation5], %s27
      %s30 = sshll.u32 [#allocation4], 4
      %s31 = int_to_ptr.vmem [resolvable:$true] %s30
      %33 = dma.hbm_to_vmem [thread:$0]  %s2, 16, %s31, [#allocation5]
    $region13: #{generator_forward.12} parent=1 // pred_fallthru
      _
    // Predicated region
    $region14: #{generator_forward.12} parent=1 // pred_check
      _
    $region15: #{generator_forward.12} parent=1 // pred_check_branch
      %35 = sbr.rel (0) target = $region17
    $region16: #{generator_forward.12} parent=1 // pred_region
      %36 = dma.done [#allocation3], 128
    $region17: #{generator_forward.12} parent=1 // pred_fallthru
      _
    // Predicated region
    $region18: #{generator_forward.12} parent=1 // pred_check
      _
    $region19: #{generator_forward.12} parent=1 // pred_check_branch
      %38 = sbr.rel (0) target = $region21
    $region20: #{generator_forward.12} parent=1 // pred_region
      %39 = dma.done [#allocation5], 16
    $region21: #{generator_forward.12} parent=1 // pred_fallthru
      _
    %v41 = vld [vmem:[%s0] sm:$0xf]
    %v42 = vld [vmem:[%s0 + $0x4] sm:$0xf]
    %v43 = vld [vmem:[%s0 + $0x8] sm:$0xf]
    %v44 = vld [vmem:[%s0 + $0xc] sm:$0xf]
    %v45 = vld [vmem:[%s0 + $0x10] sm:$0xf]
    %v46 = vld [vmem:[%s0 + $0x14] sm:$0xf]
    %v47 = vld [vmem:[%s0 + $0x18] sm:$0xf]
    %v48 = vld [vmem:[%s0 + $0x1c] sm:$0xf]
    %v49 = vld [vmem:[%s0 + $0x20] sm:$0xf]
    %v50 = vld [vmem:[%s0 + $0x24] sm:$0xf]
    %v51 = vld [vmem:[%s0 + $0x28] sm:$0xf]
    %v52 = vld [vmem:[%s0 + $0x2c] sm:$0xf]
    %v53 = vld [vmem:[%s0 + $0x30] sm:$0xf]
    %v54 = vld [vmem:[%s0 + $0x34] sm:$0xf]
    %v55 = vld [vmem:[%s0 + $0x38] sm:$0xf]
    %v56 = vld [vmem:[%s0 + $0x3c] sm:$0xf]
    %v57 = vld [vmem:[#allocation2] sm:$0xf]
    %v58 = vld [vmem:[#allocation2 + $0x4] sm:$0x1]
    %v59 = vld [vmem:[#allocation4] sm:$0x1]
    %v61 = vlaneseq
    %v62 = vshrl.u32 %v61, 7
    %v63 = vsub.s32 0, %v62
    %v64 = vrot.slane %v59, %v63
    %v82 = vunpack.c.l.b16 %v41
    %v83 = vunpack.c.l.b16 %v42
    %v84 = vunpack.c.l.b16 %v43
    %v85 = vunpack.c.l.b16 %v44
    %v86 = vunpack.c.l.b16 %v45
    %v87 = vunpack.c.l.b16 %v46
    %v88 = vunpack.c.l.b16 %v47
    %v89 = vunpack.c.l.b16 %v48
    %v90 = vunpack.c.l.b16 %v49
    %v91 = vunpack.c.l.b16 %v50
    %v92 = vunpack.c.l.b16 %v51
    %v93 = vunpack.c.l.b16 %v52
    %v94 = vunpack.c.l.b16 %v53
    %v95 = vunpack.c.l.b16 %v54
    %v96 = vunpack.c.l.b16 %v55
    %v97 = vunpack.c.l.b16 %v56
    %v98 = vpack.c.b16 %v83, %v82
    %v99 = vpack.c.b16 %v85, %v84
    %v100 = vpack.c.b16 %v87, %v86
    %v101 = vpack.c.b16 %v89, %v88
    %v102 = vpack.c.b16 %v91, %v90
    %v103 = vpack.c.b16 %v93, %v92
    %v104 = vpack.c.b16 %v95, %v94
    %v105 = vpack.c.b16 %v97, %v96
    %v108 = vunpack.c.l.b16 %v57
    %v109 = vunpack.c.l.b16 %v58
    %v110 = vpack.c.b16 %v109, %v108
    %vm111 = vcmask 72704
    %v113 = vsel %vm111, %v98, 0
    %v116 = vsel %vm111, %v99, 0
    %v119 = vsel %vm111, %v100, 0
    %v122 = vsel %vm111, %v101, 0
    %v125 = vsel %vm111, %v102, 0
    %v128 = vsel %vm111, %v103, 0
    %v131 = vsel %vm111, %v104, 0
    %v134 = vsel %vm111, %v105, 0
    %vm136 = vcmask 1043456
    %vm137 = vcmask 1044480
    %v138 = vsel %vm136, 4294967295, 65535
    %v139 = vsel %vm137, %v138, 0
    %v141 = vand.u32 %v110, %v139
    %143 = vmatprep.subr.bf16.mxu0 0
    %144 = vmatpush1.bf16.msra.mxu0 %v141
    %145 = vmatprep.subr.bf16.mxu0 0
    %146 = vmatpush1.bf16.msra.mxu0 0
    %147 = vmatprep.subr.bf16.mxu0 0
    %148 = vmatpush1.bf16.msra.mxu0 0
    %149 = vmatprep.subr.bf16.mxu0 0
    %150 = vmatpush1.bf16.msra.mxu0 0
    %151 = vmatprep.subr.bf16.mxu0 0
    %152 = vmatpush1.bf16.msra.mxu0 0
    %153 = vmatprep.subr.bf16.mxu0 0
    %154 = vmatpush1.bf16.msra.mxu0 0
    %155 = vmatprep.subr.bf16.mxu0 0
    %156 = vmatpush1.bf16.msra.mxu0 0
    %157 = vmatprep.subr.bf16.mxu0 0
    %158 = vmatpush1.bf16.msra.mxu0 0
    %159 = vmatprep.subr.bf16.mxu0 0
    %160 = vmatpush1.bf16.msra.mxu0 0
    %161 = vmatprep.subr.bf16.mxu0 0
    %162 = vmatpush1.bf16.msra.mxu0 0
    %163 = vmatprep.subr.bf16.mxu0 0
    %164 = vmatpush1.bf16.msra.mxu0 0
    %165 = vmatprep.subr.bf16.mxu0 0
    %166 = vmatpush1.bf16.msra.mxu0 0
    %167 = vmatprep.subr.bf16.mxu0 0
    %168 = vmatpush1.bf16.msra.mxu0 0
    %169 = vmatprep.subr.bf16.mxu0 0
    %170 = vmatpush1.bf16.msra.mxu0 0
    %171 = vmatprep.subr.bf16.mxu0 0
    %172 = vmatpush1.bf16.msra.mxu0 0
    %173 = vmatprep.subr.bf16.mxu0 0
    %174 = vmatpush1.bf16.msra.mxu0 0
    %175 = vmatprep.mubr.bf16.mxu0 0
    %176 = vmatmul.mubr.bf16.gmra.mrb[0].mxu0 %v113
    %v177 = vpop.f32.mrb[0].mxu0
    %v178 = vadd.f32 %v64, %v177
    %v179 = vpop.f32.mrb[0].mxu0
    %v180 = vpop.f32.mrb[0].mxu0
    %v181 = vadd.f32 %v64, %v180
    %v182 = vpop.f32.mrb[0].mxu0
    %183 = vmatprep.mubr.bf16.mxu0 0
    %184 = vmatmul.mubr.bf16.gmra.mrb[0].mxu0 %v116
    %v185 = vpop.f32.mrb[0].mxu0
    %v186 = vadd.f32 %v64, %v185
    %v187 = vpop.f32.mrb[0].mxu0
    %v188 = vpop.f32.mrb[0].mxu0
    %v189 = vadd.f32 %v64, %v188
    %v190 = vpop.f32.mrb[0].mxu0
    %191 = vmatprep.mubr.bf16.mxu0 0
    %192 = vmatmul.mubr.bf16.gmra.mrb[0].mxu0 %v119
    %v193 = vpop.f32.mrb[0].mxu0
    %v194 = vadd.f32 %v64, %v193
    %v195 = vpop.f32.mrb[0].mxu0
    %v196 = vpop.f32.mrb[0].mxu0
    %v197 = vadd.f32 %v64, %v196
    %v198 = vpop.f32.mrb[0].mxu0
    %199 = vmatprep.mubr.bf16.mxu0 0
    %200 = vmatmul.mubr.bf16.gmra.mrb[0].mxu0 %v122
    %v201 = vpop.f32.mrb[0].mxu0
    %v202 = vadd.f32 %v64, %v201
    %v203 = vpop.f32.mrb[0].mxu0
    %v204 = vpop.f32.mrb[0].mxu0
    %v205 = vadd.f32 %v64, %v204
    %v206 = vpop.f32.mrb[0].mxu0
    %207 = vmatprep.mubr.bf16.mxu0 0
    %208 = vmatmul.mubr.bf16.gmra.mrb[0].mxu0 %v125
    %v209 = vpop.f32.mrb[0].mxu0
    %v210 = vadd.f32 %v64, %v209
    %v211 = vpop.f32.mrb[0].mxu0
    %v212 = vpop.f32.mrb[0].mxu0
    %v213 = vadd.f32 %v64, %v212
    %v214 = vpop.f32.mrb[0].mxu0
    %215 = vmatprep.mubr.bf16.mxu0 0
    %216 = vmatmul.mubr.bf16.gmra.mrb[0].mxu0 %v128
    %v217 = vpop.f32.mrb[0].mxu0
    %v218 = vadd.f32 %v64, %v217
    %v219 = vpop.f32.mrb[0].mxu0
    %v220 = vpop.f32.mrb[0].mxu0
    %v221 = vadd.f32 %v64, %v220
    %v222 = vpop.f32.mrb[0].mxu0
    %223 = vmatprep.mubr.bf16.mxu0 0
    %224 = vmatmul.mubr.bf16.gmra.mrb[0].mxu0 %v131
    %v225 = vpop.f32.mrb[0].mxu0
    %v226 = vadd.f32 %v64, %v225
    %v227 = vpop.f32.mrb[0].mxu0
    %v228 = vpop.f32.mrb[0].mxu0
    %v229 = vadd.f32 %v64, %v228
    %v230 = vpop.f32.mrb[0].mxu0
    %231 = vmatprep.mubr.bf16.mxu0 0
    %232 = vmatmul.mubr.bf16.gmra.mrb[0].mxu0 %v134
    %v233 = vpop.f32.mrb[0].mxu0
    %v234 = vadd.f32 %v64, %v233
    %v235 = vpop.f32.mrb[0].mxu0
    %v236 = vpop.f32.mrb[0].mxu0
    %v237 = vadd.f32 %v64, %v236
    %v238 = vpop.f32.mrb[0].mxu0
    %239 = vdwg.mxu0
    %v240 = vsub.f32 0.0, %v178
    %v241 = vsub.f32 0.0, %v181
    %v242 = vsub.f32 0.0, %v186
    %v243 = vsub.f32 0.0, %v189
    %v244 = vsub.f32 0.0, %v194
    %v245 = vsub.f32 0.0, %v197
    %v246 = vsub.f32 0.0, %v202
    %v247 = vsub.f32 0.0, %v205
    %v248 = vsub.f32 0.0, %v210
    %v249 = vsub.f32 0.0, %v213
    %v250 = vsub.f32 0.0, %v218
    %v251 = vsub.f32 0.0, %v221
    %v252 = vsub.f32 0.0, %v226
    %v253 = vsub.f32 0.0, %v229
    %v254 = vsub.f32 0.0, %v234
    %v255 = vsub.f32 0.0, %v237
    %v256 = vmul.f32 %v240, 1.442695
    %v257 = vpow.pop %v256
    %v258 = vmul.f32 %v241, 1.442695
    %v259 = vpow.pop %v258
    %v260 = vmul.f32 %v242, 1.442695
    %v261 = vpow.pop %v260
    %v262 = vmul.f32 %v243, 1.442695
    %v263 = vpow.pop %v262
    %v264 = vmul.f32 %v244, 1.442695
    %v265 = vpow.pop %v264
    %v266 = vmul.f32 %v245, 1.442695
    %v267 = vpow.pop %v266
    %v268 = vmul.f32 %v246, 1.442695
    %v269 = vpow.pop %v268
    %v270 = vmul.f32 %v247, 1.442695
    %v271 = vpow.pop %v270
    %v272 = vmul.f32 %v248, 1.442695
    %v273 = vpow.pop %v272
    %v274 = vmul.f32 %v249, 1.442695
    %v275 = vpow.pop %v274
    %v276 = vmul.f32 %v250, 1.442695
    %v277 = vpow.pop %v276
    %v278 = vmul.f32 %v251, 1.442695
    %v279 = vpow.pop %v278
    %v280 = vmul.f32 %v252, 1.442695
    %v281 = vpow.pop %v280
    %v282 = vmul.f32 %v253, 1.442695
    %v283 = vpow.pop %v282
    %v284 = vmul.f32 %v254, 1.442695
    %v285 = vpow.pop %v284
    %v286 = vmul.f32 %v255, 1.442695
    %v287 = vpow.pop %v286
    %v288 = vadd.f32 %v257, 1.0
    %v289 = vadd.f32 %v259, 1.0
    %v290 = vadd.f32 %v261, 1.0
    %v291 = vadd.f32 %v263, 1.0
    %v292 = vadd.f32 %v265, 1.0
    %v293 = vadd.f32 %v267, 1.0
    %v294 = vadd.f32 %v269, 1.0
    %v295 = vadd.f32 %v271, 1.0
    %v296 = vadd.f32 %v273, 1.0
    %v297 = vadd.f32 %v275, 1.0
    %v298 = vadd.f32 %v277, 1.0
    %v299 = vadd.f32 %v279, 1.0
    %v300 = vadd.f32 %v281, 1.0
    %v301 = vadd.f32 %v283, 1.0
    %v302 = vadd.f32 %v285, 1.0
    %v303 = vadd.f32 %v287, 1.0
    %v304 = vrcp.pop %v288
    %v305 = vrcp.pop %v289
    %v306 = vrcp.pop %v290
    %v307 = vrcp.pop %v291
    %v308 = vrcp.pop %v292
    %v309 = vrcp.pop %v293
    %v310 = vrcp.pop %v294
    %v311 = vrcp.pop %v295
    %v312 = vrcp.pop %v296
    %v313 = vrcp.pop %v297
    %v314 = vrcp.pop %v298
    %v315 = vrcp.pop %v299
    %v316 = vrcp.pop %v300
    %v317 = vrcp.pop %v301
    %v318 = vrcp.pop %v302
    %v319 = vrcp.pop %v303
    %336 = vrot.lane.b32.xlu0 %v304, 96
    %v337 = vpop.permute.xlu0 %336
    %338 = vrot.lane.b32.xlu0 %v305, 96
    %v339 = vpop.permute.xlu0 %338
    %340 = vrot.lane.b32.xlu0 %v306, 96
    %v341 = vpop.permute.xlu0 %340
    %342 = vrot.lane.b32.xlu0 %v307, 96
    %v343 = vpop.permute.xlu0 %342
    %344 = vrot.lane.b32.xlu0 %v308, 96
    %v345 = vpop.permute.xlu0 %344
    %346 = vrot.lane.b32.xlu0 %v309, 96
    %v347 = vpop.permute.xlu0 %346
    %348 = vrot.lane.b32.xlu0 %v310, 96
    %v349 = vpop.permute.xlu0 %348
    %350 = vrot.lane.b32.xlu0 %v311, 96
    %v351 = vpop.permute.xlu0 %350
    %352 = vrot.lane.b32.xlu0 %v312, 96
    %v353 = vpop.permute.xlu0 %352
    %354 = vrot.lane.b32.xlu0 %v313, 96
    %v355 = vpop.permute.xlu0 %354
    %356 = vrot.lane.b32.xlu0 %v314, 96
    %v357 = vpop.permute.xlu0 %356
    %358 = vrot.lane.b32.xlu0 %v315, 96
    %v359 = vpop.permute.xlu0 %358
    %360 = vrot.lane.b32.xlu0 %v316, 96
    %v361 = vpop.permute.xlu0 %360
    %362 = vrot.lane.b32.xlu0 %v317, 96
    %v363 = vpop.permute.xlu0 %362
    %364 = vrot.lane.b32.xlu0 %v318, 96
    %v365 = vpop.permute.xlu0 %364
    %366 = vrot.lane.b32.xlu0 %v319, 96
    %v367 = vpop.permute.xlu0 %366
    %v384 = vmul.f32 %v178, %v337
    %v385 = vmul.f32 %v181, %v339
    %v386 = vmul.f32 %v186, %v341
    %v387 = vmul.f32 %v189, %v343
    %v388 = vmul.f32 %v194, %v345
    %v389 = vmul.f32 %v197, %v347
    %v390 = vmul.f32 %v202, %v349
    %v391 = vmul.f32 %v205, %v351
    %v392 = vmul.f32 %v210, %v353
    %v393 = vmul.f32 %v213, %v355
    %v394 = vmul.f32 %v218, %v357
    %v395 = vmul.f32 %v221, %v359
    %v396 = vmul.f32 %v226, %v361
    %v397 = vmul.f32 %v229, %v363
    %v398 = vmul.f32 %v234, %v365
    %v399 = vmul.f32 %v237, %v367
    %v400 = vpack.c.bf16 %v385, %v384
    %v401 = vpack.c.bf16 %v387, %v386
    %v402 = vpack.c.bf16 %v389, %v388
    %v403 = vpack.c.bf16 %v391, %v390
    %v404 = vpack.c.bf16 %v393, %v392
    %v405 = vpack.c.bf16 %v395, %v394
    %v406 = vpack.c.bf16 %v397, %v396
    %v407 = vpack.c.bf16 %v399, %v398
    %v416 = vunpack.c.l.b16 %v400
    %v417 = vunpack.c.h.b16 %v400
    %v418 = vunpack.c.l.b16 %v401
    %v419 = vunpack.c.h.b16 %v401
    %v420 = vunpack.c.l.b16 %v402
    %v421 = vunpack.c.h.b16 %v402
    %v422 = vunpack.c.l.b16 %v403
    %v423 = vunpack.c.h.b16 %v403
    %v424 = vunpack.c.l.b16 %v404
    %v425 = vunpack.c.h.b16 %v404
    %v426 = vunpack.c.l.b16 %v405
    %v427 = vunpack.c.h.b16 %v405
    %v428 = vunpack.c.l.b16 %v406
    %v429 = vunpack.c.h.b16 %v406
    %v430 = vunpack.c.l.b16 %v407
    %v431 = vunpack.c.h.b16 %v407
    %v432 = vpack.c.b16 %v416, %v416
    %v433 = vpack.c.b16 %v417, %v417
    %v434 = vpack.c.b16 %v418, %v418
    %v435 = vpack.c.b16 %v419, %v419
    %v436 = vpack.c.b16 %v420, %v420
    %v437 = vpack.c.b16 %v421, %v421
    %v438 = vpack.c.b16 %v422, %v422
    %v439 = vpack.c.b16 %v423, %v423
    %v440 = vpack.c.b16 %v424, %v424
    %v441 = vpack.c.b16 %v425, %v425
    %v442 = vpack.c.b16 %v426, %v426
    %v443 = vpack.c.b16 %v427, %v427
    %v444 = vpack.c.b16 %v428, %v428
    %v445 = vpack.c.b16 %v429, %v429
    %v446 = vpack.c.b16 %v430, %v430
    %v447 = vpack.c.b16 %v431, %v431
    %vm464 = vcmask 257024
    %465 = vst.msk [vmem:[%s3] sm:$0xf] %vm464, %v432
    %466 = vst.msk [vmem:[%s3 + $0x4] sm:$0xf] %vm464, %v433
    %467 = vst.msk [vmem:[%s3 + $0x8] sm:$0xf] %vm464, %v434
    %468 = vst.msk [vmem:[%s3 + $0xc] sm:$0xf] %vm464, %v435
    %469 = vst.msk [vmem:[%s3 + $0x10] sm:$0xf] %vm464, %v436
    %470 = vst.msk [vmem:[%s3 + $0x14] sm:$0xf] %vm464, %v437
    %471 = vst.msk [vmem:[%s3 + $0x18] sm:$0xf] %vm464, %v438
    %472 = vst.msk [vmem:[%s3 + $0x1c] sm:$0xf] %vm464, %v439
    %473 = vst.msk [vmem:[%s3 + $0x20] sm:$0xf] %vm464, %v440
    %474 = vst.msk [vmem:[%s3 + $0x24] sm:$0xf] %vm464, %v441
    %475 = vst.msk [vmem:[%s3 + $0x28] sm:$0xf] %vm464, %v442
    %476 = vst.msk [vmem:[%s3 + $0x2c] sm:$0xf] %vm464, %v443
    %477 = vst.msk [vmem:[%s3 + $0x30] sm:$0xf] %vm464, %v444
    %478 = vst.msk [vmem:[%s3 + $0x34] sm:$0xf] %vm464, %v445
    %479 = vst.msk [vmem:[%s3 + $0x38] sm:$0xf] %vm464, %v446
    %480 = vst.msk [vmem:[%s3 + $0x3c] sm:$0xf] %vm464, %v447
    // Predicated region
    $region22: #{generator_forward.12} parent=1 // pred_check
      _
    $region23: #{generator_forward.12} parent=1 // pred_check_branch
      %482 = sbr.rel (0) target = $region25
    $region24: #{generator_forward.12} parent=1 // pred_region
      _
    $region25: #{generator_forward.12} parent=1 // pred_fallthru
      _
    // Predicated region
    $region26: #{generator_forward.12} parent=1 // pred_check
      _
    $region27: #{generator_forward.12} parent=1 // pred_check_branch
      %484 = sbr.rel (0) target = $region29
    $region28: #{generator_forward.12} parent=1 // pred_region
      _
    $region29: #{generator_forward.12} parent=1 // pred_fallthru
      _
    %485 = vsyncpa [#allocation3], 1
    %486 = vsyncpa [#allocation5], 1

// kernel: generator_forward.17
$region0: #{generator_forward.17}
  #allocation0 [shape = 'u32[]', space=smem, size = 0x4, offset = 0x4, fixed_abs, tag = 'smem constant byte address 0x4 - core index']
  #allocation1 [shape = 'u32[144,128]{1,0:T(1,128)}', space=vmem, size = 0x12000, scoped, tag = 'internal scratch']
  %s0 = inlined_call_operand.vmem [shape: bf16[8,256], index: 0, kind: input, shape index: {}]
  %s1 = inlined_call_operand.vmem [shape: bf16[256,128], index: 1, kind: input, shape index: {}]
  %s2 = inlined_call_operand.vmem [shape: f32[1,128], index: 2, kind: input, shape index: {}]
  %s3 = inlined_call_operand.vmem [shape: f32[1,128], index: 3, kind: input, shape index: {}]
  %s4 = inlined_call_operand.vmem [shape: f32[1,128], index: 4, kind: input, shape index: {}]
  %s5 = inlined_call_operand.vmem [shape: f32[1,128], index: 5, kind: input, shape index: {}]
  %s6 = inlined_call_operand.vmem [shape: f32[1,128], index: 6, kind: input, shape index: {}]
  %s7 = inlined_call_operand.vmem [shape: bf16[8,128], index: 7, kind: output, shape index: {}]
  %s8 = sld [smem:[#allocation0]]
  $region38: #{generator_forward.17} parent=0
    _
  %s10 = ssub.s32 1, %s8
  %s11 = scalar_select 0, %s10, %s8
  // Predicated region
  $region2: #{generator_forward.17} parent=0 // pred_check
    _
  $region3: #{generator_forward.17} parent=0 // pred_check_branch
    %13 = sbr.rel (0) target = $region5
  $region4: #{generator_forward.17} parent=0 // pred_region
    _
  $region5: #{generator_forward.17} parent=0 // pred_fallthru
    _
  // Predicated region
  $region6: #{generator_forward.17} parent=0 // pred_check
    _
  $region7: #{generator_forward.17} parent=0 // pred_check_branch
    %15 = sbr.rel (0) target = $region9
  $region8: #{generator_forward.17} parent=0 // pred_region
    _
  $region9: #{generator_forward.17} parent=0 // pred_fallthru
    _
  // Predicated region
  $region10: #{generator_forward.17} parent=0 // pred_check
    _
  $region11: #{generator_forward.17} parent=0 // pred_check_branch
    %17 = sbr.rel (0) target = $region13
  $region12: #{generator_forward.17} parent=0 // pred_region
    _
  $region13: #{generator_forward.17} parent=0 // pred_fallthru
    _
  // Predicated region
  $region14: #{generator_forward.17} parent=0 // pred_check
    _
  $region15: #{generator_forward.17} parent=0 // pred_check_branch
    %19 = sbr.rel (0) target = $region17
  $region16: #{generator_forward.17} parent=0 // pred_region
    _
  $region17: #{generator_forward.17} parent=0 // pred_fallthru
    _
  // Predicated region
  $region18: #{generator_forward.17} parent=0 // pred_check
    _
  $region19: #{generator_forward.17} parent=0 // pred_check_branch
    %21 = sbr.rel (0) target = $region21
  $region20: #{generator_forward.17} parent=0 // pred_region
    _
  $region21: #{generator_forward.17} parent=0 // pred_fallthru
    _
  // Predicated region
  $region22: #{generator_forward.17} parent=0 // pred_check
    _
  $region23: #{generator_forward.17} parent=0 // pred_check_branch
    %23 = sbr.rel (0) target = $region25
  $region24: #{generator_forward.17} parent=0 // pred_region
    _
  $region25: #{generator_forward.17} parent=0 // pred_fallthru
    _
  // Predicated region
  $region26: #{generator_forward.17} parent=0 // pred_check
    _
  $region27: #{generator_forward.17} parent=0 // pred_check_branch
    %25 = sbr.rel (0) target = $region29
  $region28: #{generator_forward.17} parent=0 // pred_region
    _
  $region29: #{generator_forward.17} parent=0 // pred_fallthru
    _
  %v27 = vld [vmem:[%s0] sm:$0xff]
  %v28 = vld [vmem:[%s1] sm:$0xf]
  %v29 = vld [vmem:[%s1 + $0x4] sm:$0xf]
  %v30 = vld [vmem:[%s1 + $0x8] sm:$0xf]
  %v31 = vld [vmem:[%s1 + $0xc] sm:$0xf]
  %v32 = vld [vmem:[%s1 + $0x10] sm:$0xf]
  %v33 = vld [vmem:[%s1 + $0x14] sm:$0xf]
  %v34 = vld [vmem:[%s1 + $0x18] sm:$0xf]
  %v35 = vld [vmem:[%s1 + $0x1c] sm:$0xf]
  %v36 = vld [vmem:[%s1 + $0x20] sm:$0xf]
  %v37 = vld [vmem:[%s1 + $0x24] sm:$0xf]
  %v38 = vld [vmem:[%s1 + $0x28] sm:$0xf]
  %v39 = vld [vmem:[%s1 + $0x2c] sm:$0xf]
  %v40 = vld [vmem:[%s1 + $0x30] sm:$0xf]
  %v41 = vld [vmem:[%s1 + $0x34] sm:$0xf]
  %v42 = vld [vmem:[%s1 + $0x38] sm:$0xf]
  %v43 = vld [vmem:[%s1 + $0x3c] sm:$0xf]
  %v44 = vld [vmem:[%s1 + $0x40] sm:$0xf]
  %v45 = vld [vmem:[%s1 + $0x44] sm:$0xf]
  %v46 = vld [vmem:[%s1 + $0x48] sm:$0xf]
  %v47 = vld [vmem:[%s1 + $0x4c] sm:$0xf]
  %v48 = vld [vmem:[%s1 + $0x50] sm:$0xf]
  %v49 = vld [vmem:[%s1 + $0x54] sm:$0xf]
  %v50 = vld [vmem:[%s1 + $0x58] sm:$0xf]
  %v51 = vld [vmem:[%s1 + $0x5c] sm:$0xf]
  %v52 = vld [vmem:[%s1 + $0x60] sm:$0xf]
  %v53 = vld [vmem:[%s1 + $0x64] sm:$0xf]
  %v54 = vld [vmem:[%s1 + $0x68] sm:$0xf]
  %v55 = vld [vmem:[%s1 + $0x6c] sm:$0xf]
  %v56 = vld [vmem:[%s1 + $0x70] sm:$0xf]
  %v57 = vld [vmem:[%s1 + $0x74] sm:$0xf]
  %v58 = vld [vmem:[%s1 + $0x78] sm:$0xf]
  %v59 = vld [vmem:[%s1 + $0x7c] sm:$0xf]
  %v60 = vld [vmem:[%s2] sm:$0x1]
  %v62 = vlaneseq
  %v63 = vshrl.u32 %v62, 7
  %v64 = vsub.s32 0, %v63
  %v65 = vrot.slane %v60, %v64
  %v68 = vunpack.c.l.b16 %v27
  %v69 = vunpack.c.h.b16 %v27
  %v70 = vpack.c.b16 %v68, %v68
  %v71 = vpack.c.b16 %v69, %v69
  %v106 = vunpack.c.l.b16 %v28
  %v107 = vunpack.c.l.b16 %v29
  %v108 = vunpack.c.l.b16 %v30
  %v109 = vunpack.c.l.b16 %v31
  %v110 = vunpack.c.l.b16 %v32
  %v111 = vunpack.c.l.b16 %v33
  %v112 = vunpack.c.l.b16 %v34
  %v113 = vunpack.c.l.b16 %v35
  %v114 = vunpack.c.l.b16 %v36
  %v115 = vunpack.c.l.b16 %v37
  %v116 = vunpack.c.l.b16 %v38
  %v117 = vunpack.c.l.b16 %v39
  %v118 = vunpack.c.l.b16 %v40
  %v119 = vunpack.c.l.b16 %v41
  %v120 = vunpack.c.l.b16 %v42
  %v121 = vunpack.c.l.b16 %v43
  %v122 = vunpack.c.l.b16 %v44
  %v123 = vunpack.c.l.b16 %v45
  %v124 = vunpack.c.l.b16 %v46
  %v125 = vunpack.c.l.b16 %v47
  %v126 = vunpack.c.l.b16 %v48
  %v127 = vunpack.c.l.b16 %v49
  %v128 = vunpack.c.l.b16 %v50
  %v129 = vunpack.c.l.b16 %v51
  %v130 = vunpack.c.l.b16 %v52
  %v131 = vunpack.c.l.b16 %v53
  %v132 = vunpack.c.l.b16 %v54
  %v133 = vunpack.c.l.b16 %v55
  %v134 = vunpack.c.l.b16 %v56
  %v135 = vunpack.c.l.b16 %v57
  %v136 = vunpack.c.l.b16 %v58
  %v137 = vunpack.c.l.b16 %v59
  %v138 = vpack.c.b16 %v107, %v106
  %v139 = vpack.c.b16 %v109, %v108
  %v140 = vpack.c.b16 %v111, %v110
  %v141 = vpack.c.b16 %v113, %v112
  %v142 = vpack.c.b16 %v115, %v114
  %v143 = vpack.c.b16 %v117, %v116
  %v144 = vpack.c.b16 %v119, %v118
  %v145 = vpack.c.b16 %v121, %v120
  %v146 = vpack.c.b16 %v123, %v122
  %v147 = vpack.c.b16 %v125, %v124
  %v148 = vpack.c.b16 %v127, %v126
  %v149 = vpack.c.b16 %v129, %v128
  %v150 = vpack.c.b16 %v131, %v130
  %v151 = vpack.c.b16 %v133, %v132
  %v152 = vpack.c.b16 %v135, %v134
  %v153 = vpack.c.b16 %v137, %v136
  %170 = vmatprep.subr.bf16.mxu0 0
  %171 = vmatpush1.bf16.msra.mxu0 %v138
  %172 = vmatprep.subr.bf16.mxu0 0
  %173 = vmatpush1.bf16.msra.mxu0 %v139
  %174 = vmatprep.subr.bf16.mxu0 0
  %175 = vmatpush1.bf16.msra.mxu0 %v140
  %176 = vmatprep.subr.bf16.mxu0 0
  %177 = vmatpush1.bf16.msra.mxu0 %v141
  %178 = vmatprep.subr.bf16.mxu0 0
  %179 = vmatpush1.bf16.msra.mxu0 %v142
  %180 = vmatprep.subr.bf16.mxu0 0
  %181 = vmatpush1.bf16.msra.mxu0 %v143
  %182 = vmatprep.subr.bf16.mxu0 0
  %183 = vmatpush1.bf16.msra.mxu0 %v144
  %184 = vmatprep.subr.bf16.mxu0 0
  %185 = vmatpush1.bf16.msra.mxu0 %v145
  %186 = vmatprep.subr.bf16.mxu0 0
  %187 = vmatpush1.bf16.msra.mxu0 %v146
  %188 = vmatprep.subr.bf16.mxu0 0
  %189 = vmatpush1.bf16.msra.mxu0 %v147
  %190 = vmatprep.subr.bf16.mxu0 0
  %191 = vmatpush1.bf16.msra.mxu0 %v148
  %192 = vmatprep.subr.bf16.mxu0 0
  %193 = vmatpush1.bf16.msra.mxu0 %v149
  %194 = vmatprep.subr.bf16.mxu0 0
  %195 = vmatpush1.bf16.msra.mxu0 %v150
  %196 = vmatprep.subr.bf16.mxu0 0
  %197 = vmatpush1.bf16.msra.mxu0 %v151
  %198 = vmatprep.subr.bf16.mxu0 0
  %199 = vmatpush1.bf16.msra.mxu0 %v152
  %200 = vmatprep.subr.bf16.mxu0 0
  %201 = vmatpush1.bf16.msra.mxu0 %v153
  %202 = vmatprep.mubr.bf16.mxu0 %v71
  %203 = vmatmul.mubr.bf16.gmra.mrb[0].mxu0 %v70
  %v204 = vpop.f32.mrb[0].mxu0
  %v205 = vadd.f32 %v65, %v204
  %v206 = vpop.f32.mrb[0].mxu0
  %v207 = vpop.f32.mrb[0].mxu0
  %v208 = vpop.f32.mrb[0].mxu0
  %209 = vdwg.mxu0
  %v210 = vld [vmem:[%s3] sm:$0x1]
  %v211 = vmul.f32 %v210, 0.125
  %v212 = vld [vmem:[%s4] sm:$0x1]
  %v213 = vmul.f32 %v212, 0.125
  %v214 = vmul.f32 %v211, %v211
  %v215 = vsub.f32 %v213, %v214
  %v216 = vmax.f32 %v215, 0.0
  %v217 = vadd.f32 %v216, 1e-05
  %v218 = vrsqrt.pop %v217
  %v219 = vld [vmem:[%s5] sm:$0x1]
  %v220 = vmul.f32 %v218, %v219
  %v222 = vlaneseq
  %v223 = vshrl.u32 %v222, 7
  %v224 = vsub.s32 0, %v223
  %v225 = vrot.slane %v211, %v224
  %v227 = vsub.f32 %v205, %v225
  %v229 = vlaneseq
  %v230 = vshrl.u32 %v229, 7
  %v231 = vsub.s32 0, %v230
  %v232 = vrot.slane %v220, %v231
  %v234 = vmul.f32 %v227, %v232
  %v235 = vld [vmem:[%s6] sm:$0x1]
  %v237 = vlaneseq
  %v238 = vshrl.u32 %v237, 7
  %v239 = vsub.s32 0, %v238
  %v240 = vrot.slane %v235, %v239
  %v242 = vadd.f32 %v234, %v240
  %v243 = vpack.c.bf16 %v242, %v242
  %244 = vst [vmem:[%s7] sm:$0xf] %v243
  // Predicated region
  $region30: #{generator_forward.17} parent=0 // pred_check
    _
  $region31: #{generator_forward.17} parent=0 // pred_check_branch
    %246 = sbr.rel (0) target = $region33
  $region32: #{generator_forward.17} parent=0 // pred_region
    _
  $region33: #{generator_forward.17} parent=0 // pred_fallthru
    _
  // Predicated region
  $region34: #{generator_forward.17} parent=0 // pred_check
    _
  $region35: #{generator_forward.17} parent=0 // pred_check_branch
    %248 = sbr.rel (0) target = $region37
  $region36: #{generator_forward.17} parent=0 // pred_region
    _
  $region37: #{generator_forward.17} parent=0 // pred_fallthru
    _

// kernel: generator_forward.14
$region0: #{generator_forward.14}
  #allocation0 [shape = 'u32[]', space=smem, size = 0x4, offset = 0x4, fixed_abs, tag = 'smem constant byte address 0x4 - core index']
  #allocation1 [shape = 'u32[144,128]{1,0:T(1,128)}', space=vmem, size = 0x12000, scoped, tag = 'internal scratch']
  %s0 = inlined_call_operand.vmem [shape: bf16[8,576], index: 0, kind: input, shape index: {}]
  %s1 = inlined_call_operand.vmem [shape: bf16[576,256], index: 1, kind: input, shape index: {}]
  %s2 = inlined_call_operand.vmem [shape: f32[1,256], index: 2, kind: input, shape index: {}]
  %s3 = inlined_call_operand.vmem [shape: bf16[8,128], index: 3, kind: output, shape index: {}]
  %s4 = sld [smem:[#allocation0]]
  $region22: #{generator_forward.14} parent=0
    _
  %s6 = ssub.s32 1, %s4
  %s7 = scalar_select 0, %s6, %s4
  // Predicated region
  $region2: #{generator_forward.14} parent=0 // pred_check
    _
  $region3: #{generator_forward.14} parent=0 // pred_check_branch
    %9 = sbr.rel (0) target = $region5
  $region4: #{generator_forward.14} parent=0 // pred_region
    _
  $region5: #{generator_forward.14} parent=0 // pred_fallthru
    _
  // Predicated region
  $region6: #{generator_forward.14} parent=0 // pred_check
    _
  $region7: #{generator_forward.14} parent=0 // pred_check_branch
    %11 = sbr.rel (0) target = $region9
  $region8: #{generator_forward.14} parent=0 // pred_region
    _
  $region9: #{generator_forward.14} parent=0 // pred_fallthru
    _
  // Predicated region
  $region10: #{generator_forward.14} parent=0 // pred_check
    _
  $region11: #{generator_forward.14} parent=0 // pred_check_branch
    %13 = sbr.rel (0) target = $region13
  $region12: #{generator_forward.14} parent=0 // pred_region
    _
  $region13: #{generator_forward.14} parent=0 // pred_fallthru
    _
  %v15 = vld [vmem:[%s0] sm:$0xff]
  %v16 = vld [vmem:[%s0 + $0x8] sm:$0xff]
  %v17 = vld [vmem:[%s0 + $0x10] sm:$0xf]
  %v18 = vld [vmem:[%s1] sm:$0xff]
  %v19 = vld [vmem:[%s1 + $0x8] sm:$0xff]
  %v20 = vld [vmem:[%s1 + $0x10] sm:$0xff]
  %v21 = vld [vmem:[%s1 + $0x18] sm:$0xff]
  %v22 = vld [vmem:[%s1 + $0x20] sm:$0xff]
  %v23 = vld [vmem:[%s1 + $0x28] sm:$0xff]
  %v24 = vld [vmem:[%s1 + $0x30] sm:$0xff]
  %v25 = vld [vmem:[%s1 + $0x38] sm:$0xff]
  %v26 = vld [vmem:[%s1 + $0x40] sm:$0xff]
  %v27 = vld [vmem:[%s1 + $0x48] sm:$0xff]
  %v28 = vld [vmem:[%s1 + $0x50] sm:$0xff]
  %v29 = vld [vmem:[%s1 + $0x58] sm:$0xff]
  %v30 = vld [vmem:[%s1 + $0x60] sm:$0xff]
  %v31 = vld [vmem:[%s1 + $0x68] sm:$0xff]
  %v32 = vld [vmem:[%s1 + $0x70] sm:$0xff]
  %v33 = vld [vmem:[%s1 + $0x78] sm:$0xff]
  %v34 = vld [vmem:[%s1 + $0x80] sm:$0xff]
  %v35 = vld [vmem:[%s1 + $0x88] sm:$0xff]
  %v36 = vld [vmem:[%s1 + $0x90] sm:$0xff]
  %v37 = vld [vmem:[%s1 + $0x98] sm:$0xff]
  %v38 = vld [vmem:[%s1 + $0xa0] sm:$0xff]
  %v39 = vld [vmem:[%s1 + $0xa8] sm:$0xff]
  %v40 = vld [vmem:[%s1 + $0xb0] sm:$0xff]
  %v41 = vld [vmem:[%s1 + $0xb8] sm:$0xff]
  %v42 = vld [vmem:[%s1 + $0xc0] sm:$0xff]
  %v43 = vld [vmem:[%s1 + $0xc8] sm:$0xff]
  %v44 = vld [vmem:[%s1 + $0xd0] sm:$0xff]
  %v45 = vld [vmem:[%s1 + $0xd8] sm:$0xff]
  %v46 = vld [vmem:[%s1 + $0xe0] sm:$0xff]
  %v47 = vld [vmem:[%s1 + $0xe8] sm:$0xff]
  %v48 = vld [vmem:[%s1 + $0xf0] sm:$0xff]
  %v49 = vld [vmem:[%s1 + $0xf8] sm:$0xff]
  %v50 = vld [vmem:[%s1 + $0x100] sm:$0xff]
  %v51 = vld [vmem:[%s1 + $0x108] sm:$0xff]
  %v52 = vld [vmem:[%s1 + $0x110] sm:$0xff]
  %v53 = vld [vmem:[%s1 + $0x118] sm:$0xff]
  %v54 = vld [vmem:[%s1 + $0x120] sm:$0xff]
  %v55 = vld [vmem:[%s1 + $0x128] sm:$0xff]
  %v56 = vld [vmem:[%s1 + $0x130] sm:$0xff]
  %v57 = vld [vmem:[%s1 + $0x138] sm:$0xff]
  %v58 = vld [vmem:[%s1 + $0x140] sm:$0xff]
  %v59 = vld [vmem:[%s1 + $0x148] sm:$0xff]
  %v60 = vld [vmem:[%s1 + $0x150] sm:$0xff]
  %v61 = vld [vmem:[%s1 + $0x158] sm:$0xff]
  %v62 = vld [vmem:[%s1 + $0x160] sm:$0xff]
  %v63 = vld [vmem:[%s1 + $0x168] sm:$0xff]
  %v64 = vld [vmem:[%s1 + $0x170] sm:$0xff]
  %v65 = vld [vmem:[%s1 + $0x178] sm:$0xff]
  %v66 = vld [vmem:[%s1 + $0x180] sm:$0xff]
  %v67 = vld [vmem:[%s1 + $0x188] sm:$0xff]
  %v68 = vld [vmem:[%s1 + $0x190] sm:$0xff]
  %v69 = vld [vmem:[%s1 + $0x198] sm:$0xff]
  %v70 = vld [vmem:[%s1 + $0x1a0] sm:$0xff]
  %v71 = vld [vmem:[%s1 + $0x1a8] sm:$0xff]
  %v72 = vld [vmem:[%s1 + $0x1b0] sm:$0xff]
  %v73 = vld [vmem:[%s1 + $0x1b8] sm:$0xff]
  %v74 = vld [vmem:[%s1 + $0x1c0] sm:$0xff]
  %v75 = vld [vmem:[%s1 + $0x1c8] sm:$0xff]
  %v76 = vld [vmem:[%s1 + $0x1d0] sm:$0xff]
  %v77 = vld [vmem:[%s1 + $0x1d8] sm:$0xff]
  %v78 = vld [vmem:[%s1 + $0x1e0] sm:$0xff]
  %v79 = vld [vmem:[%s1 + $0x1e8] sm:$0xff]
  %v80 = vld [vmem:[%s1 + $0x1f0] sm:$0xff]
  %v81 = vld [vmem:[%s1 + $0x1f8] sm:$0xff]
  %v82 = vld [vmem:[%s1 + $0x200] sm:$0xff]
  %v83 = vld [vmem:[%s1 + $0x208] sm:$0xff]
  %v84 = vld [vmem:[%s1 + $0x210] sm:$0xff]
  %v85 = vld [vmem:[%s1 + $0x218] sm:$0xff]
  %v86 = vld [vmem:[%s1 + $0x220] sm:$0xff]
  %v87 = vld [vmem:[%s1 + $0x228] sm:$0xff]
  %v88 = vld [vmem:[%s1 + $0x230] sm:$0xff]
  %v89 = vld [vmem:[%s1 + $0x238] sm:$0xff]
  %v90 = vld [vmem:[%s2] sm:$0x3]
  %v92 = vlaneseq
  %v93 = vshrl.u32 %v92, 7
  %v94 = vsub.s32 0, %v93
  %v95 = vrot.slane %v90, %v94
  %v96 = vlaneseq
  %v97 = vshrl.u32 %v96, 7
  %v98 = vsub.s32 1, %v97
  %v99 = vrot.slane %v90, %v98
  %v105 = vunpack.c.l.b16 %v15
  %v106 = vunpack.c.h.b16 %v15
  %v107 = vunpack.c.l.b16 %v16
  %v108 = vunpack.c.h.b16 %v16
  %v109 = vunpack.c.l.b16 %v17
  %v110 = vpack.c.b16 %v105, %v105
  %v111 = vpack.c.b16 %v106, %v106
  %v112 = vpack.c.b16 %v107, %v107
  %v113 = vpack.c.b16 %v108, %v108
  %v114 = vpack.c.b16 %v109, %v109
  %v191 = vunpack.c.l.b16 %v18
  %v192 = vunpack.c.h.b16 %v18
  %v193 = vunpack.c.l.b16 %v19
  %v194 = vunpack.c.h.b16 %v19
  %v195 = vunpack.c.l.b16 %v20
  %v196 = vunpack.c.h.b16 %v20
  %v197 = vunpack.c.l.b16 %v21
  %v198 = vunpack.c.h.b16 %v21
  %v199 = vunpack.c.l.b16 %v22
  %v200 = vunpack.c.h.b16 %v22
  %v201 = vunpack.c.l.b16 %v23
  %v202 = vunpack.c.h.b16 %v23
  %v203 = vunpack.c.l.b16 %v24
  %v204 = vunpack.c.h.b16 %v24
  %v205 = vunpack.c.l.b16 %v25
  %v206 = vunpack.c.h.b16 %v25
  %v207 = vunpack.c.l.b16 %v26
  %v208 = vunpack.c.h.b16 %v26
  %v209 = vunpack.c.l.b16 %v27
  %v210 = vunpack.c.h.b16 %v27
  %v211 = vunpack.c.l.b16 %v28
  %v212 = vunpack.c.h.b16 %v28
  %v213 = vunpack.c.l.b16 %v29
  %v214 = vunpack.c.h.b16 %v29
  %v215 = vunpack.c.l.b16 %v30
  %v216 = vunpack.c.h.b16 %v30
  %v217 = vunpack.c.l.b16 %v31
  %v218 = vunpack.c.h.b16 %v31
  %v219 = vunpack.c.l.b16 %v32
  %v220 = vunpack.c.h.b16 %v32
  %v221 = vunpack.c.l.b16 %v33
  %v222 = vunpack.c.h.b16 %v33
  %v223 = vunpack.c.l.b16 %v34
  %v224 = vunpack.c.h.b16 %v34
  %v225 = vunpack.c.l.b16 %v35
  %v226 = vunpack.c.h.b16 %v35
  %v227 = vunpack.c.l.b16 %v36
  %v228 = vunpack.c.h.b16 %v36
  %v229 = vunpack.c.l.b16 %v37
  %v230 = vunpack.c.h.b16 %v37
  %v231 = vunpack.c.l.b16 %v38
  %v232 = vunpack.c.h.b16 %v38
  %v233 = vunpack.c.l.b16 %v39
  %v234 = vunpack.c.h.b16 %v39
  %v235 = vunpack.c.l.b16 %v40
  %v236 = vunpack.c.h.b16 %v40
  %v237 = vunpack.c.l.b16 %v41
  %v238 = vunpack.c.h.b16 %v41
  %v239 = vunpack.c.l.b16 %v42
  %v240 = vunpack.c.h.b16 %v42
  %v241 = vunpack.c.l.b16 %v43
  %v242 = vunpack.c.h.b16 %v43
  %v243 = vunpack.c.l.b16 %v44
  %v244 = vunpack.c.h.b16 %v44
  %v245 = vunpack.c.l.b16 %v45
  %v246 = vunpack.c.h.b16 %v45
  %v247 = vunpack.c.l.b16 %v46
  %v248 = vunpack.c.h.b16 %v46
  %v249 = vunpack.c.l.b16 %v47
  %v250 = vunpack.c.h.b16 %v47
  %v251 = vunpack.c.l.b16 %v48
  %v252 = vunpack.c.h.b16 %v48
  %v253 = vunpack.c.l.b16 %v49
  %v254 = vunpack.c.h.b16 %v49
  %v255 = vunpack.c.l.b16 %v50
  %v256 = vunpack.c.h.b16 %v50
  %v257 = vunpack.c.l.b16 %v51
  %v258 = vunpack.c.h.b16 %v51
  %v259 = vunpack.c.l.b16 %v52
  %v260 = vunpack.c.h.b16 %v52
  %v261 = vunpack.c.l.b16 %v53
  %v262 = vunpack.c.h.b16 %v53
  %v263 = vunpack.c.l.b16 %v54
  %v264 = vunpack.c.h.b16 %v54
  %v265 = vunpack.c.l.b16 %v55
  %v266 = vunpack.c.h.b16 %v55
  %v267 = vunpack.c.l.b16 %v56
  %v268 = vunpack.c.h.b16 %v56
  %v269 = vunpack.c.l.b16 %v57
  %v270 = vunpack.c.h.b16 %v57
  %v271 = vunpack.c.l.b16 %v58
  %v272 = vunpack.c.h.b16 %v58
  %v273 = vunpack.c.l.b16 %v59
  %v274 = vunpack.c.h.b16 %v59
  %v275 = vunpack.c.l.b16 %v60
  %v276 = vunpack.c.h.b16 %v60
  %v277 = vunpack.c.l.b16 %v61
  %v278 = vunpack.c.h.b16 %v61
  %v279 = vunpack.c.l.b16 %v62
  %v280 = vunpack.c.h.b16 %v62
  %v281 = vunpack.c.l.b16 %v63
  %v282 = vunpack.c.h.b16 %v63
  %v283 = vunpack.c.l.b16 %v64
  %v284 = vunpack.c.h.b16 %v64
  %v285 = vunpack.c.l.b16 %v65
  %v286 = vunpack.c.h.b16 %v65
  %v287 = vunpack.c.l.b16 %v66
  %v288 = vunpack.c.h.b16 %v66
  %v289 = vunpack.c.l.b16 %v67
  %v290 = vunpack.c.h.b16 %v67
  %v291 = vunpack.c.l.b16 %v68
  %v292 = vunpack.c.h.b16 %v68
  %v293 = vunpack.c.l.b16 %v69
  %v294 = vunpack.c.h.b16 %v69
  %v295 = vunpack.c.l.b16 %v70
  %v296 = vunpack.c.h.b16 %v70
  %v297 = vunpack.c.l.b16 %v71
  %v298 = vunpack.c.h.b16 %v71
  %v299 = vunpack.c.l.b16 %v72
  %v300 = vunpack.c.h.b16 %v72
  %v301 = vunpack.c.l.b16 %v73
  %v302 = vunpack.c.h.b16 %v73
  %v303 = vunpack.c.l.b16 %v74
  %v304 = vunpack.c.h.b16 %v74
  %v305 = vunpack.c.l.b16 %v75
  %v306 = vunpack.c.h.b16 %v75
  %v307 = vunpack.c.l.b16 %v76
  %v308 = vunpack.c.h.b16 %v76
  %v309 = vunpack.c.l.b16 %v77
  %v310 = vunpack.c.h.b16 %v77
  %v311 = vunpack.c.l.b16 %v78
  %v312 = vunpack.c.h.b16 %v78
  %v313 = vunpack.c.l.b16 %v79
  %v314 = vunpack.c.h.b16 %v79
  %v315 = vunpack.c.l.b16 %v80
  %v316 = vunpack.c.h.b16 %v80
  %v317 = vunpack.c.l.b16 %v81
  %v318 = vunpack.c.h.b16 %v81
  %v319 = vunpack.c.l.b16 %v82
  %v320 = vunpack.c.h.b16 %v82
  %v321 = vunpack.c.l.b16 %v83
  %v322 = vunpack.c.h.b16 %v83
  %v323 = vunpack.c.l.b16 %v84
  %v324 = vunpack.c.h.b16 %v84
  %v325 = vunpack.c.l.b16 %v85
  %v326 = vunpack.c.h.b16 %v85
  %v327 = vunpack.c.l.b16 %v86
  %v328 = vunpack.c.h.b16 %v86
  %v329 = vunpack.c.l.b16 %v87
  %v330 = vunpack.c.h.b16 %v87
  %v331 = vunpack.c.l.b16 %v88
  %v332 = vunpack.c.h.b16 %v88
  %v333 = vunpack.c.l.b16 %v89
  %v334 = vunpack.c.h.b16 %v89
  %v335 = vpack.c.b16 %v193, %v191
  %v336 = vpack.c.b16 %v194, %v192
  %v337 = vpack.c.b16 %v197, %v195
  %v338 = vpack.c.b16 %v198, %v196
  %v339 = vpack.c.b16 %v201, %v199
  %v340 = vpack.c.b16 %v202, %v200
  %v341 = vpack.c.b16 %v205, %v203
  %v342 = vpack.c.b16 %v206, %v204
  %v343 = vpack.c.b16 %v209, %v207
  %v344 = vpack.c.b16 %v210, %v208
  %v345 = vpack.c.b16 %v213, %v211
  %v346 = vpack.c.b16 %v214, %v212
  %v347 = vpack.c.b16 %v217, %v215
  %v348 = vpack.c.b16 %v218, %v216
  %v349 = vpack.c.b16 %v221, %v219
  %v350 = vpack.c.b16 %v222, %v220
  %v351 = vpack.c.b16 %v225, %v223
  %v352 = vpack.c.b16 %v226, %v224
  %v353 = vpack.c.b16 %v229, %v227
  %v354 = vpack.c.b16 %v230, %v228
  %v355 = vpack.c.b16 %v233, %v231
  %v356 = vpack.c.b16 %v234, %v232
  %v357 = vpack.c.b16 %v237, %v235
  %v358 = vpack.c.b16 %v238, %v236
  %v359 = vpack.c.b16 %v241, %v239
  %v360 = vpack.c.b16 %v242, %v240
  %v361 = vpack.c.b16 %v245, %v243
  %v362 = vpack.c.b16 %v246, %v244
  %v363 = vpack.c.b16 %v249, %v247
  %v364 = vpack.c.b16 %v250, %v248
  %v365 = vpack.c.b16 %v253, %v251
  %v366 = vpack.c.b16 %v254, %v252
  %v367 = vpack.c.b16 %v257, %v255
  %v368 = vpack.c.b16 %v258, %v256
  %v369 = vpack.c.b16 %v261, %v259
  %v370 = vpack.c.b16 %v262, %v260
  %v371 = vpack.c.b16 %v265, %v263
  %v372 = vpack.c.b16 %v266, %v264
  %v373 = vpack.c.b16 %v269, %v267
  %v374 = vpack.c.b16 %v270, %v268
  %v375 = vpack.c.b16 %v273, %v271
  %v376 = vpack.c.b16 %v274, %v272
  %v377 = vpack.c.b16 %v277, %v275
  %v378 = vpack.c.b16 %v278, %v276
  %v379 = vpack.c.b16 %v281, %v279
  %v380 = vpack.c.b16 %v282, %v280
  %v381 = vpack.c.b16 %v285, %v283
  %v382 = vpack.c.b16 %v286, %v284
  %v383 = vpack.c.b16 %v289, %v287
  %v384 = vpack.c.b16 %v290, %v288
  %v385 = vpack.c.b16 %v293, %v291
  %v386 = vpack.c.b16 %v294, %v292
  %v387 = vpack.c.b16 %v297, %v295
  %v388 = vpack.c.b16 %v298, %v296
  %v389 = vpack.c.b16 %v301, %v299
  %v390 = vpack.c.b16 %v302, %v300
  %v391 = vpack.c.b16 %v305, %v303
  %v392 = vpack.c.b16 %v306, %v304
  %v393 = vpack.c.b16 %v309, %v307
  %v394 = vpack.c.b16 %v310, %v308
  %v395 = vpack.c.b16 %v313, %v311
  %v396 = vpack.c.b16 %v314, %v312
  %v397 = vpack.c.b16 %v317, %v315
  %v398 = vpack.c.b16 %v318, %v316
  %v399 = vpack.c.b16 %v321, %v319
  %v400 = vpack.c.b16 %v322, %v320
  %v401 = vpack.c.b16 %v325, %v323
  %v402 = vpack.c.b16 %v326, %v324
  %v403 = vpack.c.b16 %v329, %v327
  %v404 = vpack.c.b16 %v330, %v328
  %v405 = vpack.c.b16 %v333, %v331
  %v406 = vpack.c.b16 %v334, %v332
  %vm479 = vcmask 523264
  %v481 = vsel %vm479, %v114, 0
  %483 = vmatprep.subr.bf16.mxu0 %v336
  %484 = vmatpush1.bf16.msra.mxu0 %v335
  %485 = vmatprep.subr.bf16.mxu0 %v338
  %486 = vmatpush1.bf16.msra.mxu0 %v337
  %487 = vmatprep.subr.bf16.mxu0 %v340
  %488 = vmatpush1.bf16.msra.mxu0 %v339
  %489 = vmatprep.subr.bf16.mxu0 %v342
  %490 = vmatpush1.bf16.msra.mxu0 %v341
  %491 = vmatprep.subr.bf16.mxu0 %v344
  %492 = vmatpush1.bf16.msra.mxu0 %v343
  %493 = vmatprep.subr.bf16.mxu0 %v346
  %494 = vmatpush1.bf16.msra.mxu0 %v345
  %495 = vmatprep.subr.bf16.mxu0 %v348
  %496 = vmatpush1.bf16.msra.mxu0 %v347
  %497 = vmatprep.subr.bf16.mxu0 %v350
  %498 = vmatpush1.bf16.msra.mxu0 %v349
  %499 = vmatprep.subr.bf16.mxu0 %v352
  %500 = vmatpush1.bf16.msra.mxu0 %v351
  %501 = vmatprep.subr.bf16.mxu0 %v354
  %502 = vmatpush1.bf16.msra.mxu0 %v353
  %503 = vmatprep.subr.bf16.mxu0 %v356
  %504 = vmatpush1.bf16.msra.mxu0 %v355
  %505 = vmatprep.subr.bf16.mxu0 %v358
  %506 = vmatpush1.bf16.msra.mxu0 %v357
  %507 = vmatprep.subr.bf16.mxu0 %v360
  %508 = vmatpush1.bf16.msra.mxu0 %v359
  %509 = vmatprep.subr.bf16.mxu0 %v362
  %510 = vmatpush1.bf16.msra.mxu0 %v361
  %511 = vmatprep.subr.bf16.mxu0 %v364
  %512 = vmatpush1.bf16.msra.mxu0 %v363
  %513 = vmatprep.subr.bf16.mxu0 %v366
  %514 = vmatpush1.bf16.msra.mxu0 %v365
  %515 = vmatprep.mubr.bf16.mxu0 %v111
  %516 = vmatmul.mubr.bf16.gmra.mrb[0].mxu0 %v110
  %v517 = vpop.f32.mrb[0].mxu0
  %v518 = vadd.f32 %v95, %v517
  %v519 = vpop.f32.mrb[0].mxu0
  %v520 = vadd.f32 %v99, %v519
  %v521 = vpop.f32.mrb[0].mxu0
  %v522 = vpop.f32.mrb[0].mxu0
  %523 = vdwg.mxu0
  %524 = vmatprep.subr.bf16.mxu0 %v368
  %525 = vmatpush1.bf16.msra.mxu0 %v367
  %526 = vmatprep.subr.bf16.mxu0 %v370
  %527 = vmatpush1.bf16.msra.mxu0 %v369
  %528 = vmatprep.subr.bf16.mxu0 %v372
  %529 = vmatpush1.bf16.msra.mxu0 %v371
  %530 = vmatprep.subr.bf16.mxu0 %v374
  %531 = vmatpush1.bf16.msra.mxu0 %v373
  %532 = vmatprep.subr.bf16.mxu0 %v376
  %533 = vmatpush1.bf16.msra.mxu0 %v375
  %534 = vmatprep.subr.bf16.mxu0 %v378
  %535 = vmatpush1.bf16.msra.mxu0 %v377
  %536 = vmatprep.subr.bf16.mxu0 %v380
  %537 = vmatpush1.bf16.msra.mxu0 %v379
  %538 = vmatprep.subr.bf16.mxu0 %v382
  %539 = vmatpush1.bf16.msra.mxu0 %v381
  %540 = vmatprep.subr.bf16.mxu0 %v384
  %541 = vmatpush1.bf16.msra.mxu0 %v383
  %542 = vmatprep.subr.bf16.mxu0 %v386
  %543 = vmatpush1.bf16.msra.mxu0 %v385
  %544 = vmatprep.subr.bf16.mxu0 %v388
  %545 = vmatpush1.bf16.msra.mxu0 %v387
  %546 = vmatprep.subr.bf16.mxu0 %v390
  %547 = vmatpush1.bf16.msra.mxu0 %v389
  %548 = vmatprep.subr.bf16.mxu0 %v392
  %549 = vmatpush1.bf16.msra.mxu0 %v391
  %550 = vmatprep.subr.bf16.mxu0 %v394
  %551 = vmatpush1.bf16.msra.mxu0 %v393
  %552 = vmatprep.subr.bf16.mxu0 %v396
  %553 = vmatpush1.bf16.msra.mxu0 %v395
  %554 = vmatprep.subr.bf16.mxu0 %v398
  %555 = vmatpush1.bf16.msra.mxu0 %v397
  %556 = vmatprep.mubr.bf16.mxu0 %v113
  %557 = vmatmul.mubr.bf16.gmra.mrb[0].mxu0 %v112
  %v558 = vpop.f32.mrb[0].mxu0
  %v559 = vadd.f32 %v518, %v558
  %v560 = vpop.f32.mrb[0].mxu0
  %v561 = vadd.f32 %v520, %v560
  %v562 = vpop.f32.mrb[0].mxu0
  %v563 = vpop.f32.mrb[0].mxu0
  %564 = vdwg.mxu0
  %565 = vmatprep.subr.bf16.mxu0 %v400
  %566 = vmatpush1.bf16.msra.mxu0 %v399
  %567 = vmatprep.subr.bf16.mxu0 %v402
  %568 = vmatpush1.bf16.msra.mxu0 %v401
  %569 = vmatprep.subr.bf16.mxu0 %v404
  %570 = vmatpush1.bf16.msra.mxu0 %v403
  %571 = vmatprep.subr.bf16.mxu0 %v406
  %572 = vmatpush1.bf16.msra.mxu0 %v405
  %573 = vmatprep.subr.bf16.mxu0 0
  %574 = vmatpush1.bf16.msra.mxu0 0
  %575 = vmatprep.subr.bf16.mxu0 0
  %576 = vmatpush1.bf16.msra.mxu0 0
  %577 = vmatprep.subr.bf16.mxu0 0
  %578 = vmatpush1.bf16.msra.mxu0 0
  %579 = vmatprep.subr.bf16.mxu0 0
  %580 = vmatpush1.bf16.msra.mxu0 0
  %581 = vmatprep.subr.bf16.mxu0 0
  %582 = vmatpush1.bf16.msra.mxu0 0
  %583 = vmatprep.subr.bf16.mxu0 0
  %584 = vmatpush1.bf16.msra.mxu0 0
  %585 = vmatprep.subr.bf16.mxu0 0
  %586 = vmatpush1.bf16.msra.mxu0 0
  %587 = vmatprep.subr.bf16.mxu0 0
  %588 = vmatpush1.bf16.msra.mxu0 0
  %589 = vmatprep.subr.bf16.mxu0 0
  %590 = vmatpush1.bf16.msra.mxu0 0
  %591 = vmatprep.subr.bf16.mxu0 0
  %592 = vmatpush1.bf16.msra.mxu0 0
  %593 = vmatprep.subr.bf16.mxu0 0
  %594 = vmatpush1.bf16.msra.mxu0 0
  %595 = vmatprep.subr.bf16.mxu0 0
  %596 = vmatpush1.bf16.msra.mxu0 0
  %597 = vmatprep.mubr.bf16.mxu0 0
  %598 = vmatmul.mubr.bf16.gmra.mrb[0].mxu0 %v481
  %v599 = vpop.f32.mrb[0].mxu0
  %v600 = vadd.f32 %v559, %v599
  %v601 = vpop.f32.mrb[0].mxu0
  %v602 = vadd.f32 %v561, %v601
  %v603 = vpop.f32.mrb[0].mxu0
  %v604 = vpop.f32.mrb[0].mxu0
  %605 = vdwg.mxu0
  %v606 = vsub.f32 0.0, %v602
  %v607 = vmul.f32 %v606, 1.442695
  %v608 = vpow.pop %v607
  %v609 = vadd.f32 %v608, 1.0
  %v610 = vrcp.pop %v609
  %v611 = vmul.f32 %v600, %v610
  %v612 = vpack.c.bf16 %v611, %v611
  %613 = vst [vmem:[%s3] sm:$0xf] %v612
  // Predicated region
  $region14: #{generator_forward.14} parent=0 // pred_check
    _
  $region15: #{generator_forward.14} parent=0 // pred_check_branch
    %615 = sbr.rel (0) target = $region17
  $region16: #{generator_forward.14} parent=0 // pred_region
    _
  $region17: #{generator_forward.14} parent=0 // pred_fallthru
    _
  // Predicated region
  $region18: #{generator_forward.14} parent=0 // pred_check
    _
  $region19: #{generator_forward.14} parent=0 // pred_check_branch
    %617 = sbr.rel (0) target = $region21
  $region20: #{generator_forward.14} parent=0 // pred_region
    _
  $region21: #{generator_forward.14} parent=0 // pred_fallthru
    _

// kernel: generator_forward.16
$region0: #{generator_forward.16}
  #allocation0 [shape = 'u32[]', space=smem, size = 0x4, offset = 0x4, fixed_abs, tag = 'smem constant byte address 0x4 - core index']
  #allocation1 [shape = 'u32[144,128]{1,0:T(1,128)}', space=vmem, size = 0x12000, scoped, tag = 'internal scratch']
  %s0 = inlined_call_operand.vmem [shape: bf16[8,256], index: 0, kind: input, shape index: {}]
  %s1 = inlined_call_operand.vmem [shape: bf16[256,128], index: 1, kind: input, shape index: {}]
  %s2 = inlined_call_operand.vmem [shape: f32[1,128], index: 2, kind: input, shape index: {}]
  %s3 = inlined_call_operand.vmem [shape: f32[1,128], index: 3, kind: output, shape index: {0}]
  %s4 = inlined_call_operand.vmem [shape: f32[1,128], index: 4, kind: output, shape index: {1}]
  %5 = xla_tuple %s3, %s4
  %s6 = sld [smem:[#allocation0]]
  $region34: #{generator_forward.16} parent=0
    _
  %s8 = ssub.s32 1, %s6
  %s9 = scalar_select 0, %s8, %s6
  // Predicated region
  $region2: #{generator_forward.16} parent=0 // pred_check
    _
  $region3: #{generator_forward.16} parent=0 // pred_check_branch
    %11 = sbr.rel (0) target = $region5
  $region4: #{generator_forward.16} parent=0 // pred_region
    _
  $region5: #{generator_forward.16} parent=0 // pred_fallthru
    _
  // Predicated region
  $region6: #{generator_forward.16} parent=0 // pred_check
    _
  $region7: #{generator_forward.16} parent=0 // pred_check_branch
    %13 = sbr.rel (0) target = $region9
  $region8: #{generator_forward.16} parent=0 // pred_region
    _
  $region9: #{generator_forward.16} parent=0 // pred_fallthru
    _
  // Predicated region
  $region10: #{generator_forward.16} parent=0 // pred_check
    _
  $region11: #{generator_forward.16} parent=0 // pred_check_branch
    %15 = sbr.rel (0) target = $region13
  $region12: #{generator_forward.16} parent=0 // pred_region
    _
  $region13: #{generator_forward.16} parent=0 // pred_fallthru
    _
  %v17 = vld [vmem:[%s0] sm:$0xff]
  %v18 = vld [vmem:[%s1] sm:$0xf]
  %v19 = vld [vmem:[%s1 + $0x4] sm:$0xf]
  %v20 = vld [vmem:[%s1 + $0x8] sm:$0xf]
  %v21 = vld [vmem:[%s1 + $0xc] sm:$0xf]
  %v22 = vld [vmem:[%s1 + $0x10] sm:$0xf]
  %v23 = vld [vmem:[%s1 + $0x14] sm:$0xf]
  %v24 = vld [vmem:[%s1 + $0x18] sm:$0xf]
  %v25 = vld [vmem:[%s1 + $0x1c] sm:$0xf]
  %v26 = vld [vmem:[%s1 + $0x20] sm:$0xf]
  %v27 = vld [vmem:[%s1 + $0x24] sm:$0xf]
  %v28 = vld [vmem:[%s1 + $0x28] sm:$0xf]
  %v29 = vld [vmem:[%s1 + $0x2c] sm:$0xf]
  %v30 = vld [vmem:[%s1 + $0x30] sm:$0xf]
  %v31 = vld [vmem:[%s1 + $0x34] sm:$0xf]
  %v32 = vld [vmem:[%s1 + $0x38] sm:$0xf]
  %v33 = vld [vmem:[%s1 + $0x3c] sm:$0xf]
  %v34 = vld [vmem:[%s1 + $0x40] sm:$0xf]
  %v35 = vld [vmem:[%s1 + $0x44] sm:$0xf]
  %v36 = vld [vmem:[%s1 + $0x48] sm:$0xf]
  %v37 = vld [vmem:[%s1 + $0x4c] sm:$0xf]
  %v38 = vld [vmem:[%s1 + $0x50] sm:$0xf]
  %v39 = vld [vmem:[%s1 + $0x54] sm:$0xf]
  %v40 = vld [vmem:[%s1 + $0x58] sm:$0xf]
  %v41 = vld [vmem:[%s1 + $0x5c] sm:$0xf]
  %v42 = vld [vmem:[%s1 + $0x60] sm:$0xf]
  %v43 = vld [vmem:[%s1 + $0x64] sm:$0xf]
  %v44 = vld [vmem:[%s1 + $0x68] sm:$0xf]
  %v45 = vld [vmem:[%s1 + $0x6c] sm:$0xf]
  %v46 = vld [vmem:[%s1 + $0x70] sm:$0xf]
  %v47 = vld [vmem:[%s1 + $0x74] sm:$0xf]
  %v48 = vld [vmem:[%s1 + $0x78] sm:$0xf]
  %v49 = vld [vmem:[%s1 + $0x7c] sm:$0xf]
  %v50 = vld [vmem:[%s2] sm:$0x1]
  %v52 = vlaneseq
  %v53 = vshrl.u32 %v52, 7
  %v54 = vsub.s32 0, %v53
  %v55 = vrot.slane %v50, %v54
  %v58 = vunpack.c.l.b16 %v17
  %v59 = vunpack.c.h.b16 %v17
  %v60 = vpack.c.b16 %v58, %v58
  %v61 = vpack.c.b16 %v59, %v59
  %v96 = vunpack.c.l.b16 %v18
  %v97 = vunpack.c.l.b16 %v19
  %v98 = vunpack.c.l.b16 %v20
  %v99 = vunpack.c.l.b16 %v21
  %v100 = vunpack.c.l.b16 %v22
  %v101 = vunpack.c.l.b16 %v23
  %v102 = vunpack.c.l.b16 %v24
  %v103 = vunpack.c.l.b16 %v25
  %v104 = vunpack.c.l.b16 %v26
  %v105 = vunpack.c.l.b16 %v27
  %v106 = vunpack.c.l.b16 %v28
  %v107 = vunpack.c.l.b16 %v29
  %v108 = vunpack.c.l.b16 %v30
  %v109 = vunpack.c.l.b16 %v31
  %v110 = vunpack.c.l.b16 %v32
  %v111 = vunpack.c.l.b16 %v33
  %v112 = vunpack.c.l.b16 %v34
  %v113 = vunpack.c.l.b16 %v35
  %v114 = vunpack.c.l.b16 %v36
  %v115 = vunpack.c.l.b16 %v37
  %v116 = vunpack.c.l.b16 %v38
  %v117 = vunpack.c.l.b16 %v39
  %v118 = vunpack.c.l.b16 %v40
  %v119 = vunpack.c.l.b16 %v41
  %v120 = vunpack.c.l.b16 %v42
  %v121 = vunpack.c.l.b16 %v43
  %v122 = vunpack.c.l.b16 %v44
  %v123 = vunpack.c.l.b16 %v45
  %v124 = vunpack.c.l.b16 %v46
  %v125 = vunpack.c.l.b16 %v47
  %v126 = vunpack.c.l.b16 %v48
  %v127 = vunpack.c.l.b16 %v49
  %v128 = vpack.c.b16 %v97, %v96
  %v129 = vpack.c.b16 %v99, %v98
  %v130 = vpack.c.b16 %v101, %v100
  %v131 = vpack.c.b16 %v103, %v102
  %v132 = vpack.c.b16 %v105, %v104
  %v133 = vpack.c.b16 %v107, %v106
  %v134 = vpack.c.b16 %v109, %v108
  %v135 = vpack.c.b16 %v111, %v110
  %v136 = vpack.c.b16 %v113, %v112
  %v137 = vpack.c.b16 %v115, %v114
  %v138 = vpack.c.b16 %v117, %v116
  %v139 = vpack.c.b16 %v119, %v118
  %v140 = vpack.c.b16 %v121, %v120
  %v141 = vpack.c.b16 %v123, %v122
  %v142 = vpack.c.b16 %v125, %v124
  %v143 = vpack.c.b16 %v127, %v126
  %160 = vmatprep.subr.bf16.mxu0 0
  %161 = vmatpush1.bf16.msra.mxu0 %v128
  %162 = vmatprep.subr.bf16.mxu0 0
  %163 = vmatpush1.bf16.msra.mxu0 %v129
  %164 = vmatprep.subr.bf16.mxu0 0
  %165 = vmatpush1.bf16.msra.mxu0 %v130
  %166 = vmatprep.subr.bf16.mxu0 0
  %167 = vmatpush1.bf16.msra.mxu0 %v131
  %168 = vmatprep.subr.bf16.mxu0 0
  %169 = vmatpush1.bf16.msra.mxu0 %v132
  %170 = vmatprep.subr.bf16.mxu0 0
  %171 = vmatpush1.bf16.msra.mxu0 %v133
  %172 = vmatprep.subr.bf16.mxu0 0
  %173 = vmatpush1.bf16.msra.mxu0 %v134
  %174 = vmatprep.subr.bf16.mxu0 0
  %175 = vmatpush1.bf16.msra.mxu0 %v135
  %176 = vmatprep.subr.bf16.mxu0 0
  %177 = vmatpush1.bf16.msra.mxu0 %v136
  %178 = vmatprep.subr.bf16.mxu0 0
  %179 = vmatpush1.bf16.msra.mxu0 %v137
  %180 = vmatprep.subr.bf16.mxu0 0
  %181 = vmatpush1.bf16.msra.mxu0 %v138
  %182 = vmatprep.subr.bf16.mxu0 0
  %183 = vmatpush1.bf16.msra.mxu0 %v139
  %184 = vmatprep.subr.bf16.mxu0 0
  %185 = vmatpush1.bf16.msra.mxu0 %v140
  %186 = vmatprep.subr.bf16.mxu0 0
  %187 = vmatpush1.bf16.msra.mxu0 %v141
  %188 = vmatprep.subr.bf16.mxu0 0
  %189 = vmatpush1.bf16.msra.mxu0 %v142
  %190 = vmatprep.subr.bf16.mxu0 0
  %191 = vmatpush1.bf16.msra.mxu0 %v143
  %192 = vmatprep.mubr.bf16.mxu0 %v61
  %193 = vmatmul.mubr.bf16.gmra.mrb[0].mxu0 %v60
  %v194 = vpop.f32.mrb[0].mxu0
  %v195 = vadd.f32 %v55, %v194
  %v196 = vpop.f32.mrb[0].mxu0
  %v197 = vpop.f32.mrb[0].mxu0
  %v198 = vpop.f32.mrb[0].mxu0
  %199 = vdwg.mxu0
  %p200 = scmp.eq.s32.totalorder 0, 0
  // Predicated region
  $region14: #{generator_forward.16} parent=0 // pred_check
    %p201 = pneg %p200
  $region15: #{generator_forward.16} parent=0 // pred_check_branch
    %203 = sbr.rel (%p201) target = $region17
  $region16: #{generator_forward.16} parent=0 // pred_region
    %204 = vst [vmem:[%s3] sm:$0x1] 0.0
    %205 = vst [vmem:[%s4] sm:$0x1] 0.0
  $region17: #{generator_forward.16} parent=0 // pred_fallthru
    _
  %v206 = vld [vmem:[%s3] sm:$0x1]
  %v207 = vrot.slane %v195, 4
  %v208 = vadd.f32 %v195, %v207
  %v209 = vrot.slane %v208, 2
  %v210 = vadd.f32 %v208, %v209
  %v211 = vrot.slane %v210, 1
  %v212 = vadd.f32 %v210, %v211
  %v213 = vadd.f32 %v206, %v212
  %214 = vst [vmem:[%s3] sm:$0x1] %v213
  %v215 = vld [vmem:[%s4] sm:$0x1]
  %v216 = vmul.f32 %v195, %v195
  %v217 = vrot.slane %v216, 4
  %v218 = vadd.f32 %v216, %v217
  %v219 = vrot.slane %v218, 2
  %v220 = vadd.f32 %v218, %v219
  %v221 = vrot.slane %v220, 1
  %v222 = vadd.f32 %v220, %v221
  %v223 = vadd.f32 %v215, %v222
  %224 = vst [vmem:[%s4] sm:$0x1] %v223
  // Predicated region
  $region18: #{generator_forward.16} parent=0 // pred_check
    _
  $region19: #{generator_forward.16} parent=0 // pred_check_branch
    %226 = sbr.rel (0) target = $region21
  $region20: #{generator_forward.16} parent=0 // pred_region
    _
  $region21: #{generator_forward.16} parent=0 // pred_fallthru
    _
  // Predicated region
  $region22: #{generator_forward.16} parent=0 // pred_check
    _
  $region23: #{generator_forward.16} parent=0 // pred_check_branch
    %228 = sbr.rel (0) target = $region25
  $region24: #{generator_forward.16} parent=0 // pred_region
    _
  $region25: #{generator_forward.16} parent=0 // pred_fallthru
    _
  // Predicated region
  $region26: #{generator_forward.16} parent=0 // pred_check
    _
  $region27: #{generator_forward.16} parent=0 // pred_check_branch
    %230 = sbr.rel (0) target = $region29
  $region28: #{generator_forward.16} parent=0 // pred_region
    _
  $region29: #{generator_forward.16} parent=0 // pred_fallthru
    _
  // Predicated region
  $region30: #{generator_forward.16} parent=0 // pred_check
    _
  $region31: #{generator_forward.16} parent=0 // pred_check_branch
    %232 = sbr.rel (0) target = $region33
  $region32: #{generator_forward.16} parent=0 // pred_region
    _
  $region33: #{generator_forward.16} parent=0 // pred_fallthru
    _

// kernel: generator_forward.18
$region0: #{generator_forward.18}
  #allocation0 [shape = 'u32[]', space=smem, size = 0x4, offset = 0x4, fixed_abs, tag = 'smem constant byte address 0x4 - core index']
  #allocation1 [shape = 'u32[144,128]{1,0:T(1,128)}', space=vmem, size = 0x12000, scoped, tag = 'internal scratch']
  %s0 = inlined_call_operand.vmem [shape: bf16[32,128], index: 0, kind: input, shape index: {}]
  %s1 = inlined_call_operand.vmem [shape: bf16[32,128], index: 1, kind: input, shape index: {}]
  %s2 = inlined_call_operand.vmem [shape: bf16[128,64], index: 2, kind: input, shape index: {}]
  %s3 = inlined_call_operand.vmem [shape: bf16[128,64], index: 3, kind: input, shape index: {}]
  %s4 = inlined_call_operand.vmem [shape: f32[1,64], index: 4, kind: input, shape index: {}]
  %s5 = inlined_call_operand.vmem [shape: f32[1,64], index: 5, kind: output, shape index: {0}]
  %s6 = inlined_call_operand.vmem [shape: f32[1,64], index: 6, kind: output, shape index: {1}]
  %7 = xla_tuple %s5, %s6
  %s8 = sld [smem:[#allocation0]]
  $region42: #{generator_forward.18} parent=0
    _
  %s10 = ssub.s32 1, %s8
  %s11 = scalar_select 0, %s10, %s8
  // Predicated region
  $region2: #{generator_forward.18} parent=0 // pred_check
    _
  $region3: #{generator_forward.18} parent=0 // pred_check_branch
    %13 = sbr.rel (0) target = $region5
  $region4: #{generator_forward.18} parent=0 // pred_region
    _
  $region5: #{generator_forward.18} parent=0 // pred_fallthru
    _
  // Predicated region
  $region6: #{generator_forward.18} parent=0 // pred_check
    _
  $region7: #{generator_forward.18} parent=0 // pred_check_branch
    %15 = sbr.rel (0) target = $region9
  $region8: #{generator_forward.18} parent=0 // pred_region
    _
  $region9: #{generator_forward.18} parent=0 // pred_fallthru
    _
  // Predicated region
  $region10: #{generator_forward.18} parent=0 // pred_check
    _
  $region11: #{generator_forward.18} parent=0 // pred_check_branch
    %17 = sbr.rel (0) target = $region13
  $region12: #{generator_forward.18} parent=0 // pred_region
    _
  $region13: #{generator_forward.18} parent=0 // pred_fallthru
    _
  // Predicated region
  $region14: #{generator_forward.18} parent=0 // pred_check
    _
  $region15: #{generator_forward.18} parent=0 // pred_check_branch
    %19 = sbr.rel (0) target = $region17
  $region16: #{generator_forward.18} parent=0 // pred_region
    _
  $region17: #{generator_forward.18} parent=0 // pred_fallthru
    _
  // Predicated region
  $region18: #{generator_forward.18} parent=0 // pred_check
    _
  $region19: #{generator_forward.18} parent=0 // pred_check_branch
    %21 = sbr.rel (0) target = $region21
  $region20: #{generator_forward.18} parent=0 // pred_region
    _
  $region21: #{generator_forward.18} parent=0 // pred_fallthru
    _
  %v23 = vld [vmem:[%s0] sm:$0xf]
  %v24 = vld [vmem:[%s0 + $0x4] sm:$0xf]
  %v25 = vld [vmem:[%s0 + $0x8] sm:$0xf]
  %v26 = vld [vmem:[%s0 + $0xc] sm:$0xf]
  %v27 = vld [vmem:[%s2] sm:$0xf]
  %v28 = vld [vmem:[%s2 + $0x4] sm:$0xf]
  %v29 = vld [vmem:[%s2 + $0x8] sm:$0xf]
  %v30 = vld [vmem:[%s2 + $0xc] sm:$0xf]
  %v31 = vld [vmem:[%s2 + $0x10] sm:$0xf]
  %v32 = vld [vmem:[%s2 + $0x14] sm:$0xf]
  %v33 = vld [vmem:[%s2 + $0x18] sm:$0xf]
  %v34 = vld [vmem:[%s2 + $0x1c] sm:$0xf]
  %v35 = vld [vmem:[%s2 + $0x20] sm:$0xf]
  %v36 = vld [vmem:[%s2 + $0x24] sm:$0xf]
  %v37 = vld [vmem:[%s2 + $0x28] sm:$0xf]
  %v38 = vld [vmem:[%s2 + $0x2c] sm:$0xf]
  %v39 = vld [vmem:[%s2 + $0x30] sm:$0xf]
  %v40 = vld [vmem:[%s2 + $0x34] sm:$0xf]
  %v41 = vld [vmem:[%s2 + $0x38] sm:$0xf]
  %v42 = vld [vmem:[%s2 + $0x3c] sm:$0xf]
  %v43 = vld [vmem:[%s1] sm:$0xf]
  %v44 = vld [vmem:[%s1 + $0x4] sm:$0xf]
  %v45 = vld [vmem:[%s1 + $0x8] sm:$0xf]
  %v46 = vld [vmem:[%s1 + $0xc] sm:$0xf]
  %v47 = vld [vmem:[%s3] sm:$0xf]
  %v48 = vld [vmem:[%s3 + $0x4] sm:$0xf]
  %v49 = vld [vmem:[%s3 + $0x8] sm:$0xf]
  %v50 = vld [vmem:[%s3 + $0xc] sm:$0xf]
  %v51 = vld [vmem:[%s3 + $0x10] sm:$0xf]
  %v52 = vld [vmem:[%s3 + $0x14] sm:$0xf]
  %v53 = vld [vmem:[%s3 + $0x18] sm:$0xf]
  %v54 = vld [vmem:[%s3 + $0x1c] sm:$0xf]
  %v55 = vld [vmem:[%s3 + $0x20] sm:$0xf]
  %v56 = vld [vmem:[%s3 + $0x24] sm:$0xf]
  %v57 = vld [vmem:[%s3 + $0x28] sm:$0xf]
  %v58 = vld [vmem:[%s3 + $0x2c] sm:$0xf]
  %v59 = vld [vmem:[%s3 + $0x30] sm:$0xf]
  %v60 = vld [vmem:[%s3 + $0x34] sm:$0xf]
  %v61 = vld [vmem:[%s3 + $0x38] sm:$0xf]
  %v62 = vld [vmem:[%s3 + $0x3c] sm:$0xf]
  %v67 = vunpack.c.l.b16 %v43
  %v68 = vunpack.c.l.b16 %v44
  %v69 = vunpack.c.l.b16 %v45
  %v70 = vunpack.c.l.b16 %v46
  %v71 = vpack.c.b16 %v68, %v67
  %v72 = vpack.c.b16 %v70, %v69
  %v91 = vunpack.c.l.b16 %v47
  %v92 = vunpack.c.l.b16 %v48
  %v93 = vunpack.c.l.b16 %v49
  %v94 = vunpack.c.l.b16 %v50
  %v95 = vunpack.c.l.b16 %v51
  %v96 = vunpack.c.l.b16 %v52
  %v97 = vunpack.c.l.b16 %v53
  %v98 = vunpack.c.l.b16 %v54
  %v99 = vunpack.c.l.b16 %v55
  %v100 = vunpack.c.l.b16 %v56
  %v101 = vunpack.c.l.b16 %v57
  %v102 = vunpack.c.l.b16 %v58
  %v103 = vunpack.c.l.b16 %v59
  %v104 = vunpack.c.l.b16 %v60
  %v105 = vunpack.c.l.b16 %v61
  %v106 = vunpack.c.l.b16 %v62
  %v107 = vpack.c.b16 %v92, %v91
  %v108 = vpack.c.b16 %v94, %v93
  %v109 = vpack.c.b16 %v96, %v95
  %v110 = vpack.c.b16 %v98, %v97
  %v111 = vpack.c.b16 %v100, %v99
  %v112 = vpack.c.b16 %v102, %v101
  %v113 = vpack.c.b16 %v104, %v103
  %v114 = vpack.c.b16 %v106, %v105
  %123 = vmatprep.subr.bf16.mxu0 0
  %124 = vmatpush1.bf16.msra.mxu0 %v107
  %125 = vmatprep.subr.bf16.mxu0 0
  %126 = vmatpush1.bf16.msra.mxu0 %v108
  %127 = vmatprep.subr.bf16.mxu0 0
  %128 = vmatpush1.bf16.msra.mxu0 %v109
  %129 = vmatprep.subr.bf16.mxu0 0
  %130 = vmatpush1.bf16.msra.mxu0 %v110
  %131 = vmatprep.subr.bf16.mxu0 0
  %132 = vmatpush1.bf16.msra.mxu0 %v111
  %133 = vmatprep.subr.bf16.mxu0 0
  %134 = vmatpush1.bf16.msra.mxu0 %v112
  %135 = vmatprep.subr.bf16.mxu0 0
  %136 = vmatpush1.bf16.msra.mxu0 %v113
  %137 = vmatprep.subr.bf16.mxu0 0
  %138 = vmatpush1.bf16.msra.mxu0 %v114
  %139 = vmatprep.subr.bf16.mxu0 0
  %140 = vmatpush1.bf16.msra.mxu0 0
  %141 = vmatprep.subr.bf16.mxu0 0
  %142 = vmatpush1.bf16.msra.mxu0 0
  %143 = vmatprep.subr.bf16.mxu0 0
  %144 = vmatpush1.bf16.msra.mxu0 0
  %145 = vmatprep.subr.bf16.mxu0 0
  %146 = vmatpush1.bf16.msra.mxu0 0
  %147 = vmatprep.subr.bf16.mxu0 0
  %148 = vmatpush1.bf16.msra.mxu0 0
  %149 = vmatprep.subr.bf16.mxu0 0
  %150 = vmatpush1.bf16.msra.mxu0 0
  %151 = vmatprep.subr.bf16.mxu0 0
  %152 = vmatpush1.bf16.msra.mxu0 0
  %153 = vmatprep.subr.bf16.mxu0 0
  %154 = vmatpush1.bf16.msra.mxu0 0
  %155 = vmatprep.mubr.bf16.mxu0 0
  %156 = vmatmul.mubr.bf16.gmra.mrb[0].mxu0 %v71
  %v157 = vpop.f32.mrb[0].mxu0
  %v158 = vadd.f32 0.0, %v157
  %v159 = vpop.f32.mrb[0].mxu0
  %v160 = vpop.f32.mrb[0].mxu0
  %v161 = vadd.f32 0.0, %v160
  %v162 = vpop.f32.mrb[0].mxu0
  %163 = vmatprep.mubr.bf16.mxu0 0
  %164 = vmatmul.mubr.bf16.gmra.mrb[0].mxu0 %v72
  %v165 = vpop.f32.mrb[0].mxu0
  %v166 = vadd.f32 0.0, %v165
  %v167 = vpop.f32.mrb[0].mxu0
  %v168 = vpop.f32.mrb[0].mxu0
  %v169 = vadd.f32 0.0, %v168
  %v170 = vpop.f32.mrb[0].mxu0
  %171 = vdwg.mxu0
  %v176 = vunpack.c.l.b16 %v23
  %v177 = vunpack.c.l.b16 %v24
  %v178 = vunpack.c.l.b16 %v25
  %v179 = vunpack.c.l.b16 %v26
  %v180 = vpack.c.b16 %v177, %v176
  %v181 = vpack.c.b16 %v179, %v178
  %v200 = vunpack.c.l.b16 %v27
  %v201 = vunpack.c.l.b16 %v28
  %v202 = vunpack.c.l.b16 %v29
  %v203 = vunpack.c.l.b16 %v30
  %v204 = vunpack.c.l.b16 %v31
  %v205 = vunpack.c.l.b16 %v32
  %v206 = vunpack.c.l.b16 %v33
  %v207 = vunpack.c.l.b16 %v34
  %v208 = vunpack.c.l.b16 %v35
  %v209 = vunpack.c.l.b16 %v36
  %v210 = vunpack.c.l.b16 %v37
  %v211 = vunpack.c.l.b16 %v38
  %v212 = vunpack.c.l.b16 %v39
  %v213 = vunpack.c.l.b16 %v40
  %v214 = vunpack.c.l.b16 %v41
  %v215 = vunpack.c.l.b16 %v42
  %v216 = vpack.c.b16 %v201, %v200
  %v217 = vpack.c.b16 %v203, %v202
  %v218 = vpack.c.b16 %v205, %v204
  %v219 = vpack.c.b16 %v207, %v206
  %v220 = vpack.c.b16 %v209, %v208
  %v221 = vpack.c.b16 %v211, %v210
  %v222 = vpack.c.b16 %v213, %v212
  %v223 = vpack.c.b16 %v215, %v214
  %232 = vmatprep.subr.bf16.mxu0 0
  %233 = vmatpush1.bf16.msra.mxu0 %v216
  %234 = vmatprep.subr.bf16.mxu0 0
  %235 = vmatpush1.bf16.msra.mxu0 %v217
  %236 = vmatprep.subr.bf16.mxu0 0
  %237 = vmatpush1.bf16.msra.mxu0 %v218
  %238 = vmatprep.subr.bf16.mxu0 0
  %239 = vmatpush1.bf16.msra.mxu0 %v219
  %240 = vmatprep.subr.bf16.mxu0 0
  %241 = vmatpush1.bf16.msra.mxu0 %v220
  %242 = vmatprep.subr.bf16.mxu0 0
  %243 = vmatpush1.bf16.msra.mxu0 %v221
  %244 = vmatprep.subr.bf16.mxu0 0
  %245 = vmatpush1.bf16.msra.mxu0 %v222
  %246 = vmatprep.subr.bf16.mxu0 0
  %247 = vmatpush1.bf16.msra.mxu0 %v223
  %248 = vmatprep.subr.bf16.mxu0 0
  %249 = vmatpush1.bf16.msra.mxu0 0
  %250 = vmatprep.subr.bf16.mxu0 0
  %251 = vmatpush1.bf16.msra.mxu0 0
  %252 = vmatprep.subr.bf16.mxu0 0
  %253 = vmatpush1.bf16.msra.mxu0 0
  %254 = vmatprep.subr.bf16.mxu0 0
  %255 = vmatpush1.bf16.msra.mxu0 0
  %256 = vmatprep.subr.bf16.mxu0 0
  %257 = vmatpush1.bf16.msra.mxu0 0
  %258 = vmatprep.subr.bf16.mxu0 0
  %259 = vmatpush1.bf16.msra.mxu0 0
  %260 = vmatprep.subr.bf16.mxu0 0
  %261 = vmatpush1.bf16.msra.mxu0 0
  %262 = vmatprep.subr.bf16.mxu0 0
  %263 = vmatpush1.bf16.msra.mxu0 0
  %264 = vmatprep.mubr.bf16.mxu0 0
  %265 = vmatmul.mubr.bf16.gmra.mrb[0].mxu0 %v180
  %v266 = vpop.f32.mrb[0].mxu0
  %v267 = vadd.f32 %v158, %v266
  %v268 = vpop.f32.mrb[0].mxu0
  %v269 = vpop.f32.mrb[0].mxu0
  %v270 = vadd.f32 %v161, %v269
  %v271 = vpop.f32.mrb[0].mxu0
  %272 = vmatprep.mubr.bf16.mxu0 0
  %273 = vmatmul.mubr.bf16.gmra.mrb[0].mxu0 %v181
  %v274 = vpop.f32.mrb[0].mxu0
  %v275 = vadd.f32 %v166, %v274
  %v276 = vpop.f32.mrb[0].mxu0
  %v277 = vpop.f32.mrb[0].mxu0
  %v278 = vadd.f32 %v169, %v277
  %v279 = vpop.f32.mrb[0].mxu0
  %280 = vdwg.mxu0
  %v281 = vld [vmem:[%s4] sm:$0x1]
  %v283 = vlaneseq
  %v284 = vshrl.u32 %v283, 7
  %v285 = vsub.s32 0, %v284
  %v286 = vrot.slane %v281, %v285
  %v288 = vadd.f32 %v267, %v286
  %v289 = vadd.f32 %v270, %v286
  %v290 = vadd.f32 %v275, %v286
  %v291 = vadd.f32 %v278, %v286
  %p292 = scmp.eq.s32.totalorder 0, 0
  // Predicated region
  $region22: #{generator_forward.18} parent=0 // pred_check
    %p293 = pneg %p292
  $region23: #{generator_forward.18} parent=0 // pred_check_branch
    %295 = sbr.rel (%p293) target = $region25
  $region24: #{generator_forward.18} parent=0 // pred_region
    %vm296 = vcmask 516096
    %297 = vst.msk [vmem:[%s5] sm:$0x1] %vm296, 0.0
    %298 = vst.msk [vmem:[%s6] sm:$0x1] %vm296, 0.0
  $region25: #{generator_forward.18} parent=0 // pred_fallthru
    _
  %v299 = vld [vmem:[%s5] sm:$0x1]
  %vm300 = vcmask 523264
  %v301 = vsel %vm300, %v288, 0.0
  %v302 = vsel %vm300, %v289, 0.0
  %v303 = vadd.f32 %v301, %v302
  %v304 = vsel %vm300, %v290, 0.0
  %v305 = vadd.f32 %v303, %v304
  %v306 = vsel %vm300, %v291, 0.0
  %v307 = vadd.f32 %v305, %v306
  %v308 = vrot.slane %v307, 4
  %v309 = vadd.f32 %v307, %v308
  %v310 = vrot.slane %v309, 2
  %v311 = vadd.f32 %v309, %v310
  %v312 = vrot.slane %v311, 1
  %v313 = vadd.f32 %v311, %v312
  %v314 = vadd.f32 %v299, %v313
  %vm315 = vcmask 516096
  %316 = vst.msk [vmem:[%s5] sm:$0x1] %vm315, %v314
  %v317 = vld [vmem:[%s6] sm:$0x1]
  %v318 = vmul.f32 %v288, %v288
  %v319 = vmul.f32 %v289, %v289
  %v320 = vmul.f32 %v290, %v290
  %v321 = vmul.f32 %v291, %v291
  %v322 = vsel %vm300, %v318, 0.0
  %v323 = vsel %vm300, %v319, 0.0
  %v324 = vadd.f32 %v322, %v323
  %v325 = vsel %vm300, %v320, 0.0
  %v326 = vadd.f32 %v324, %v325
  %v327 = vsel %vm300, %v321, 0.0
  %v328 = vadd.f32 %v326, %v327
  %v329 = vrot.slane %v328, 4
  %v330 = vadd.f32 %v328, %v329
  %v331 = vrot.slane %v330, 2
  %v332 = vadd.f32 %v330, %v331
  %v333 = vrot.slane %v332, 1
  %v334 = vadd.f32 %v332, %v333
  %v335 = vadd.f32 %v317, %v334
  %336 = vst.msk [vmem:[%s6] sm:$0x1] %vm315, %v335
  // Predicated region
  $region26: #{generator_forward.18} parent=0 // pred_check
    _
  $region27: #{generator_forward.18} parent=0 // pred_check_branch
    %338 = sbr.rel (0) target = $region29
  $region28: #{generator_forward.18} parent=0 // pred_region
    _
  $region29: #{generator_forward.18} parent=0 // pred_fallthru
    _
  // Predicated region
  $region30: #{generator_forward.18} parent=0 // pred_check
    _
  $region31: #{generator_forward.18} parent=0 // pred_check_branch
    %340 = sbr.rel (0) target = $region33
  $region32: #{generator_forward.18} parent=0 // pred_region
    _
  $region33: #{generator_forward.18} parent=0 // pred_fallthru
    _
  // Predicated region
  $region34: #{generator_forward.18} parent=0 // pred_check
    _
  $region35: #{generator_forward.18} parent=0 // pred_check_branch
    %342 = sbr.rel (0) target = $region37
  $region36: #{generator_forward.18} parent=0 // pred_region
    _
  $region37: #{generator_forward.18} parent=0 // pred_fallthru
    _
  // Predicated region
  $region38: #{generator_forward.18} parent=0 // pred_check
    _
  $region39: #{generator_forward.18} parent=0 // pred_check_branch
    %344 = sbr.rel (0) target = $region41
  $region40: #{generator_forward.18} parent=0 // pred_region
    _
  $region41: #{generator_forward.18} parent=0 // pred_fallthru
    _

// kernel: generator_forward.15
$region0: #{generator_forward.15}
  #allocation0 [shape = 'u32[]', space=smem, size = 0x4, offset = 0x4, fixed_abs, tag = 'smem constant byte address 0x4 - core index']
  #allocation1 [shape = 'u32[144,128]{1,0:T(1,128)}', space=vmem, size = 0x12000, scoped, tag = 'internal scratch']
  %s0 = inlined_call_operand.vmem [shape: bf16[2,1152], index: 0, kind: input, shape index: {}]
  %s1 = inlined_call_operand.vmem [shape: bf16[1152,512], index: 1, kind: input, shape index: {}]
  %s2 = inlined_call_operand.vmem [shape: f32[1,512], index: 2, kind: input, shape index: {}]
  %s3 = inlined_call_operand.vmem [shape: bf16[2,256], index: 3, kind: output, shape index: {}]
  %s4 = sld [smem:[#allocation0]]
  $region22: #{generator_forward.15} parent=0
    _
  %s6 = ssub.s32 1, %s4
  %s7 = scalar_select 0, %s6, %s4
  // Predicated region
  $region2: #{generator_forward.15} parent=0 // pred_check
    _
  $region3: #{generator_forward.15} parent=0 // pred_check_branch
    %9 = sbr.rel (0) target = $region5
  $region4: #{generator_forward.15} parent=0 // pred_region
    _
  $region5: #{generator_forward.15} parent=0 // pred_fallthru
    _
  // Predicated region
  $region6: #{generator_forward.15} parent=0 // pred_check
    _
  $region7: #{generator_forward.15} parent=0 // pred_check_branch
    %11 = sbr.rel (0) target = $region9
  $region8: #{generator_forward.15} parent=0 // pred_region
    _
  $region9: #{generator_forward.15} parent=0 // pred_fallthru
    _
  // Predicated region
  $region10: #{generator_forward.15} parent=0 // pred_check
    _
  $region11: #{generator_forward.15} parent=0 // pred_check_branch
    %13 = sbr.rel (0) target = $region13
  $region12: #{generator_forward.15} parent=0 // pred_region
    _
  $region13: #{generator_forward.15} parent=0 // pred_fallthru
    _
  %v15 = vld [vmem:[%s0] sm:$0xff]
  %v16 = vld [vmem:[%s0 + $0x8] sm:$0x1]
  %v17 = vld [vmem:[%s1] sm:$0xff]
  %v18 = vld [vmem:[%s1 + $0x8] sm:$0xff]
  %v19 = vld [vmem:[%s1 + $0x10] sm:$0xff]
  %v20 = vld [vmem:[%s1 + $0x18] sm:$0xff]
  %v21 = vld [vmem:[%s1 + $0x20] sm:$0xff]
  %v22 = vld [vmem:[%s1 + $0x28] sm:$0xff]
  %v23 = vld [vmem:[%s1 + $0x30] sm:$0xff]
  %v24 = vld [vmem:[%s1 + $0x38] sm:$0xff]
  %v25 = vld [vmem:[%s1 + $0x40] sm:$0xff]
  %v26 = vld [vmem:[%s1 + $0x48] sm:$0xff]
  %v27 = vld [vmem:[%s1 + $0x50] sm:$0xff]
  %v28 = vld [vmem:[%s1 + $0x58] sm:$0xff]
  %v29 = vld [vmem:[%s1 + $0x60] sm:$0xff]
  %v30 = vld [vmem:[%s1 + $0x68] sm:$0xff]
  %v31 = vld [vmem:[%s1 + $0x70] sm:$0xff]
  %v32 = vld [vmem:[%s1 + $0x78] sm:$0xff]
  %v33 = vld [vmem:[%s1 + $0x80] sm:$0xff]
  %v34 = vld [vmem:[%s1 + $0x88] sm:$0xff]
  %v35 = vld [vmem:[%s1 + $0x90] sm:$0xff]
  %v36 = vld [vmem:[%s1 + $0x98] sm:$0xff]
  %v37 = vld [vmem:[%s1 + $0xa0] sm:$0xff]
  %v38 = vld [vmem:[%s1 + $0xa8] sm:$0xff]
  %v39 = vld [vmem:[%s1 + $0xb0] sm:$0xff]
  %v40 = vld [vmem:[%s1 + $0xb8] sm:$0xff]
  %v41 = vld [vmem:[%s1 + $0xc0] sm:$0xff]
  %v42 = vld [vmem:[%s1 + $0xc8] sm:$0xff]
  %v43 = vld [vmem:[%s1 + $0xd0] sm:$0xff]
  %v44 = vld [vmem:[%s1 + $0xd8] sm:$0xff]
  %v45 = vld [vmem:[%s1 + $0xe0] sm:$0xff]
  %v46 = vld [vmem:[%s1 + $0xe8] sm:$0xff]
  %v47 = vld [vmem:[%s1 + $0xf0] sm:$0xff]
  %v48 = vld [vmem:[%s1 + $0xf8] sm:$0xff]
  %v49 = vld [vmem:[%s1 + $0x100] sm:$0xff]
  %v50 = vld [vmem:[%s1 + $0x108] sm:$0xff]
  %v51 = vld [vmem:[%s1 + $0x110] sm:$0xff]
  %v52 = vld [vmem:[%s1 + $0x118] sm:$0xff]
  %v53 = vld [vmem:[%s1 + $0x120] sm:$0xff]
  %v54 = vld [vmem:[%s1 + $0x128] sm:$0xff]
  %v55 = vld [vmem:[%s1 + $0x130] sm:$0xff]
  %v56 = vld [vmem:[%s1 + $0x138] sm:$0xff]
  %v57 = vld [vmem:[%s1 + $0x140] sm:$0xff]
  %v58 = vld [vmem:[%s1 + $0x148] sm:$0xff]
  %v59 = vld [vmem:[%s1 + $0x150] sm:$0xff]
  %v60 = vld [vmem:[%s1 + $0x158] sm:$0xff]
  %v61 = vld [vmem:[%s1 + $0x160] sm:$0xff]
  %v62 = vld [vmem:[%s1 + $0x168] sm:$0xff]
  %v63 = vld [vmem:[%s1 + $0x170] sm:$0xff]
  %v64 = vld [vmem:[%s1 + $0x178] sm:$0xff]
  %v65 = vld [vmem:[%s1 + $0x180] sm:$0xff]
  %v66 = vld [vmem:[%s1 + $0x188] sm:$0xff]
  %v67 = vld [vmem:[%s1 + $0x190] sm:$0xff]
  %v68 = vld [vmem:[%s1 + $0x198] sm:$0xff]
  %v69 = vld [vmem:[%s1 + $0x1a0] sm:$0xff]
  %v70 = vld [vmem:[%s1 + $0x1a8] sm:$0xff]
  %v71 = vld [vmem:[%s1 + $0x1b0] sm:$0xff]
  %v72 = vld [vmem:[%s1 + $0x1b8] sm:$0xff]
  %v73 = vld [vmem:[%s1 + $0x1c0] sm:$0xff]
  %v74 = vld [vmem:[%s1 + $0x1c8] sm:$0xff]
  %v75 = vld [vmem:[%s1 + $0x1d0] sm:$0xff]
  %v76 = vld [vmem:[%s1 + $0x1d8] sm:$0xff]
  %v77 = vld [vmem:[%s1 + $0x1e0] sm:$0xff]
  %v78 = vld [vmem:[%s1 + $0x1e8] sm:$0xff]
  %v79 = vld [vmem:[%s1 + $0x1f0] sm:$0xff]
  %v80 = vld [vmem:[%s1 + $0x1f8] sm:$0xff]
  %v81 = vld [vmem:[%s1 + $0x200] sm:$0xff]
  %v82 = vld [vmem:[%s1 + $0x208] sm:$0xff]
  %v83 = vld [vmem:[%s1 + $0x210] sm:$0xff]
  %v84 = vld [vmem:[%s1 + $0x218] sm:$0xff]
  %v85 = vld [vmem:[%s1 + $0x220] sm:$0xff]
  %v86 = vld [vmem:[%s1 + $0x228] sm:$0xff]
  %v87 = vld [vmem:[%s1 + $0x230] sm:$0xff]
  %v88 = vld [vmem:[%s1 + $0x238] sm:$0xff]
  %v89 = vld [vmem:[%s1 + $0x240] sm:$0xff]
  %v90 = vld [vmem:[%s1 + $0x248] sm:$0xff]
  %v91 = vld [vmem:[%s1 + $0x250] sm:$0xff]
  %v92 = vld [vmem:[%s1 + $0x258] sm:$0xff]
  %v93 = vld [vmem:[%s1 + $0x260] sm:$0xff]
  %v94 = vld [vmem:[%s1 + $0x268] sm:$0xff]
  %v95 = vld [vmem:[%s1 + $0x270] sm:$0xff]
  %v96 = vld [vmem:[%s1 + $0x278] sm:$0xff]
  %v97 = vld [vmem:[%s1 + $0x280] sm:$0xff]
  %v98 = vld [vmem:[%s1 + $0x288] sm:$0xff]
  %v99 = vld [vmem:[%s1 + $0x290] sm:$0xff]
  %v100 = vld [vmem:[%s1 + $0x298] sm:$0xff]
  %v101 = vld [vmem:[%s1 + $0x2a0] sm:$0xff]
  %v102 = vld [vmem:[%s1 + $0x2a8] sm:$0xff]
  %v103 = vld [vmem:[%s1 + $0x2b0] sm:$0xff]
  %v104 = vld [vmem:[%s1 + $0x2b8] sm:$0xff]
  %v105 = vld [vmem:[%s1 + $0x2c0] sm:$0xff]
  %v106 = vld [vmem:[%s1 + $0x2c8] sm:$0xff]
  %v107 = vld [vmem:[%s1 + $0x2d0] sm:$0xff]
  %v108 = vld [vmem:[%s1 + $0x2d8] sm:$0xff]
  %v109 = vld [vmem:[%s1 + $0x2e0] sm:$0xff]
  %v110 = vld [vmem:[%s1 + $0x2e8] sm:$0xff]
  %v111 = vld [vmem:[%s1 + $0x2f0] sm:$0xff]
  %v112 = vld [vmem:[%s1 + $0x2f8] sm:$0xff]
  %v113 = vld [vmem:[%s1 + $0x300] sm:$0xff]
  %v114 = vld [vmem:[%s1 + $0x308] sm:$0xff]
  %v115 = vld [vmem:[%s1 + $0x310] sm:$0xff]
  %v116 = vld [vmem:[%s1 + $0x318] sm:$0xff]
  %v117 = vld [vmem:[%s1 + $0x320] sm:$0xff]
  %v118 = vld [vmem:[%s1 + $0x328] sm:$0xff]
  %v119 = vld [vmem:[%s1 + $0x330] sm:$0xff]
  %v120 = vld [vmem:[%s1 + $0x338] sm:$0xff]
  %v121 = vld [vmem:[%s1 + $0x340] sm:$0xff]
  %v122 = vld [vmem:[%s1 + $0x348] sm:$0xff]
  %v123 = vld [vmem:[%s1 + $0x350] sm:$0xff]
  %v124 = vld [vmem:[%s1 + $0x358] sm:$0xff]
  %v125 = vld [vmem:[%s1 + $0x360] sm:$0xff]
  %v126 = vld [vmem:[%s1 + $0x368] sm:$0xff]
  %v127 = vld [vmem:[%s1 + $0x370] sm:$0xff]
  %v128 = vld [vmem:[%s1 + $0x378] sm:$0xff]
  %v129 = vld [vmem:[%s1 + $0x380] sm:$0xff]
  %v130 = vld [vmem:[%s1 + $0x388] sm:$0xff]
  %v131 = vld [vmem:[%s1 + $0x390] sm:$0xff]
  %v132 = vld [vmem:[%s1 + $0x398] sm:$0xff]
  %v133 = vld [vmem:[%s1 + $0x3a0] sm:$0xff]
  %v134 = vld [vmem:[%s1 + $0x3a8] sm:$0xff]
  %v135 = vld [vmem:[%s1 + $0x3b0] sm:$0xff]
  %v136 = vld [vmem:[%s1 + $0x3b8] sm:$0xff]
  %v137 = vld [vmem:[%s1 + $0x3c0] sm:$0xff]
  %v138 = vld [vmem:[%s1 + $0x3c8] sm:$0xff]
  %v139 = vld [vmem:[%s1 + $0x3d0] sm:$0xff]
  %v140 = vld [vmem:[%s1 + $0x3d8] sm:$0xff]
  %v141 = vld [vmem:[%s1 + $0x3e0] sm:$0xff]
  %v142 = vld [vmem:[%s1 + $0x3e8] sm:$0xff]
  %v143 = vld [vmem:[%s1 + $0x3f0] sm:$0xff]
  %v144 = vld [vmem:[%s1 + $0x3f8] sm:$0xff]
  %v145 = vld [vmem:[%s1 + $0x400] sm:$0xff]
  %v146 = vld [vmem:[%s1 + $0x408] sm:$0xff]
  %v147 = vld [vmem:[%s1 + $0x410] sm:$0xff]
  %v148 = vld [vmem:[%s1 + $0x418] sm:$0xff]
  %v149 = vld [vmem:[%s1 + $0x420] sm:$0xff]
  %v150 = vld [vmem:[%s1 + $0x428] sm:$0xff]
  %v151 = vld [vmem:[%s1 + $0x430] sm:$0xff]
  %v152 = vld [vmem:[%s1 + $0x438] sm:$0xff]
  %v153 = vld [vmem:[%s1 + $0x440] sm:$0xff]
  %v154 = vld [vmem:[%s1 + $0x448] sm:$0xff]
  %v155 = vld [vmem:[%s1 + $0x450] sm:$0xff]
  %v156 = vld [vmem:[%s1 + $0x458] sm:$0xff]
  %v157 = vld [vmem:[%s1 + $0x460] sm:$0xff]
  %v158 = vld [vmem:[%s1 + $0x468] sm:$0xff]
  %v159 = vld [vmem:[%s1 + $0x470] sm:$0xff]
  %v160 = vld [vmem:[%s1 + $0x478] sm:$0xff]
  %v161 = vld [vmem:[%s1 + $0x480] sm:$0xff]
  %v162 = vld [vmem:[%s1 + $0x488] sm:$0xff]
  %v163 = vld [vmem:[%s1 + $0x490] sm:$0xff]
  %v164 = vld [vmem:[%s1 + $0x498] sm:$0xff]
  %v165 = vld [vmem:[%s1 + $0x4a0] sm:$0xff]
  %v166 = vld [vmem:[%s1 + $0x4a8] sm:$0xff]
  %v167 = vld [vmem:[%s1 + $0x4b0] sm:$0xff]
  %v168 = vld [vmem:[%s1 + $0x4b8] sm:$0xff]
  %v169 = vld [vmem:[%s1 + $0x4c0] sm:$0xff]
  %v170 = vld [vmem:[%s1 + $0x4c8] sm:$0xff]
  %v171 = vld [vmem:[%s1 + $0x4d0] sm:$0xff]
  %v172 = vld [vmem:[%s1 + $0x4d8] sm:$0xff]
  %v173 = vld [vmem:[%s1 + $0x4e0] sm:$0xff]
  %v174 = vld [vmem:[%s1 + $0x4e8] sm:$0xff]
  %v175 = vld [vmem:[%s1 + $0x4f0] sm:$0xff]
  %v176 = vld [vmem:[%s1 + $0x4f8] sm:$0xff]
  %v177 = vld [vmem:[%s1 + $0x500] sm:$0xff]
  %v178 = vld [vmem:[%s1 + $0x508] sm:$0xff]
  %v179 = vld [vmem:[%s1 + $0x510] sm:$0xff]
  %v180 = vld [vmem:[%s1 + $0x518] sm:$0xff]
  %v181 = vld [vmem:[%s1 + $0x520] sm:$0xff]
  %v182 = vld [vmem:[%s1 + $0x528] sm:$0xff]
  %v183 = vld [vmem:[%s1 + $0x530] sm:$0xff]
  %v184 = vld [vmem:[%s1 + $0x538] sm:$0xff]
  %v185 = vld [vmem:[%s1 + $0x540] sm:$0xff]
  %v186 = vld [vmem:[%s1 + $0x548] sm:$0xff]
  %v187 = vld [vmem:[%s1 + $0x550] sm:$0xff]
  %v188 = vld [vmem:[%s1 + $0x558] sm:$0xff]
  %v189 = vld [vmem:[%s1 + $0x560] sm:$0xff]
  %v190 = vld [vmem:[%s1 + $0x568] sm:$0xff]
  %v191 = vld [vmem:[%s1 + $0x570] sm:$0xff]
  %v192 = vld [vmem:[%s1 + $0x578] sm:$0xff]
  %v193 = vld [vmem:[%s1 + $0x580] sm:$0xff]
  %v194 = vld [vmem:[%s1 + $0x588] sm:$0xff]
  %v195 = vld [vmem:[%s1 + $0x590] sm:$0xff]
  %v196 = vld [vmem:[%s1 + $0x598] sm:$0xff]
  %v197 = vld [vmem:[%s1 + $0x5a0] sm:$0xff]
  %v198 = vld [vmem:[%s1 + $0x5a8] sm:$0xff]
  %v199 = vld [vmem:[%s1 + $0x5b0] sm:$0xff]
  %v200 = vld [vmem:[%s1 + $0x5b8] sm:$0xff]
  %v201 = vld [vmem:[%s1 + $0x5c0] sm:$0xff]
  %v202 = vld [vmem:[%s1 + $0x5c8] sm:$0xff]
  %v203 = vld [vmem:[%s1 + $0x5d0] sm:$0xff]
  %v204 = vld [vmem:[%s1 + $0x5d8] sm:$0xff]
  %v205 = vld [vmem:[%s1 + $0x5e0] sm:$0xff]
  %v206 = vld [vmem:[%s1 + $0x5e8] sm:$0xff]
  %v207 = vld [vmem:[%s1 + $0x5f0] sm:$0xff]
  %v208 = vld [vmem:[%s1 + $0x5f8] sm:$0xff]
  %v209 = vld [vmem:[%s1 + $0x600] sm:$0xff]
  %v210 = vld [vmem:[%s1 + $0x608] sm:$0xff]
  %v211 = vld [vmem:[%s1 + $0x610] sm:$0xff]
  %v212 = vld [vmem:[%s1 + $0x618] sm:$0xff]
  %v213 = vld [vmem:[%s1 + $0x620] sm:$0xff]
  %v214 = vld [vmem:[%s1 + $0x628] sm:$0xff]
  %v215 = vld [vmem:[%s1 + $0x630] sm:$0xff]
  %v216 = vld [vmem:[%s1 + $0x638] sm:$0xff]
  %v217 = vld [vmem:[%s1 + $0x640] sm:$0xff]
  %v218 = vld [vmem:[%s1 + $0x648] sm:$0xff]
  %v219 = vld [vmem:[%s1 + $0x650] sm:$0xff]
  %v220 = vld [vmem:[%s1 + $0x658] sm:$0xff]
  %v221 = vld [vmem:[%s1 + $0x660] sm:$0xff]
  %v222 = vld [vmem:[%s1 + $0x668] sm:$0xff]
  %v223 = vld [vmem:[%s1 + $0x670] sm:$0xff]
  %v224 = vld [vmem:[%s1 + $0x678] sm:$0xff]
  %v225 = vld [vmem:[%s1 + $0x680] sm:$0xff]
  %v226 = vld [vmem:[%s1 + $0x688] sm:$0xff]
  %v227 = vld [vmem:[%s1 + $0x690] sm:$0xff]
  %v228 = vld [vmem:[%s1 + $0x698] sm:$0xff]
  %v229 = vld [vmem:[%s1 + $0x6a0] sm:$0xff]
  %v230 = vld [vmem:[%s1 + $0x6a8] sm:$0xff]
  %v231 = vld [vmem:[%s1 + $0x6b0] sm:$0xff]
  %v232 = vld [vmem:[%s1 + $0x6b8] sm:$0xff]
  %v233 = vld [vmem:[%s1 + $0x6c0] sm:$0xff]
  %v234 = vld [vmem:[%s1 + $0x6c8] sm:$0xff]
  %v235 = vld [vmem:[%s1 + $0x6d0] sm:$0xff]
  %v236 = vld [vmem:[%s1 + $0x6d8] sm:$0xff]
  %v237 = vld [vmem:[%s1 + $0x6e0] sm:$0xff]
  %v238 = vld [vmem:[%s1 + $0x6e8] sm:$0xff]
  %v239 = vld [vmem:[%s1 + $0x6f0] sm:$0xff]
  %v240 = vld [vmem:[%s1 + $0x6f8] sm:$0xff]
  %v241 = vld [vmem:[%s1 + $0x700] sm:$0xff]
  %v242 = vld [vmem:[%s1 + $0x708] sm:$0xff]
  %v243 = vld [vmem:[%s1 + $0x710] sm:$0xff]
  %v244 = vld [vmem:[%s1 + $0x718] sm:$0xff]
  %v245 = vld [vmem:[%s1 + $0x720] sm:$0xff]
  %v246 = vld [vmem:[%s1 + $0x728] sm:$0xff]
  %v247 = vld [vmem:[%s1 + $0x730] sm:$0xff]
  %v248 = vld [vmem:[%s1 + $0x738] sm:$0xff]
  %v249 = vld [vmem:[%s1 + $0x740] sm:$0xff]
  %v250 = vld [vmem:[%s1 + $0x748] sm:$0xff]
  %v251 = vld [vmem:[%s1 + $0x750] sm:$0xff]
  %v252 = vld [vmem:[%s1 + $0x758] sm:$0xff]
  %v253 = vld [vmem:[%s1 + $0x760] sm:$0xff]
  %v254 = vld [vmem:[%s1 + $0x768] sm:$0xff]
  %v255 = vld [vmem:[%s1 + $0x770] sm:$0xff]
  %v256 = vld [vmem:[%s1 + $0x778] sm:$0xff]
  %v257 = vld [vmem:[%s1 + $0x780] sm:$0xff]
  %v258 = vld [vmem:[%s1 + $0x788] sm:$0xff]
  %v259 = vld [vmem:[%s1 + $0x790] sm:$0xff]
  %v260 = vld [vmem:[%s1 + $0x798] sm:$0xff]
  %v261 = vld [vmem:[%s1 + $0x7a0] sm:$0xff]
  %v262 = vld [vmem:[%s1 + $0x7a8] sm:$0xff]
  %v263 = vld [vmem:[%s1 + $0x7b0] sm:$0xff]
  %v264 = vld [vmem:[%s1 + $0x7b8] sm:$0xff]
  %v265 = vld [vmem:[%s1 + $0x7c0] sm:$0xff]
  %v266 = vld [vmem:[%s1 + $0x7c8] sm:$0xff]
  %v267 = vld [vmem:[%s1 + $0x7d0] sm:$0xff]
  %v268 = vld [vmem:[%s1 + $0x7d8] sm:$0xff]
  %v269 = vld [vmem:[%s1 + $0x7e0] sm:$0xff]
  %v270 = vld [vmem:[%s1 + $0x7e8] sm:$0xff]
  %v271 = vld [vmem:[%s1 + $0x7f0] sm:$0xff]
  %v272 = vld [vmem:[%s1 + $0x7f8] sm:$0xff]
  %v273 = vld [vmem:[%s1 + $0x800] sm:$0xff]
  %v274 = vld [vmem:[%s1 + $0x808] sm:$0xff]
  %v275 = vld [vmem:[%s1 + $0x810] sm:$0xff]
  %v276 = vld [vmem:[%s1 + $0x818] sm:$0xff]
  %v277 = vld [vmem:[%s1 + $0x820] sm:$0xff]
  %v278 = vld [vmem:[%s1 + $0x828] sm:$0xff]
  %v279 = vld [vmem:[%s1 + $0x830] sm:$0xff]
  %v280 = vld [vmem:[%s1 + $0x838] sm:$0xff]
  %v281 = vld [vmem:[%s1 + $0x840] sm:$0xff]
  %v282 = vld [vmem:[%s1 + $0x848] sm:$0xff]
  %v283 = vld [vmem:[%s1 + $0x850] sm:$0xff]
  %v284 = vld [vmem:[%s1 + $0x858] sm:$0xff]
  %v285 = vld [vmem:[%s1 + $0x860] sm:$0xff]
  %v286 = vld [vmem:[%s1 + $0x868] sm:$0xff]
  %v287 = vld [vmem:[%s1 + $0x870] sm:$0xff]
  %v288 = vld [vmem:[%s1 + $0x878] sm:$0xff]
  %v289 = vld [vmem:[%s1 + $0x880] sm:$0xff]
  %v290 = vld [vmem:[%s1 + $0x888] sm:$0xff]
  %v291 = vld [vmem:[%s1 + $0x890] sm:$0xff]
  %v292 = vld [vmem:[%s1 + $0x898] sm:$0xff]
  %v293 = vld [vmem:[%s1 + $0x8a0] sm:$0xff]
  %v294 = vld [vmem:[%s1 + $0x8a8] sm:$0xff]
  %v295 = vld [vmem:[%s1 + $0x8b0] sm:$0xff]
  %v296 = vld [vmem:[%s1 + $0x8b8] sm:$0xff]
  %v297 = vld [vmem:[%s1 + $0x8c0] sm:$0xff]
  %v298 = vld [vmem:[%s1 + $0x8c8] sm:$0xff]
  %v299 = vld [vmem:[%s1 + $0x8d0] sm:$0xff]
  %v300 = vld [vmem:[%s1 + $0x8d8] sm:$0xff]
  %v301 = vld [vmem:[%s1 + $0x8e0] sm:$0xff]
  %v302 = vld [vmem:[%s1 + $0x8e8] sm:$0xff]
  %v303 = vld [vmem:[%s1 + $0x8f0] sm:$0xff]
  %v304 = vld [vmem:[%s1 + $0x8f8] sm:$0xff]
  %v305 = vld [vmem:[%s2] sm:$0xf]
  %v307 = vlaneseq
  %v308 = vshrl.u32 %v307, 7
  %v309 = vsub.s32 0, %v308
  %v310 = vrot.slane %v305, %v309
  %v311 = vlaneseq
  %v312 = vshrl.u32 %v311, 7
  %v313 = vsub.s32 1, %v312
  %v314 = vrot.slane %v305, %v313
  %v315 = vlaneseq
  %v316 = vshrl.u32 %v315, 7
  %v317 = vsub.s32 2, %v316
  %v318 = vrot.slane %v305, %v317
  %v319 = vlaneseq
  %v320 = vshrl.u32 %v319, 7
  %v321 = vsub.s32 3, %v320
  %v322 = vrot.slane %v305, %v321
  %v329 = vcombine.high %v15, %v15
  %v331 = vunpack.c.l.s4 1966171168
  %v332 = vunpack.c.0.s8 %v331
  %v333 = vlaneseq
  %v334 = vshrl.u32 %v333, 7
  %v335 = vsub.s32 %v332, %v334
  %v336 = vrot.slane %v15, %v335
  %v338 = vunpack.c.l.s4 1966171168
  %v339 = vunpack.c.0.s8 %v338
  %v340 = vlaneseq
  %v341 = vshrl.u32 %v340, 7
  %v342 = vsub.s32 %v339, %v341
  %v343 = vrot.slane %v329, %v342
  %v344 = vcombine.high %v336, %v336
  %v345 = vcombine.high %v343, %v343
  %v347 = vunpack.c.l.s4 1966171168
  %v348 = vunpack.c.0.s8 %v347
  %v349 = vlaneseq
  %v350 = vshrl.u32 %v349, 7
  %v351 = vsub.s32 %v348, %v350
  %v352 = vrot.slane %v336, %v351
  %v354 = vunpack.c.l.s4 1966171168
  %v355 = vunpack.c.0.s8 %v354
  %v356 = vlaneseq
  %v357 = vshrl.u32 %v356, 7
  %v358 = vsub.s32 %v355, %v357
  %v359 = vrot.slane %v343, %v358
  %v361 = vunpack.c.l.s4 1966171168
  %v362 = vunpack.c.0.s8 %v361
  %v363 = vlaneseq
  %v364 = vshrl.u32 %v363, 7
  %v365 = vsub.s32 %v362, %v364
  %v366 = vrot.slane %v344, %v365
  %v368 = vunpack.c.l.s4 1966171168
  %v369 = vunpack.c.0.s8 %v368
  %v370 = vlaneseq
  %v371 = vshrl.u32 %v370, 7
  %v372 = vsub.s32 %v369, %v371
  %v373 = vrot.slane %v345, %v372
  %v374 = vcombine.high %v352, %v352
  %v375 = vcombine.high %v359, %v359
  %v376 = vcombine.high %v366, %v366
  %v377 = vcombine.high %v373, %v373
  %v379 = vunpack.c.l.s4 1966171168
  %v380 = vunpack.c.0.s8 %v379
  %v381 = vlaneseq
  %v382 = vshrl.u32 %v381, 7
  %v383 = vsub.s32 %v380, %v382
  %v384 = vrot.slane %v16, %v383
  %v386 = vunpack.c.l.s4 1966171168
  %v387 = vunpack.c.0.s8 %v386
  %v388 = vlaneseq
  %v389 = vshrl.u32 %v388, 7
  %v390 = vsub.s32 %v387, %v389
  %v391 = vrot.slane %v384, %v390
  %v689 = vunpack.c.l.b16 %v17
  %v690 = vunpack.c.h.b16 %v17
  %v691 = vunpack.c.l.b16 %v18
  %v692 = vunpack.c.h.b16 %v18
  %v693 = vunpack.c.l.b16 %v19
  %v694 = vunpack.c.h.b16 %v19
  %v695 = vunpack.c.l.b16 %v20
  %v696 = vunpack.c.h.b16 %v20
  %v697 = vunpack.c.l.b16 %v21
  %v698 = vunpack.c.h.b16 %v21
  %v699 = vunpack.c.l.b16 %v22
  %v700 = vunpack.c.h.b16 %v22
  %v701 = vunpack.c.l.b16 %v23
  %v702 = vunpack.c.h.b16 %v23
  %v703 = vunpack.c.l.b16 %v24
  %v704 = vunpack.c.h.b16 %v24
  %v705 = vunpack.c.l.b16 %v25
  %v706 = vunpack.c.h.b16 %v25
  %v707 = vunpack.c.l.b16 %v26
  %v708 = vunpack.c.h.b16 %v26
  %v709 = vunpack.c.l.b16 %v27
  %v710 = vunpack.c.h.b16 %v27
  %v711 = vunpack.c.l.b16 %v28
  %v712 = vunpack.c.h.b16 %v28
  %v713 = vunpack.c.l.b16 %v29
  %v714 = vunpack.c.h.b16 %v29
  %v715 = vunpack.c.l.b16 %v30
  %v716 = vunpack.c.h.b16 %v30
  %v717 = vunpack.c.l.b16 %v31
  %v718 = vunpack.c.h.b16 %v31
  %v719 = vunpack.c.l.b16 %v32
  %v720 = vunpack.c.h.b16 %v32
  %v721 = vunpack.c.l.b16 %v33
  %v722 = vunpack.c.h.b16 %v33
  %v723 = vunpack.c.l.b16 %v34
  %v724 = vunpack.c.h.b16 %v34
  %v725 = vunpack.c.l.b16 %v35
  %v726 = vunpack.c.h.b16 %v35
  %v727 = vunpack.c.l.b16 %v36
  %v728 = vunpack.c.h.b16 %v36
  %v729 = vunpack.c.l.b16 %v37
  %v730 = vunpack.c.h.b16 %v37
  %v731 = vunpack.c.l.b16 %v38
  %v732 = vunpack.c.h.b16 %v38
  %v733 = vunpack.c.l.b16 %v39
  %v734 = vunpack.c.h.b16 %v39
  %v735 = vunpack.c.l.b16 %v40
  %v736 = vunpack.c.h.b16 %v40
  %v737 = vunpack.c.l.b16 %v41
  %v738 = vunpack.c.h.b16 %v41
  %v739 = vunpack.c.l.b16 %v42
  %v740 = vunpack.c.h.b16 %v42
  %v741 = vunpack.c.l.b16 %v43
  %v742 = vunpack.c.h.b16 %v43
  %v743 = vunpack.c.l.b16 %v44
  %v744 = vunpack.c.h.b16 %v44
  %v745 = vunpack.c.l.b16 %v45
  %v746 = vunpack.c.h.b16 %v45
  %v747 = vunpack.c.l.b16 %v46
  %v748 = vunpack.c.h.b16 %v46
  %v749 = vunpack.c.l.b16 %v47
  %v750 = vunpack.c.h.b16 %v47
  %v751 = vunpack.c.l.b16 %v48
  %v752 = vunpack.c.h.b16 %v48
  %v753 = vunpack.c.l.b16 %v49
  %v754 = vunpack.c.h.b16 %v49
  %v755 = vunpack.c.l.b16 %v50
  %v756 = vunpack.c.h.b16 %v50
  %v757 = vunpack.c.l.b16 %v51
  %v758 = vunpack.c.h.b16 %v51
  %v759 = vunpack.c.l.b16 %v52
  %v760 = vunpack.c.h.b16 %v52
  %v761 = vunpack.c.l.b16 %v53
  %v762 = vunpack.c.h.b16 %v53
  %v763 = vunpack.c.l.b16 %v54
  %v764 = vunpack.c.h.b16 %v54
  %v765 = vunpack.c.l.b16 %v55
  %v766 = vunpack.c.h.b16 %v55
  %v767 = vunpack.c.l.b16 %v56
  %v768 = vunpack.c.h.b16 %v56
  %v769 = vunpack.c.l.b16 %v57
  %v770 = vunpack.c.h.b16 %v57
  %v771 = vunpack.c.l.b16 %v58
  %v772 = vunpack.c.h.b16 %v58
  %v773 = vunpack.c.l.b16 %v59
  %v774 = vunpack.c.h.b16 %v59
  %v775 = vunpack.c.l.b16 %v60
  %v776 = vunpack.c.h.b16 %v60
  %v777 = vunpack.c.l.b16 %v61
  %v778 = vunpack.c.h.b16 %v61
  %v779 = vunpack.c.l.b16 %v62
  %v780 = vunpack.c.h.b16 %v62
  %v781 = vunpack.c.l.b16 %v63
  %v782 = vunpack.c.h.b16 %v63
  %v783 = vunpack.c.l.b16 %v64
  %v784 = vunpack.c.h.b16 %v64
  %v785 = vunpack.c.l.b16 %v65
  %v786 = vunpack.c.h.b16 %v65
  %v787 = vunpack.c.l.b16 %v66
  %v788 = vunpack.c.h.b16 %v66
  %v789 = vunpack.c.l.b16 %v67
  %v790 = vunpack.c.h.b16 %v67
  %v791 = vunpack.c.l.b16 %v68
  %v792 = vunpack.c.h.b16 %v68
  %v793 = vunpack.c.l.b16 %v69
  %v794 = vunpack.c.h.b16 %v69
  %v795 = vunpack.c.l.b16 %v70
  %v796 = vunpack.c.h.b16 %v70
  %v797 = vunpack.c.l.b16 %v71
  %v798 = vunpack.c.h.b16 %v71
  %v799 = vunpack.c.l.b16 %v72
  %v800 = vunpack.c.h.b16 %v72
  %v801 = vunpack.c.l.b16 %v73
  %v802 = vunpack.c.h.b16 %v73
  %v803 = vunpack.c.l.b16 %v74
  %v804 = vunpack.c.h.b16 %v74
  %v805 = vunpack.c.l.b16 %v75
  %v806 = vunpack.c.h.b16 %v75
  %v807 = vunpack.c.l.b16 %v76
  %v808 = vunpack.c.h.b16 %v76
  %v809 = vunpack.c.l.b16 %v77
  %v810 = vunpack.c.h.b16 %v77
  %v811 = vunpack.c.l.b16 %v78
  %v812 = vunpack.c.h.b16 %v78
  %v813 = vunpack.c.l.b16 %v79
  %v814 = vunpack.c.h.b16 %v79
  %v815 = vunpack.c.l.b16 %v80
  %v816 = vunpack.c.h.b16 %v80
  %v817 = vunpack.c.l.b16 %v81
  %v818 = vunpack.c.h.b16 %v81
  %v819 = vunpack.c.l.b16 %v82
  %v820 = vunpack.c.h.b16 %v82
  %v821 = vunpack.c.l.b16 %v83
  %v822 = vunpack.c.h.b16 %v83
  %v823 = vunpack.c.l.b16 %v84
  %v824 = vunpack.c.h.b16 %v84
  %v825 = vunpack.c.l.b16 %v85
  %v826 = vunpack.c.h.b16 %v85
  %v827 = vunpack.c.l.b16 %v86
  %v828 = vunpack.c.h.b16 %v86
  %v829 = vunpack.c.l.b16 %v87
  %v830 = vunpack.c.h.b16 %v87
  %v831 = vunpack.c.l.b16 %v88
  %v832 = vunpack.c.h.b16 %v88
  %v833 = vunpack.c.l.b16 %v89
  %v834 = vunpack.c.h.b16 %v89
  %v835 = vunpack.c.l.b16 %v90
  %v836 = vunpack.c.h.b16 %v90
  %v837 = vunpack.c.l.b16 %v91
  %v838 = vunpack.c.h.b16 %v91
  %v839 = vunpack.c.l.b16 %v92
  %v840 = vunpack.c.h.b16 %v92
  %v841 = vunpack.c.l.b16 %v93
  %v842 = vunpack.c.h.b16 %v93
  %v843 = vunpack.c.l.b16 %v94
  %v844 = vunpack.c.h.b16 %v94
  %v845 = vunpack.c.l.b16 %v95
  %v846 = vunpack.c.h.b16 %v95
  %v847 = vunpack.c.l.b16 %v96
  %v848 = vunpack.c.h.b16 %v96
  %v849 = vunpack.c.l.b16 %v97
  %v850 = vunpack.c.h.b16 %v97
  %v851 = vunpack.c.l.b16 %v98
  %v852 = vunpack.c.h.b16 %v98
  %v853 = vunpack.c.l.b16 %v99
  %v854 = vunpack.c.h.b16 %v99
  %v855 = vunpack.c.l.b16 %v100
  %v856 = vunpack.c.h.b16 %v100
  %v857 = vunpack.c.l.b16 %v101
  %v858 = vunpack.c.h.b16 %v101
  %v859 = vunpack.c.l.b16 %v102
  %v860 = vunpack.c.h.b16 %v102
  %v861 = vunpack.c.l.b16 %v103
  %v862 = vunpack.c.h.b16 %v103
  %v863 = vunpack.c.l.b16 %v104
  %v864 = vunpack.c.h.b16 %v104
  %v865 = vunpack.c.l.b16 %v105
  %v866 = vunpack.c.h.b16 %v105
  %v867 = vunpack.c.l.b16 %v106
  %v868 = vunpack.c.h.b16 %v106
  %v869 = vunpack.c.l.b16 %v107
  %v870 = vunpack.c.h.b16 %v107
  %v871 = vunpack.c.l.b16 %v108
  %v872 = vunpack.c.h.b16 %v108
  %v873 = vunpack.c.l.b16 %v109
  %v874 = vunpack.c.h.b16 %v109
  %v875 = vunpack.c.l.b16 %v110
  %v876 = vunpack.c.h.b16 %v110
  %v877 = vunpack.c.l.b16 %v111
  %v878 = vunpack.c.h.b16 %v111
  %v879 = vunpack.c.l.b16 %v112
  %v880 = vunpack.c.h.b16 %v112
  %v881 = vunpack.c.l.b16 %v113
  %v882 = vunpack.c.h.b16 %v113
  %v883 = vunpack.c.l.b16 %v114
  %v884 = vunpack.c.h.b16 %v114
  %v885 = vunpack.c.l.b16 %v115
  %v886 = vunpack.c.h.b16 %v115
  %v887 = vunpack.c.l.b16 %v116
  %v888 = vunpack.c.h.b16 %v116
  %v889 = vunpack.c.l.b16 %v117
  %v890 = vunpack.c.h.b16 %v117
  %v891 = vunpack.c.l.b16 %v118
  %v892 = vunpack.c.h.b16 %v118
  %v893 = vunpack.c.l.b16 %v119
  %v894 = vunpack.c.h.b16 %v119
  %v895 = vunpack.c.l.b16 %v120
  %v896 = vunpack.c.h.b16 %v120
  %v897 = vunpack.c.l.b16 %v121
  %v898 = vunpack.c.h.b16 %v121
  %v899 = vunpack.c.l.b16 %v122
  %v900 = vunpack.c.h.b16 %v122
  %v901 = vunpack.c.l.b16 %v123
  %v902 = vunpack.c.h.b16 %v123
  %v903 = vunpack.c.l.b16 %v124
  %v904 = vunpack.c.h.b16 %v124
  %v905 = vunpack.c.l.b16 %v125
  %v906 = vunpack.c.h.b16 %v125
  %v907 = vunpack.c.l.b16 %v126
  %v908 = vunpack.c.h.b16 %v126
  %v909 = vunpack.c.l.b16 %v127
  %v910 = vunpack.c.h.b16 %v127
  %v911 = vunpack.c.l.b16 %v128
  %v912 = vunpack.c.h.b16 %v128
  %v913 = vunpack.c.l.b16 %v129
  %v914 = vunpack.c.h.b16 %v129
  %v915 = vunpack.c.l.b16 %v130
  %v916 = vunpack.c.h.b16 %v130
  %v917 = vunpack.c.l.b16 %v131
  %v918 = vunpack.c.h.b16 %v131
  %v919 = vunpack.c.l.b16 %v132
  %v920 = vunpack.c.h.b16 %v132
  %v921 = vunpack.c.l.b16 %v133
  %v922 = vunpack.c.h.b16 %v133
  %v923 = vunpack.c.l.b16 %v134
  %v924 = vunpack.c.h.b16 %v134
  %v925 = vunpack.c.l.b16 %v135
  %v926 = vunpack.c.h.b16 %v135
  %v927 = vunpack.c.l.b16 %v136
  %v928 = vunpack.c.h.b16 %v136
  %v929 = vunpack.c.l.b16 %v137
  %v930 = vunpack.c.h.b16 %v137
  %v931 = vunpack.c.l.b16 %v138
  %v932 = vunpack.c.h.b16 %v138
  %v933 = vunpack.c.l.b16 %v139
  %v934 = vunpack.c.h.b16 %v139
  %v935 = vunpack.c.l.b16 %v140
  %v936 = vunpack.c.h.b16 %v140
  %v937 = vunpack.c.l.b16 %v141
  %v938 = vunpack.c.h.b16 %v141
  %v939 = vunpack.c.l.b16 %v142
  %v940 = vunpack.c.h.b16 %v142
  %v941 = vunpack.c.l.b16 %v143
  %v942 = vunpack.c.h.b16 %v143
  %v943 = vunpack.c.l.b16 %v144
  %v944 = vunpack.c.h.b16 %v144
  %v945 = vunpack.c.l.b16 %v145
  %v946 = vunpack.c.h.b16 %v145
  %v947 = vunpack.c.l.b16 %v146
  %v948 = vunpack.c.h.b16 %v146
  %v949 = vunpack.c.l.b16 %v147
  %v950 = vunpack.c.h.b16 %v147
  %v951 = vunpack.c.l.b16 %v148
  %v952 = vunpack.c.h.b16 %v148
  %v953 = vunpack.c.l.b16 %v149
  %v954 = vunpack.c.h.b16 %v149
  %v955 = vunpack.c.l.b16 %v150
  %v956 = vunpack.c.h.b16 %v150
  %v957 = vunpack.c.l.b16 %v151
  %v958 = vunpack.c.h.b16 %v151
  %v959 = vunpack.c.l.b16 %v152
  %v960 = vunpack.c.h.b16 %v152
  %v961 = vunpack.c.l.b16 %v153
  %v962 = vunpack.c.h.b16 %v153
  %v963 = vunpack.c.l.b16 %v154
  %v964 = vunpack.c.h.b16 %v154
  %v965 = vunpack.c.l.b16 %v155
  %v966 = vunpack.c.h.b16 %v155
  %v967 = vunpack.c.l.b16 %v156
  %v968 = vunpack.c.h.b16 %v156
  %v969 = vunpack.c.l.b16 %v157
  %v970 = vunpack.c.h.b16 %v157
  %v971 = vunpack.c.l.b16 %v158
  %v972 = vunpack.c.h.b16 %v158
  %v973 = vunpack.c.l.b16 %v159
  %v974 = vunpack.c.h.b16 %v159
  %v975 = vunpack.c.l.b16 %v160
  %v976 = vunpack.c.h.b16 %v160
  %v977 = vunpack.c.l.b16 %v161
  %v978 = vunpack.c.h.b16 %v161
  %v979 = vunpack.c.l.b16 %v162
  %v980 = vunpack.c.h.b16 %v162
  %v981 = vunpack.c.l.b16 %v163
  %v982 = vunpack.c.h.b16 %v163
  %v983 = vunpack.c.l.b16 %v164
  %v984 = vunpack.c.h.b16 %v164
  %v985 = vunpack.c.l.b16 %v165
  %v986 = vunpack.c.h.b16 %v165
  %v987 = vunpack.c.l.b16 %v166
  %v988 = vunpack.c.h.b16 %v166
  %v989 = vunpack.c.l.b16 %v167
  %v990 = vunpack.c.h.b16 %v167
  %v991 = vunpack.c.l.b16 %v168
  %v992 = vunpack.c.h.b16 %v168
  %v993 = vunpack.c.l.b16 %v169
  %v994 = vunpack.c.h.b16 %v169
  %v995 = vunpack.c.l.b16 %v170
  %v996 = vunpack.c.h.b16 %v170
  %v997 = vunpack.c.l.b16 %v171
  %v998 = vunpack.c.h.b16 %v171
  %v999 = vunpack.c.l.b16 %v172
  %v1000 = vunpack.c.h.b16 %v172
  %v1001 = vunpack.c.l.b16 %v173
  %v1002 = vunpack.c.h.b16 %v173
  %v1003 = vunpack.c.l.b16 %v174
  %v1004 = vunpack.c.h.b16 %v174
  %v1005 = vunpack.c.l.b16 %v175
  %v1006 = vunpack.c.h.b16 %v175
  %v1007 = vunpack.c.l.b16 %v176
  %v1008 = vunpack.c.h.b16 %v176
  %v1009 = vunpack.c.l.b16 %v177
  %v1010 = vunpack.c.h.b16 %v177
  %v1011 = vunpack.c.l.b16 %v178
  %v1012 = vunpack.c.h.b16 %v178
  %v1013 = vunpack.c.l.b16 %v179
  %v1014 = vunpack.c.h.b16 %v179
  %v1015 = vunpack.c.l.b16 %v180
  %v1016 = vunpack.c.h.b16 %v180
  %v1017 = vunpack.c.l.b16 %v181
  %v1018 = vunpack.c.h.b16 %v181
  %v1019 = vunpack.c.l.b16 %v182
  %v1020 = vunpack.c.h.b16 %v182
  %v1021 = vunpack.c.l.b16 %v183
  %v1022 = vunpack.c.h.b16 %v183
  %v1023 = vunpack.c.l.b16 %v184
  %v1024 = vunpack.c.h.b16 %v184
  %v1025 = vunpack.c.l.b16 %v185
  %v1026 = vunpack.c.h.b16 %v185
  %v1027 = vunpack.c.l.b16 %v186
  %v1028 = vunpack.c.h.b16 %v186
  %v1029 = vunpack.c.l.b16 %v187
  %v1030 = vunpack.c.h.b16 %v187
  %v1031 = vunpack.c.l.b16 %v188
  %v1032 = vunpack.c.h.b16 %v188
  %v1033 = vunpack.c.l.b16 %v189
  %v1034 = vunpack.c.h.b16 %v189
  %v1035 = vunpack.c.l.b16 %v190
  %v1036 = vunpack.c.h.b16 %v190
  %v1037 = vunpack.c.l.b16 %v191
  %v1038 = vunpack.c.h.b16 %v191
  %v1039 = vunpack.c.l.b16 %v192
  %v1040 = vunpack.c.h.b16 %v192
  %v1041 = vunpack.c.l.b16 %v193
  %v1042 = vunpack.c.h.b16 %v193
  %v1043 = vunpack.c.l.b16 %v194
  %v1044 = vunpack.c.h.b16 %v194
  %v1045 = vunpack.c.l.b16 %v195
  %v1046 = vunpack.c.h.b16 %v195
  %v1047 = vunpack.c.l.b16 %v196
  %v1048 = vunpack.c.h.b16 %v196
  %v1049 = vunpack.c.l.b16 %v197
  %v1050 = vunpack.c.h.b16 %v197
  %v1051 = vunpack.c.l.b16 %v198
  %v1052 = vunpack.c.h.b16 %v198
  %v1053 = vunpack.c.l.b16 %v199
  %v1054 = vunpack.c.h.b16 %v199
  %v1055 = vunpack.c.l.b16 %v200
  %v1056 = vunpack.c.h.b16 %v200
  %v1057 = vunpack.c.l.b16 %v201
  %v1058 = vunpack.c.h.b16 %v201
  %v1059 = vunpack.c.l.b16 %v202
  %v1060 = vunpack.c.h.b16 %v202
  %v1061 = vunpack.c.l.b16 %v203
  %v1062 = vunpack.c.h.b16 %v203
  %v1063 = vunpack.c.l.b16 %v204
  %v1064 = vunpack.c.h.b16 %v204
  %v1065 = vunpack.c.l.b16 %v205
  %v1066 = vunpack.c.h.b16 %v205
  %v1067 = vunpack.c.l.b16 %v206
  %v1068 = vunpack.c.h.b16 %v206
  %v1069 = vunpack.c.l.b16 %v207
  %v1070 = vunpack.c.h.b16 %v207
  %v1071 = vunpack.c.l.b16 %v208
  %v1072 = vunpack.c.h.b16 %v208
  %v1073 = vunpack.c.l.b16 %v209
  %v1074 = vunpack.c.h.b16 %v209
  %v1075 = vunpack.c.l.b16 %v210
  %v1076 = vunpack.c.h.b16 %v210
  %v1077 = vunpack.c.l.b16 %v211
  %v1078 = vunpack.c.h.b16 %v211
  %v1079 = vunpack.c.l.b16 %v212
  %v1080 = vunpack.c.h.b16 %v212
  %v1081 = vunpack.c.l.b16 %v213
  %v1082 = vunpack.c.h.b16 %v213
  %v1083 = vunpack.c.l.b16 %v214
  %v1084 = vunpack.c.h.b16 %v214
  %v1085 = vunpack.c.l.b16 %v215
  %v1086 = vunpack.c.h.b16 %v215
  %v1087 = vunpack.c.l.b16 %v216
  %v1088 = vunpack.c.h.b16 %v216
  %v1089 = vunpack.c.l.b16 %v217
  %v1090 = vunpack.c.h.b16 %v217
  %v1091 = vunpack.c.l.b16 %v218
  %v1092 = vunpack.c.h.b16 %v218
  %v1093 = vunpack.c.l.b16 %v219
  %v1094 = vunpack.c.h.b16 %v219
  %v1095 = vunpack.c.l.b16 %v220
  %v1096 = vunpack.c.h.b16 %v220
  %v1097 = vunpack.c.l.b16 %v221
  %v1098 = vunpack.c.h.b16 %v221
  %v1099 = vunpack.c.l.b16 %v222
  %v1100 = vunpack.c.h.b16 %v222
  %v1101 = vunpack.c.l.b16 %v223
  %v1102 = vunpack.c.h.b16 %v223
  %v1103 = vunpack.c.l.b16 %v224
  %v1104 = vunpack.c.h.b16 %v224
  %v1105 = vunpack.c.l.b16 %v225
  %v1106 = vunpack.c.h.b16 %v225
  %v1107 = vunpack.c.l.b16 %v226
  %v1108 = vunpack.c.h.b16 %v226
  %v1109 = vunpack.c.l.b16 %v227
  %v1110 = vunpack.c.h.b16 %v227
  %v1111 = vunpack.c.l.b16 %v228
  %v1112 = vunpack.c.h.b16 %v228
  %v1113 = vunpack.c.l.b16 %v229
  %v1114 = vunpack.c.h.b16 %v229
  %v1115 = vunpack.c.l.b16 %v230
  %v1116 = vunpack.c.h.b16 %v230
  %v1117 = vunpack.c.l.b16 %v231
  %v1118 = vunpack.c.h.b16 %v231
  %v1119 = vunpack.c.l.b16 %v232
  %v1120 = vunpack.c.h.b16 %v232
  %v1121 = vunpack.c.l.b16 %v233
  %v1122 = vunpack.c.h.b16 %v233
  %v1123 = vunpack.c.l.b16 %v234
  %v1124 = vunpack.c.h.b16 %v234
  %v1125 = vunpack.c.l.b16 %v235
  %v1126 = vunpack.c.h.b16 %v235
  %v1127 = vunpack.c.l.b16 %v236
  %v1128 = vunpack.c.h.b16 %v236
  %v1129 = vunpack.c.l.b16 %v237
  %v1130 = vunpack.c.h.b16 %v237
  %v1131 = vunpack.c.l.b16 %v238
  %v1132 = vunpack.c.h.b16 %v238
  %v1133 = vunpack.c.l.b16 %v239
  %v1134 = vunpack.c.h.b16 %v239
  %v1135 = vunpack.c.l.b16 %v240
  %v1136 = vunpack.c.h.b16 %v240
  %v1137 = vunpack.c.l.b16 %v241
  %v1138 = vunpack.c.h.b16 %v241
  %v1139 = vunpack.c.l.b16 %v242
  %v1140 = vunpack.c.h.b16 %v242
  %v1141 = vunpack.c.l.b16 %v243
  %v1142 = vunpack.c.h.b16 %v243
  %v1143 = vunpack.c.l.b16 %v244
  %v1144 = vunpack.c.h.b16 %v244
  %v1145 = vunpack.c.l.b16 %v245
  %v1146 = vunpack.c.h.b16 %v245
  %v1147 = vunpack.c.l.b16 %v246
  %v1148 = vunpack.c.h.b16 %v246
  %v1149 = vunpack.c.l.b16 %v247
  %v1150 = vunpack.c.h.b16 %v247
  %v1151 = vunpack.c.l.b16 %v248
  %v1152 = vunpack.c.h.b16 %v248
  %v1153 = vunpack.c.l.b16 %v249
  %v1154 = vunpack.c.h.b16 %v249
  %v1155 = vunpack.c.l.b16 %v250
  %v1156 = vunpack.c.h.b16 %v250
  %v1157 = vunpack.c.l.b16 %v251
  %v1158 = vunpack.c.h.b16 %v251
  %v1159 = vunpack.c.l.b16 %v252
  %v1160 = vunpack.c.h.b16 %v252
  %v1161 = vunpack.c.l.b16 %v253
  %v1162 = vunpack.c.h.b16 %v253
  %v1163 = vunpack.c.l.b16 %v254
  %v1164 = vunpack.c.h.b16 %v254
  %v1165 = vunpack.c.l.b16 %v255
  %v1166 = vunpack.c.h.b16 %v255
  %v1167 = vunpack.c.l.b16 %v256
  %v1168 = vunpack.c.h.b16 %v256
  %v1169 = vunpack.c.l.b16 %v257
  %v1170 = vunpack.c.h.b16 %v257
  %v1171 = vunpack.c.l.b16 %v258
  %v1172 = vunpack.c.h.b16 %v258
  %v1173 = vunpack.c.l.b16 %v259
  %v1174 = vunpack.c.h.b16 %v259
  %v1175 = vunpack.c.l.b16 %v260
  %v1176 = vunpack.c.h.b16 %v260
  %v1177 = vunpack.c.l.b16 %v261
  %v1178 = vunpack.c.h.b16 %v261
  %v1179 = vunpack.c.l.b16 %v262
  %v1180 = vunpack.c.h.b16 %v262
  %v1181 = vunpack.c.l.b16 %v263
  %v1182 = vunpack.c.h.b16 %v263
  %v1183 = vunpack.c.l.b16 %v264
  %v1184 = vunpack.c.h.b16 %v264
  %v1185 = vunpack.c.l.b16 %v265
  %v1186 = vunpack.c.h.b16 %v265
  %v1187 = vunpack.c.l.b16 %v266
  %v1188 = vunpack.c.h.b16 %v266
  %v1189 = vunpack.c.l.b16 %v267
  %v1190 = vunpack.c.h.b16 %v267
  %v1191 = vunpack.c.l.b16 %v268
  %v1192 = vunpack.c.h.b16 %v268
  %v1193 = vunpack.c.l.b16 %v269
  %v1194 = vunpack.c.h.b16 %v269
  %v1195 = vunpack.c.l.b16 %v270
  %v1196 = vunpack.c.h.b16 %v270
  %v1197 = vunpack.c.l.b16 %v271
  %v1198 = vunpack.c.h.b16 %v271
  %v1199 = vunpack.c.l.b16 %v272
  %v1200 = vunpack.c.h.b16 %v272
  %v1201 = vunpack.c.l.b16 %v273
  %v1202 = vunpack.c.h.b16 %v273
  %v1203 = vunpack.c.l.b16 %v274
  %v1204 = vunpack.c.h.b16 %v274
  %v1205 = vunpack.c.l.b16 %v275
  %v1206 = vunpack.c.h.b16 %v275
  %v1207 = vunpack.c.l.b16 %v276
  %v1208 = vunpack.c.h.b16 %v276
  %v1209 = vunpack.c.l.b16 %v277
  %v1210 = vunpack.c.h.b16 %v277
  %v1211 = vunpack.c.l.b16 %v278
  %v1212 = vunpack.c.h.b16 %v278
  %v1213 = vunpack.c.l.b16 %v279
  %v1214 = vunpack.c.h.b16 %v279
  %v1215 = vunpack.c.l.b16 %v280
  %v1216 = vunpack.c.h.b16 %v280
  %v1217 = vunpack.c.l.b16 %v281
  %v1218 = vunpack.c.h.b16 %v281
  %v1219 = vunpack.c.l.b16 %v282
  %v1220 = vunpack.c.h.b16 %v282
  %v1221 = vunpack.c.l.b16 %v283
  %v1222 = vunpack.c.h.b16 %v283
  %v1223 = vunpack.c.l.b16 %v284
  %v1224 = vunpack.c.h.b16 %v284
  %v1225 = vunpack.c.l.b16 %v285
  %v1226 = vunpack.c.h.b16 %v285
  %v1227 = vunpack.c.l.b16 %v286
  %v1228 = vunpack.c.h.b16 %v286
  %v1229 = vunpack.c.l.b16 %v287
  %v1230 = vunpack.c.h.b16 %v287
  %v1231 = vunpack.c.l.b16 %v288
  %v1232 = vunpack.c.h.b16 %v288
  %v1233 = vunpack.c.l.b16 %v289
  %v1234 = vunpack.c.h.b16 %v289
  %v1235 = vunpack.c.l.b16 %v290
  %v1236 = vunpack.c.h.b16 %v290
  %v1237 = vunpack.c.l.b16 %v291
  %v1238 = vunpack.c.h.b16 %v291
  %v1239 = vunpack.c.l.b16 %v292
  %v1240 = vunpack.c.h.b16 %v292
  %v1241 = vunpack.c.l.b16 %v293
  %v1242 = vunpack.c.h.b16 %v293
  %v1243 = vunpack.c.l.b16 %v294
  %v1244 = vunpack.c.h.b16 %v294
  %v1245 = vunpack.c.l.b16 %v295
  %v1246 = vunpack.c.h.b16 %v295
  %v1247 = vunpack.c.l.b16 %v296
  %v1248 = vunpack.c.h.b16 %v296
  %v1249 = vunpack.c.l.b16 %v297
  %v1250 = vunpack.c.h.b16 %v297
  %v1251 = vunpack.c.l.b16 %v298
  %v1252 = vunpack.c.h.b16 %v298
  %v1253 = vunpack.c.l.b16 %v299
  %v1254 = vunpack.c.h.b16 %v299
  %v1255 = vunpack.c.l.b16 %v300
  %v1256 = vunpack.c.h.b16 %v300
  %v1257 = vunpack.c.l.b16 %v301
  %v1258 = vunpack.c.h.b16 %v301
  %v1259 = vunpack.c.l.b16 %v302
  %v1260 = vunpack.c.h.b16 %v302
  %v1261 = vunpack.c.l.b16 %v303
  %v1262 = vunpack.c.h.b16 %v303
  %v1263 = vunpack.c.l.b16 %v304
  %v1264 = vunpack.c.h.b16 %v304
  %v1265 = vpack.c.b16 %v693, %v689
  %v1266 = vpack.c.b16 %v694, %v690
  %v1267 = vpack.c.b16 %v695, %v691
  %v1268 = vpack.c.b16 %v696, %v692
  %v1269 = vpack.c.b16 %v701, %v697
  %v1270 = vpack.c.b16 %v702, %v698
  %v1271 = vpack.c.b16 %v703, %v699
  %v1272 = vpack.c.b16 %v704, %v700
  %v1273 = vpack.c.b16 %v709, %v705
  %v1274 = vpack.c.b16 %v710, %v706
  %v1275 = vpack.c.b16 %v711, %v707
  %v1276 = vpack.c.b16 %v712, %v708
  %v1277 = vpack.c.b16 %v717, %v713
  %v1278 = vpack.c.b16 %v718, %v714
  %v1279 = vpack.c.b16 %v719, %v715
  %v1280 = vpack.c.b16 %v720, %v716
  %v1281 = vpack.c.b16 %v725, %v721
  %v1282 = vpack.c.b16 %v726, %v722
  %v1283 = vpack.c.b16 %v727, %v723
  %v1284 = vpack.c.b16 %v728, %v724
  %v1285 = vpack.c.b16 %v733, %v729
  %v1286 = vpack.c.b16 %v734, %v730
  %v1287 = vpack.c.b16 %v735, %v731
  %v1288 = vpack.c.b16 %v736, %v732
  %v1289 = vpack.c.b16 %v741, %v737
  %v1290 = vpack.c.b16 %v742, %v738
  %v1291 = vpack.c.b16 %v743, %v739
  %v1292 = vpack.c.b16 %v744, %v740
  %v1293 = vpack.c.b16 %v749, %v745
  %v1294 = vpack.c.b16 %v750, %v746
  %v1295 = vpack.c.b16 %v751, %v747
  %v1296 = vpack.c.b16 %v752, %v748
  %v1297 = vpack.c.b16 %v757, %v753
  %v1298 = vpack.c.b16 %v758, %v754
  %v1299 = vpack.c.b16 %v759, %v755
  %v1300 = vpack.c.b16 %v760, %v756
  %v1301 = vpack.c.b16 %v765, %v761
  %v1302 = vpack.c.b16 %v766, %v762
  %v1303 = vpack.c.b16 %v767, %v763
  %v1304 = vpack.c.b16 %v768, %v764
  %v1305 = vpack.c.b16 %v773, %v769
  %v1306 = vpack.c.b16 %v774, %v770
  %v1307 = vpack.c.b16 %v775, %v771
  %v1308 = vpack.c.b16 %v776, %v772
  %v1309 = vpack.c.b16 %v781, %v777
  %v1310 = vpack.c.b16 %v782, %v778
  %v1311 = vpack.c.b16 %v783, %v779
  %v1312 = vpack.c.b16 %v784, %v780
  %v1313 = vpack.c.b16 %v789, %v785
  %v1314 = vpack.c.b16 %v790, %v786
  %v1315 = vpack.c.b16 %v791, %v787
  %v1316 = vpack.c.b16 %v792, %v788
  %v1317 = vpack.c.b16 %v797, %v793
  %v1318 = vpack.c.b16 %v798, %v794
  %v1319 = vpack.c.b16 %v799, %v795
  %v1320 = vpack.c.b16 %v800, %v796
  %v1321 = vpack.c.b16 %v805, %v801
  %v1322 = vpack.c.b16 %v806, %v802
  %v1323 = vpack.c.b16 %v807, %v803
  %v1324 = vpack.c.b16 %v808, %v804
  %v1325 = vpack.c.b16 %v813, %v809
  %v1326 = vpack.c.b16 %v814, %v810
  %v1327 = vpack.c.b16 %v815, %v811
  %v1328 = vpack.c.b16 %v816, %v812
  %v1329 = vpack.c.b16 %v821, %v817
  %v1330 = vpack.c.b16 %v822, %v818
  %v1331 = vpack.c.b16 %v823, %v819
  %v1332 = vpack.c.b16 %v824, %v820
  %v1333 = vpack.c.b16 %v829, %v825
  %v1334 = vpack.c.b16 %v830, %v826
  %v1335 = vpack.c.b16 %v831, %v827
  %v1336 = vpack.c.b16 %v832, %v828
  %v1337 = vpack.c.b16 %v837, %v833
  %v1338 = vpack.c.b16 %v838, %v834
  %v1339 = vpack.c.b16 %v839, %v835
  %v1340 = vpack.c.b16 %v840, %v836
  %v1341 = vpack.c.b16 %v845, %v841
  %v1342 = vpack.c.b16 %v846, %v842
  %v1343 = vpack.c.b16 %v847, %v843
  %v1344 = vpack.c.b16 %v848, %v844
  %v1345 = vpack.c.b16 %v853, %v849
  %v1346 = vpack.c.b16 %v854, %v850
  %v1347 = vpack.c.b16 %v855, %v851
  %v1348 = vpack.c.b16 %v856, %v852
  %v1349 = vpack.c.b16 %v861, %v857
  %v1350 = vpack.c.b16 %v862, %v858
  %v1351 = vpack.c.b16 %v863, %v859
  %v1352 = vpack.c.b16 %v864, %v860
  %v1353 = vpack.c.b16 %v869, %v865
  %v1354 = vpack.c.b16 %v870, %v866
  %v1355 = vpack.c.b16 %v871, %v867
  %v1356 = vpack.c.b16 %v872, %v868
  %v1357 = vpack.c.b16 %v877, %v873
  %v1358 = vpack.c.b16 %v878, %v874
  %v1359 = vpack.c.b16 %v879, %v875
  %v1360 = vpack.c.b16 %v880, %v876
  %v1361 = vpack.c.b16 %v885, %v881
  %v1362 = vpack.c.b16 %v886, %v882
  %v1363 = vpack.c.b16 %v887, %v883
  %v1364 = vpack.c.b16 %v888, %v884
  %v1365 = vpack.c.b16 %v893, %v889
  %v1366 = vpack.c.b16 %v894, %v890
  %v1367 = vpack.c.b16 %v895, %v891
  %v1368 = vpack.c.b16 %v896, %v892
  %v1369 = vpack.c.b16 %v901, %v897
  %v1370 = vpack.c.b16 %v902, %v898
  %v1371 = vpack.c.b16 %v903, %v899
  %v1372 = vpack.c.b16 %v904, %v900
  %v1373 = vpack.c.b16 %v909, %v905
  %v1374 = vpack.c.b16 %v910, %v906
  %v1375 = vpack.c.b16 %v911, %v907
  %v1376 = vpack.c.b16 %v912, %v908
  %v1377 = vpack.c.b16 %v917, %v913
  %v1378 = vpack.c.b16 %v918, %v914
  %v1379 = vpack.c.b16 %v919, %v915
  %v1380 = vpack.c.b16 %v920, %v916
  %v1381 = vpack.c.b16 %v925, %v921
  %v1382 = vpack.c.b16 %v926, %v922
  %v1383 = vpack.c.b16 %v927, %v923
  %v1384 = vpack.c.b16 %v928, %v924
  %v1385 = vpack.c.b16 %v933, %v929
  %v1386 = vpack.c.b16 %v934, %v930
  %v1387 = vpack.c.b16 %v935, %v931
  %v1388 = vpack.c.b16 %v936, %v932
  %v1389 = vpack.c.b16 %v941, %v937
  %v1390 = vpack.c.b16 %v942, %v938
  %v1391 = vpack.c.b16 %v943, %v939
  %v1392 = vpack.c.b16 %v944, %v940
  %v1393 = vpack.c.b16 %v949, %v945
  %v1394 = vpack.c.b16 %v950, %v946
  %v1395 = vpack.c.b16 %v951, %v947
  %v1396 = vpack.c.b16 %v952, %v948
  %v1397 = vpack.c.b16 %v957, %v953
  %v1398 = vpack.c.b16 %v958, %v954
  %v1399 = vpack.c.b16 %v959, %v955
  %v1400 = vpack.c.b16 %v960, %v956
  %v1401 = vpack.c.b16 %v965, %v961
  %v1402 = vpack.c.b16 %v966, %v962
  %v1403 = vpack.c.b16 %v967, %v963
  %v1404 = vpack.c.b16 %v968, %v964
  %v1405 = vpack.c.b16 %v973, %v969
  %v1406 = vpack.c.b16 %v974, %v970
  %v1407 = vpack.c.b16 %v975, %v971
  %v1408 = vpack.c.b16 %v976, %v972
  %v1409 = vpack.c.b16 %v981, %v977
  %v1410 = vpack.c.b16 %v982, %v978
  %v1411 = vpack.c.b16 %v983, %v979
  %v1412 = vpack.c.b16 %v984, %v980
  %v1413 = vpack.c.b16 %v989, %v985
  %v1414 = vpack.c.b16 %v990, %v986
  %v1415 = vpack.c.b16 %v991, %v987
  %v1416 = vpack.c.b16 %v992, %v988
  %v1417 = vpack.c.b16 %v997, %v993
  %v1418 = vpack.c.b16 %v998, %v994
  %v1419 = vpack.c.b16 %v999, %v995
  %v1420 = vpack.c.b16 %v1000, %v996
  %v1421 = vpack.c.b16 %v1005, %v1001
  %v1422 = vpack.c.b16 %v1006, %v1002
  %v1423 = vpack.c.b16 %v1007, %v1003
  %v1424 = vpack.c.b16 %v1008, %v1004
  %v1425 = vpack.c.b16 %v1013, %v1009
  %v1426 = vpack.c.b16 %v1014, %v1010
  %v1427 = vpack.c.b16 %v1015, %v1011
  %v1428 = vpack.c.b16 %v1016, %v1012
  %v1429 = vpack.c.b16 %v1021, %v1017
  %v1430 = vpack.c.b16 %v1022, %v1018
  %v1431 = vpack.c.b16 %v1023, %v1019
  %v1432 = vpack.c.b16 %v1024, %v1020
  %v1433 = vpack.c.b16 %v1029, %v1025
  %v1434 = vpack.c.b16 %v1030, %v1026
  %v1435 = vpack.c.b16 %v1031, %v1027
  %v1436 = vpack.c.b16 %v1032, %v1028
  %v1437 = vpack.c.b16 %v1037, %v1033
  %v1438 = vpack.c.b16 %v1038, %v1034
  %v1439 = vpack.c.b16 %v1039, %v1035
  %v1440 = vpack.c.b16 %v1040, %v1036
  %v1441 = vpack.c.b16 %v1045, %v1041
  %v1442 = vpack.c.b16 %v1046, %v1042
  %v1443 = vpack.c.b16 %v1047, %v1043
  %v1444 = vpack.c.b16 %v1048, %v1044
  %v1445 = vpack.c.b16 %v1053, %v1049
  %v1446 = vpack.c.b16 %v1054, %v1050
  %v1447 = vpack.c.b16 %v1055, %v1051
  %v1448 = vpack.c.b16 %v1056, %v1052
  %v1449 = vpack.c.b16 %v1061, %v1057
  %v1450 = vpack.c.b16 %v1062, %v1058
  %v1451 = vpack.c.b16 %v1063, %v1059
  %v1452 = vpack.c.b16 %v1064, %v1060
  %v1453 = vpack.c.b16 %v1069, %v1065
  %v1454 = vpack.c.b16 %v1070, %v1066
  %v1455 = vpack.c.b16 %v1071, %v1067
  %v1456 = vpack.c.b16 %v1072, %v1068
  %v1457 = vpack.c.b16 %v1077, %v1073
  %v1458 = vpack.c.b16 %v1078, %v1074
  %v1459 = vpack.c.b16 %v1079, %v1075
  %v1460 = vpack.c.b16 %v1080, %v1076
  %v1461 = vpack.c.b16 %v1085, %v1081
  %v1462 = vpack.c.b16 %v1086, %v1082
  %v1463 = vpack.c.b16 %v1087, %v1083
  %v1464 = vpack.c.b16 %v1088, %v1084
  %v1465 = vpack.c.b16 %v1093, %v1089
  %v1466 = vpack.c.b16 %v1094, %v1090
  %v1467 = vpack.c.b16 %v1095, %v1091
  %v1468 = vpack.c.b16 %v1096, %v1092
  %v1469 = vpack.c.b16 %v1101, %v1097
  %v1470 = vpack.c.b16 %v1102, %v1098
  %v1471 = vpack.c.b16 %v1103, %v1099
  %v1472 = vpack.c.b16 %v1104, %v1100
  %v1473 = vpack.c.b16 %v1109, %v1105
  %v1474 = vpack.c.b16 %v1110, %v1106
  %v1475 = vpack.c.b16 %v1111, %v1107
  %v1476 = vpack.c.b16 %v1112, %v1108
  %v1477 = vpack.c.b16 %v1117, %v1113
  %v1478 = vpack.c.b16 %v1118, %v1114
  %v1479 = vpack.c.b16 %v1119, %v1115
  %v1480 = vpack.c.b16 %v1120, %v1116
  %v1481 = vpack.c.b16 %v1125, %v1121
  %v1482 = vpack.c.b16 %v1126, %v1122
  %v1483 = vpack.c.b16 %v1127, %v1123
  %v1484 = vpack.c.b16 %v1128, %v1124
  %v1485 = vpack.c.b16 %v1133, %v1129
  %v1486 = vpack.c.b16 %v1134, %v1130
  %v1487 = vpack.c.b16 %v1135, %v1131
  %v1488 = vpack.c.b16 %v1136, %v1132
  %v1489 = vpack.c.b16 %v1141, %v1137
  %v1490 = vpack.c.b16 %v1142, %v1138
  %v1491 = vpack.c.b16 %v1143, %v1139
  %v1492 = vpack.c.b16 %v1144, %v1140
  %v1493 = vpack.c.b16 %v1149, %v1145
  %v1494 = vpack.c.b16 %v1150, %v1146
  %v1495 = vpack.c.b16 %v1151, %v1147
  %v1496 = vpack.c.b16 %v1152, %v1148
  %v1497 = vpack.c.b16 %v1157, %v1153
  %v1498 = vpack.c.b16 %v1158, %v1154
  %v1499 = vpack.c.b16 %v1159, %v1155
  %v1500 = vpack.c.b16 %v1160, %v1156
  %v1501 = vpack.c.b16 %v1165, %v1161
  %v1502 = vpack.c.b16 %v1166, %v1162
  %v1503 = vpack.c.b16 %v1167, %v1163
  %v1504 = vpack.c.b16 %v1168, %v1164
  %v1505 = vpack.c.b16 %v1173, %v1169
  %v1506 = vpack.c.b16 %v1174, %v1170
  %v1507 = vpack.c.b16 %v1175, %v1171
  %v1508 = vpack.c.b16 %v1176, %v1172
  %v1509 = vpack.c.b16 %v1181, %v1177
  %v1510 = vpack.c.b16 %v1182, %v1178
  %v1511 = vpack.c.b16 %v1183, %v1179
  %v1512 = vpack.c.b16 %v1184, %v1180
  %v1513 = vpack.c.b16 %v1189, %v1185
  %v1514 = vpack.c.b16 %v1190, %v1186
  %v1515 = vpack.c.b16 %v1191, %v1187
  %v1516 = vpack.c.b16 %v1192, %v1188
  %v1517 = vpack.c.b16 %v1197, %v1193
  %v1518 = vpack.c.b16 %v1198, %v1194
  %v1519 = vpack.c.b16 %v1199, %v1195
  %v1520 = vpack.c.b16 %v1200, %v1196
  %v1521 = vpack.c.b16 %v1205, %v1201
  %v1522 = vpack.c.b16 %v1206, %v1202
  %v1523 = vpack.c.b16 %v1207, %v1203
  %v1524 = vpack.c.b16 %v1208, %v1204
  %v1525 = vpack.c.b16 %v1213, %v1209
  %v1526 = vpack.c.b16 %v1214, %v1210
  %v1527 = vpack.c.b16 %v1215, %v1211
  %v1528 = vpack.c.b16 %v1216, %v1212
  %v1529 = vpack.c.b16 %v1221, %v1217
  %v1530 = vpack.c.b16 %v1222, %v1218
  %v1531 = vpack.c.b16 %v1223, %v1219
  %v1532 = vpack.c.b16 %v1224, %v1220
  %v1533 = vpack.c.b16 %v1229, %v1225
  %v1534 = vpack.c.b16 %v1230, %v1226
  %v1535 = vpack.c.b16 %v1231, %v1227
  %v1536 = vpack.c.b16 %v1232, %v1228
  %v1537 = vpack.c.b16 %v1237, %v1233
  %v1538 = vpack.c.b16 %v1238, %v1234
  %v1539 = vpack.c.b16 %v1239, %v1235
  %v1540 = vpack.c.b16 %v1240, %v1236
  %v1541 = vpack.c.b16 %v1245, %v1241
  %v1542 = vpack.c.b16 %v1246, %v1242
  %v1543 = vpack.c.b16 %v1247, %v1243
  %v1544 = vpack.c.b16 %v1248, %v1244
  %v1545 = vpack.c.b16 %v1253, %v1249
  %v1546 = vpack.c.b16 %v1254, %v1250
  %v1547 = vpack.c.b16 %v1255, %v1251
  %v1548 = vpack.c.b16 %v1256, %v1252
  %v1549 = vpack.c.b16 %v1261, %v1257
  %v1550 = vpack.c.b16 %v1262, %v1258
  %v1551 = vpack.c.b16 %v1263, %v1259
  %v1552 = vpack.c.b16 %v1264, %v1260
  %1841 = vmatprep.subr.bf16.mxu0 %v1266
  %1842 = vmatpush1.bf16.msra.mxu0 %v1265
  %1843 = vmatprep.subr.bf16.mxu0 %v1270
  %1844 = vmatpush1.bf16.msra.mxu0 %v1269
  %1845 = vmatprep.subr.bf16.mxu0 %v1274
  %1846 = vmatpush1.bf16.msra.mxu0 %v1273
  %1847 = vmatprep.subr.bf16.mxu0 %v1278
  %1848 = vmatpush1.bf16.msra.mxu0 %v1277
  %1849 = vmatprep.subr.bf16.mxu0 %v1282
  %1850 = vmatpush1.bf16.msra.mxu0 %v1281
  %1851 = vmatprep.subr.bf16.mxu0 %v1286
  %1852 = vmatpush1.bf16.msra.mxu0 %v1285
  %1853 = vmatprep.subr.bf16.mxu0 %v1290
  %1854 = vmatpush1.bf16.msra.mxu0 %v1289
  %1855 = vmatprep.subr.bf16.mxu0 %v1294
  %1856 = vmatpush1.bf16.msra.mxu0 %v1293
  %1857 = vmatprep.subr.bf16.mxu0 %v1298
  %1858 = vmatpush1.bf16.msra.mxu0 %v1297
  %1859 = vmatprep.subr.bf16.mxu0 %v1302
  %1860 = vmatpush1.bf16.msra.mxu0 %v1301
  %1861 = vmatprep.subr.bf16.mxu0 %v1306
  %1862 = vmatpush1.bf16.msra.mxu0 %v1305
  %1863 = vmatprep.subr.bf16.mxu0 %v1310
  %1864 = vmatpush1.bf16.msra.mxu0 %v1309
  %1865 = vmatprep.subr.bf16.mxu0 %v1314
  %1866 = vmatpush1.bf16.msra.mxu0 %v1313
  %1867 = vmatprep.subr.bf16.mxu0 %v1318
  %1868 = vmatpush1.bf16.msra.mxu0 %v1317
  %1869 = vmatprep.subr.bf16.mxu0 %v1322
  %1870 = vmatpush1.bf16.msra.mxu0 %v1321
  %1871 = vmatprep.subr.bf16.mxu0 %v1326
  %1872 = vmatpush1.bf16.msra.mxu0 %v1325
  %1873 = vmatprep.mubr.bf16.mxu0 %v366
  %1874 = vmatmul.mubr.bf16.gmra.mrb[0].mxu0 %v352
  %v1875 = vpop.f32.mrb[0].mxu0
  %v1876 = vadd.f32 %v310, %v1875
  %v1877 = vpop.f32.mrb[0].mxu0
  %v1878 = vadd.f32 %v314, %v1877
  %v1879 = vpop.f32.mrb[0].mxu0
  %v1880 = vpop.f32.mrb[0].mxu0
  %1881 = vdwg.mxu0
  %1882 = vmatprep.subr.bf16.mxu0 %v1330
  %1883 = vmatpush1.bf16.msra.mxu0 %v1329
  %1884 = vmatprep.subr.bf16.mxu0 %v1334
  %1885 = vmatpush1.bf16.msra.mxu0 %v1333
  %1886 = vmatprep.subr.bf16.mxu0 %v1338
  %1887 = vmatpush1.bf16.msra.mxu0 %v1337
  %1888 = vmatprep.subr.bf16.mxu0 %v1342
  %1889 = vmatpush1.bf16.msra.mxu0 %v1341
  %1890 = vmatprep.subr.bf16.mxu0 %v1346
  %1891 = vmatpush1.bf16.msra.mxu0 %v1345
  %1892 = vmatprep.subr.bf16.mxu0 %v1350
  %1893 = vmatpush1.bf16.msra.mxu0 %v1349
  %1894 = vmatprep.subr.bf16.mxu0 %v1354
  %1895 = vmatpush1.bf16.msra.mxu0 %v1353
  %1896 = vmatprep.subr.bf16.mxu0 %v1358
  %1897 = vmatpush1.bf16.msra.mxu0 %v1357
  %1898 = vmatprep.subr.bf16.mxu0 %v1362
  %1899 = vmatpush1.bf16.msra.mxu0 %v1361
  %1900 = vmatprep.subr.bf16.mxu0 %v1366
  %1901 = vmatpush1.bf16.msra.mxu0 %v1365
  %1902 = vmatprep.subr.bf16.mxu0 %v1370
  %1903 = vmatpush1.bf16.msra.mxu0 %v1369
  %1904 = vmatprep.subr.bf16.mxu0 %v1374
  %1905 = vmatpush1.bf16.msra.mxu0 %v1373
  %1906 = vmatprep.subr.bf16.mxu0 %v1378
  %1907 = vmatpush1.bf16.msra.mxu0 %v1377
  %1908 = vmatprep.subr.bf16.mxu0 %v1382
  %1909 = vmatpush1.bf16.msra.mxu0 %v1381
  %1910 = vmatprep.subr.bf16.mxu0 %v1386
  %1911 = vmatpush1.bf16.msra.mxu0 %v1385
  %1912 = vmatprep.subr.bf16.mxu0 %v1390
  %1913 = vmatpush1.bf16.msra.mxu0 %v1389
  %1914 = vmatprep.mubr.bf16.mxu0 %v376
  %1915 = vmatmul.mubr.bf16.gmra.mrb[0].mxu0 %v374
  %v1916 = vpop.f32.mrb[0].mxu0
  %v1917 = vadd.f32 %v1876, %v1916
  %v1918 = vpop.f32.mrb[0].mxu0
  %v1919 = vadd.f32 %v1878, %v1918
  %v1920 = vpop.f32.mrb[0].mxu0
  %v1921 = vpop.f32.mrb[0].mxu0
  %1922 = vdwg.mxu0
  %1923 = vmatprep.subr.bf16.mxu0 %v1394
  %1924 = vmatpush1.bf16.msra.mxu0 %v1393
  %1925 = vmatprep.subr.bf16.mxu0 %v1398
  %1926 = vmatpush1.bf16.msra.mxu0 %v1397
  %1927 = vmatprep.subr.bf16.mxu0 %v1402
  %1928 = vmatpush1.bf16.msra.mxu0 %v1401
  %1929 = vmatprep.subr.bf16.mxu0 %v1406
  %1930 = vmatpush1.bf16.msra.mxu0 %v1405
  %1931 = vmatprep.subr.bf16.mxu0 %v1410
  %1932 = vmatpush1.bf16.msra.mxu0 %v1409
  %1933 = vmatprep.subr.bf16.mxu0 %v1414
  %1934 = vmatpush1.bf16.msra.mxu0 %v1413
  %1935 = vmatprep.subr.bf16.mxu0 %v1418
  %1936 = vmatpush1.bf16.msra.mxu0 %v1417
  %1937 = vmatprep.subr.bf16.mxu0 %v1422
  %1938 = vmatpush1.bf16.msra.mxu0 %v1421
  %1939 = vmatprep.subr.bf16.mxu0 %v1426
  %1940 = vmatpush1.bf16.msra.mxu0 %v1425
  %1941 = vmatprep.subr.bf16.mxu0 %v1430
  %1942 = vmatpush1.bf16.msra.mxu0 %v1429
  %1943 = vmatprep.subr.bf16.mxu0 %v1434
  %1944 = vmatpush1.bf16.msra.mxu0 %v1433
  %1945 = vmatprep.subr.bf16.mxu0 %v1438
  %1946 = vmatpush1.bf16.msra.mxu0 %v1437
  %1947 = vmatprep.subr.bf16.mxu0 %v1442
  %1948 = vmatpush1.bf16.msra.mxu0 %v1441
  %1949 = vmatprep.subr.bf16.mxu0 %v1446
  %1950 = vmatpush1.bf16.msra.mxu0 %v1445
  %1951 = vmatprep.subr.bf16.mxu0 %v1450
  %1952 = vmatpush1.bf16.msra.mxu0 %v1449
  %1953 = vmatprep.subr.bf16.mxu0 %v1454
  %1954 = vmatpush1.bf16.msra.mxu0 %v1453
  %1955 = vmatprep.mubr.bf16.mxu0 %v373
  %1956 = vmatmul.mubr.bf16.gmra.mrb[0].mxu0 %v359
  %v1957 = vpop.f32.mrb[0].mxu0
  %v1958 = vadd.f32 %v1917, %v1957
  %v1959 = vpop.f32.mrb[0].mxu0
  %v1960 = vadd.f32 %v1919, %v1959
  %v1961 = vpop.f32.mrb[0].mxu0
  %v1962 = vpop.f32.mrb[0].mxu0
  %1963 = vdwg.mxu0
  %1964 = vmatprep.subr.bf16.mxu0 %v1458
  %1965 = vmatpush1.bf16.msra.mxu0 %v1457
  %1966 = vmatprep.subr.bf16.mxu0 %v1462
  %1967 = vmatpush1.bf16.msra.mxu0 %v1461
  %1968 = vmatprep.subr.bf16.mxu0 %v1466
  %1969 = vmatpush1.bf16.msra.mxu0 %v1465
  %1970 = vmatprep.subr.bf16.mxu0 %v1470
  %1971 = vmatpush1.bf16.msra.mxu0 %v1469
  %1972 = vmatprep.subr.bf16.mxu0 %v1474
  %1973 = vmatpush1.bf16.msra.mxu0 %v1473
  %1974 = vmatprep.subr.bf16.mxu0 %v1478
  %1975 = vmatpush1.bf16.msra.mxu0 %v1477
  %1976 = vmatprep.subr.bf16.mxu0 %v1482
  %1977 = vmatpush1.bf16.msra.mxu0 %v1481
  %1978 = vmatprep.subr.bf16.mxu0 %v1486
  %1979 = vmatpush1.bf16.msra.mxu0 %v1485
  %1980 = vmatprep.subr.bf16.mxu0 %v1490
  %1981 = vmatpush1.bf16.msra.mxu0 %v1489
  %1982 = vmatprep.subr.bf16.mxu0 %v1494
  %1983 = vmatpush1.bf16.msra.mxu0 %v1493
  %1984 = vmatprep.subr.bf16.mxu0 %v1498
  %1985 = vmatpush1.bf16.msra.mxu0 %v1497
  %1986 = vmatprep.subr.bf16.mxu0 %v1502
  %1987 = vmatpush1.bf16.msra.mxu0 %v1501
  %1988 = vmatprep.subr.bf16.mxu0 %v1506
  %1989 = vmatpush1.bf16.msra.mxu0 %v1505
  %1990 = vmatprep.subr.bf16.mxu0 %v1510
  %1991 = vmatpush1.bf16.msra.mxu0 %v1509
  %1992 = vmatprep.subr.bf16.mxu0 %v1514
  %1993 = vmatpush1.bf16.msra.mxu0 %v1513
  %1994 = vmatprep.subr.bf16.mxu0 %v1518
  %1995 = vmatpush1.bf16.msra.mxu0 %v1517
  %1996 = vmatprep.mubr.bf16.mxu0 %v377
  %1997 = vmatmul.mubr.bf16.gmra.mrb[0].mxu0 %v375
  %v1998 = vpop.f32.mrb[0].mxu0
  %v1999 = vadd.f32 %v1958, %v1998
  %v2000 = vpop.f32.mrb[0].mxu0
  %v2001 = vadd.f32 %v1960, %v2000
  %v2002 = vpop.f32.mrb[0].mxu0
  %v2003 = vpop.f32.mrb[0].mxu0
  %2004 = vdwg.mxu0
  %2005 = vmatprep.subr.bf16.mxu0 %v1522
  %2006 = vmatpush1.bf16.msra.mxu0 %v1521
  %2007 = vmatprep.subr.bf16.mxu0 %v1526
  %2008 = vmatpush1.bf16.msra.mxu0 %v1525
  %2009 = vmatprep.subr.bf16.mxu0 %v1530
  %2010 = vmatpush1.bf16.msra.mxu0 %v1529
  %2011 = vmatprep.subr.bf16.mxu0 %v1534
  %2012 = vmatpush1.bf16.msra.mxu0 %v1533
  %2013 = vmatprep.subr.bf16.mxu0 %v1538
  %2014 = vmatpush1.bf16.msra.mxu0 %v1537
  %2015 = vmatprep.subr.bf16.mxu0 %v1542
  %2016 = vmatpush1.bf16.msra.mxu0 %v1541
  %2017 = vmatprep.subr.bf16.mxu0 %v1546
  %2018 = vmatpush1.bf16.msra.mxu0 %v1545
  %2019 = vmatprep.subr.bf16.mxu0 %v1550
  %2020 = vmatpush1.bf16.msra.mxu0 %v1549
  %2021 = vmatprep.subr.bf16.mxu0 0
  %2022 = vmatpush1.bf16.msra.mxu0 0
  %2023 = vmatprep.subr.bf16.mxu0 0
  %2024 = vmatpush1.bf16.msra.mxu0 0
  %2025 = vmatprep.subr.bf16.mxu0 0
  %2026 = vmatpush1.bf16.msra.mxu0 0
  %2027 = vmatprep.subr.bf16.mxu0 0
  %2028 = vmatpush1.bf16.msra.mxu0 0
  %2029 = vmatprep.subr.bf16.mxu0 0
  %2030 = vmatpush1.bf16.msra.mxu0 0
  %2031 = vmatprep.subr.bf16.mxu0 0
  %2032 = vmatpush1.bf16.msra.mxu0 0
  %2033 = vmatprep.subr.bf16.mxu0 0
  %2034 = vmatpush1.bf16.msra.mxu0 0
  %2035 = vmatprep.subr.bf16.mxu0 0
  %2036 = vmatpush1.bf16.msra.mxu0 0
  %2037 = vmatprep.mubr.bf16.mxu0 0
  %2038 = vmatmul.mubr.bf16.gmra.mrb[0].mxu0 %v391
  %v2039 = vpop.f32.mrb[0].mxu0
  %v2040 = vadd.f32 %v1999, %v2039
  %v2041 = vpop.f32.mrb[0].mxu0
  %v2042 = vadd.f32 %v2001, %v2041
  %v2043 = vpop.f32.mrb[0].mxu0
  %v2044 = vpop.f32.mrb[0].mxu0
  %2045 = vdwg.mxu0
  %2046 = vmatprep.subr.bf16.mxu0 %v1268
  %2047 = vmatpush1.bf16.msra.mxu0 %v1267
  %2048 = vmatprep.subr.bf16.mxu0 %v1272
  %2049 = vmatpush1.bf16.msra.mxu0 %v1271
  %2050 = vmatprep.subr.bf16.mxu0 %v1276
  %2051 = vmatpush1.bf16.msra.mxu0 %v1275
  %2052 = vmatprep.subr.bf16.mxu0 %v1280
  %2053 = vmatpush1.bf16.msra.mxu0 %v1279
  %2054 = vmatprep.subr.bf16.mxu0 %v1284
  %2055 = vmatpush1.bf16.msra.mxu0 %v1283
  %2056 = vmatprep.subr.bf16.mxu0 %v1288
  %2057 = vmatpush1.bf16.msra.mxu0 %v1287
  %2058 = vmatprep.subr.bf16.mxu0 %v1292
  %2059 = vmatpush1.bf16.msra.mxu0 %v1291
  %2060 = vmatprep.subr.bf16.mxu0 %v1296
  %2061 = vmatpush1.bf16.msra.mxu0 %v1295
  %2062 = vmatprep.subr.bf16.mxu0 %v1300
  %2063 = vmatpush1.bf16.msra.mxu0 %v1299
  %2064 = vmatprep.subr.bf16.mxu0 %v1304
  %2065 = vmatpush1.bf16.msra.mxu0 %v1303
  %2066 = vmatprep.subr.bf16.mxu0 %v1308
  %2067 = vmatpush1.bf16.msra.mxu0 %v1307
  %2068 = vmatprep.subr.bf16.mxu0 %v1312
  %2069 = vmatpush1.bf16.msra.mxu0 %v1311
  %2070 = vmatprep.subr.bf16.mxu0 %v1316
  %2071 = vmatpush1.bf16.msra.mxu0 %v1315
  %2072 = vmatprep.subr.bf16.mxu0 %v1320
  %2073 = vmatpush1.bf16.msra.mxu0 %v1319
  %2074 = vmatprep.subr.bf16.mxu0 %v1324
  %2075 = vmatpush1.bf16.msra.mxu0 %v1323
  %2076 = vmatprep.subr.bf16.mxu0 %v1328
  %2077 = vmatpush1.bf16.msra.mxu0 %v1327
  %2078 = vmatprep.mubr.bf16.mxu0 %v366
  %2079 = vmatmul.mubr.bf16.gmra.mrb[0].mxu0 %v352
  %v2080 = vpop.f32.mrb[0].mxu0
  %v2081 = vadd.f32 %v318, %v2080
  %v2082 = vpop.f32.mrb[0].mxu0
  %v2083 = vadd.f32 %v322, %v2082
  %v2084 = vpop.f32.mrb[0].mxu0
  %v2085 = vpop.f32.mrb[0].mxu0
  %2086 = vdwg.mxu0
  %2087 = vmatprep.subr.bf16.mxu0 %v1332
  %2088 = vmatpush1.bf16.msra.mxu0 %v1331
  %2089 = vmatprep.subr.bf16.mxu0 %v1336
  %2090 = vmatpush1.bf16.msra.mxu0 %v1335
  %2091 = vmatprep.subr.bf16.mxu0 %v1340
  %2092 = vmatpush1.bf16.msra.mxu0 %v1339
  %2093 = vmatprep.subr.bf16.mxu0 %v1344
  %2094 = vmatpush1.bf16.msra.mxu0 %v1343
  %2095 = vmatprep.subr.bf16.mxu0 %v1348
  %2096 = vmatpush1.bf16.msra.mxu0 %v1347
  %2097 = vmatprep.subr.bf16.mxu0 %v1352
  %2098 = vmatpush1.bf16.msra.mxu0 %v1351
  %2099 = vmatprep.subr.bf16.mxu0 %v1356
  %2100 = vmatpush1.bf16.msra.mxu0 %v1355
  %2101 = vmatprep.subr.bf16.mxu0 %v1360
  %2102 = vmatpush1.bf16.msra.mxu0 %v1359
  %2103 = vmatprep.subr.bf16.mxu0 %v1364
  %2104 = vmatpush1.bf16.msra.mxu0 %v1363
  %2105 = vmatprep.subr.bf16.mxu0 %v1368
  %2106 = vmatpush1.bf16.msra.mxu0 %v1367
  %2107 = vmatprep.subr.bf16.mxu0 %v1372
  %2108 = vmatpush1.bf16.msra.mxu0 %v1371
  %2109 = vmatprep.subr.bf16.mxu0 %v1376
  %2110 = vmatpush1.bf16.msra.mxu0 %v1375
  %2111 = vmatprep.subr.bf16.mxu0 %v1380
  %2112 = vmatpush1.bf16.msra.mxu0 %v1379
  %2113 = vmatprep.subr.bf16.mxu0 %v1384
  %2114 = vmatpush1.bf16.msra.mxu0 %v1383
  %2115 = vmatprep.subr.bf16.mxu0 %v1388
  %2116 = vmatpush1.bf16.msra.mxu0 %v1387
  %2117 = vmatprep.subr.bf16.mxu0 %v1392
  %2118 = vmatpush1.bf16.msra.mxu0 %v1391
  %2119 = vmatprep.mubr.bf16.mxu0 %v376
  %2120 = vmatmul.mubr.bf16.gmra.mrb[0].mxu0 %v374
  %v2121 = vpop.f32.mrb[0].mxu0
  %v2122 = vadd.f32 %v2081, %v2121
  %v2123 = vpop.f32.mrb[0].mxu0
  %v2124 = vadd.f32 %v2083, %v2123
  %v2125 = vpop.f32.mrb[0].mxu0
  %v2126 = vpop.f32.mrb[0].mxu0
  %2127 = vdwg.mxu0
  %2128 = vmatprep.subr.bf16.mxu0 %v1396
  %2129 = vmatpush1.bf16.msra.mxu0 %v1395
  %2130 = vmatprep.subr.bf16.mxu0 %v1400
  %2131 = vmatpush1.bf16.msra.mxu0 %v1399
  %2132 = vmatprep.subr.bf16.mxu0 %v1404
  %2133 = vmatpush1.bf16.msra.mxu0 %v1403
  %2134 = vmatprep.subr.bf16.mxu0 %v1408
  %2135 = vmatpush1.bf16.msra.mxu0 %v1407
  %2136 = vmatprep.subr.bf16.mxu0 %v1412
  %2137 = vmatpush1.bf16.msra.mxu0 %v1411
  %2138 = vmatprep.subr.bf16.mxu0 %v1416
  %2139 = vmatpush1.bf16.msra.mxu0 %v1415
  %2140 = vmatprep.subr.bf16.mxu0 %v1420
  %2141 = vmatpush1.bf16.msra.mxu0 %v1419
  %2142 = vmatprep.subr.bf16.mxu0 %v1424
  %2143 = vmatpush1.bf16.msra.mxu0 %v1423
  %2144 = vmatprep.subr.bf16.mxu0 %v1428
  %2145 = vmatpush1.bf16.msra.mxu0 %v1427
  %2146 = vmatprep.subr.bf16.mxu0 %v1432
  %2147 = vmatpush1.bf16.msra.mxu0 %v1431
  %2148 = vmatprep.subr.bf16.mxu0 %v1436
  %2149 = vmatpush1.bf16.msra.mxu0 %v1435
  %2150 = vmatprep.subr.bf16.mxu0 %v1440
  %2151 = vmatpush1.bf16.msra.mxu0 %v1439
  %2152 = vmatprep.subr.bf16.mxu0 %v1444
  %2153 = vmatpush1.bf16.msra.mxu0 %v1443
  %2154 = vmatprep.subr.bf16.mxu0 %v1448
  %2155 = vmatpush1.bf16.msra.mxu0 %v1447
  %2156 = vmatprep.subr.bf16.mxu0 %v1452
  %2157 = vmatpush1.bf16.msra.mxu0 %v1451
  %2158 = vmatprep.subr.bf16.mxu0 %v1456
  %2159 = vmatpush1.bf16.msra.mxu0 %v1455
  %2160 = vmatprep.mubr.bf16.mxu0 %v373
  %2161 = vmatmul.mubr.bf16.gmra.mrb[0].mxu0 %v359
  %v2162 = vpop.f32.mrb[0].mxu0
  %v2163 = vadd.f32 %v2122, %v2162
  %v2164 = vpop.f32.mrb[0].mxu0
  %v2165 = vadd.f32 %v2124, %v2164
  %v2166 = vpop.f32.mrb[0].mxu0
  %v2167 = vpop.f32.mrb[0].mxu0
  %2168 = vdwg.mxu0
  %2169 = vmatprep.subr.bf16.mxu0 %v1460
  %2170 = vmatpush1.bf16.msra.mxu0 %v1459
  %2171 = vmatprep.subr.bf16.mxu0 %v1464
  %2172 = vmatpush1.bf16.msra.mxu0 %v1463
  %2173 = vmatprep.subr.bf16.mxu0 %v1468
  %2174 = vmatpush1.bf16.msra.mxu0 %v1467
  %2175 = vmatprep.subr.bf16.mxu0 %v1472
  %2176 = vmatpush1.bf16.msra.mxu0 %v1471
  %2177 = vmatprep.subr.bf16.mxu0 %v1476
  %2178 = vmatpush1.bf16.msra.mxu0 %v1475
  %2179 = vmatprep.subr.bf16.mxu0 %v1480
  %2180 = vmatpush1.bf16.msra.mxu0 %v1479
  %2181 = vmatprep.subr.bf16.mxu0 %v1484
  %2182 = vmatpush1.bf16.msra.mxu0 %v1483
  %2183 = vmatprep.subr.bf16.mxu0 %v1488
  %2184 = vmatpush1.bf16.msra.mxu0 %v1487
  %2185 = vmatprep.subr.bf16.mxu0 %v1492
  %2186 = vmatpush1.bf16.msra.mxu0 %v1491
  %2187 = vmatprep.subr.bf16.mxu0 %v1496
  %2188 = vmatpush1.bf16.msra.mxu0 %v1495
  %2189 = vmatprep.subr.bf16.mxu0 %v1500
  %2190 = vmatpush1.bf16.msra.mxu0 %v1499
  %2191 = vmatprep.subr.bf16.mxu0 %v1504
  %2192 = vmatpush1.bf16.msra.mxu0 %v1503
  %2193 = vmatprep.subr.bf16.mxu0 %v1508
  %2194 = vmatpush1.bf16.msra.mxu0 %v1507
  %2195 = vmatprep.subr.bf16.mxu0 %v1512
  %2196 = vmatpush1.bf16.msra.mxu0 %v1511
  %2197 = vmatprep.subr.bf16.mxu0 %v1516
  %2198 = vmatpush1.bf16.msra.mxu0 %v1515
  %2199 = vmatprep.subr.bf16.mxu0 %v1520
  %2200 = vmatpush1.bf16.msra.mxu0 %v1519
  %2201 = vmatprep.mubr.bf16.mxu0 %v377
  %2202 = vmatmul.mubr.bf16.gmra.mrb[0].mxu0 %v375
  %v2203 = vpop.f32.mrb[0].mxu0
  %v2204 = vadd.f32 %v2163, %v2203
  %v2205 = vpop.f32.mrb[0].mxu0
  %v2206 = vadd.f32 %v2165, %v2205
  %v2207 = vpop.f32.mrb[0].mxu0
  %v2208 = vpop.f32.mrb[0].mxu0
  %2209 = vdwg.mxu0
  %2210 = vmatprep.subr.bf16.mxu0 %v1524
  %2211 = vmatpush1.bf16.msra.mxu0 %v1523
  %2212 = vmatprep.subr.bf16.mxu0 %v1528
  %2213 = vmatpush1.bf16.msra.mxu0 %v1527
  %2214 = vmatprep.subr.bf16.mxu0 %v1532
  %2215 = vmatpush1.bf16.msra.mxu0 %v1531
  %2216 = vmatprep.subr.bf16.mxu0 %v1536
  %2217 = vmatpush1.bf16.msra.mxu0 %v1535
  %2218 = vmatprep.subr.bf16.mxu0 %v1540
  %2219 = vmatpush1.bf16.msra.mxu0 %v1539
  %2220 = vmatprep.subr.bf16.mxu0 %v1544
  %2221 = vmatpush1.bf16.msra.mxu0 %v1543
  %2222 = vmatprep.subr.bf16.mxu0 %v1548
  %2223 = vmatpush1.bf16.msra.mxu0 %v1547
  %2224 = vmatprep.subr.bf16.mxu0 %v1552
  %2225 = vmatpush1.bf16.msra.mxu0 %v1551
  %2226 = vmatprep.subr.bf16.mxu0 0
  %2227 = vmatpush1.bf16.msra.mxu0 0
  %2228 = vmatprep.subr.bf16.mxu0 0
  %2229 = vmatpush1.bf16.msra.mxu0 0
  %2230 = vmatprep.subr.bf16.mxu0 0
  %2231 = vmatpush1.bf16.msra.mxu0 0
  %2232 = vmatprep.subr.bf16.mxu0 0
  %2233 = vmatpush1.bf16.msra.mxu0 0
  %2234 = vmatprep.subr.bf16.mxu0 0
  %2235 = vmatpush1.bf16.msra.mxu0 0
  %2236 = vmatprep.subr.bf16.mxu0 0
  %2237 = vmatpush1.bf16.msra.mxu0 0
  %2238 = vmatprep.subr.bf16.mxu0 0
  %2239 = vmatpush1.bf16.msra.mxu0 0
  %2240 = vmatprep.subr.bf16.mxu0 0
  %2241 = vmatpush1.bf16.msra.mxu0 0
  %2242 = vmatprep.mubr.bf16.mxu0 0
  %2243 = vmatmul.mubr.bf16.gmra.mrb[0].mxu0 %v391
  %v2244 = vpop.f32.mrb[0].mxu0
  %v2245 = vadd.f32 %v2204, %v2244
  %v2246 = vpop.f32.mrb[0].mxu0
  %v2247 = vadd.f32 %v2206, %v2246
  %v2248 = vpop.f32.mrb[0].mxu0
  %v2249 = vpop.f32.mrb[0].mxu0
  %2250 = vdwg.mxu0
  %v2251 = vsub.f32 0.0, %v2245
  %v2252 = vsub.f32 0.0, %v2247
  %v2253 = vmul.f32 %v2251, 1.442695
  %v2254 = vpow.pop %v2253
  %v2255 = vmul.f32 %v2252, 1.442695
  %v2256 = vpow.pop %v2255
  %v2257 = vadd.f32 %v2254, 1.0
  %v2258 = vadd.f32 %v2256, 1.0
  %v2259 = vrcp.pop %v2257
  %v2260 = vrcp.pop %v2258
  %v2261 = vmul.f32 %v2040, %v2259
  %v2262 = vmul.f32 %v2042, %v2260
  %v2263 = vpack.c.bf16 %v2261, %v2261
  %v2264 = vpack.c.bf16 %v2262, %v2262
  %v2267 = vcombine.low %v2263, %v2264
  %v2269 = vunpack.c.l.s4 1966171168
  %v2270 = vunpack.c.0.s8 %v2269
  %v2271 = vlaneseq
  %v2272 = vshrl.u32 %v2271, 7
  %v2273 = vsub.s32 %v2270, %v2272
  %v2274 = vrot.slane %v2267, %v2273
  %v2276 = vunpack.c.l.s4 1966171168
  %v2277 = vunpack.c.0.s8 %v2276
  %v2278 = vlaneseq
  %v2279 = vshrl.u32 %v2278, 7
  %v2280 = vsub.s32 %v2277, %v2279
  %v2281 = vrot.slane %v2274, %v2280
  %2283 = vst [vmem:[%s3] sm:$0x3] %v2281
  // Predicated region
  $region14: #{generator_forward.15} parent=0 // pred_check
    _
  $region15: #{generator_forward.15} parent=0 // pred_check_branch
    %2285 = sbr.rel (0) target = $region17
  $region16: #{generator_forward.15} parent=0 // pred_region
    _
  $region17: #{generator_forward.15} parent=0 // pred_fallthru
    _
  // Predicated region
  $region18: #{generator_forward.15} parent=0 // pred_check
    _
  $region19: #{generator_forward.15} parent=0 // pred_check_branch
    %2287 = sbr.rel (0) target = $region21
  $region20: #{generator_forward.15} parent=0 // pred_region
    _
  $region21: #{generator_forward.15} parent=0 // pred_fallthru
    _

// kernel: generator_forward.20
$region0: #{generator_forward.20}
  #allocation0 [shape = 'u32[]', space=smem, size = 0x4, offset = 0x4, fixed_abs, tag = 'smem constant byte address 0x4 - core index']
  #allocation1 [shape = 'u32[144,128]{1,0:T(1,128)}', space=vmem, size = 0x12000, scoped, tag = 'internal scratch']
  %s0 = inlined_call_operand.vmem [shape: bf16[128,64], index: 0, kind: input, shape index: {}]
  %s1 = inlined_call_operand.vmem [shape: bf16[128,64], index: 1, kind: input, shape index: {}]
  %s2 = inlined_call_operand.vmem [shape: bf16[64,32], index: 2, kind: input, shape index: {}]
  %s3 = inlined_call_operand.vmem [shape: bf16[64,32], index: 3, kind: input, shape index: {}]
  %s4 = inlined_call_operand.vmem [shape: f32[1,32], index: 4, kind: input, shape index: {}]
  %s5 = inlined_call_operand.vmem [shape: f32[1,32], index: 5, kind: output, shape index: {0}]
  %s6 = inlined_call_operand.vmem [shape: f32[1,32], index: 6, kind: output, shape index: {1}]
  %7 = xla_tuple %s5, %s6
  %s8 = sld [smem:[#allocation0]]
  $region42: #{generator_forward.20} parent=0
    _
  %s10 = ssub.s32 1, %s8
  %s11 = scalar_select 0, %s10, %s8
  // Predicated region
  $region2: #{generator_forward.20} parent=0 // pred_check
    _
  $region3: #{generator_forward.20} parent=0 // pred_check_branch
    %13 = sbr.rel (0) target = $region5
  $region4: #{generator_forward.20} parent=0 // pred_region
    _
  $region5: #{generator_forward.20} parent=0 // pred_fallthru
    _
  // Predicated region
  $region6: #{generator_forward.20} parent=0 // pred_check
    _
  $region7: #{generator_forward.20} parent=0 // pred_check_branch
    %15 = sbr.rel (0) target = $region9
  $region8: #{generator_forward.20} parent=0 // pred_region
    _
  $region9: #{generator_forward.20} parent=0 // pred_fallthru
    _
  // Predicated region
  $region10: #{generator_forward.20} parent=0 // pred_check
    _
  $region11: #{generator_forward.20} parent=0 // pred_check_branch
    %17 = sbr.rel (0) target = $region13
  $region12: #{generator_forward.20} parent=0 // pred_region
    _
  $region13: #{generator_forward.20} parent=0 // pred_fallthru
    _
  // Predicated region
  $region14: #{generator_forward.20} parent=0 // pred_check
    _
  $region15: #{generator_forward.20} parent=0 // pred_check_branch
    %19 = sbr.rel (0) target = $region17
  $region16: #{generator_forward.20} parent=0 // pred_region
    _
  $region17: #{generator_forward.20} parent=0 // pred_fallthru
    _
  // Predicated region
  $region18: #{generator_forward.20} parent=0 // pred_check
    _
  $region19: #{generator_forward.20} parent=0 // pred_check_branch
    %21 = sbr.rel (0) target = $region21
  $region20: #{generator_forward.20} parent=0 // pred_region
    _
  $region21: #{generator_forward.20} parent=0 // pred_fallthru
    _
  %v23 = vld [vmem:[%s0] sm:$0xf]
  %v24 = vld [vmem:[%s0 + $0x4] sm:$0xf]
  %v25 = vld [vmem:[%s0 + $0x8] sm:$0xf]
  %v26 = vld [vmem:[%s0 + $0xc] sm:$0xf]
  %v27 = vld [vmem:[%s0 + $0x10] sm:$0xf]
  %v28 = vld [vmem:[%s0 + $0x14] sm:$0xf]
  %v29 = vld [vmem:[%s0 + $0x18] sm:$0xf]
  %v30 = vld [vmem:[%s0 + $0x1c] sm:$0xf]
  %v31 = vld [vmem:[%s0 + $0x20] sm:$0xf]
  %v32 = vld [vmem:[%s0 + $0x24] sm:$0xf]
  %v33 = vld [vmem:[%s0 + $0x28] sm:$0xf]
  %v34 = vld [vmem:[%s0 + $0x2c] sm:$0xf]
  %v35 = vld [vmem:[%s0 + $0x30] sm:$0xf]
  %v36 = vld [vmem:[%s0 + $0x34] sm:$0xf]
  %v37 = vld [vmem:[%s0 + $0x38] sm:$0xf]
  %v38 = vld [vmem:[%s0 + $0x3c] sm:$0xf]
  %v39 = vld [vmem:[%s2] sm:$0xf]
  %v40 = vld [vmem:[%s2 + $0x4] sm:$0xf]
  %v41 = vld [vmem:[%s2 + $0x8] sm:$0xf]
  %v42 = vld [vmem:[%s2 + $0xc] sm:$0xf]
  %v43 = vld [vmem:[%s2 + $0x10] sm:$0xf]
  %v44 = vld [vmem:[%s2 + $0x14] sm:$0xf]
  %v45 = vld [vmem:[%s2 + $0x18] sm:$0xf]
  %v46 = vld [vmem:[%s2 + $0x1c] sm:$0xf]
  %v47 = vld [vmem:[%s1] sm:$0xf]
  %v48 = vld [vmem:[%s1 + $0x4] sm:$0xf]
  %v49 = vld [vmem:[%s1 + $0x8] sm:$0xf]
  %v50 = vld [vmem:[%s1 + $0xc] sm:$0xf]
  %v51 = vld [vmem:[%s1 + $0x10] sm:$0xf]
  %v52 = vld [vmem:[%s1 + $0x14] sm:$0xf]
  %v53 = vld [vmem:[%s1 + $0x18] sm:$0xf]
  %v54 = vld [vmem:[%s1 + $0x1c] sm:$0xf]
  %v55 = vld [vmem:[%s1 + $0x20] sm:$0xf]
  %v56 = vld [vmem:[%s1 + $0x24] sm:$0xf]
  %v57 = vld [vmem:[%s1 + $0x28] sm:$0xf]
  %v58 = vld [vmem:[%s1 + $0x2c] sm:$0xf]
  %v59 = vld [vmem:[%s1 + $0x30] sm:$0xf]
  %v60 = vld [vmem:[%s1 + $0x34] sm:$0xf]
  %v61 = vld [vmem:[%s1 + $0x38] sm:$0xf]
  %v62 = vld [vmem:[%s1 + $0x3c] sm:$0xf]
  %v63 = vld [vmem:[%s3] sm:$0xf]
  %v64 = vld [vmem:[%s3 + $0x4] sm:$0xf]
  %v65 = vld [vmem:[%s3 + $0x8] sm:$0xf]
  %v66 = vld [vmem:[%s3 + $0xc] sm:$0xf]
  %v67 = vld [vmem:[%s3 + $0x10] sm:$0xf]
  %v68 = vld [vmem:[%s3 + $0x14] sm:$0xf]
  %v69 = vld [vmem:[%s3 + $0x18] sm:$0xf]
  %v70 = vld [vmem:[%s3 + $0x1c] sm:$0xf]
  %v87 = vunpack.c.l.b16 %v47
  %v88 = vunpack.c.l.b16 %v48
  %v89 = vunpack.c.l.b16 %v49
  %v90 = vunpack.c.l.b16 %v50
  %v91 = vunpack.c.l.b16 %v51
  %v92 = vunpack.c.l.b16 %v52
  %v93 = vunpack.c.l.b16 %v53
  %v94 = vunpack.c.l.b16 %v54
  %v95 = vunpack.c.l.b16 %v55
  %v96 = vunpack.c.l.b16 %v56
  %v97 = vunpack.c.l.b16 %v57
  %v98 = vunpack.c.l.b16 %v58
  %v99 = vunpack.c.l.b16 %v59
  %v100 = vunpack.c.l.b16 %v60
  %v101 = vunpack.c.l.b16 %v61
  %v102 = vunpack.c.l.b16 %v62
  %v103 = vpack.c.b16 %v88, %v87
  %v104 = vpack.c.b16 %v90, %v89
  %v105 = vpack.c.b16 %v92, %v91
  %v106 = vpack.c.b16 %v94, %v93
  %v107 = vpack.c.b16 %v96, %v95
  %v108 = vpack.c.b16 %v98, %v97
  %v109 = vpack.c.b16 %v100, %v99
  %v110 = vpack.c.b16 %v102, %v101
  %v119 = vunpack.c.l.b16 %v63
  %v120 = vunpack.c.l.b16 %v64
  %v121 = vunpack.c.l.b16 %v65
  %v122 = vunpack.c.l.b16 %v66
  %v123 = vunpack.c.l.b16 %v67
  %v124 = vunpack.c.l.b16 %v68
  %v125 = vunpack.c.l.b16 %v69
  %v126 = vunpack.c.l.b16 %v70
  %v127 = vpack.c.b16 %v120, %v119
  %v128 = vpack.c.b16 %v122, %v121
  %v129 = vpack.c.b16 %v124, %v123
  %v130 = vpack.c.b16 %v126, %v125
  %vm135 = vcmask 523264
  %v137 = vsel %vm135, %v103, 0
  %v140 = vsel %vm135, %v104, 0
  %v143 = vsel %vm135, %v105, 0
  %v146 = vsel %vm135, %v106, 0
  %v149 = vsel %vm135, %v107, 0
  %v152 = vsel %vm135, %v108, 0
  %v155 = vsel %vm135, %v109, 0
  %v158 = vsel %vm135, %v110, 0
  %160 = vmatprep.subr.bf16.mxu0 0
  %161 = vmatpush1.bf16.msra.mxu0 %v127
  %162 = vmatprep.subr.bf16.mxu0 0
  %163 = vmatpush1.bf16.msra.mxu0 %v128
  %164 = vmatprep.subr.bf16.mxu0 0
  %165 = vmatpush1.bf16.msra.mxu0 %v129
  %166 = vmatprep.subr.bf16.mxu0 0
  %167 = vmatpush1.bf16.msra.mxu0 %v130
  %168 = vmatprep.subr.bf16.mxu0 0
  %169 = vmatpush1.bf16.msra.mxu0 0
  %170 = vmatprep.subr.bf16.mxu0 0
  %171 = vmatpush1.bf16.msra.mxu0 0
  %172 = vmatprep.subr.bf16.mxu0 0
  %173 = vmatpush1.bf16.msra.mxu0 0
  %174 = vmatprep.subr.bf16.mxu0 0
  %175 = vmatpush1.bf16.msra.mxu0 0
  %176 = vmatprep.subr.bf16.mxu0 0
  %177 = vmatpush1.bf16.msra.mxu0 0
  %178 = vmatprep.subr.bf16.mxu0 0
  %179 = vmatpush1.bf16.msra.mxu0 0
  %180 = vmatprep.subr.bf16.mxu0 0
  %181 = vmatpush1.bf16.msra.mxu0 0
  %182 = vmatprep.subr.bf16.mxu0 0
  %183 = vmatpush1.bf16.msra.mxu0 0
  %184 = vmatprep.subr.bf16.mxu0 0
  %185 = vmatpush1.bf16.msra.mxu0 0
  %186 = vmatprep.subr.bf16.mxu0 0
  %187 = vmatpush1.bf16.msra.mxu0 0
  %188 = vmatprep.subr.bf16.mxu0 0
  %189 = vmatpush1.bf16.msra.mxu0 0
  %190 = vmatprep.subr.bf16.mxu0 0
  %191 = vmatpush1.bf16.msra.mxu0 0
  %192 = vmatprep.mubr.bf16.mxu0 0
  %193 = vmatmul.mubr.bf16.gmra.mrb[0].mxu0 %v137
  %v194 = vpop.f32.mrb[0].mxu0
  %v195 = vadd.f32 0.0, %v194
  %v196 = vpop.f32.mrb[0].mxu0
  %v197 = vpop.f32.mrb[0].mxu0
  %v198 = vadd.f32 0.0, %v197
  %v199 = vpop.f32.mrb[0].mxu0
  %200 = vmatprep.mubr.bf16.mxu0 0
  %201 = vmatmul.mubr.bf16.gmra.mrb[0].mxu0 %v140
  %v202 = vpop.f32.mrb[0].mxu0
  %v203 = vadd.f32 0.0, %v202
  %v204 = vpop.f32.mrb[0].mxu0
  %v205 = vpop.f32.mrb[0].mxu0
  %v206 = vadd.f32 0.0, %v205
  %v207 = vpop.f32.mrb[0].mxu0
  %208 = vmatprep.mubr.bf16.mxu0 0
  %209 = vmatmul.mubr.bf16.gmra.mrb[0].mxu0 %v143
  %v210 = vpop.f32.mrb[0].mxu0
  %v211 = vadd.f32 0.0, %v210
  %v212 = vpop.f32.mrb[0].mxu0
  %v213 = vpop.f32.mrb[0].mxu0
  %v214 = vadd.f32 0.0, %v213
  %v215 = vpop.f32.mrb[0].mxu0
  %216 = vmatprep.mubr.bf16.mxu0 0
  %217 = vmatmul.mubr.bf16.gmra.mrb[0].mxu0 %v146
  %v218 = vpop.f32.mrb[0].mxu0
  %v219 = vadd.f32 0.0, %v218
  %v220 = vpop.f32.mrb[0].mxu0
  %v221 = vpop.f32.mrb[0].mxu0
  %v222 = vadd.f32 0.0, %v221
  %v223 = vpop.f32.mrb[0].mxu0
  %224 = vmatprep.mubr.bf16.mxu0 0
  %225 = vmatmul.mubr.bf16.gmra.mrb[0].mxu0 %v149
  %v226 = vpop.f32.mrb[0].mxu0
  %v227 = vadd.f32 0.0, %v226
  %v228 = vpop.f32.mrb[0].mxu0
  %v229 = vpop.f32.mrb[0].mxu0
  %v230 = vadd.f32 0.0, %v229
  %v231 = vpop.f32.mrb[0].mxu0
  %232 = vmatprep.mubr.bf16.mxu0 0
  %233 = vmatmul.mubr.bf16.gmra.mrb[0].mxu0 %v152
  %v234 = vpop.f32.mrb[0].mxu0
  %v235 = vadd.f32 0.0, %v234
  %v236 = vpop.f32.mrb[0].mxu0
  %v237 = vpop.f32.mrb[0].mxu0
  %v238 = vadd.f32 0.0, %v237
  %v239 = vpop.f32.mrb[0].mxu0
  %240 = vmatprep.mubr.bf16.mxu0 0
  %241 = vmatmul.mubr.bf16.gmra.mrb[0].mxu0 %v155
  %v242 = vpop.f32.mrb[0].mxu0
  %v243 = vadd.f32 0.0, %v242
  %v244 = vpop.f32.mrb[0].mxu0
  %v245 = vpop.f32.mrb[0].mxu0
  %v246 = vadd.f32 0.0, %v245
  %v247 = vpop.f32.mrb[0].mxu0
  %248 = vmatprep.mubr.bf16.mxu0 0
  %249 = vmatmul.mubr.bf16.gmra.mrb[0].mxu0 %v158
  %v250 = vpop.f32.mrb[0].mxu0
  %v251 = vadd.f32 0.0, %v250
  %v252 = vpop.f32.mrb[0].mxu0
  %v253 = vpop.f32.mrb[0].mxu0
  %v254 = vadd.f32 0.0, %v253
  %v255 = vpop.f32.mrb[0].mxu0
  %256 = vdwg.mxu0
  %v273 = vunpack.c.l.b16 %v23
  %v274 = vunpack.c.l.b16 %v24
  %v275 = vunpack.c.l.b16 %v25
  %v276 = vunpack.c.l.b16 %v26
  %v277 = vunpack.c.l.b16 %v27
  %v278 = vunpack.c.l.b16 %v28
  %v279 = vunpack.c.l.b16 %v29
  %v280 = vunpack.c.l.b16 %v30
  %v281 = vunpack.c.l.b16 %v31
  %v282 = vunpack.c.l.b16 %v32
  %v283 = vunpack.c.l.b16 %v33
  %v284 = vunpack.c.l.b16 %v34
  %v285 = vunpack.c.l.b16 %v35
  %v286 = vunpack.c.l.b16 %v36
  %v287 = vunpack.c.l.b16 %v37
  %v288 = vunpack.c.l.b16 %v38
  %v289 = vpack.c.b16 %v274, %v273
  %v290 = vpack.c.b16 %v276, %v275
  %v291 = vpack.c.b16 %v278, %v277
  %v292 = vpack.c.b16 %v280, %v279
  %v293 = vpack.c.b16 %v282, %v281
  %v294 = vpack.c.b16 %v284, %v283
  %v295 = vpack.c.b16 %v286, %v285
  %v296 = vpack.c.b16 %v288, %v287
  %v305 = vunpack.c.l.b16 %v39
  %v306 = vunpack.c.l.b16 %v40
  %v307 = vunpack.c.l.b16 %v41
  %v308 = vunpack.c.l.b16 %v42
  %v309 = vunpack.c.l.b16 %v43
  %v310 = vunpack.c.l.b16 %v44
  %v311 = vunpack.c.l.b16 %v45
  %v312 = vunpack.c.l.b16 %v46
  %v313 = vpack.c.b16 %v306, %v305
  %v314 = vpack.c.b16 %v308, %v307
  %v315 = vpack.c.b16 %v310, %v309
  %v316 = vpack.c.b16 %v312, %v311
  %v322 = vsel %vm135, %v289, 0
  %v325 = vsel %vm135, %v290, 0
  %v328 = vsel %vm135, %v291, 0
  %v331 = vsel %vm135, %v292, 0
  %v334 = vsel %vm135, %v293, 0
  %v337 = vsel %vm135, %v294, 0
  %v340 = vsel %vm135, %v295, 0
  %v343 = vsel %vm135, %v296, 0
  %345 = vmatprep.subr.bf16.mxu0 0
  %346 = vmatpush1.bf16.msra.mxu0 %v313
  %347 = vmatprep.subr.bf16.mxu0 0
  %348 = vmatpush1.bf16.msra.mxu0 %v314
  %349 = vmatprep.subr.bf16.mxu0 0
  %350 = vmatpush1.bf16.msra.mxu0 %v315
  %351 = vmatprep.subr.bf16.mxu0 0
  %352 = vmatpush1.bf16.msra.mxu0 %v316
  %353 = vmatprep.subr.bf16.mxu0 0
  %354 = vmatpush1.bf16.msra.mxu0 0
  %355 = vmatprep.subr.bf16.mxu0 0
  %356 = vmatpush1.bf16.msra.mxu0 0
  %357 = vmatprep.subr.bf16.mxu0 0
  %358 = vmatpush1.bf16.msra.mxu0 0
  %359 = vmatprep.subr.bf16.mxu0 0
  %360 = vmatpush1.bf16.msra.mxu0 0
  %361 = vmatprep.subr.bf16.mxu0 0
  %362 = vmatpush1.bf16.msra.mxu0 0
  %363 = vmatprep.subr.bf16.mxu0 0
  %364 = vmatpush1.bf16.msra.mxu0 0
  %365 = vmatprep.subr.bf16.mxu0 0
  %366 = vmatpush1.bf16.msra.mxu0 0
  %367 = vmatprep.subr.bf16.mxu0 0
  %368 = vmatpush1.bf16.msra.mxu0 0
  %369 = vmatprep.subr.bf16.mxu0 0
  %370 = vmatpush1.bf16.msra.mxu0 0
  %371 = vmatprep.subr.bf16.mxu0 0
  %372 = vmatpush1.bf16.msra.mxu0 0
  %373 = vmatprep.subr.bf16.mxu0 0
  %374 = vmatpush1.bf16.msra.mxu0 0
  %375 = vmatprep.subr.bf16.mxu0 0
  %376 = vmatpush1.bf16.msra.mxu0 0
  %377 = vmatprep.mubr.bf16.mxu0 0
  %378 = vmatmul.mubr.bf16.gmra.mrb[0].mxu0 %v322
  %v379 = vpop.f32.mrb[0].mxu0
  %v380 = vadd.f32 %v195, %v379
  %v381 = vpop.f32.mrb[0].mxu0
  %v382 = vpop.f32.mrb[0].mxu0
  %v383 = vadd.f32 %v198, %v382
  %v384 = vpop.f32.mrb[0].mxu0
  %385 = vmatprep.mubr.bf16.mxu0 0
  %386 = vmatmul.mubr.bf16.gmra.mrb[0].mxu0 %v325
  %v387 = vpop.f32.mrb[0].mxu0
  %v388 = vadd.f32 %v203, %v387
  %v389 = vpop.f32.mrb[0].mxu0
  %v390 = vpop.f32.mrb[0].mxu0
  %v391 = vadd.f32 %v206, %v390
  %v392 = vpop.f32.mrb[0].mxu0
  %393 = vmatprep.mubr.bf16.mxu0 0
  %394 = vmatmul.mubr.bf16.gmra.mrb[0].mxu0 %v328
  %v395 = vpop.f32.mrb[0].mxu0
  %v396 = vadd.f32 %v211, %v395
  %v397 = vpop.f32.mrb[0].mxu0
  %v398 = vpop.f32.mrb[0].mxu0
  %v399 = vadd.f32 %v214, %v398
  %v400 = vpop.f32.mrb[0].mxu0
  %401 = vmatprep.mubr.bf16.mxu0 0
  %402 = vmatmul.mubr.bf16.gmra.mrb[0].mxu0 %v331
  %v403 = vpop.f32.mrb[0].mxu0
  %v404 = vadd.f32 %v219, %v403
  %v405 = vpop.f32.mrb[0].mxu0
  %v406 = vpop.f32.mrb[0].mxu0
  %v407 = vadd.f32 %v222, %v406
  %v408 = vpop.f32.mrb[0].mxu0
  %409 = vmatprep.mubr.bf16.mxu0 0
  %410 = vmatmul.mubr.bf16.gmra.mrb[0].mxu0 %v334
  %v411 = vpop.f32.mrb[0].mxu0
  %v412 = vadd.f32 %v227, %v411
  %v413 = vpop.f32.mrb[0].mxu0
  %v414 = vpop.f32.mrb[0].mxu0
  %v415 = vadd.f32 %v230, %v414
  %v416 = vpop.f32.mrb[0].mxu0
  %417 = vmatprep.mubr.bf16.mxu0 0
  %418 = vmatmul.mubr.bf16.gmra.mrb[0].mxu0 %v337
  %v419 = vpop.f32.mrb[0].mxu0
  %v420 = vadd.f32 %v235, %v419
  %v421 = vpop.f32.mrb[0].mxu0
  %v422 = vpop.f32.mrb[0].mxu0
  %v423 = vadd.f32 %v238, %v422
  %v424 = vpop.f32.mrb[0].mxu0
  %425 = vmatprep.mubr.bf16.mxu0 0
  %426 = vmatmul.mubr.bf16.gmra.mrb[0].mxu0 %v340
  %v427 = vpop.f32.mrb[0].mxu0
  %v428 = vadd.f32 %v243, %v427
  %v429 = vpop.f32.mrb[0].mxu0
  %v430 = vpop.f32.mrb[0].mxu0
  %v431 = vadd.f32 %v246, %v430
  %v432 = vpop.f32.mrb[0].mxu0
  %433 = vmatprep.mubr.bf16.mxu0 0
  %434 = vmatmul.mubr.bf16.gmra.mrb[0].mxu0 %v343
  %v435 = vpop.f32.mrb[0].mxu0
  %v436 = vadd.f32 %v251, %v435
  %v437 = vpop.f32.mrb[0].mxu0
  %v438 = vpop.f32.mrb[0].mxu0
  %v439 = vadd.f32 %v254, %v438
  %v440 = vpop.f32.mrb[0].mxu0
  %441 = vdwg.mxu0
  %v442 = vld [vmem:[%s4] sm:$0x1]
  %v444 = vlaneseq
  %v445 = vshrl.u32 %v444, 7
  %v446 = vsub.s32 0, %v445
  %v447 = vrot.slane %v442, %v446
  %v449 = vadd.f32 %v380, %v447
  %v450 = vadd.f32 %v383, %v447
  %v451 = vadd.f32 %v388, %v447
  %v452 = vadd.f32 %v391, %v447
  %v453 = vadd.f32 %v396, %v447
  %v454 = vadd.f32 %v399, %v447
  %v455 = vadd.f32 %v404, %v447
  %v456 = vadd.f32 %v407, %v447
  %v457 = vadd.f32 %v412, %v447
  %v458 = vadd.f32 %v415, %v447
  %v459 = vadd.f32 %v420, %v447
  %v460 = vadd.f32 %v423, %v447
  %v461 = vadd.f32 %v428, %v447
  %v462 = vadd.f32 %v431, %v447
  %v463 = vadd.f32 %v436, %v447
  %v464 = vadd.f32 %v439, %v447
  %p465 = scmp.eq.s32.totalorder 0, 0
  // Predicated region
  $region22: #{generator_forward.20} parent=0 // pred_check
    %p466 = pneg %p465
  $region23: #{generator_forward.20} parent=0 // pred_check_branch
    %468 = sbr.rel (%p466) target = $region25
  $region24: #{generator_forward.20} parent=0 // pred_region
    %vm469 = vcmask 253952
    %470 = vst.msk [vmem:[%s5] sm:$0x1] %vm469, 0.0
    %471 = vst.msk [vmem:[%s6] sm:$0x1] %vm469, 0.0
  $region25: #{generator_forward.20} parent=0 // pred_fallthru
    _
  %v472 = vld [vmem:[%s5] sm:$0x1]
  %vm473 = vcmask 261120
  %v474 = vsel %vm473, %v449, 0.0
  %v475 = vsel %vm473, %v450, 0.0
  %v476 = vadd.f32 %v474, %v475
  %v477 = vsel %vm473, %v451, 0.0
  %v478 = vadd.f32 %v476, %v477
  %v479 = vsel %vm473, %v452, 0.0
  %v480 = vadd.f32 %v478, %v479
  %v481 = vsel %vm473, %v453, 0.0
  %v482 = vadd.f32 %v480, %v481
  %v483 = vsel %vm473, %v454, 0.0
  %v484 = vadd.f32 %v482, %v483
  %v485 = vsel %vm473, %v455, 0.0
  %v486 = vadd.f32 %v484, %v485
  %v487 = vsel %vm473, %v456, 0.0
  %v488 = vadd.f32 %v486, %v487
  %v489 = vsel %vm473, %v457, 0.0
  %v490 = vadd.f32 %v488, %v489
  %v491 = vsel %vm473, %v458, 0.0
  %v492 = vadd.f32 %v490, %v491
  %v493 = vsel %vm473, %v459, 0.0
  %v494 = vadd.f32 %v492, %v493
  %v495 = vsel %vm473, %v460, 0.0
  %v496 = vadd.f32 %v494, %v495
  %v497 = vsel %vm473, %v461, 0.0
  %v498 = vadd.f32 %v496, %v497
  %v499 = vsel %vm473, %v462, 0.0
  %v500 = vadd.f32 %v498, %v499
  %v501 = vsel %vm473, %v463, 0.0
  %v502 = vadd.f32 %v500, %v501
  %v503 = vsel %vm473, %v464, 0.0
  %v504 = vadd.f32 %v502, %v503
  %v505 = vrot.slane %v504, 4
  %v506 = vadd.f32 %v504, %v505
  %v507 = vrot.slane %v506, 2
  %v508 = vadd.f32 %v506, %v507
  %v509 = vrot.slane %v508, 1
  %v510 = vadd.f32 %v508, %v509
  %v511 = vadd.f32 %v472, %v510
  %vm512 = vcmask 253952
  %513 = vst.msk [vmem:[%s5] sm:$0x1] %vm512, %v511
  %v514 = vld [vmem:[%s6] sm:$0x1]
  %v515 = vmul.f32 %v449, %v449
  %v516 = vmul.f32 %v450, %v450
  %v517 = vmul.f32 %v451, %v451
  %v518 = vmul.f32 %v452, %v452
  %v519 = vmul.f32 %v453, %v453
  %v520 = vmul.f32 %v454, %v454
  %v521 = vmul.f32 %v455, %v455
  %v522 = vmul.f32 %v456, %v456
  %v523 = vmul.f32 %v457, %v457
  %v524 = vmul.f32 %v458, %v458
  %v525 = vmul.f32 %v459, %v459
  %v526 = vmul.f32 %v460, %v460
  %v527 = vmul.f32 %v461, %v461
  %v528 = vmul.f32 %v462, %v462
  %v529 = vmul.f32 %v463, %v463
  %v530 = vmul.f32 %v464, %v464
  %v531 = vsel %vm473, %v515, 0.0
  %v532 = vsel %vm473, %v516, 0.0
  %v533 = vadd.f32 %v531, %v532
  %v534 = vsel %vm473, %v517, 0.0
  %v535 = vadd.f32 %v533, %v534
  %v536 = vsel %vm473, %v518, 0.0
  %v537 = vadd.f32 %v535, %v536
  %v538 = vsel %vm473, %v519, 0.0
  %v539 = vadd.f32 %v537, %v538
  %v540 = vsel %vm473, %v520, 0.0
  %v541 = vadd.f32 %v539, %v540
  %v542 = vsel %vm473, %v521, 0.0
  %v543 = vadd.f32 %v541, %v542
  %v544 = vsel %vm473, %v522, 0.0
  %v545 = vadd.f32 %v543, %v544
  %v546 = vsel %vm473, %v523, 0.0
  %v547 = vadd.f32 %v545, %v546
  %v548 = vsel %vm473, %v524, 0.0
  %v549 = vadd.f32 %v547, %v548
  %v550 = vsel %vm473, %v525, 0.0
  %v551 = vadd.f32 %v549, %v550
  %v552 = vsel %vm473, %v526, 0.0
  %v553 = vadd.f32 %v551, %v552
  %v554 = vsel %vm473, %v527, 0.0
  %v555 = vadd.f32 %v553, %v554
  %v556 = vsel %vm473, %v528, 0.0
  %v557 = vadd.f32 %v555, %v556
  %v558 = vsel %vm473, %v529, 0.0
  %v559 = vadd.f32 %v557, %v558
  %v560 = vsel %vm473, %v530, 0.0
  %v561 = vadd.f32 %v559, %v560
  %v562 = vrot.slane %v561, 4
  %v563 = vadd.f32 %v561, %v562
  %v564 = vrot.slane %v563, 2
  %v565 = vadd.f32 %v563, %v564
  %v566 = vrot.slane %v565, 1
  %v567 = vadd.f32 %v565, %v566
  %v568 = vadd.f32 %v514, %v567
  %569 = vst.msk [vmem:[%s6] sm:$0x1] %vm512, %v568
  // Predicated region
  $region26: #{generator_forward.20} parent=0 // pred_check
    _
  $region27: #{generator_forward.20} parent=0 // pred_check_branch
    %571 = sbr.rel (0) target = $region29
  $region28: #{generator_forward.20} parent=0 // pred_region
    _
  $region29: #{generator_forward.20} parent=0 // pred_fallthru
    _
  // Predicated region
  $region30: #{generator_forward.20} parent=0 // pred_check
    _
  $region31: #{generator_forward.20} parent=0 // pred_check_branch
    %573 = sbr.rel (0) target = $region33
  $region32: #{generator_forward.20} parent=0 // pred_region
    _
  $region33: #{generator_forward.20} parent=0 // pred_fallthru
    _
  // Predicated region
  $region34: #{generator_forward.20} parent=0 // pred_check
    _
  $region35: #{generator_forward.20} parent=0 // pred_check_branch
    %575 = sbr.rel (0) target = $region37
  $region36: #{generator_forward.20} parent=0 // pred_region
    _
  $region37: #{generator_forward.20} parent=0 // pred_fallthru
    _
  // Predicated region
  $region38: #{generator_forward.20} parent=0 // pred_check
    _
  $region39: #{generator_forward.20} parent=0 // pred_check_branch
    %577 = sbr.rel (0) target = $region41
  $region40: #{generator_forward.20} parent=0 // pred_region
    _
  $region41: #{generator_forward.20} parent=0 // pred_fallthru
    _

// kernel: generator_forward.19
$region0: #{generator_forward.19}
  #allocation0 [shape = 'u32[]', space=smem, size = 0x4, offset = 0x4, fixed_abs, tag = 'smem constant byte address 0x4 - core index']
  #allocation1 [shape = 'u32[144,128]{1,0:T(1,128)}', space=vmem, size = 0x12000, scoped, tag = 'internal scratch']
  %s0 = inlined_call_operand.vmem [shape: bf16[32,128], index: 0, kind: input, shape index: {}]
  %s1 = inlined_call_operand.vmem [shape: bf16[32,128], index: 1, kind: input, shape index: {}]
  %s2 = inlined_call_operand.vmem [shape: bf16[128,64], index: 2, kind: input, shape index: {}]
  %s3 = inlined_call_operand.vmem [shape: bf16[128,64], index: 3, kind: input, shape index: {}]
  %s4 = inlined_call_operand.vmem [shape: f32[1,64], index: 4, kind: input, shape index: {}]
  %s5 = inlined_call_operand.vmem [shape: f32[1,64], index: 5, kind: input, shape index: {}]
  %s6 = inlined_call_operand.vmem [shape: f32[1,64], index: 6, kind: input, shape index: {}]
  %s7 = inlined_call_operand.vmem [shape: f32[1,64], index: 7, kind: input, shape index: {}]
  %s8 = inlined_call_operand.vmem [shape: f32[1,64], index: 8, kind: input, shape index: {}]
  %s9 = inlined_call_operand.vmem [shape: bf16[32,64], index: 9, kind: output, shape index: {}]
  %s10 = sld [smem:[#allocation0]]
  $region46: #{generator_forward.19} parent=0
    _
  %s12 = ssub.s32 1, %s10
  %s13 = scalar_select 0, %s12, %s10
  // Predicated region
  $region2: #{generator_forward.19} parent=0 // pred_check
    _
  $region3: #{generator_forward.19} parent=0 // pred_check_branch
    %15 = sbr.rel (0) target = $region5
  $region4: #{generator_forward.19} parent=0 // pred_region
    _
  $region5: #{generator_forward.19} parent=0 // pred_fallthru
    _
  // Predicated region
  $region6: #{generator_forward.19} parent=0 // pred_check
    _
  $region7: #{generator_forward.19} parent=0 // pred_check_branch
    %17 = sbr.rel (0) target = $region9
  $region8: #{generator_forward.19} parent=0 // pred_region
    _
  $region9: #{generator_forward.19} parent=0 // pred_fallthru
    _
  // Predicated region
  $region10: #{generator_forward.19} parent=0 // pred_check
    _
  $region11: #{generator_forward.19} parent=0 // pred_check_branch
    %19 = sbr.rel (0) target = $region13
  $region12: #{generator_forward.19} parent=0 // pred_region
    _
  $region13: #{generator_forward.19} parent=0 // pred_fallthru
    _
  // Predicated region
  $region14: #{generator_forward.19} parent=0 // pred_check
    _
  $region15: #{generator_forward.19} parent=0 // pred_check_branch
    %21 = sbr.rel (0) target = $region17
  $region16: #{generator_forward.19} parent=0 // pred_region
    _
  $region17: #{generator_forward.19} parent=0 // pred_fallthru
    _
  // Predicated region
  $region18: #{generator_forward.19} parent=0 // pred_check
    _
  $region19: #{generator_forward.19} parent=0 // pred_check_branch
    %23 = sbr.rel (0) target = $region21
  $region20: #{generator_forward.19} parent=0 // pred_region
    _
  $region21: #{generator_forward.19} parent=0 // pred_fallthru
    _
  // Predicated region
  $region22: #{generator_forward.19} parent=0 // pred_check
    _
  $region23: #{generator_forward.19} parent=0 // pred_check_branch
    %25 = sbr.rel (0) target = $region25
  $region24: #{generator_forward.19} parent=0 // pred_region
    _
  $region25: #{generator_forward.19} parent=0 // pred_fallthru
    _
  // Predicated region
  $region26: #{generator_forward.19} parent=0 // pred_check
    _
  $region27: #{generator_forward.19} parent=0 // pred_check_branch
    %27 = sbr.rel (0) target = $region29
  $region28: #{generator_forward.19} parent=0 // pred_region
    _
  $region29: #{generator_forward.19} parent=0 // pred_fallthru
    _
  // Predicated region
  $region30: #{generator_forward.19} parent=0 // pred_check
    _
  $region31: #{generator_forward.19} parent=0 // pred_check_branch
    %29 = sbr.rel (0) target = $region33
  $region32: #{generator_forward.19} parent=0 // pred_region
    _
  $region33: #{generator_forward.19} parent=0 // pred_fallthru
    _
  // Predicated region
  $region34: #{generator_forward.19} parent=0 // pred_check
    _
  $region35: #{generator_forward.19} parent=0 // pred_check_branch
    %31 = sbr.rel (0) target = $region37
  $region36: #{generator_forward.19} parent=0 // pred_region
    _
  $region37: #{generator_forward.19} parent=0 // pred_fallthru
    _
  %v33 = vld [vmem:[%s0] sm:$0xf]
  %v34 = vld [vmem:[%s0 + $0x4] sm:$0xf]
  %v35 = vld [vmem:[%s0 + $0x8] sm:$0xf]
  %v36 = vld [vmem:[%s0 + $0xc] sm:$0xf]
  %v37 = vld [vmem:[%s2] sm:$0xf]
  %v38 = vld [vmem:[%s2 + $0x4] sm:$0xf]
  %v39 = vld [vmem:[%s2 + $0x8] sm:$0xf]
  %v40 = vld [vmem:[%s2 + $0xc] sm:$0xf]
  %v41 = vld [vmem:[%s2 + $0x10] sm:$0xf]
  %v42 = vld [vmem:[%s2 + $0x14] sm:$0xf]
  %v43 = vld [vmem:[%s2 + $0x18] sm:$0xf]
  %v44 = vld [vmem:[%s2 + $0x1c] sm:$0xf]
  %v45 = vld [vmem:[%s2 + $0x20] sm:$0xf]
  %v46 = vld [vmem:[%s2 + $0x24] sm:$0xf]
  %v47 = vld [vmem:[%s2 + $0x28] sm:$0xf]
  %v48 = vld [vmem:[%s2 + $0x2c] sm:$0xf]
  %v49 = vld [vmem:[%s2 + $0x30] sm:$0xf]
  %v50 = vld [vmem:[%s2 + $0x34] sm:$0xf]
  %v51 = vld [vmem:[%s2 + $0x38] sm:$0xf]
  %v52 = vld [vmem:[%s2 + $0x3c] sm:$0xf]
  %v53 = vld [vmem:[%s1] sm:$0xf]
  %v54 = vld [vmem:[%s1 + $0x4] sm:$0xf]
  %v55 = vld [vmem:[%s1 + $0x8] sm:$0xf]
  %v56 = vld [vmem:[%s1 + $0xc] sm:$0xf]
  %v57 = vld [vmem:[%s3] sm:$0xf]
  %v58 = vld [vmem:[%s3 + $0x4] sm:$0xf]
  %v59 = vld [vmem:[%s3 + $0x8] sm:$0xf]
  %v60 = vld [vmem:[%s3 + $0xc] sm:$0xf]
  %v61 = vld [vmem:[%s3 + $0x10] sm:$0xf]
  %v62 = vld [vmem:[%s3 + $0x14] sm:$0xf]
  %v63 = vld [vmem:[%s3 + $0x18] sm:$0xf]
  %v64 = vld [vmem:[%s3 + $0x1c] sm:$0xf]
  %v65 = vld [vmem:[%s3 + $0x20] sm:$0xf]
  %v66 = vld [vmem:[%s3 + $0x24] sm:$0xf]
  %v67 = vld [vmem:[%s3 + $0x28] sm:$0xf]
  %v68 = vld [vmem:[%s3 + $0x2c] sm:$0xf]
  %v69 = vld [vmem:[%s3 + $0x30] sm:$0xf]
  %v70 = vld [vmem:[%s3 + $0x34] sm:$0xf]
  %v71 = vld [vmem:[%s3 + $0x38] sm:$0xf]
  %v72 = vld [vmem:[%s3 + $0x3c] sm:$0xf]
  %v77 = vunpack.c.l.b16 %v53
  %v78 = vunpack.c.l.b16 %v54
  %v79 = vunpack.c.l.b16 %v55
  %v80 = vunpack.c.l.b16 %v56
  %v81 = vpack.c.b16 %v78, %v77
  %v82 = vpack.c.b16 %v80, %v79
  %v101 = vunpack.c.l.b16 %v57
  %v102 = vunpack.c.l.b16 %v58
  %v103 = vunpack.c.l.b16 %v59
  %v104 = vunpack.c.l.b16 %v60
  %v105 = vunpack.c.l.b16 %v61
  %v106 = vunpack.c.l.b16 %v62
  %v107 = vunpack.c.l.b16 %v63
  %v108 = vunpack.c.l.b16 %v64
  %v109 = vunpack.c.l.b16 %v65
  %v110 = vunpack.c.l.b16 %v66
  %v111 = vunpack.c.l.b16 %v67
  %v112 = vunpack.c.l.b16 %v68
  %v113 = vunpack.c.l.b16 %v69
  %v114 = vunpack.c.l.b16 %v70
  %v115 = vunpack.c.l.b16 %v71
  %v116 = vunpack.c.l.b16 %v72
  %v117 = vpack.c.b16 %v102, %v101
  %v118 = vpack.c.b16 %v104, %v103
  %v119 = vpack.c.b16 %v106, %v105
  %v120 = vpack.c.b16 %v108, %v107
  %v121 = vpack.c.b16 %v110, %v109
  %v122 = vpack.c.b16 %v112, %v111
  %v123 = vpack.c.b16 %v114, %v113
  %v124 = vpack.c.b16 %v116, %v115
  %133 = vmatprep.subr.bf16.mxu0 0
  %134 = vmatpush1.bf16.msra.mxu0 %v117
  %135 = vmatprep.subr.bf16.mxu0 0
  %136 = vmatpush1.bf16.msra.mxu0 %v118
  %137 = vmatprep.subr.bf16.mxu0 0
  %138 = vmatpush1.bf16.msra.mxu0 %v119
  %139 = vmatprep.subr.bf16.mxu0 0
  %140 = vmatpush1.bf16.msra.mxu0 %v120
  %141 = vmatprep.subr.bf16.mxu0 0
  %142 = vmatpush1.bf16.msra.mxu0 %v121
  %143 = vmatprep.subr.bf16.mxu0 0
  %144 = vmatpush1.bf16.msra.mxu0 %v122
  %145 = vmatprep.subr.bf16.mxu0 0
  %146 = vmatpush1.bf16.msra.mxu0 %v123
  %147 = vmatprep.subr.bf16.mxu0 0
  %148 = vmatpush1.bf16.msra.mxu0 %v124
  %149 = vmatprep.subr.bf16.mxu0 0
  %150 = vmatpush1.bf16.msra.mxu0 0
  %151 = vmatprep.subr.bf16.mxu0 0
  %152 = vmatpush1.bf16.msra.mxu0 0
  %153 = vmatprep.subr.bf16.mxu0 0
  %154 = vmatpush1.bf16.msra.mxu0 0
  %155 = vmatprep.subr.bf16.mxu0 0
  %156 = vmatpush1.bf16.msra.mxu0 0
  %157 = vmatprep.subr.bf16.mxu0 0
  %158 = vmatpush1.bf16.msra.mxu0 0
  %159 = vmatprep.subr.bf16.mxu0 0
  %160 = vmatpush1.bf16.msra.mxu0 0
  %161 = vmatprep.subr.bf16.mxu0 0
  %162 = vmatpush1.bf16.msra.mxu0 0
  %163 = vmatprep.subr.bf16.mxu0 0
  %164 = vmatpush1.bf16.msra.mxu0 0
  %165 = vmatprep.mubr.bf16.mxu0 0
  %166 = vmatmul.mubr.bf16.gmra.mrb[0].mxu0 %v81
  %v167 = vpop.f32.mrb[0].mxu0
  %v168 = vadd.f32 0.0, %v167
  %v169 = vpop.f32.mrb[0].mxu0
  %v170 = vpop.f32.mrb[0].mxu0
  %v171 = vadd.f32 0.0, %v170
  %v172 = vpop.f32.mrb[0].mxu0
  %173 = vmatprep.mubr.bf16.mxu0 0
  %174 = vmatmul.mubr.bf16.gmra.mrb[0].mxu0 %v82
  %v175 = vpop.f32.mrb[0].mxu0
  %v176 = vadd.f32 0.0, %v175
  %v177 = vpop.f32.mrb[0].mxu0
  %v178 = vpop.f32.mrb[0].mxu0
  %v179 = vadd.f32 0.0, %v178
  %v180 = vpop.f32.mrb[0].mxu0
  %181 = vdwg.mxu0
  %v186 = vunpack.c.l.b16 %v33
  %v187 = vunpack.c.l.b16 %v34
  %v188 = vunpack.c.l.b16 %v35
  %v189 = vunpack.c.l.b16 %v36
  %v190 = vpack.c.b16 %v187, %v186
  %v191 = vpack.c.b16 %v189, %v188
  %v210 = vunpack.c.l.b16 %v37
  %v211 = vunpack.c.l.b16 %v38
  %v212 = vunpack.c.l.b16 %v39
  %v213 = vunpack.c.l.b16 %v40
  %v214 = vunpack.c.l.b16 %v41
  %v215 = vunpack.c.l.b16 %v42
  %v216 = vunpack.c.l.b16 %v43
  %v217 = vunpack.c.l.b16 %v44
  %v218 = vunpack.c.l.b16 %v45
  %v219 = vunpack.c.l.b16 %v46
  %v220 = vunpack.c.l.b16 %v47
  %v221 = vunpack.c.l.b16 %v48
  %v222 = vunpack.c.l.b16 %v49
  %v223 = vunpack.c.l.b16 %v50
  %v224 = vunpack.c.l.b16 %v51
  %v225 = vunpack.c.l.b16 %v52
  %v226 = vpack.c.b16 %v211, %v210
  %v227 = vpack.c.b16 %v213, %v212
  %v228 = vpack.c.b16 %v215, %v214
  %v229 = vpack.c.b16 %v217, %v216
  %v230 = vpack.c.b16 %v219, %v218
  %v231 = vpack.c.b16 %v221, %v220
  %v232 = vpack.c.b16 %v223, %v222
  %v233 = vpack.c.b16 %v225, %v224
  %242 = vmatprep.subr.bf16.mxu0 0
  %243 = vmatpush1.bf16.msra.mxu0 %v226
  %244 = vmatprep.subr.bf16.mxu0 0
  %245 = vmatpush1.bf16.msra.mxu0 %v227
  %246 = vmatprep.subr.bf16.mxu0 0
  %247 = vmatpush1.bf16.msra.mxu0 %v228
  %248 = vmatprep.subr.bf16.mxu0 0
  %249 = vmatpush1.bf16.msra.mxu0 %v229
  %250 = vmatprep.subr.bf16.mxu0 0
  %251 = vmatpush1.bf16.msra.mxu0 %v230
  %252 = vmatprep.subr.bf16.mxu0 0
  %253 = vmatpush1.bf16.msra.mxu0 %v231
  %254 = vmatprep.subr.bf16.mxu0 0
  %255 = vmatpush1.bf16.msra.mxu0 %v232
  %256 = vmatprep.subr.bf16.mxu0 0
  %257 = vmatpush1.bf16.msra.mxu0 %v233
  %258 = vmatprep.subr.bf16.mxu0 0
  %259 = vmatpush1.bf16.msra.mxu0 0
  %260 = vmatprep.subr.bf16.mxu0 0
  %261 = vmatpush1.bf16.msra.mxu0 0
  %262 = vmatprep.subr.bf16.mxu0 0
  %263 = vmatpush1.bf16.msra.mxu0 0
  %264 = vmatprep.subr.bf16.mxu0 0
  %265 = vmatpush1.bf16.msra.mxu0 0
  %266 = vmatprep.subr.bf16.mxu0 0
  %267 = vmatpush1.bf16.msra.mxu0 0
  %268 = vmatprep.subr.bf16.mxu0 0
  %269 = vmatpush1.bf16.msra.mxu0 0
  %270 = vmatprep.subr.bf16.mxu0 0
  %271 = vmatpush1.bf16.msra.mxu0 0
  %272 = vmatprep.subr.bf16.mxu0 0
  %273 = vmatpush1.bf16.msra.mxu0 0
  %274 = vmatprep.mubr.bf16.mxu0 0
  %275 = vmatmul.mubr.bf16.gmra.mrb[0].mxu0 %v190
  %v276 = vpop.f32.mrb[0].mxu0
  %v277 = vadd.f32 %v168, %v276
  %v278 = vpop.f32.mrb[0].mxu0
  %v279 = vpop.f32.mrb[0].mxu0
  %v280 = vadd.f32 %v171, %v279
  %v281 = vpop.f32.mrb[0].mxu0
  %282 = vmatprep.mubr.bf16.mxu0 0
  %283 = vmatmul.mubr.bf16.gmra.mrb[0].mxu0 %v191
  %v284 = vpop.f32.mrb[0].mxu0
  %v285 = vadd.f32 %v176, %v284
  %v286 = vpop.f32.mrb[0].mxu0
  %v287 = vpop.f32.mrb[0].mxu0
  %v288 = vadd.f32 %v179, %v287
  %v289 = vpop.f32.mrb[0].mxu0
  %290 = vdwg.mxu0
  %v291 = vld [vmem:[%s4] sm:$0x1]
  %v293 = vlaneseq
  %v294 = vshrl.u32 %v293, 7
  %v295 = vsub.s32 0, %v294
  %v296 = vrot.slane %v291, %v295
  %v298 = vadd.f32 %v277, %v296
  %v299 = vadd.f32 %v280, %v296
  %v300 = vadd.f32 %v285, %v296
  %v301 = vadd.f32 %v288, %v296
  %v302 = vld [vmem:[%s5] sm:$0x1]
  %v303 = vmul.f32 %v302, 0.03125
  %v304 = vld [vmem:[%s6] sm:$0x1]
  %v305 = vmul.f32 %v304, 0.03125
  %v306 = vmul.f32 %v303, %v303
  %v307 = vsub.f32 %v305, %v306
  %v308 = vmax.f32 %v307, 0.0
  %v309 = vadd.f32 %v308, 1e-05
  %v310 = vrsqrt.pop %v309
  %v311 = vld [vmem:[%s7] sm:$0x1]
  %v312 = vmul.f32 %v310, %v311
  %v314 = vlaneseq
  %v315 = vshrl.u32 %v314, 7
  %v316 = vsub.s32 0, %v315
  %v317 = vrot.slane %v303, %v316
  %v319 = vsub.f32 %v298, %v317
  %v320 = vsub.f32 %v299, %v317
  %v321 = vsub.f32 %v300, %v317
  %v322 = vsub.f32 %v301, %v317
  %v324 = vlaneseq
  %v325 = vshrl.u32 %v324, 7
  %v326 = vsub.s32 0, %v325
  %v327 = vrot.slane %v312, %v326
  %v329 = vmul.f32 %v319, %v327
  %v330 = vmul.f32 %v320, %v327
  %v331 = vmul.f32 %v321, %v327
  %v332 = vmul.f32 %v322, %v327
  %v333 = vld [vmem:[%s8] sm:$0x1]
  %v335 = vlaneseq
  %v336 = vshrl.u32 %v335, 7
  %v337 = vsub.s32 0, %v336
  %v338 = vrot.slane %v333, %v337
  %v340 = vadd.f32 %v329, %v338
  %v341 = vadd.f32 %v330, %v338
  %v342 = vadd.f32 %v331, %v338
  %v343 = vadd.f32 %v332, %v338
  %v344 = vpack.c.bf16 %v341, %v340
  %v345 = vpack.c.bf16 %v343, %v342
  %v348 = vunpack.c.l.b16 %v344
  %v349 = vunpack.c.h.b16 %v344
  %v350 = vunpack.c.l.b16 %v345
  %v351 = vunpack.c.h.b16 %v345
  %v352 = vpack.c.b16 %v348, %v348
  %v353 = vpack.c.b16 %v349, %v349
  %v354 = vpack.c.b16 %v350, %v350
  %v355 = vpack.c.b16 %v351, %v351
  %vm360 = vcmask 519168
  %361 = vst.msk [vmem:[%s9] sm:$0xf] %vm360, %v352
  %362 = vst.msk [vmem:[%s9 + $0x4] sm:$0xf] %vm360, %v353
  %363 = vst.msk [vmem:[%s9 + $0x8] sm:$0xf] %vm360, %v354
  %364 = vst.msk [vmem:[%s9 + $0xc] sm:$0xf] %vm360, %v355
  // Predicated region
  $region38: #{generator_forward.19} parent=0 // pred_check
    _
  $region39: #{generator_forward.19} parent=0 // pred_check_branch
    %366 = sbr.rel (0) target = $region41
  $region40: #{generator_forward.19} parent=0 // pred_region
    _
  $region41: #{generator_forward.19} parent=0 // pred_fallthru
    _
  // Predicated region
  $region42: #{generator_forward.19} parent=0 // pred_check
    _
  $region43: #{generator_forward.19} parent=0 // pred_check_branch
    %368 = sbr.rel (0) target = $region45
  $region44: #{generator_forward.19} parent=0 // pred_region
    _
  $region45: #{generator_forward.19} parent=0 // pred_fallthru
    _

// kernel: generator_forward.21
$region0: #{generator_forward.21}
  #allocation0 [shape = 'u32[]', space=smem, size = 0x4, offset = 0x4, fixed_abs, tag = 'smem constant byte address 0x4 - core index']
  #allocation1 [shape = 'u32[144,128]{1,0:T(1,128)}', space=vmem, size = 0x12000, scoped, tag = 'internal scratch']
  %s0 = inlined_call_operand.vmem [shape: bf16[128,64], index: 0, kind: input, shape index: {}]
  %s1 = inlined_call_operand.vmem [shape: bf16[128,64], index: 1, kind: input, shape index: {}]
  %s2 = inlined_call_operand.vmem [shape: bf16[64,32], index: 2, kind: input, shape index: {}]
  %s3 = inlined_call_operand.vmem [shape: bf16[64,32], index: 3, kind: input, shape index: {}]
  %s4 = inlined_call_operand.vmem [shape: f32[1,32], index: 4, kind: input, shape index: {}]
  %s5 = inlined_call_operand.vmem [shape: f32[1,32], index: 5, kind: input, shape index: {}]
  %s6 = inlined_call_operand.vmem [shape: f32[1,32], index: 6, kind: input, shape index: {}]
  %s7 = inlined_call_operand.vmem [shape: f32[1,32], index: 7, kind: input, shape index: {}]
  %s8 = inlined_call_operand.vmem [shape: f32[1,32], index: 8, kind: input, shape index: {}]
  %s9 = inlined_call_operand.vmem [shape: bf16[128,32], index: 9, kind: output, shape index: {}]
  %s10 = sld [smem:[#allocation0]]
  $region46: #{generator_forward.21} parent=0
    _
  %s12 = ssub.s32 1, %s10
  %s13 = scalar_select 0, %s12, %s10
  // Predicated region
  $region2: #{generator_forward.21} parent=0 // pred_check
    _
  $region3: #{generator_forward.21} parent=0 // pred_check_branch
    %15 = sbr.rel (0) target = $region5
  $region4: #{generator_forward.21} parent=0 // pred_region
    _
  $region5: #{generator_forward.21} parent=0 // pred_fallthru
    _
  // Predicated region
  $region6: #{generator_forward.21} parent=0 // pred_check
    _
  $region7: #{generator_forward.21} parent=0 // pred_check_branch
    %17 = sbr.rel (0) target = $region9
  $region8: #{generator_forward.21} parent=0 // pred_region
    _
  $region9: #{generator_forward.21} parent=0 // pred_fallthru
    _
  // Predicated region
  $region10: #{generator_forward.21} parent=0 // pred_check
    _
  $region11: #{generator_forward.21} parent=0 // pred_check_branch
    %19 = sbr.rel (0) target = $region13
  $region12: #{generator_forward.21} parent=0 // pred_region
    _
  $region13: #{generator_forward.21} parent=0 // pred_fallthru
    _
  // Predicated region
  $region14: #{generator_forward.21} parent=0 // pred_check
    _
  $region15: #{generator_forward.21} parent=0 // pred_check_branch
    %21 = sbr.rel (0) target = $region17
  $region16: #{generator_forward.21} parent=0 // pred_region
    _
  $region17: #{generator_forward.21} parent=0 // pred_fallthru
    _
  // Predicated region
  $region18: #{generator_forward.21} parent=0 // pred_check
    _
  $region19: #{generator_forward.21} parent=0 // pred_check_branch
    %23 = sbr.rel (0) target = $region21
  $region20: #{generator_forward.21} parent=0 // pred_region
    _
  $region21: #{generator_forward.21} parent=0 // pred_fallthru
    _
  // Predicated region
  $region22: #{generator_forward.21} parent=0 // pred_check
    _
  $region23: #{generator_forward.21} parent=0 // pred_check_branch
    %25 = sbr.rel (0) target = $region25
  $region24: #{generator_forward.21} parent=0 // pred_region
    _
  $region25: #{generator_forward.21} parent=0 // pred_fallthru
    _
  // Predicated region
  $region26: #{generator_forward.21} parent=0 // pred_check
    _
  $region27: #{generator_forward.21} parent=0 // pred_check_branch
    %27 = sbr.rel (0) target = $region29
  $region28: #{generator_forward.21} parent=0 // pred_region
    _
  $region29: #{generator_forward.21} parent=0 // pred_fallthru
    _
  // Predicated region
  $region30: #{generator_forward.21} parent=0 // pred_check
    _
  $region31: #{generator_forward.21} parent=0 // pred_check_branch
    %29 = sbr.rel (0) target = $region33
  $region32: #{generator_forward.21} parent=0 // pred_region
    _
  $region33: #{generator_forward.21} parent=0 // pred_fallthru
    _
  // Predicated region
  $region34: #{generator_forward.21} parent=0 // pred_check
    _
  $region35: #{generator_forward.21} parent=0 // pred_check_branch
    %31 = sbr.rel (0) target = $region37
  $region36: #{generator_forward.21} parent=0 // pred_region
    _
  $region37: #{generator_forward.21} parent=0 // pred_fallthru
    _
  %v33 = vld [vmem:[%s0] sm:$0xf]
  %v34 = vld [vmem:[%s0 + $0x4] sm:$0xf]
  %v35 = vld [vmem:[%s0 + $0x8] sm:$0xf]
  %v36 = vld [vmem:[%s0 + $0xc] sm:$0xf]
  %v37 = vld [vmem:[%s0 + $0x10] sm:$0xf]
  %v38 = vld [vmem:[%s0 + $0x14] sm:$0xf]
  %v39 = vld [vmem:[%s0 + $0x18] sm:$0xf]
  %v40 = vld [vmem:[%s0 + $0x1c] sm:$0xf]
  %v41 = vld [vmem:[%s0 + $0x20] sm:$0xf]
  %v42 = vld [vmem:[%s0 + $0x24] sm:$0xf]
  %v43 = vld [vmem:[%s0 + $0x28] sm:$0xf]
  %v44 = vld [vmem:[%s0 + $0x2c] sm:$0xf]
  %v45 = vld [vmem:[%s0 + $0x30] sm:$0xf]
  %v46 = vld [vmem:[%s0 + $0x34] sm:$0xf]
  %v47 = vld [vmem:[%s0 + $0x38] sm:$0xf]
  %v48 = vld [vmem:[%s0 + $0x3c] sm:$0xf]
  %v49 = vld [vmem:[%s2] sm:$0xf]
  %v50 = vld [vmem:[%s2 + $0x4] sm:$0xf]
  %v51 = vld [vmem:[%s2 + $0x8] sm:$0xf]
  %v52 = vld [vmem:[%s2 + $0xc] sm:$0xf]
  %v53 = vld [vmem:[%s2 + $0x10] sm:$0xf]
  %v54 = vld [vmem:[%s2 + $0x14] sm:$0xf]
  %v55 = vld [vmem:[%s2 + $0x18] sm:$0xf]
  %v56 = vld [vmem:[%s2 + $0x1c] sm:$0xf]
  %v57 = vld [vmem:[%s1] sm:$0xf]
  %v58 = vld [vmem:[%s1 + $0x4] sm:$0xf]
  %v59 = vld [vmem:[%s1 + $0x8] sm:$0xf]
  %v60 = vld [vmem:[%s1 + $0xc] sm:$0xf]
  %v61 = vld [vmem:[%s1 + $0x10] sm:$0xf]
  %v62 = vld [vmem:[%s1 + $0x14] sm:$0xf]
  %v63 = vld [vmem:[%s1 + $0x18] sm:$0xf]
  %v64 = vld [vmem:[%s1 + $0x1c] sm:$0xf]
  %v65 = vld [vmem:[%s1 + $0x20] sm:$0xf]
  %v66 = vld [vmem:[%s1 + $0x24] sm:$0xf]
  %v67 = vld [vmem:[%s1 + $0x28] sm:$0xf]
  %v68 = vld [vmem:[%s1 + $0x2c] sm:$0xf]
  %v69 = vld [vmem:[%s1 + $0x30] sm:$0xf]
  %v70 = vld [vmem:[%s1 + $0x34] sm:$0xf]
  %v71 = vld [vmem:[%s1 + $0x38] sm:$0xf]
  %v72 = vld [vmem:[%s1 + $0x3c] sm:$0xf]
  %v73 = vld [vmem:[%s3] sm:$0xf]
  %v74 = vld [vmem:[%s3 + $0x4] sm:$0xf]
  %v75 = vld [vmem:[%s3 + $0x8] sm:$0xf]
  %v76 = vld [vmem:[%s3 + $0xc] sm:$0xf]
  %v77 = vld [vmem:[%s3 + $0x10] sm:$0xf]
  %v78 = vld [vmem:[%s3 + $0x14] sm:$0xf]
  %v79 = vld [vmem:[%s3 + $0x18] sm:$0xf]
  %v80 = vld [vmem:[%s3 + $0x1c] sm:$0xf]
  %v97 = vunpack.c.l.b16 %v57
  %v98 = vunpack.c.l.b16 %v58
  %v99 = vunpack.c.l.b16 %v59
  %v100 = vunpack.c.l.b16 %v60
  %v101 = vunpack.c.l.b16 %v61
  %v102 = vunpack.c.l.b16 %v62
  %v103 = vunpack.c.l.b16 %v63
  %v104 = vunpack.c.l.b16 %v64
  %v105 = vunpack.c.l.b16 %v65
  %v106 = vunpack.c.l.b16 %v66
  %v107 = vunpack.c.l.b16 %v67
  %v108 = vunpack.c.l.b16 %v68
  %v109 = vunpack.c.l.b16 %v69
  %v110 = vunpack.c.l.b16 %v70
  %v111 = vunpack.c.l.b16 %v71
  %v112 = vunpack.c.l.b16 %v72
  %v113 = vpack.c.b16 %v98, %v97
  %v114 = vpack.c.b16 %v100, %v99
  %v115 = vpack.c.b16 %v102, %v101
  %v116 = vpack.c.b16 %v104, %v103
  %v117 = vpack.c.b16 %v106, %v105
  %v118 = vpack.c.b16 %v108, %v107
  %v119 = vpack.c.b16 %v110, %v109
  %v120 = vpack.c.b16 %v112, %v111
  %v129 = vunpack.c.l.b16 %v73
  %v130 = vunpack.c.l.b16 %v74
  %v131 = vunpack.c.l.b16 %v75
  %v132 = vunpack.c.l.b16 %v76
  %v133 = vunpack.c.l.b16 %v77
  %v134 = vunpack.c.l.b16 %v78
  %v135 = vunpack.c.l.b16 %v79
  %v136 = vunpack.c.l.b16 %v80
  %v137 = vpack.c.b16 %v130, %v129
  %v138 = vpack.c.b16 %v132, %v131
  %v139 = vpack.c.b16 %v134, %v133
  %v140 = vpack.c.b16 %v136, %v135
  %vm145 = vcmask 523264
  %v147 = vsel %vm145, %v113, 0
  %v150 = vsel %vm145, %v114, 0
  %v153 = vsel %vm145, %v115, 0
  %v156 = vsel %vm145, %v116, 0
  %v159 = vsel %vm145, %v117, 0
  %v162 = vsel %vm145, %v118, 0
  %v165 = vsel %vm145, %v119, 0
  %v168 = vsel %vm145, %v120, 0
  %170 = vmatprep.subr.bf16.mxu0 0
  %171 = vmatpush1.bf16.msra.mxu0 %v137
  %172 = vmatprep.subr.bf16.mxu0 0
  %173 = vmatpush1.bf16.msra.mxu0 %v138
  %174 = vmatprep.subr.bf16.mxu0 0
  %175 = vmatpush1.bf16.msra.mxu0 %v139
  %176 = vmatprep.subr.bf16.mxu0 0
  %177 = vmatpush1.bf16.msra.mxu0 %v140
  %178 = vmatprep.subr.bf16.mxu0 0
  %179 = vmatpush1.bf16.msra.mxu0 0
  %180 = vmatprep.subr.bf16.mxu0 0
  %181 = vmatpush1.bf16.msra.mxu0 0
  %182 = vmatprep.subr.bf16.mxu0 0
  %183 = vmatpush1.bf16.msra.mxu0 0
  %184 = vmatprep.subr.bf16.mxu0 0
  %185 = vmatpush1.bf16.msra.mxu0 0
  %186 = vmatprep.subr.bf16.mxu0 0
  %187 = vmatpush1.bf16.msra.mxu0 0
  %188 = vmatprep.subr.bf16.mxu0 0
  %189 = vmatpush1.bf16.msra.mxu0 0
  %190 = vmatprep.subr.bf16.mxu0 0
  %191 = vmatpush1.bf16.msra.mxu0 0
  %192 = vmatprep.subr.bf16.mxu0 0
  %193 = vmatpush1.bf16.msra.mxu0 0
  %194 = vmatprep.subr.bf16.mxu0 0
  %195 = vmatpush1.bf16.msra.mxu0 0
  %196 = vmatprep.subr.bf16.mxu0 0
  %197 = vmatpush1.bf16.msra.mxu0 0
  %198 = vmatprep.subr.bf16.mxu0 0
  %199 = vmatpush1.bf16.msra.mxu0 0
  %200 = vmatprep.subr.bf16.mxu0 0
  %201 = vmatpush1.bf16.msra.mxu0 0
  %202 = vmatprep.mubr.bf16.mxu0 0
  %203 = vmatmul.mubr.bf16.gmra.mrb[0].mxu0 %v147
  %v204 = vpop.f32.mrb[0].mxu0
  %v205 = vadd.f32 0.0, %v204
  %v206 = vpop.f32.mrb[0].mxu0
  %v207 = vpop.f32.mrb[0].mxu0
  %v208 = vadd.f32 0.0, %v207
  %v209 = vpop.f32.mrb[0].mxu0
  %210 = vmatprep.mubr.bf16.mxu0 0
  %211 = vmatmul.mubr.bf16.gmra.mrb[0].mxu0 %v150
  %v212 = vpop.f32.mrb[0].mxu0
  %v213 = vadd.f32 0.0, %v212
  %v214 = vpop.f32.mrb[0].mxu0
  %v215 = vpop.f32.mrb[0].mxu0
  %v216 = vadd.f32 0.0, %v215
  %v217 = vpop.f32.mrb[0].mxu0
  %218 = vmatprep.mubr.bf16.mxu0 0
  %219 = vmatmul.mubr.bf16.gmra.mrb[0].mxu0 %v153
  %v220 = vpop.f32.mrb[0].mxu0
  %v221 = vadd.f32 0.0, %v220
  %v222 = vpop.f32.mrb[0].mxu0
  %v223 = vpop.f32.mrb[0].mxu0
  %v224 = vadd.f32 0.0, %v223
  %v225 = vpop.f32.mrb[0].mxu0
  %226 = vmatprep.mubr.bf16.mxu0 0
  %227 = vmatmul.mubr.bf16.gmra.mrb[0].mxu0 %v156
  %v228 = vpop.f32.mrb[0].mxu0
  %v229 = vadd.f32 0.0, %v228
  %v230 = vpop.f32.mrb[0].mxu0
  %v231 = vpop.f32.mrb[0].mxu0
  %v232 = vadd.f32 0.0, %v231
  %v233 = vpop.f32.mrb[0].mxu0
  %234 = vmatprep.mubr.bf16.mxu0 0
  %235 = vmatmul.mubr.bf16.gmra.mrb[0].mxu0 %v159
  %v236 = vpop.f32.mrb[0].mxu0
  %v237 = vadd.f32 0.0, %v236
  %v238 = vpop.f32.mrb[0].mxu0
  %v239 = vpop.f32.mrb[0].mxu0
  %v240 = vadd.f32 0.0, %v239
  %v241 = vpop.f32.mrb[0].mxu0
  %242 = vmatprep.mubr.bf16.mxu0 0
  %243 = vmatmul.mubr.bf16.gmra.mrb[0].mxu0 %v162
  %v244 = vpop.f32.mrb[0].mxu0
  %v245 = vadd.f32 0.0, %v244
  %v246 = vpop.f32.mrb[0].mxu0
  %v247 = vpop.f32.mrb[0].mxu0
  %v248 = vadd.f32 0.0, %v247
  %v249 = vpop.f32.mrb[0].mxu0
  %250 = vmatprep.mubr.bf16.mxu0 0
  %251 = vmatmul.mubr.bf16.gmra.mrb[0].mxu0 %v165
  %v252 = vpop.f32.mrb[0].mxu0
  %v253 = vadd.f32 0.0, %v252
  %v254 = vpop.f32.mrb[0].mxu0
  %v255 = vpop.f32.mrb[0].mxu0
  %v256 = vadd.f32 0.0, %v255
  %v257 = vpop.f32.mrb[0].mxu0
  %258 = vmatprep.mubr.bf16.mxu0 0
  %259 = vmatmul.mubr.bf16.gmra.mrb[0].mxu0 %v168
  %v260 = vpop.f32.mrb[0].mxu0
  %v261 = vadd.f32 0.0, %v260
  %v262 = vpop.f32.mrb[0].mxu0
  %v263 = vpop.f32.mrb[0].mxu0
  %v264 = vadd.f32 0.0, %v263
  %v265 = vpop.f32.mrb[0].mxu0
  %266 = vdwg.mxu0
  %v283 = vunpack.c.l.b16 %v33
  %v284 = vunpack.c.l.b16 %v34
  %v285 = vunpack.c.l.b16 %v35
  %v286 = vunpack.c.l.b16 %v36
  %v287 = vunpack.c.l.b16 %v37
  %v288 = vunpack.c.l.b16 %v38
  %v289 = vunpack.c.l.b16 %v39
  %v290 = vunpack.c.l.b16 %v40
  %v291 = vunpack.c.l.b16 %v41
  %v292 = vunpack.c.l.b16 %v42
  %v293 = vunpack.c.l.b16 %v43
  %v294 = vunpack.c.l.b16 %v44
  %v295 = vunpack.c.l.b16 %v45
  %v296 = vunpack.c.l.b16 %v46
  %v297 = vunpack.c.l.b16 %v47
  %v298 = vunpack.c.l.b16 %v48
  %v299 = vpack.c.b16 %v284, %v283
  %v300 = vpack.c.b16 %v286, %v285
  %v301 = vpack.c.b16 %v288, %v287
  %v302 = vpack.c.b16 %v290, %v289
  %v303 = vpack.c.b16 %v292, %v291
  %v304 = vpack.c.b16 %v294, %v293
  %v305 = vpack.c.b16 %v296, %v295
  %v306 = vpack.c.b16 %v298, %v297
  %v315 = vunpack.c.l.b16 %v49
  %v316 = vunpack.c.l.b16 %v50
  %v317 = vunpack.c.l.b16 %v51
  %v318 = vunpack.c.l.b16 %v52
  %v319 = vunpack.c.l.b16 %v53
  %v320 = vunpack.c.l.b16 %v54
  %v321 = vunpack.c.l.b16 %v55
  %v322 = vunpack.c.l.b16 %v56
  %v323 = vpack.c.b16 %v316, %v315
  %v324 = vpack.c.b16 %v318, %v317
  %v325 = vpack.c.b16 %v320, %v319
  %v326 = vpack.c.b16 %v322, %v321
  %v332 = vsel %vm145, %v299, 0
  %v335 = vsel %vm145, %v300, 0
  %v338 = vsel %vm145, %v301, 0
  %v341 = vsel %vm145, %v302, 0
  %v344 = vsel %vm145, %v303, 0
  %v347 = vsel %vm145, %v304, 0
  %v350 = vsel %vm145, %v305, 0
  %v353 = vsel %vm145, %v306, 0
  %355 = vmatprep.subr.bf16.mxu0 0
  %356 = vmatpush1.bf16.msra.mxu0 %v323
  %357 = vmatprep.subr.bf16.mxu0 0
  %358 = vmatpush1.bf16.msra.mxu0 %v324
  %359 = vmatprep.subr.bf16.mxu0 0
  %360 = vmatpush1.bf16.msra.mxu0 %v325
  %361 = vmatprep.subr.bf16.mxu0 0
  %362 = vmatpush1.bf16.msra.mxu0 %v326
  %363 = vmatprep.subr.bf16.mxu0 0
  %364 = vmatpush1.bf16.msra.mxu0 0
  %365 = vmatprep.subr.bf16.mxu0 0
  %366 = vmatpush1.bf16.msra.mxu0 0
  %367 = vmatprep.subr.bf16.mxu0 0
  %368 = vmatpush1.bf16.msra.mxu0 0
  %369 = vmatprep.subr.bf16.mxu0 0
  %370 = vmatpush1.bf16.msra.mxu0 0
  %371 = vmatprep.subr.bf16.mxu0 0
  %372 = vmatpush1.bf16.msra.mxu0 0
  %373 = vmatprep.subr.bf16.mxu0 0
  %374 = vmatpush1.bf16.msra.mxu0 0
  %375 = vmatprep.subr.bf16.mxu0 0
  %376 = vmatpush1.bf16.msra.mxu0 0
  %377 = vmatprep.subr.bf16.mxu0 0
  %378 = vmatpush1.bf16.msra.mxu0 0
  %379 = vmatprep.subr.bf16.mxu0 0
  %380 = vmatpush1.bf16.msra.mxu0 0
  %381 = vmatprep.subr.bf16.mxu0 0
  %382 = vmatpush1.bf16.msra.mxu0 0
  %383 = vmatprep.subr.bf16.mxu0 0
  %384 = vmatpush1.bf16.msra.mxu0 0
  %385 = vmatprep.subr.bf16.mxu0 0
  %386 = vmatpush1.bf16.msra.mxu0 0
  %387 = vmatprep.mubr.bf16.mxu0 0
  %388 = vmatmul.mubr.bf16.gmra.mrb[0].mxu0 %v332
  %v389 = vpop.f32.mrb[0].mxu0
  %v390 = vadd.f32 %v205, %v389
  %v391 = vpop.f32.mrb[0].mxu0
  %v392 = vpop.f32.mrb[0].mxu0
  %v393 = vadd.f32 %v208, %v392
  %v394 = vpop.f32.mrb[0].mxu0
  %395 = vmatprep.mubr.bf16.mxu0 0
  %396 = vmatmul.mubr.bf16.gmra.mrb[0].mxu0 %v335
  %v397 = vpop.f32.mrb[0].mxu0
  %v398 = vadd.f32 %v213, %v397
  %v399 = vpop.f32.mrb[0].mxu0
  %v400 = vpop.f32.mrb[0].mxu0
  %v401 = vadd.f32 %v216, %v400
  %v402 = vpop.f32.mrb[0].mxu0
  %403 = vmatprep.mubr.bf16.mxu0 0
  %404 = vmatmul.mubr.bf16.gmra.mrb[0].mxu0 %v338
  %v405 = vpop.f32.mrb[0].mxu0
  %v406 = vadd.f32 %v221, %v405
  %v407 = vpop.f32.mrb[0].mxu0
  %v408 = vpop.f32.mrb[0].mxu0
  %v409 = vadd.f32 %v224, %v408
  %v410 = vpop.f32.mrb[0].mxu0
  %411 = vmatprep.mubr.bf16.mxu0 0
  %412 = vmatmul.mubr.bf16.gmra.mrb[0].mxu0 %v341
  %v413 = vpop.f32.mrb[0].mxu0
  %v414 = vadd.f32 %v229, %v413
  %v415 = vpop.f32.mrb[0].mxu0
  %v416 = vpop.f32.mrb[0].mxu0
  %v417 = vadd.f32 %v232, %v416
  %v418 = vpop.f32.mrb[0].mxu0
  %419 = vmatprep.mubr.bf16.mxu0 0
  %420 = vmatmul.mubr.bf16.gmra.mrb[0].mxu0 %v344
  %v421 = vpop.f32.mrb[0].mxu0
  %v422 = vadd.f32 %v237, %v421
  %v423 = vpop.f32.mrb[0].mxu0
  %v424 = vpop.f32.mrb[0].mxu0
  %v425 = vadd.f32 %v240, %v424
  %v426 = vpop.f32.mrb[0].mxu0
  %427 = vmatprep.mubr.bf16.mxu0 0
  %428 = vmatmul.mubr.bf16.gmra.mrb[0].mxu0 %v347
  %v429 = vpop.f32.mrb[0].mxu0
  %v430 = vadd.f32 %v245, %v429
  %v431 = vpop.f32.mrb[0].mxu0
  %v432 = vpop.f32.mrb[0].mxu0
  %v433 = vadd.f32 %v248, %v432
  %v434 = vpop.f32.mrb[0].mxu0
  %435 = vmatprep.mubr.bf16.mxu0 0
  %436 = vmatmul.mubr.bf16.gmra.mrb[0].mxu0 %v350
  %v437 = vpop.f32.mrb[0].mxu0
  %v438 = vadd.f32 %v253, %v437
  %v439 = vpop.f32.mrb[0].mxu0
  %v440 = vpop.f32.mrb[0].mxu0
  %v441 = vadd.f32 %v256, %v440
  %v442 = vpop.f32.mrb[0].mxu0
  %443 = vmatprep.mubr.bf16.mxu0 0
  %444 = vmatmul.mubr.bf16.gmra.mrb[0].mxu0 %v353
  %v445 = vpop.f32.mrb[0].mxu0
  %v446 = vadd.f32 %v261, %v445
  %v447 = vpop.f32.mrb[0].mxu0
  %v448 = vpop.f32.mrb[0].mxu0
  %v449 = vadd.f32 %v264, %v448
  %v450 = vpop.f32.mrb[0].mxu0
  %451 = vdwg.mxu0
  %v452 = vld [vmem:[%s4] sm:$0x1]
  %v454 = vlaneseq
  %v455 = vshrl.u32 %v454, 7
  %v456 = vsub.s32 0, %v455
  %v457 = vrot.slane %v452, %v456
  %v459 = vadd.f32 %v390, %v457
  %v460 = vadd.f32 %v393, %v457
  %v461 = vadd.f32 %v398, %v457
  %v462 = vadd.f32 %v401, %v457
  %v463 = vadd.f32 %v406, %v457
  %v464 = vadd.f32 %v409, %v457
  %v465 = vadd.f32 %v414, %v457
  %v466 = vadd.f32 %v417, %v457
  %v467 = vadd.f32 %v422, %v457
  %v468 = vadd.f32 %v425, %v457
  %v469 = vadd.f32 %v430, %v457
  %v470 = vadd.f32 %v433, %v457
  %v471 = vadd.f32 %v438, %v457
  %v472 = vadd.f32 %v441, %v457
  %v473 = vadd.f32 %v446, %v457
  %v474 = vadd.f32 %v449, %v457
  %v475 = vld [vmem:[%s5] sm:$0x1]
  %v476 = vmul.f32 %v475, 0.0078125
  %v477 = vld [vmem:[%s6] sm:$0x1]
  %v478 = vmul.f32 %v477, 0.0078125
  %v479 = vmul.f32 %v476, %v476
  %v480 = vsub.f32 %v478, %v479
  %v481 = vmax.f32 %v480, 0.0
  %v482 = vadd.f32 %v481, 1e-05
  %v483 = vrsqrt.pop %v482
  %v484 = vld [vmem:[%s7] sm:$0x1]
  %v485 = vmul.f32 %v483, %v484
  %v487 = vlaneseq
  %v488 = vshrl.u32 %v487, 7
  %v489 = vsub.s32 0, %v488
  %v490 = vrot.slane %v476, %v489
  %v492 = vsub.f32 %v459, %v490
  %v493 = vsub.f32 %v460, %v490
  %v494 = vsub.f32 %v461, %v490
  %v495 = vsub.f32 %v462, %v490
  %v496 = vsub.f32 %v463, %v490
  %v497 = vsub.f32 %v464, %v490
  %v498 = vsub.f32 %v465, %v490
  %v499 = vsub.f32 %v466, %v490
  %v500 = vsub.f32 %v467, %v490
  %v501 = vsub.f32 %v468, %v490
  %v502 = vsub.f32 %v469, %v490
  %v503 = vsub.f32 %v470, %v490
  %v504 = vsub.f32 %v471, %v490
  %v505 = vsub.f32 %v472, %v490
  %v506 = vsub.f32 %v473, %v490
  %v507 = vsub.f32 %v474, %v490
  %v509 = vlaneseq
  %v510 = vshrl.u32 %v509, 7
  %v511 = vsub.s32 0, %v510
  %v512 = vrot.slane %v485, %v511
  %v514 = vmul.f32 %v492, %v512
  %v515 = vmul.f32 %v493, %v512
  %v516 = vmul.f32 %v494, %v512
  %v517 = vmul.f32 %v495, %v512
  %v518 = vmul.f32 %v496, %v512
  %v519 = vmul.f32 %v497, %v512
  %v520 = vmul.f32 %v498, %v512
  %v521 = vmul.f32 %v499, %v512
  %v522 = vmul.f32 %v500, %v512
  %v523 = vmul.f32 %v501, %v512
  %v524 = vmul.f32 %v502, %v512
  %v525 = vmul.f32 %v503, %v512
  %v526 = vmul.f32 %v504, %v512
  %v527 = vmul.f32 %v505, %v512
  %v528 = vmul.f32 %v506, %v512
  %v529 = vmul.f32 %v507, %v512
  %v530 = vld [vmem:[%s8] sm:$0x1]
  %v532 = vlaneseq
  %v533 = vshrl.u32 %v532, 7
  %v534 = vsub.s32 0, %v533
  %v535 = vrot.slane %v530, %v534
  %v537 = vadd.f32 %v514, %v535
  %v538 = vadd.f32 %v515, %v535
  %v539 = vadd.f32 %v516, %v535
  %v540 = vadd.f32 %v517, %v535
  %v541 = vadd.f32 %v518, %v535
  %v542 = vadd.f32 %v519, %v535
  %v543 = vadd.f32 %v520, %v535
  %v544 = vadd.f32 %v521, %v535
  %v545 = vadd.f32 %v522, %v535
  %v546 = vadd.f32 %v523, %v535
  %v547 = vadd.f32 %v524, %v535
  %v548 = vadd.f32 %v525, %v535
  %v549 = vadd.f32 %v526, %v535
  %v550 = vadd.f32 %v527, %v535
  %v551 = vadd.f32 %v528, %v535
  %v552 = vadd.f32 %v529, %v535
  %v553 = vpack.c.bf16 %v538, %v537
  %v554 = vpack.c.bf16 %v540, %v539
  %v555 = vpack.c.bf16 %v542, %v541
  %v556 = vpack.c.bf16 %v544, %v543
  %v557 = vpack.c.bf16 %v546, %v545
  %v558 = vpack.c.bf16 %v548, %v547
  %v559 = vpack.c.bf16 %v550, %v549
  %v560 = vpack.c.bf16 %v552, %v551
  %v569 = vunpack.c.l.b16 %v553
  %v570 = vunpack.c.h.b16 %v553
  %v571 = vunpack.c.l.b16 %v554
  %v572 = vunpack.c.h.b16 %v554
  %v573 = vunpack.c.l.b16 %v555
  %v574 = vunpack.c.h.b16 %v555
  %v575 = vunpack.c.l.b16 %v556
  %v576 = vunpack.c.h.b16 %v556
  %v577 = vunpack.c.l.b16 %v557
  %v578 = vunpack.c.h.b16 %v557
  %v579 = vunpack.c.l.b16 %v558
  %v580 = vunpack.c.h.b16 %v558
  %v581 = vunpack.c.l.b16 %v559
  %v582 = vunpack.c.h.b16 %v559
  %v583 = vunpack.c.l.b16 %v560
  %v584 = vunpack.c.h.b16 %v560
  %v585 = vpack.c.b16 %v569, %v569
  %v586 = vpack.c.b16 %v570, %v570
  %v587 = vpack.c.b16 %v571, %v571
  %v588 = vpack.c.b16 %v572, %v572
  %v589 = vpack.c.b16 %v573, %v573
  %v590 = vpack.c.b16 %v574, %v574
  %v591 = vpack.c.b16 %v575, %v575
  %v592 = vpack.c.b16 %v576, %v576
  %v593 = vpack.c.b16 %v577, %v577
  %v594 = vpack.c.b16 %v578, %v578
  %v595 = vpack.c.b16 %v579, %v579
  %v596 = vpack.c.b16 %v580, %v580
  %v597 = vpack.c.b16 %v581, %v581
  %v598 = vpack.c.b16 %v582, %v582
  %v599 = vpack.c.b16 %v583, %v583
  %v600 = vpack.c.b16 %v584, %v584
  %vm617 = vcmask 257024
  %618 = vst.msk [vmem:[%s9] sm:$0xf] %vm617, %v585
  %619 = vst.msk [vmem:[%s9 + $0x4] sm:$0xf] %vm617, %v586
  %620 = vst.msk [vmem:[%s9 + $0x8] sm:$0xf] %vm617, %v587
  %621 = vst.msk [vmem:[%s9 + $0xc] sm:$0xf] %vm617, %v588
  %622 = vst.msk [vmem:[%s9 + $0x10] sm:$0xf] %vm617, %v589
  %623 = vst.msk [vmem:[%s9 + $0x14] sm:$0xf] %vm617, %v590
  %624 = vst.msk [vmem:[%s9 + $0x18] sm:$0xf] %vm617, %v591
  %625 = vst.msk [vmem:[%s9 + $0x1c] sm:$0xf] %vm617, %v592
  %626 = vst.msk [vmem:[%s9 + $0x20] sm:$0xf] %vm617, %v593
  %627 = vst.msk [vmem:[%s9 + $0x24] sm:$0xf] %vm617, %v594
  %628 = vst.msk [vmem:[%s9 + $0x28] sm:$0xf] %vm617, %v595
  %629 = vst.msk [vmem:[%s9 + $0x2c] sm:$0xf] %vm617, %v596
  %630 = vst.msk [vmem:[%s9 + $0x30] sm:$0xf] %vm617, %v597
  %631 = vst.msk [vmem:[%s9 + $0x34] sm:$0xf] %vm617, %v598
  %632 = vst.msk [vmem:[%s9 + $0x38] sm:$0xf] %vm617, %v599
  %633 = vst.msk [vmem:[%s9 + $0x3c] sm:$0xf] %vm617, %v600
  // Predicated region
  $region38: #{generator_forward.21} parent=0 // pred_check
    _
  $region39: #{generator_forward.21} parent=0 // pred_check_branch
    %635 = sbr.rel (0) target = $region41
  $region40: #{generator_forward.21} parent=0 // pred_region
    _
  $region41: #{generator_forward.21} parent=0 // pred_fallthru
    _
  // Predicated region
  $region42: #{generator_forward.21} parent=0 // pred_check
    _
  $region43: #{generator_forward.21} parent=0 // pred_check_branch
    %637 = sbr.rel (0) target = $region45
  $region44: #{generator_forward.21} parent=0 // pred_region
    _
  $region45: #{generator_forward.21} parent=0 // pred_fallthru
    _

// kernel: generator_forward.23
$region0: #{generator_forward.23}
  #allocation0 [shape = 'u32[]', space=smem, size = 0x4, offset = 0x4, fixed_abs, tag = 'smem constant byte address 0x4 - core index']
  #allocation1 [shape = 'u32[144,128]{1,0:T(1,128)}', space=vmem, size = 0x12000, scoped, tag = 'internal scratch']
  #allocation2 [shape = 'f32[1,1]{1,0:T(1,128)S(1)}', space=vmem, size = 0x200, scoped, tag = 'scoped memory for generator_forward.23']
  #allocation3 [shape = 'f32[1,1]{1,0:T(1,128)S(1)}', space=vmem, size = 0x200, scoped, tag = 'scoped memory for generator_forward.23']
  #allocation4 [shape = 'f32[1,1]{1,0:T(1,128)S(1)}', space=vmem, size = 0x200, scoped, tag = 'scoped memory for generator_forward.23']
  #allocation5 [shape = 'f32[1,1]{1,0:T(1,128)S(1)}', space=vmem, size = 0x200, scoped, tag = 'scoped memory for generator_forward.23']
  #allocation6 [shape = 'f32[1,1]{1,0:T(1,128)S(1)}', space=vmem, size = 0x200, scoped, tag = 'scoped memory for generator_forward.23']
  %s0 = inlined_call_operand.vmem [shape: bf16[512,32], index: 0, kind: input, shape index: {}]
  %s1 = inlined_call_operand.vmem [shape: bf16[512,32], index: 1, kind: input, shape index: {}]
  %s2 = inlined_call_operand.vmem [shape: bf16[32,1], index: 2, kind: input, shape index: {}]
  %s3 = inlined_call_operand.vmem [shape: bf16[32,1], index: 3, kind: input, shape index: {}]
  %s4 = inlined_call_operand.<no memory space> [shape: f32[1,1], index: 4, kind: input, shape index: {}]
  %s5 = inlined_call_operand.<no memory space> [shape: f32[1,1], index: 5, kind: input, shape index: {}]
  %s6 = inlined_call_operand.<no memory space> [shape: f32[1,1], index: 6, kind: input, shape index: {}]
  %s7 = inlined_call_operand.<no memory space> [shape: f32[1,1], index: 7, kind: input, shape index: {}]
  %s8 = inlined_call_operand.<no memory space> [shape: f32[1,1], index: 8, kind: input, shape index: {}]
  %s9 = inlined_call_operand.vmem [shape: bf16[512,1], index: 9, kind: output, shape index: {}]
  %s10 = sld [smem:[#allocation0]]
  $region46: #{generator_forward.23} parent=0
    _
  %s12 = ssub.s32 1, %s10
  %s13 = scalar_select 0, %s12, %s10
  %v14 = vstv %s4
  %15 = vst [vmem:[#allocation2] sm:$0x1] %v14
  %v16 = vstv %s5
  %17 = vst [vmem:[#allocation3] sm:$0x1] %v16
  %v18 = vstv %s6
  %19 = vst [vmem:[#allocation4] sm:$0x1] %v18
  %v20 = vstv %s7
  %21 = vst [vmem:[#allocation5] sm:$0x1] %v20
  %v22 = vstv %s8
  %23 = vst [vmem:[#allocation6] sm:$0x1] %v22
  // Predicated region
  $region2: #{generator_forward.23} parent=0 // pred_check
    _
  $region3: #{generator_forward.23} parent=0 // pred_check_branch
    %25 = sbr.rel (0) target = $region5
  $region4: #{generator_forward.23} parent=0 // pred_region
    _
  $region5: #{generator_forward.23} parent=0 // pred_fallthru
    _
  // Predicated region
  $region6: #{generator_forward.23} parent=0 // pred_check
    _
  $region7: #{generator_forward.23} parent=0 // pred_check_branch
    %27 = sbr.rel (0) target = $region9
  $region8: #{generator_forward.23} parent=0 // pred_region
    _
  $region9: #{generator_forward.23} parent=0 // pred_fallthru
    _
  // Predicated region
  $region10: #{generator_forward.23} parent=0 // pred_check
    _
  $region11: #{generator_forward.23} parent=0 // pred_check_branch
    %29 = sbr.rel (0) target = $region13
  $region12: #{generator_forward.23} parent=0 // pred_region
    _
  $region13: #{generator_forward.23} parent=0 // pred_fallthru
    _
  // Predicated region
  $region14: #{generator_forward.23} parent=0 // pred_check
    _
  $region15: #{generator_forward.23} parent=0 // pred_check_branch
    %31 = sbr.rel (0) target = $region17
  $region16: #{generator_forward.23} parent=0 // pred_region
    _
  $region17: #{generator_forward.23} parent=0 // pred_fallthru
    _
  // Predicated region
  $region18: #{generator_forward.23} parent=0 // pred_check
    _
  $region19: #{generator_forward.23} parent=0 // pred_check_branch
    %33 = sbr.rel (0) target = $region21
  $region20: #{generator_forward.23} parent=0 // pred_region
    _
  $region21: #{generator_forward.23} parent=0 // pred_fallthru
    _
  // Predicated region
  $region22: #{generator_forward.23} parent=0 // pred_check
    _
  $region23: #{generator_forward.23} parent=0 // pred_check_branch
    %35 = sbr.rel (0) target = $region25
  $region24: #{generator_forward.23} parent=0 // pred_region
    _
  $region25: #{generator_forward.23} parent=0 // pred_fallthru
    _
  // Predicated region
  $region26: #{generator_forward.23} parent=0 // pred_check
    _
  $region27: #{generator_forward.23} parent=0 // pred_check_branch
    %37 = sbr.rel (0) target = $region29
  $region28: #{generator_forward.23} parent=0 // pred_region
    _
  $region29: #{generator_forward.23} parent=0 // pred_fallthru
    _
  // Predicated region
  $region30: #{generator_forward.23} parent=0 // pred_check
    _
  $region31: #{generator_forward.23} parent=0 // pred_check_branch
    %39 = sbr.rel (0) target = $region33
  $region32: #{generator_forward.23} parent=0 // pred_region
    _
  $region33: #{generator_forward.23} parent=0 // pred_fallthru
    _
  // Predicated region
  $region34: #{generator_forward.23} parent=0 // pred_check
    _
  $region35: #{generator_forward.23} parent=0 // pred_check_branch
    %41 = sbr.rel (0) target = $region37
  $region36: #{generator_forward.23} parent=0 // pred_region
    _
  $region37: #{generator_forward.23} parent=0 // pred_fallthru
    _
  %v43 = vld [vmem:[%s0] sm:$0xf]
  %v44 = vld [vmem:[%s0 + $0x4] sm:$0xf]
  %v45 = vld [vmem:[%s0 + $0x8] sm:$0xf]
  %v46 = vld [vmem:[%s0 + $0xc] sm:$0xf]
  %v47 = vld [vmem:[%s0 + $0x10] sm:$0xf]
  %v48 = vld [vmem:[%s0 + $0x14] sm:$0xf]
  %v49 = vld [vmem:[%s0 + $0x18] sm:$0xf]
  %v50 = vld [vmem:[%s0 + $0x1c] sm:$0xf]
  %v51 = vld [vmem:[%s0 + $0x20] sm:$0xf]
  %v52 = vld [vmem:[%s0 + $0x24] sm:$0xf]
  %v53 = vld [vmem:[%s0 + $0x28] sm:$0xf]
  %v54 = vld [vmem:[%s0 + $0x2c] sm:$0xf]
  %v55 = vld [vmem:[%s0 + $0x30] sm:$0xf]
  %v56 = vld [vmem:[%s0 + $0x34] sm:$0xf]
  %v57 = vld [vmem:[%s0 + $0x38] sm:$0xf]
  %v58 = vld [vmem:[%s0 + $0x3c] sm:$0xf]
  %v59 = vld [vmem:[%s0 + $0x40] sm:$0xf]
  %v60 = vld [vmem:[%s0 + $0x44] sm:$0xf]
  %v61 = vld [vmem:[%s0 + $0x48] sm:$0xf]
  %v62 = vld [vmem:[%s0 + $0x4c] sm:$0xf]
  %v63 = vld [vmem:[%s0 + $0x50] sm:$0xf]
  %v64 = vld [vmem:[%s0 + $0x54] sm:$0xf]
  %v65 = vld [vmem:[%s0 + $0x58] sm:$0xf]
  %v66 = vld [vmem:[%s0 + $0x5c] sm:$0xf]
  %v67 = vld [vmem:[%s0 + $0x60] sm:$0xf]
  %v68 = vld [vmem:[%s0 + $0x64] sm:$0xf]
  %v69 = vld [vmem:[%s0 + $0x68] sm:$0xf]
  %v70 = vld [vmem:[%s0 + $0x6c] sm:$0xf]
  %v71 = vld [vmem:[%s0 + $0x70] sm:$0xf]
  %v72 = vld [vmem:[%s0 + $0x74] sm:$0xf]
  %v73 = vld [vmem:[%s0 + $0x78] sm:$0xf]
  %v74 = vld [vmem:[%s0 + $0x7c] sm:$0xf]
  %v75 = vld [vmem:[%s0 + $0x80] sm:$0xf]
  %v76 = vld [vmem:[%s0 + $0x84] sm:$0xf]
  %v77 = vld [vmem:[%s0 + $0x88] sm:$0xf]
  %v78 = vld [vmem:[%s0 + $0x8c] sm:$0xf]
  %v79 = vld [vmem:[%s0 + $0x90] sm:$0xf]
  %v80 = vld [vmem:[%s0 + $0x94] sm:$0xf]
  %v81 = vld [vmem:[%s0 + $0x98] sm:$0xf]
  %v82 = vld [vmem:[%s0 + $0x9c] sm:$0xf]
  %v83 = vld [vmem:[%s0 + $0xa0] sm:$0xf]
  %v84 = vld [vmem:[%s0 + $0xa4] sm:$0xf]
  %v85 = vld [vmem:[%s0 + $0xa8] sm:$0xf]
  %v86 = vld [vmem:[%s0 + $0xac] sm:$0xf]
  %v87 = vld [vmem:[%s0 + $0xb0] sm:$0xf]
  %v88 = vld [vmem:[%s0 + $0xb4] sm:$0xf]
  %v89 = vld [vmem:[%s0 + $0xb8] sm:$0xf]
  %v90 = vld [vmem:[%s0 + $0xbc] sm:$0xf]
  %v91 = vld [vmem:[%s0 + $0xc0] sm:$0xf]
  %v92 = vld [vmem:[%s0 + $0xc4] sm:$0xf]
  %v93 = vld [vmem:[%s0 + $0xc8] sm:$0xf]
  %v94 = vld [vmem:[%s0 + $0xcc] sm:$0xf]
  %v95 = vld [vmem:[%s0 + $0xd0] sm:$0xf]
  %v96 = vld [vmem:[%s0 + $0xd4] sm:$0xf]
  %v97 = vld [vmem:[%s0 + $0xd8] sm:$0xf]
  %v98 = vld [vmem:[%s0 + $0xdc] sm:$0xf]
  %v99 = vld [vmem:[%s0 + $0xe0] sm:$0xf]
  %v100 = vld [vmem:[%s0 + $0xe4] sm:$0xf]
  %v101 = vld [vmem:[%s0 + $0xe8] sm:$0xf]
  %v102 = vld [vmem:[%s0 + $0xec] sm:$0xf]
  %v103 = vld [vmem:[%s0 + $0xf0] sm:$0xf]
  %v104 = vld [vmem:[%s0 + $0xf4] sm:$0xf]
  %v105 = vld [vmem:[%s0 + $0xf8] sm:$0xf]
  %v106 = vld [vmem:[%s0 + $0xfc] sm:$0xf]
  %v107 = vld [vmem:[%s2] sm:$0xf]
  %v108 = vld [vmem:[%s2 + $0x4] sm:$0xf]
  %v109 = vld [vmem:[%s2 + $0x8] sm:$0xf]
  %v110 = vld [vmem:[%s2 + $0xc] sm:$0xf]
  %v111 = vld [vmem:[%s1] sm:$0xf]
  %v112 = vld [vmem:[%s1 + $0x4] sm:$0xf]
  %v113 = vld [vmem:[%s1 + $0x8] sm:$0xf]
  %v114 = vld [vmem:[%s1 + $0xc] sm:$0xf]
  %v115 = vld [vmem:[%s1 + $0x10] sm:$0xf]
  %v116 = vld [vmem:[%s1 + $0x14] sm:$0xf]
  %v117 = vld [vmem:[%s1 + $0x18] sm:$0xf]
  %v118 = vld [vmem:[%s1 + $0x1c] sm:$0xf]
  %v119 = vld [vmem:[%s1 + $0x20] sm:$0xf]
  %v120 = vld [vmem:[%s1 + $0x24] sm:$0xf]
  %v121 = vld [vmem:[%s1 + $0x28] sm:$0xf]
  %v122 = vld [vmem:[%s1 + $0x2c] sm:$0xf]
  %v123 = vld [vmem:[%s1 + $0x30] sm:$0xf]
  %v124 = vld [vmem:[%s1 + $0x34] sm:$0xf]
  %v125 = vld [vmem:[%s1 + $0x38] sm:$0xf]
  %v126 = vld [vmem:[%s1 + $0x3c] sm:$0xf]
  %v127 = vld [vmem:[%s1 + $0x40] sm:$0xf]
  %v128 = vld [vmem:[%s1 + $0x44] sm:$0xf]
  %v129 = vld [vmem:[%s1 + $0x48] sm:$0xf]
  %v130 = vld [vmem:[%s1 + $0x4c] sm:$0xf]
  %v131 = vld [vmem:[%s1 + $0x50] sm:$0xf]
  %v132 = vld [vmem:[%s1 + $0x54] sm:$0xf]
  %v133 = vld [vmem:[%s1 + $0x58] sm:$0xf]
  %v134 = vld [vmem:[%s1 + $0x5c] sm:$0xf]
  %v135 = vld [vmem:[%s1 + $0x60] sm:$0xf]
  %v136 = vld [vmem:[%s1 + $0x64] sm:$0xf]
  %v137 = vld [vmem:[%s1 + $0x68] sm:$0xf]
  %v138 = vld [vmem:[%s1 + $0x6c] sm:$0xf]
  %v139 = vld [vmem:[%s1 + $0x70] sm:$0xf]
  %v140 = vld [vmem:[%s1 + $0x74] sm:$0xf]
  %v141 = vld [vmem:[%s1 + $0x78] sm:$0xf]
  %v142 = vld [vmem:[%s1 + $0x7c] sm:$0xf]
  %v143 = vld [vmem:[%s1 + $0x80] sm:$0xf]
  %v144 = vld [vmem:[%s1 + $0x84] sm:$0xf]
  %v145 = vld [vmem:[%s1 + $0x88] sm:$0xf]
  %v146 = vld [vmem:[%s1 + $0x8c] sm:$0xf]
  %v147 = vld [vmem:[%s1 + $0x90] sm:$0xf]
  %v148 = vld [vmem:[%s1 + $0x94] sm:$0xf]
  %v149 = vld [vmem:[%s1 + $0x98] sm:$0xf]
  %v150 = vld [vmem:[%s1 + $0x9c] sm:$0xf]
  %v151 = vld [vmem:[%s1 + $0xa0] sm:$0xf]
  %v152 = vld [vmem:[%s1 + $0xa4] sm:$0xf]
  %v153 = vld [vmem:[%s1 + $0xa8] sm:$0xf]
  %v154 = vld [vmem:[%s1 + $0xac] sm:$0xf]
  %v155 = vld [vmem:[%s1 + $0xb0] sm:$0xf]
  %v156 = vld [vmem:[%s1 + $0xb4] sm:$0xf]
  %v157 = vld [vmem:[%s1 + $0xb8] sm:$0xf]
  %v158 = vld [vmem:[%s1 + $0xbc] sm:$0xf]
  %v159 = vld [vmem:[%s1 + $0xc0] sm:$0xf]
  %v160 = vld [vmem:[%s1 + $0xc4] sm:$0xf]
  %v161 = vld [vmem:[%s1 + $0xc8] sm:$0xf]
  %v162 = vld [vmem:[%s1 + $0xcc] sm:$0xf]
  %v163 = vld [vmem:[%s1 + $0xd0] sm:$0xf]
  %v164 = vld [vmem:[%s1 + $0xd4] sm:$0xf]
  %v165 = vld [vmem:[%s1 + $0xd8] sm:$0xf]
  %v166 = vld [vmem:[%s1 + $0xdc] sm:$0xf]
  %v167 = vld [vmem:[%s1 + $0xe0] sm:$0xf]
  %v168 = vld [vmem:[%s1 + $0xe4] sm:$0xf]
  %v169 = vld [vmem:[%s1 + $0xe8] sm:$0xf]
  %v170 = vld [vmem:[%s1 + $0xec] sm:$0xf]
  %v171 = vld [vmem:[%s1 + $0xf0] sm:$0xf]
  %v172 = vld [vmem:[%s1 + $0xf4] sm:$0xf]
  %v173 = vld [vmem:[%s1 + $0xf8] sm:$0xf]
  %v174 = vld [vmem:[%s1 + $0xfc] sm:$0xf]
  %v175 = vld [vmem:[%s3] sm:$0xf]
  %v176 = vld [vmem:[%s3 + $0x4] sm:$0xf]
  %v177 = vld [vmem:[%s3 + $0x8] sm:$0xf]
  %v178 = vld [vmem:[%s3 + $0xc] sm:$0xf]
  %v243 = vunpack.c.l.b16 %v111
  %v244 = vunpack.c.l.b16 %v112
  %v245 = vunpack.c.l.b16 %v113
  %v246 = vunpack.c.l.b16 %v114
  %v247 = vunpack.c.l.b16 %v115
  %v248 = vunpack.c.l.b16 %v116
  %v249 = vunpack.c.l.b16 %v117
  %v250 = vunpack.c.l.b16 %v118
  %v251 = vunpack.c.l.b16 %v119
  %v252 = vunpack.c.l.b16 %v120
  %v253 = vunpack.c.l.b16 %v121
  %v254 = vunpack.c.l.b16 %v122
  %v255 = vunpack.c.l.b16 %v123
  %v256 = vunpack.c.l.b16 %v124
  %v257 = vunpack.c.l.b16 %v125
  %v258 = vunpack.c.l.b16 %v126
  %v259 = vunpack.c.l.b16 %v127
  %v260 = vunpack.c.l.b16 %v128
  %v261 = vunpack.c.l.b16 %v129
  %v262 = vunpack.c.l.b16 %v130
  %v263 = vunpack.c.l.b16 %v131
  %v264 = vunpack.c.l.b16 %v132
  %v265 = vunpack.c.l.b16 %v133
  %v266 = vunpack.c.l.b16 %v134
  %v267 = vunpack.c.l.b16 %v135
  %v268 = vunpack.c.l.b16 %v136
  %v269 = vunpack.c.l.b16 %v137
  %v270 = vunpack.c.l.b16 %v138
  %v271 = vunpack.c.l.b16 %v139
  %v272 = vunpack.c.l.b16 %v140
  %v273 = vunpack.c.l.b16 %v141
  %v274 = vunpack.c.l.b16 %v142
  %v275 = vunpack.c.l.b16 %v143
  %v276 = vunpack.c.l.b16 %v144
  %v277 = vunpack.c.l.b16 %v145
  %v278 = vunpack.c.l.b16 %v146
  %v279 = vunpack.c.l.b16 %v147
  %v280 = vunpack.c.l.b16 %v148
  %v281 = vunpack.c.l.b16 %v149
  %v282 = vunpack.c.l.b16 %v150
  %v283 = vunpack.c.l.b16 %v151
  %v284 = vunpack.c.l.b16 %v152
  %v285 = vunpack.c.l.b16 %v153
  %v286 = vunpack.c.l.b16 %v154
  %v287 = vunpack.c.l.b16 %v155
  %v288 = vunpack.c.l.b16 %v156
  %v289 = vunpack.c.l.b16 %v157
  %v290 = vunpack.c.l.b16 %v158
  %v291 = vunpack.c.l.b16 %v159
  %v292 = vunpack.c.l.b16 %v160
  %v293 = vunpack.c.l.b16 %v161
  %v294 = vunpack.c.l.b16 %v162
  %v295 = vunpack.c.l.b16 %v163
  %v296 = vunpack.c.l.b16 %v164
  %v297 = vunpack.c.l.b16 %v165
  %v298 = vunpack.c.l.b16 %v166
  %v299 = vunpack.c.l.b16 %v167
  %v300 = vunpack.c.l.b16 %v168
  %v301 = vunpack.c.l.b16 %v169
  %v302 = vunpack.c.l.b16 %v170
  %v303 = vunpack.c.l.b16 %v171
  %v304 = vunpack.c.l.b16 %v172
  %v305 = vunpack.c.l.b16 %v173
  %v306 = vunpack.c.l.b16 %v174
  %v307 = vpack.c.b16 %v244, %v243
  %v308 = vpack.c.b16 %v246, %v245
  %v309 = vpack.c.b16 %v248, %v247
  %v310 = vpack.c.b16 %v250, %v249
  %v311 = vpack.c.b16 %v252, %v251
  %v312 = vpack.c.b16 %v254, %v253
  %v313 = vpack.c.b16 %v256, %v255
  %v314 = vpack.c.b16 %v258, %v257
  %v315 = vpack.c.b16 %v260, %v259
  %v316 = vpack.c.b16 %v262, %v261
  %v317 = vpack.c.b16 %v264, %v263
  %v318 = vpack.c.b16 %v266, %v265
  %v319 = vpack.c.b16 %v268, %v267
  %v320 = vpack.c.b16 %v270, %v269
  %v321 = vpack.c.b16 %v272, %v271
  %v322 = vpack.c.b16 %v274, %v273
  %v323 = vpack.c.b16 %v276, %v275
  %v324 = vpack.c.b16 %v278, %v277
  %v325 = vpack.c.b16 %v280, %v279
  %v326 = vpack.c.b16 %v282, %v281
  %v327 = vpack.c.b16 %v284, %v283
  %v328 = vpack.c.b16 %v286, %v285
  %v329 = vpack.c.b16 %v288, %v287
  %v330 = vpack.c.b16 %v290, %v289
  %v331 = vpack.c.b16 %v292, %v291
  %v332 = vpack.c.b16 %v294, %v293
  %v333 = vpack.c.b16 %v296, %v295
  %v334 = vpack.c.b16 %v298, %v297
  %v335 = vpack.c.b16 %v300, %v299
  %v336 = vpack.c.b16 %v302, %v301
  %v337 = vpack.c.b16 %v304, %v303
  %v338 = vpack.c.b16 %v306, %v305
  %v343 = vunpack.c.l.b16 %v175
  %v344 = vunpack.c.l.b16 %v176
  %v345 = vunpack.c.l.b16 %v177
  %v346 = vunpack.c.l.b16 %v178
  %v347 = vpack.c.b16 %v344, %v343
  %v348 = vpack.c.b16 %v346, %v345
  %vm351 = vcmask 261120
  %v353 = vsel %vm351, %v307, 0
  %v356 = vsel %vm351, %v308, 0
  %v359 = vsel %vm351, %v309, 0
  %v362 = vsel %vm351, %v310, 0
  %v365 = vsel %vm351, %v311, 0
  %v368 = vsel %vm351, %v312, 0
  %v371 = vsel %vm351, %v313, 0
  %v374 = vsel %vm351, %v314, 0
  %v377 = vsel %vm351, %v315, 0
  %v380 = vsel %vm351, %v316, 0
  %v383 = vsel %vm351, %v317, 0
  %v386 = vsel %vm351, %v318, 0
  %v389 = vsel %vm351, %v319, 0
  %v392 = vsel %vm351, %v320, 0
  %v395 = vsel %vm351, %v321, 0
  %v398 = vsel %vm351, %v322, 0
  %v401 = vsel %vm351, %v323, 0
  %v404 = vsel %vm351, %v324, 0
  %v407 = vsel %vm351, %v325, 0
  %v410 = vsel %vm351, %v326, 0
  %v413 = vsel %vm351, %v327, 0
  %v416 = vsel %vm351, %v328, 0
  %v419 = vsel %vm351, %v329, 0
  %v422 = vsel %vm351, %v330, 0
  %v425 = vsel %vm351, %v331, 0
  %v428 = vsel %vm351, %v332, 0
  %v431 = vsel %vm351, %v333, 0
  %v434 = vsel %vm351, %v334, 0
  %v437 = vsel %vm351, %v335, 0
  %v440 = vsel %vm351, %v336, 0
  %v443 = vsel %vm351, %v337, 0
  %v446 = vsel %vm351, %v338, 0
  %448 = vmatprep.subr.bf16.mxu0 0
  %449 = vmatpush1.bf16.msra.mxu0 %v347
  %450 = vmatprep.subr.bf16.mxu0 0
  %451 = vmatpush1.bf16.msra.mxu0 %v348
  %452 = vmatprep.subr.bf16.mxu0 0
  %453 = vmatpush1.bf16.msra.mxu0 0
  %454 = vmatprep.subr.bf16.mxu0 0
  %455 = vmatpush1.bf16.msra.mxu0 0
  %456 = vmatprep.subr.bf16.mxu0 0
  %457 = vmatpush1.bf16.msra.mxu0 0
  %458 = vmatprep.subr.bf16.mxu0 0
  %459 = vmatpush1.bf16.msra.mxu0 0
  %460 = vmatprep.subr.bf16.mxu0 0
  %461 = vmatpush1.bf16.msra.mxu0 0
  %462 = vmatprep.subr.bf16.mxu0 0
  %463 = vmatpush1.bf16.msra.mxu0 0
  %464 = vmatprep.subr.bf16.mxu0 0
  %465 = vmatpush1.bf16.msra.mxu0 0
  %466 = vmatprep.subr.bf16.mxu0 0
  %467 = vmatpush1.bf16.msra.mxu0 0
  %468 = vmatprep.subr.bf16.mxu0 0
  %469 = vmatpush1.bf16.msra.mxu0 0
  %470 = vmatprep.subr.bf16.mxu0 0
  %471 = vmatpush1.bf16.msra.mxu0 0
  %472 = vmatprep.subr.bf16.mxu0 0
  %473 = vmatpush1.bf16.msra.mxu0 0
  %474 = vmatprep.subr.bf16.mxu0 0
  %475 = vmatpush1.bf16.msra.mxu0 0
  %476 = vmatprep.subr.bf16.mxu0 0
  %477 = vmatpush1.bf16.msra.mxu0 0
  %478 = vmatprep.subr.bf16.mxu0 0
  %479 = vmatpush1.bf16.msra.mxu0 0
  %480 = vmatprep.mubr.bf16.mxu0 0
  %481 = vmatmul.mubr.bf16.gmra.mrb[0].mxu0 %v353
  %v482 = vpop.f32.mrb[0].mxu0
  %v483 = vadd.f32 0.0, %v482
  %v484 = vpop.f32.mrb[0].mxu0
  %v485 = vpop.f32.mrb[0].mxu0
  %v486 = vadd.f32 0.0, %v485
  %v487 = vpop.f32.mrb[0].mxu0
  %488 = vmatprep.mubr.bf16.mxu0 0
  %489 = vmatmul.mubr.bf16.gmra.mrb[0].mxu0 %v356
  %v490 = vpop.f32.mrb[0].mxu0
  %v491 = vadd.f32 0.0, %v490
  %v492 = vpop.f32.mrb[0].mxu0
  %v493 = vpop.f32.mrb[0].mxu0
  %v494 = vadd.f32 0.0, %v493
  %v495 = vpop.f32.mrb[0].mxu0
  %496 = vmatprep.mubr.bf16.mxu0 0
  %497 = vmatmul.mubr.bf16.gmra.mrb[0].mxu0 %v359
  %v498 = vpop.f32.mrb[0].mxu0
  %v499 = vadd.f32 0.0, %v498
  %v500 = vpop.f32.mrb[0].mxu0
  %v501 = vpop.f32.mrb[0].mxu0
  %v502 = vadd.f32 0.0, %v501
  %v503 = vpop.f32.mrb[0].mxu0
  %504 = vmatprep.mubr.bf16.mxu0 0
  %505 = vmatmul.mubr.bf16.gmra.mrb[0].mxu0 %v362
  %v506 = vpop.f32.mrb[0].mxu0
  %v507 = vadd.f32 0.0, %v506
  %v508 = vpop.f32.mrb[0].mxu0
  %v509 = vpop.f32.mrb[0].mxu0
  %v510 = vadd.f32 0.0, %v509
  %v511 = vpop.f32.mrb[0].mxu0
  %512 = vmatprep.mubr.bf16.mxu0 0
  %513 = vmatmul.mubr.bf16.gmra.mrb[0].mxu0 %v365
  %v514 = vpop.f32.mrb[0].mxu0
  %v515 = vadd.f32 0.0, %v514
  %v516 = vpop.f32.mrb[0].mxu0
  %v517 = vpop.f32.mrb[0].mxu0
  %v518 = vadd.f32 0.0, %v517
  %v519 = vpop.f32.mrb[0].mxu0
  %520 = vmatprep.mubr.bf16.mxu0 0
  %521 = vmatmul.mubr.bf16.gmra.mrb[0].mxu0 %v368
  %v522 = vpop.f32.mrb[0].mxu0
  %v523 = vadd.f32 0.0, %v522
  %v524 = vpop.f32.mrb[0].mxu0
  %v525 = vpop.f32.mrb[0].mxu0
  %v526 = vadd.f32 0.0, %v525
  %v527 = vpop.f32.mrb[0].mxu0
  %528 = vmatprep.mubr.bf16.mxu0 0
  %529 = vmatmul.mubr.bf16.gmra.mrb[0].mxu0 %v371
  %v530 = vpop.f32.mrb[0].mxu0
  %v531 = vadd.f32 0.0, %v530
  %v532 = vpop.f32.mrb[0].mxu0
  %v533 = vpop.f32.mrb[0].mxu0
  %v534 = vadd.f32 0.0, %v533
  %v535 = vpop.f32.mrb[0].mxu0
  %536 = vmatprep.mubr.bf16.mxu0 0
  %537 = vmatmul.mubr.bf16.gmra.mrb[0].mxu0 %v374
  %v538 = vpop.f32.mrb[0].mxu0
  %v539 = vadd.f32 0.0, %v538
  %v540 = vpop.f32.mrb[0].mxu0
  %v541 = vpop.f32.mrb[0].mxu0
  %v542 = vadd.f32 0.0, %v541
  %v543 = vpop.f32.mrb[0].mxu0
  %544 = vmatprep.mubr.bf16.mxu0 0
  %545 = vmatmul.mubr.bf16.gmra.mrb[0].mxu0 %v377
  %v546 = vpop.f32.mrb[0].mxu0
  %v547 = vadd.f32 0.0, %v546
  %v548 = vpop.f32.mrb[0].mxu0
  %v549 = vpop.f32.mrb[0].mxu0
  %v550 = vadd.f32 0.0, %v549
  %v551 = vpop.f32.mrb[0].mxu0
  %552 = vmatprep.mubr.bf16.mxu0 0
  %553 = vmatmul.mubr.bf16.gmra.mrb[0].mxu0 %v380
  %v554 = vpop.f32.mrb[0].mxu0
  %v555 = vadd.f32 0.0, %v554
  %v556 = vpop.f32.mrb[0].mxu0
  %v557 = vpop.f32.mrb[0].mxu0
  %v558 = vadd.f32 0.0, %v557
  %v559 = vpop.f32.mrb[0].mxu0
  %560 = vmatprep.mubr.bf16.mxu0 0
  %561 = vmatmul.mubr.bf16.gmra.mrb[0].mxu0 %v383
  %v562 = vpop.f32.mrb[0].mxu0
  %v563 = vadd.f32 0.0, %v562
  %v564 = vpop.f32.mrb[0].mxu0
  %v565 = vpop.f32.mrb[0].mxu0
  %v566 = vadd.f32 0.0, %v565
  %v567 = vpop.f32.mrb[0].mxu0
  %568 = vmatprep.mubr.bf16.mxu0 0
  %569 = vmatmul.mubr.bf16.gmra.mrb[0].mxu0 %v386
  %v570 = vpop.f32.mrb[0].mxu0
  %v571 = vadd.f32 0.0, %v570
  %v572 = vpop.f32.mrb[0].mxu0
  %v573 = vpop.f32.mrb[0].mxu0
  %v574 = vadd.f32 0.0, %v573
  %v575 = vpop.f32.mrb[0].mxu0
  %576 = vmatprep.mubr.bf16.mxu0 0
  %577 = vmatmul.mubr.bf16.gmra.mrb[0].mxu0 %v389
  %v578 = vpop.f32.mrb[0].mxu0
  %v579 = vadd.f32 0.0, %v578
  %v580 = vpop.f32.mrb[0].mxu0
  %v581 = vpop.f32.mrb[0].mxu0
  %v582 = vadd.f32 0.0, %v581
  %v583 = vpop.f32.mrb[0].mxu0
  %584 = vmatprep.mubr.bf16.mxu0 0
  %585 = vmatmul.mubr.bf16.gmra.mrb[0].mxu0 %v392
  %v586 = vpop.f32.mrb[0].mxu0
  %v587 = vadd.f32 0.0, %v586
  %v588 = vpop.f32.mrb[0].mxu0
  %v589 = vpop.f32.mrb[0].mxu0
  %v590 = vadd.f32 0.0, %v589
  %v591 = vpop.f32.mrb[0].mxu0
  %592 = vmatprep.mubr.bf16.mxu0 0
  %593 = vmatmul.mubr.bf16.gmra.mrb[0].mxu0 %v395
  %v594 = vpop.f32.mrb[0].mxu0
  %v595 = vadd.f32 0.0, %v594
  %v596 = vpop.f32.mrb[0].mxu0
  %v597 = vpop.f32.mrb[0].mxu0
  %v598 = vadd.f32 0.0, %v597
  %v599 = vpop.f32.mrb[0].mxu0
  %600 = vmatprep.mubr.bf16.mxu0 0
  %601 = vmatmul.mubr.bf16.gmra.mrb[0].mxu0 %v398
  %v602 = vpop.f32.mrb[0].mxu0
  %v603 = vadd.f32 0.0, %v602
  %v604 = vpop.f32.mrb[0].mxu0
  %v605 = vpop.f32.mrb[0].mxu0
  %v606 = vadd.f32 0.0, %v605
  %v607 = vpop.f32.mrb[0].mxu0
  %608 = vmatprep.mubr.bf16.mxu0 0
  %609 = vmatmul.mubr.bf16.gmra.mrb[0].mxu0 %v401
  %v610 = vpop.f32.mrb[0].mxu0
  %v611 = vadd.f32 0.0, %v610
  %v612 = vpop.f32.mrb[0].mxu0
  %v613 = vpop.f32.mrb[0].mxu0
  %v614 = vadd.f32 0.0, %v613
  %v615 = vpop.f32.mrb[0].mxu0
  %616 = vmatprep.mubr.bf16.mxu0 0
  %617 = vmatmul.mubr.bf16.gmra.mrb[0].mxu0 %v404
  %v618 = vpop.f32.mrb[0].mxu0
  %v619 = vadd.f32 0.0, %v618
  %v620 = vpop.f32.mrb[0].mxu0
  %v621 = vpop.f32.mrb[0].mxu0
  %v622 = vadd.f32 0.0, %v621
  %v623 = vpop.f32.mrb[0].mxu0
  %624 = vmatprep.mubr.bf16.mxu0 0
  %625 = vmatmul.mubr.bf16.gmra.mrb[0].mxu0 %v407
  %v626 = vpop.f32.mrb[0].mxu0
  %v627 = vadd.f32 0.0, %v626
  %v628 = vpop.f32.mrb[0].mxu0
  %v629 = vpop.f32.mrb[0].mxu0
  %v630 = vadd.f32 0.0, %v629
  %v631 = vpop.f32.mrb[0].mxu0
  %632 = vmatprep.mubr.bf16.mxu0 0
  %633 = vmatmul.mubr.bf16.gmra.mrb[0].mxu0 %v410
  %v634 = vpop.f32.mrb[0].mxu0
  %v635 = vadd.f32 0.0, %v634
  %v636 = vpop.f32.mrb[0].mxu0
  %v637 = vpop.f32.mrb[0].mxu0
  %v638 = vadd.f32 0.0, %v637
  %v639 = vpop.f32.mrb[0].mxu0
  %640 = vmatprep.mubr.bf16.mxu0 0
  %641 = vmatmul.mubr.bf16.gmra.mrb[0].mxu0 %v413
  %v642 = vpop.f32.mrb[0].mxu0
  %v643 = vadd.f32 0.0, %v642
  %v644 = vpop.f32.mrb[0].mxu0
  %v645 = vpop.f32.mrb[0].mxu0
  %v646 = vadd.f32 0.0, %v645
  %v647 = vpop.f32.mrb[0].mxu0
  %648 = vmatprep.mubr.bf16.mxu0 0
  %649 = vmatmul.mubr.bf16.gmra.mrb[0].mxu0 %v416
  %v650 = vpop.f32.mrb[0].mxu0
  %v651 = vadd.f32 0.0, %v650
  %v652 = vpop.f32.mrb[0].mxu0
  %v653 = vpop.f32.mrb[0].mxu0
  %v654 = vadd.f32 0.0, %v653
  %v655 = vpop.f32.mrb[0].mxu0
  %656 = vmatprep.mubr.bf16.mxu0 0
  %657 = vmatmul.mubr.bf16.gmra.mrb[0].mxu0 %v419
  %v658 = vpop.f32.mrb[0].mxu0
  %v659 = vadd.f32 0.0, %v658
  %v660 = vpop.f32.mrb[0].mxu0
  %v661 = vpop.f32.mrb[0].mxu0
  %v662 = vadd.f32 0.0, %v661
  %v663 = vpop.f32.mrb[0].mxu0
  %664 = vmatprep.mubr.bf16.mxu0 0
  %665 = vmatmul.mubr.bf16.gmra.mrb[0].mxu0 %v422
  %v666 = vpop.f32.mrb[0].mxu0
  %v667 = vadd.f32 0.0, %v666
  %v668 = vpop.f32.mrb[0].mxu0
  %v669 = vpop.f32.mrb[0].mxu0
  %v670 = vadd.f32 0.0, %v669
  %v671 = vpop.f32.mrb[0].mxu0
  %672 = vmatprep.mubr.bf16.mxu0 0
  %673 = vmatmul.mubr.bf16.gmra.mrb[0].mxu0 %v425
  %v674 = vpop.f32.mrb[0].mxu0
  %v675 = vadd.f32 0.0, %v674
  %v676 = vpop.f32.mrb[0].mxu0
  %v677 = vpop.f32.mrb[0].mxu0
  %v678 = vadd.f32 0.0, %v677
  %v679 = vpop.f32.mrb[0].mxu0
  %680 = vmatprep.mubr.bf16.mxu0 0
  %681 = vmatmul.mubr.bf16.gmra.mrb[0].mxu0 %v428
  %v682 = vpop.f32.mrb[0].mxu0
  %v683 = vadd.f32 0.0, %v682
  %v684 = vpop.f32.mrb[0].mxu0
  %v685 = vpop.f32.mrb[0].mxu0
  %v686 = vadd.f32 0.0, %v685
  %v687 = vpop.f32.mrb[0].mxu0
  %688 = vmatprep.mubr.bf16.mxu0 0
  %689 = vmatmul.mubr.bf16.gmra.mrb[0].mxu0 %v431
  %v690 = vpop.f32.mrb[0].mxu0
  %v691 = vadd.f32 0.0, %v690
  %v692 = vpop.f32.mrb[0].mxu0
  %v693 = vpop.f32.mrb[0].mxu0
  %v694 = vadd.f32 0.0, %v693
  %v695 = vpop.f32.mrb[0].mxu0
  %696 = vmatprep.mubr.bf16.mxu0 0
  %697 = vmatmul.mubr.bf16.gmra.mrb[0].mxu0 %v434
  %v698 = vpop.f32.mrb[0].mxu0
  %v699 = vadd.f32 0.0, %v698
  %v700 = vpop.f32.mrb[0].mxu0
  %v701 = vpop.f32.mrb[0].mxu0
  %v702 = vadd.f32 0.0, %v701
  %v703 = vpop.f32.mrb[0].mxu0
  %704 = vmatprep.mubr.bf16.mxu0 0
  %705 = vmatmul.mubr.bf16.gmra.mrb[0].mxu0 %v437
  %v706 = vpop.f32.mrb[0].mxu0
  %v707 = vadd.f32 0.0, %v706
  %v708 = vpop.f32.mrb[0].mxu0
  %v709 = vpop.f32.mrb[0].mxu0
  %v710 = vadd.f32 0.0, %v709
  %v711 = vpop.f32.mrb[0].mxu0
  %712 = vmatprep.mubr.bf16.mxu0 0
  %713 = vmatmul.mubr.bf16.gmra.mrb[0].mxu0 %v440
  %v714 = vpop.f32.mrb[0].mxu0
  %v715 = vadd.f32 0.0, %v714
  %v716 = vpop.f32.mrb[0].mxu0
  %v717 = vpop.f32.mrb[0].mxu0
  %v718 = vadd.f32 0.0, %v717
  %v719 = vpop.f32.mrb[0].mxu0
  %720 = vmatprep.mubr.bf16.mxu0 0
  %721 = vmatmul.mubr.bf16.gmra.mrb[0].mxu0 %v443
  %v722 = vpop.f32.mrb[0].mxu0
  %v723 = vadd.f32 0.0, %v722
  %v724 = vpop.f32.mrb[0].mxu0
  %v725 = vpop.f32.mrb[0].mxu0
  %v726 = vadd.f32 0.0, %v725
  %v727 = vpop.f32.mrb[0].mxu0
  %728 = vmatprep.mubr.bf16.mxu0 0
  %729 = vmatmul.mubr.bf16.gmra.mrb[0].mxu0 %v446
  %v730 = vpop.f32.mrb[0].mxu0
  %v731 = vadd.f32 0.0, %v730
  %v732 = vpop.f32.mrb[0].mxu0
  %v733 = vpop.f32.mrb[0].mxu0
  %v734 = vadd.f32 0.0, %v733
  %v735 = vpop.f32.mrb[0].mxu0
  %736 = vdwg.mxu0
  %v801 = vunpack.c.l.b16 %v43
  %v802 = vunpack.c.l.b16 %v44
  %v803 = vunpack.c.l.b16 %v45
  %v804 = vunpack.c.l.b16 %v46
  %v805 = vunpack.c.l.b16 %v47
  %v806 = vunpack.c.l.b16 %v48
  %v807 = vunpack.c.l.b16 %v49
  %v808 = vunpack.c.l.b16 %v50
  %v809 = vunpack.c.l.b16 %v51
  %v810 = vunpack.c.l.b16 %v52
  %v811 = vunpack.c.l.b16 %v53
  %v812 = vunpack.c.l.b16 %v54
  %v813 = vunpack.c.l.b16 %v55
  %v814 = vunpack.c.l.b16 %v56
  %v815 = vunpack.c.l.b16 %v57
  %v816 = vunpack.c.l.b16 %v58
  %v817 = vunpack.c.l.b16 %v59
  %v818 = vunpack.c.l.b16 %v60
  %v819 = vunpack.c.l.b16 %v61
  %v820 = vunpack.c.l.b16 %v62
  %v821 = vunpack.c.l.b16 %v63
  %v822 = vunpack.c.l.b16 %v64
  %v823 = vunpack.c.l.b16 %v65
  %v824 = vunpack.c.l.b16 %v66
  %v825 = vunpack.c.l.b16 %v67
  %v826 = vunpack.c.l.b16 %v68
  %v827 = vunpack.c.l.b16 %v69
  %v828 = vunpack.c.l.b16 %v70
  %v829 = vunpack.c.l.b16 %v71
  %v830 = vunpack.c.l.b16 %v72
  %v831 = vunpack.c.l.b16 %v73
  %v832 = vunpack.c.l.b16 %v74
  %v833 = vunpack.c.l.b16 %v75
  %v834 = vunpack.c.l.b16 %v76
  %v835 = vunpack.c.l.b16 %v77
  %v836 = vunpack.c.l.b16 %v78
  %v837 = vunpack.c.l.b16 %v79
  %v838 = vunpack.c.l.b16 %v80
  %v839 = vunpack.c.l.b16 %v81
  %v840 = vunpack.c.l.b16 %v82
  %v841 = vunpack.c.l.b16 %v83
  %v842 = vunpack.c.l.b16 %v84
  %v843 = vunpack.c.l.b16 %v85
  %v844 = vunpack.c.l.b16 %v86
  %v845 = vunpack.c.l.b16 %v87
  %v846 = vunpack.c.l.b16 %v88
  %v847 = vunpack.c.l.b16 %v89
  %v848 = vunpack.c.l.b16 %v90
  %v849 = vunpack.c.l.b16 %v91
  %v850 = vunpack.c.l.b16 %v92
  %v851 = vunpack.c.l.b16 %v93
  %v852 = vunpack.c.l.b16 %v94
  %v853 = vunpack.c.l.b16 %v95
  %v854 = vunpack.c.l.b16 %v96
  %v855 = vunpack.c.l.b16 %v97
  %v856 = vunpack.c.l.b16 %v98
  %v857 = vunpack.c.l.b16 %v99
  %v858 = vunpack.c.l.b16 %v100
  %v859 = vunpack.c.l.b16 %v101
  %v860 = vunpack.c.l.b16 %v102
  %v861 = vunpack.c.l.b16 %v103
  %v862 = vunpack.c.l.b16 %v104
  %v863 = vunpack.c.l.b16 %v105
  %v864 = vunpack.c.l.b16 %v106
  %v865 = vpack.c.b16 %v802, %v801
  %v866 = vpack.c.b16 %v804, %v803
  %v867 = vpack.c.b16 %v806, %v805
  %v868 = vpack.c.b16 %v808, %v807
  %v869 = vpack.c.b16 %v810, %v809
  %v870 = vpack.c.b16 %v812, %v811
  %v871 = vpack.c.b16 %v814, %v813
  %v872 = vpack.c.b16 %v816, %v815
  %v873 = vpack.c.b16 %v818, %v817
  %v874 = vpack.c.b16 %v820, %v819
  %v875 = vpack.c.b16 %v822, %v821
  %v876 = vpack.c.b16 %v824, %v823
  %v877 = vpack.c.b16 %v826, %v825
  %v878 = vpack.c.b16 %v828, %v827
  %v879 = vpack.c.b16 %v830, %v829
  %v880 = vpack.c.b16 %v832, %v831
  %v881 = vpack.c.b16 %v834, %v833
  %v882 = vpack.c.b16 %v836, %v835
  %v883 = vpack.c.b16 %v838, %v837
  %v884 = vpack.c.b16 %v840, %v839
  %v885 = vpack.c.b16 %v842, %v841
  %v886 = vpack.c.b16 %v844, %v843
  %v887 = vpack.c.b16 %v846, %v845
  %v888 = vpack.c.b16 %v848, %v847
  %v889 = vpack.c.b16 %v850, %v849
  %v890 = vpack.c.b16 %v852, %v851
  %v891 = vpack.c.b16 %v854, %v853
  %v892 = vpack.c.b16 %v856, %v855
  %v893 = vpack.c.b16 %v858, %v857
  %v894 = vpack.c.b16 %v860, %v859
  %v895 = vpack.c.b16 %v862, %v861
  %v896 = vpack.c.b16 %v864, %v863
  %v901 = vunpack.c.l.b16 %v107
  %v902 = vunpack.c.l.b16 %v108
  %v903 = vunpack.c.l.b16 %v109
  %v904 = vunpack.c.l.b16 %v110
  %v905 = vpack.c.b16 %v902, %v901
  %v906 = vpack.c.b16 %v904, %v903
  %v910 = vsel %vm351, %v865, 0
  %v913 = vsel %vm351, %v866, 0
  %v916 = vsel %vm351, %v867, 0
  %v919 = vsel %vm351, %v868, 0
  %v922 = vsel %vm351, %v869, 0
  %v925 = vsel %vm351, %v870, 0
  %v928 = vsel %vm351, %v871, 0
  %v931 = vsel %vm351, %v872, 0
  %v934 = vsel %vm351, %v873, 0
  %v937 = vsel %vm351, %v874, 0
  %v940 = vsel %vm351, %v875, 0
  %v943 = vsel %vm351, %v876, 0
  %v946 = vsel %vm351, %v877, 0
  %v949 = vsel %vm351, %v878, 0
  %v952 = vsel %vm351, %v879, 0
  %v955 = vsel %vm351, %v880, 0
  %v958 = vsel %vm351, %v881, 0
  %v961 = vsel %vm351, %v882, 0
  %v964 = vsel %vm351, %v883, 0
  %v967 = vsel %vm351, %v884, 0
  %v970 = vsel %vm351, %v885, 0
  %v973 = vsel %vm351, %v886, 0
  %v976 = vsel %vm351, %v887, 0
  %v979 = vsel %vm351, %v888, 0
  %v982 = vsel %vm351, %v889, 0
  %v985 = vsel %vm351, %v890, 0
  %v988 = vsel %vm351, %v891, 0
  %v991 = vsel %vm351, %v892, 0
  %v994 = vsel %vm351, %v893, 0
  %v997 = vsel %vm351, %v894, 0
  %v1000 = vsel %vm351, %v895, 0
  %v1003 = vsel %vm351, %v896, 0
  %1005 = vmatprep.subr.bf16.mxu0 0
  %1006 = vmatpush1.bf16.msra.mxu0 %v905
  %1007 = vmatprep.subr.bf16.mxu0 0
  %1008 = vmatpush1.bf16.msra.mxu0 %v906
  %1009 = vmatprep.subr.bf16.mxu0 0
  %1010 = vmatpush1.bf16.msra.mxu0 0
  %1011 = vmatprep.subr.bf16.mxu0 0
  %1012 = vmatpush1.bf16.msra.mxu0 0
  %1013 = vmatprep.subr.bf16.mxu0 0
  %1014 = vmatpush1.bf16.msra.mxu0 0
  %1015 = vmatprep.subr.bf16.mxu0 0
  %1016 = vmatpush1.bf16.msra.mxu0 0
  %1017 = vmatprep.subr.bf16.mxu0 0
  %1018 = vmatpush1.bf16.msra.mxu0 0
  %1019 = vmatprep.subr.bf16.mxu0 0
  %1020 = vmatpush1.bf16.msra.mxu0 0
  %1021 = vmatprep.subr.bf16.mxu0 0
  %1022 = vmatpush1.bf16.msra.mxu0 0
  %1023 = vmatprep.subr.bf16.mxu0 0
  %1024 = vmatpush1.bf16.msra.mxu0 0
  %1025 = vmatprep.subr.bf16.mxu0 0
  %1026 = vmatpush1.bf16.msra.mxu0 0
  %1027 = vmatprep.subr.bf16.mxu0 0
  %1028 = vmatpush1.bf16.msra.mxu0 0
  %1029 = vmatprep.subr.bf16.mxu0 0
  %1030 = vmatpush1.bf16.msra.mxu0 0
  %1031 = vmatprep.subr.bf16.mxu0 0
  %1032 = vmatpush1.bf16.msra.mxu0 0
  %1033 = vmatprep.subr.bf16.mxu0 0
  %1034 = vmatpush1.bf16.msra.mxu0 0
  %1035 = vmatprep.subr.bf16.mxu0 0
  %1036 = vmatpush1.bf16.msra.mxu0 0
  %1037 = vmatprep.mubr.bf16.mxu0 0
  %1038 = vmatmul.mubr.bf16.gmra.mrb[0].mxu0 %v910
  %v1039 = vpop.f32.mrb[0].mxu0
  %v1040 = vadd.f32 %v483, %v1039
  %v1041 = vpop.f32.mrb[0].mxu0
  %v1042 = vpop.f32.mrb[0].mxu0
  %v1043 = vadd.f32 %v486, %v1042
  %v1044 = vpop.f32.mrb[0].mxu0
  %1045 = vmatprep.mubr.bf16.mxu0 0
  %1046 = vmatmul.mubr.bf16.gmra.mrb[0].mxu0 %v913
  %v1047 = vpop.f32.mrb[0].mxu0
  %v1048 = vadd.f32 %v491, %v1047
  %v1049 = vpop.f32.mrb[0].mxu0
  %v1050 = vpop.f32.mrb[0].mxu0
  %v1051 = vadd.f32 %v494, %v1050
  %v1052 = vpop.f32.mrb[0].mxu0
  %1053 = vmatprep.mubr.bf16.mxu0 0
  %1054 = vmatmul.mubr.bf16.gmra.mrb[0].mxu0 %v916
  %v1055 = vpop.f32.mrb[0].mxu0
  %v1056 = vadd.f32 %v499, %v1055
  %v1057 = vpop.f32.mrb[0].mxu0
  %v1058 = vpop.f32.mrb[0].mxu0
  %v1059 = vadd.f32 %v502, %v1058
  %v1060 = vpop.f32.mrb[0].mxu0
  %1061 = vmatprep.mubr.bf16.mxu0 0
  %1062 = vmatmul.mubr.bf16.gmra.mrb[0].mxu0 %v919
  %v1063 = vpop.f32.mrb[0].mxu0
  %v1064 = vadd.f32 %v507, %v1063
  %v1065 = vpop.f32.mrb[0].mxu0
  %v1066 = vpop.f32.mrb[0].mxu0
  %v1067 = vadd.f32 %v510, %v1066
  %v1068 = vpop.f32.mrb[0].mxu0
  %1069 = vmatprep.mubr.bf16.mxu0 0
  %1070 = vmatmul.mubr.bf16.gmra.mrb[0].mxu0 %v922
  %v1071 = vpop.f32.mrb[0].mxu0
  %v1072 = vadd.f32 %v515, %v1071
  %v1073 = vpop.f32.mrb[0].mxu0
  %v1074 = vpop.f32.mrb[0].mxu0
  %v1075 = vadd.f32 %v518, %v1074
  %v1076 = vpop.f32.mrb[0].mxu0
  %1077 = vmatprep.mubr.bf16.mxu0 0
  %1078 = vmatmul.mubr.bf16.gmra.mrb[0].mxu0 %v925
  %v1079 = vpop.f32.mrb[0].mxu0
  %v1080 = vadd.f32 %v523, %v1079
  %v1081 = vpop.f32.mrb[0].mxu0
  %v1082 = vpop.f32.mrb[0].mxu0
  %v1083 = vadd.f32 %v526, %v1082
  %v1084 = vpop.f32.mrb[0].mxu0
  %1085 = vmatprep.mubr.bf16.mxu0 0
  %1086 = vmatmul.mubr.bf16.gmra.mrb[0].mxu0 %v928
  %v1087 = vpop.f32.mrb[0].mxu0
  %v1088 = vadd.f32 %v531, %v1087
  %v1089 = vpop.f32.mrb[0].mxu0
  %v1090 = vpop.f32.mrb[0].mxu0
  %v1091 = vadd.f32 %v534, %v1090
  %v1092 = vpop.f32.mrb[0].mxu0
  %1093 = vmatprep.mubr.bf16.mxu0 0
  %1094 = vmatmul.mubr.bf16.gmra.mrb[0].mxu0 %v931
  %v1095 = vpop.f32.mrb[0].mxu0
  %v1096 = vadd.f32 %v539, %v1095
  %v1097 = vpop.f32.mrb[0].mxu0
  %v1098 = vpop.f32.mrb[0].mxu0
  %v1099 = vadd.f32 %v542, %v1098
  %v1100 = vpop.f32.mrb[0].mxu0
  %1101 = vmatprep.mubr.bf16.mxu0 0
  %1102 = vmatmul.mubr.bf16.gmra.mrb[0].mxu0 %v934
  %v1103 = vpop.f32.mrb[0].mxu0
  %v1104 = vadd.f32 %v547, %v1103
  %v1105 = vpop.f32.mrb[0].mxu0
  %v1106 = vpop.f32.mrb[0].mxu0
  %v1107 = vadd.f32 %v550, %v1106
  %v1108 = vpop.f32.mrb[0].mxu0
  %1109 = vmatprep.mubr.bf16.mxu0 0
  %1110 = vmatmul.mubr.bf16.gmra.mrb[0].mxu0 %v937
  %v1111 = vpop.f32.mrb[0].mxu0
  %v1112 = vadd.f32 %v555, %v1111
  %v1113 = vpop.f32.mrb[0].mxu0
  %v1114 = vpop.f32.mrb[0].mxu0
  %v1115 = vadd.f32 %v558, %v1114
  %v1116 = vpop.f32.mrb[0].mxu0
  %1117 = vmatprep.mubr.bf16.mxu0 0
  %1118 = vmatmul.mubr.bf16.gmra.mrb[0].mxu0 %v940
  %v1119 = vpop.f32.mrb[0].mxu0
  %v1120 = vadd.f32 %v563, %v1119
  %v1121 = vpop.f32.mrb[0].mxu0
  %v1122 = vpop.f32.mrb[0].mxu0
  %v1123 = vadd.f32 %v566, %v1122
  %v1124 = vpop.f32.mrb[0].mxu0
  %1125 = vmatprep.mubr.bf16.mxu0 0
  %1126 = vmatmul.mubr.bf16.gmra.mrb[0].mxu0 %v943
  %v1127 = vpop.f32.mrb[0].mxu0
  %v1128 = vadd.f32 %v571, %v1127
  %v1129 = vpop.f32.mrb[0].mxu0
  %v1130 = vpop.f32.mrb[0].mxu0
  %v1131 = vadd.f32 %v574, %v1130
  %v1132 = vpop.f32.mrb[0].mxu0
  %1133 = vmatprep.mubr.bf16.mxu0 0
  %1134 = vmatmul.mubr.bf16.gmra.mrb[0].mxu0 %v946
  %v1135 = vpop.f32.mrb[0].mxu0
  %v1136 = vadd.f32 %v579, %v1135
  %v1137 = vpop.f32.mrb[0].mxu0
  %v1138 = vpop.f32.mrb[0].mxu0
  %v1139 = vadd.f32 %v582, %v1138
  %v1140 = vpop.f32.mrb[0].mxu0
  %1141 = vmatprep.mubr.bf16.mxu0 0
  %1142 = vmatmul.mubr.bf16.gmra.mrb[0].mxu0 %v949
  %v1143 = vpop.f32.mrb[0].mxu0
  %v1144 = vadd.f32 %v587, %v1143
  %v1145 = vpop.f32.mrb[0].mxu0
  %v1146 = vpop.f32.mrb[0].mxu0
  %v1147 = vadd.f32 %v590, %v1146
  %v1148 = vpop.f32.mrb[0].mxu0
  %1149 = vmatprep.mubr.bf16.mxu0 0
  %1150 = vmatmul.mubr.bf16.gmra.mrb[0].mxu0 %v952
  %v1151 = vpop.f32.mrb[0].mxu0
  %v1152 = vadd.f32 %v595, %v1151
  %v1153 = vpop.f32.mrb[0].mxu0
  %v1154 = vpop.f32.mrb[0].mxu0
  %v1155 = vadd.f32 %v598, %v1154
  %v1156 = vpop.f32.mrb[0].mxu0
  %1157 = vmatprep.mubr.bf16.mxu0 0
  %1158 = vmatmul.mubr.bf16.gmra.mrb[0].mxu0 %v955
  %v1159 = vpop.f32.mrb[0].mxu0
  %v1160 = vadd.f32 %v603, %v1159
  %v1161 = vpop.f32.mrb[0].mxu0
  %v1162 = vpop.f32.mrb[0].mxu0
  %v1163 = vadd.f32 %v606, %v1162
  %v1164 = vpop.f32.mrb[0].mxu0
  %1165 = vmatprep.mubr.bf16.mxu0 0
  %1166 = vmatmul.mubr.bf16.gmra.mrb[0].mxu0 %v958
  %v1167 = vpop.f32.mrb[0].mxu0
  %v1168 = vadd.f32 %v611, %v1167
  %v1169 = vpop.f32.mrb[0].mxu0
  %v1170 = vpop.f32.mrb[0].mxu0
  %v1171 = vadd.f32 %v614, %v1170
  %v1172 = vpop.f32.mrb[0].mxu0
  %1173 = vmatprep.mubr.bf16.mxu0 0
  %1174 = vmatmul.mubr.bf16.gmra.mrb[0].mxu0 %v961
  %v1175 = vpop.f32.mrb[0].mxu0
  %v1176 = vadd.f32 %v619, %v1175
  %v1177 = vpop.f32.mrb[0].mxu0
  %v1178 = vpop.f32.mrb[0].mxu0
  %v1179 = vadd.f32 %v622, %v1178
  %v1180 = vpop.f32.mrb[0].mxu0
  %1181 = vmatprep.mubr.bf16.mxu0 0
  %1182 = vmatmul.mubr.bf16.gmra.mrb[0].mxu0 %v964
  %v1183 = vpop.f32.mrb[0].mxu0
  %v1184 = vadd.f32 %v627, %v1183
  %v1185 = vpop.f32.mrb[0].mxu0
  %v1186 = vpop.f32.mrb[0].mxu0
  %v1187 = vadd.f32 %v630, %v1186
  %v1188 = vpop.f32.mrb[0].mxu0
  %1189 = vmatprep.mubr.bf16.mxu0 0
  %1190 = vmatmul.mubr.bf16.gmra.mrb[0].mxu0 %v967
  %v1191 = vpop.f32.mrb[0].mxu0
  %v1192 = vadd.f32 %v635, %v1191
  %v1193 = vpop.f32.mrb[0].mxu0
  %v1194 = vpop.f32.mrb[0].mxu0
  %v1195 = vadd.f32 %v638, %v1194
  %v1196 = vpop.f32.mrb[0].mxu0
  %1197 = vmatprep.mubr.bf16.mxu0 0
  %1198 = vmatmul.mubr.bf16.gmra.mrb[0].mxu0 %v970
  %v1199 = vpop.f32.mrb[0].mxu0
  %v1200 = vadd.f32 %v643, %v1199
  %v1201 = vpop.f32.mrb[0].mxu0
  %v1202 = vpop.f32.mrb[0].mxu0
  %v1203 = vadd.f32 %v646, %v1202
  %v1204 = vpop.f32.mrb[0].mxu0
  %1205 = vmatprep.mubr.bf16.mxu0 0
  %1206 = vmatmul.mubr.bf16.gmra.mrb[0].mxu0 %v973
  %v1207 = vpop.f32.mrb[0].mxu0
  %v1208 = vadd.f32 %v651, %v1207
  %v1209 = vpop.f32.mrb[0].mxu0
  %v1210 = vpop.f32.mrb[0].mxu0
  %v1211 = vadd.f32 %v654, %v1210
  %v1212 = vpop.f32.mrb[0].mxu0
  %1213 = vmatprep.mubr.bf16.mxu0 0
  %1214 = vmatmul.mubr.bf16.gmra.mrb[0].mxu0 %v976
  %v1215 = vpop.f32.mrb[0].mxu0
  %v1216 = vadd.f32 %v659, %v1215
  %v1217 = vpop.f32.mrb[0].mxu0
  %v1218 = vpop.f32.mrb[0].mxu0
  %v1219 = vadd.f32 %v662, %v1218
  %v1220 = vpop.f32.mrb[0].mxu0
  %1221 = vmatprep.mubr.bf16.mxu0 0
  %1222 = vmatmul.mubr.bf16.gmra.mrb[0].mxu0 %v979
  %v1223 = vpop.f32.mrb[0].mxu0
  %v1224 = vadd.f32 %v667, %v1223
  %v1225 = vpop.f32.mrb[0].mxu0
  %v1226 = vpop.f32.mrb[0].mxu0
  %v1227 = vadd.f32 %v670, %v1226
  %v1228 = vpop.f32.mrb[0].mxu0
  %1229 = vmatprep.mubr.bf16.mxu0 0
  %1230 = vmatmul.mubr.bf16.gmra.mrb[0].mxu0 %v982
  %v1231 = vpop.f32.mrb[0].mxu0
  %v1232 = vadd.f32 %v675, %v1231
  %v1233 = vpop.f32.mrb[0].mxu0
  %v1234 = vpop.f32.mrb[0].mxu0
  %v1235 = vadd.f32 %v678, %v1234
  %v1236 = vpop.f32.mrb[0].mxu0
  %1237 = vmatprep.mubr.bf16.mxu0 0
  %1238 = vmatmul.mubr.bf16.gmra.mrb[0].mxu0 %v985
  %v1239 = vpop.f32.mrb[0].mxu0
  %v1240 = vadd.f32 %v683, %v1239
  %v1241 = vpop.f32.mrb[0].mxu0
  %v1242 = vpop.f32.mrb[0].mxu0
  %v1243 = vadd.f32 %v686, %v1242
  %v1244 = vpop.f32.mrb[0].mxu0
  %1245 = vmatprep.mubr.bf16.mxu0 0
  %1246 = vmatmul.mubr.bf16.gmra.mrb[0].mxu0 %v988
  %v1247 = vpop.f32.mrb[0].mxu0
  %v1248 = vadd.f32 %v691, %v1247
  %v1249 = vpop.f32.mrb[0].mxu0
  %v1250 = vpop.f32.mrb[0].mxu0
  %v1251 = vadd.f32 %v694, %v1250
  %v1252 = vpop.f32.mrb[0].mxu0
  %1253 = vmatprep.mubr.bf16.mxu0 0
  %1254 = vmatmul.mubr.bf16.gmra.mrb[0].mxu0 %v991
  %v1255 = vpop.f32.mrb[0].mxu0
  %v1256 = vadd.f32 %v699, %v1255
  %v1257 = vpop.f32.mrb[0].mxu0
  %v1258 = vpop.f32.mrb[0].mxu0
  %v1259 = vadd.f32 %v702, %v1258
  %v1260 = vpop.f32.mrb[0].mxu0
  %1261 = vmatprep.mubr.bf16.mxu0 0
  %1262 = vmatmul.mubr.bf16.gmra.mrb[0].mxu0 %v994
  %v1263 = vpop.f32.mrb[0].mxu0
  %v1264 = vadd.f32 %v707, %v1263
  %v1265 = vpop.f32.mrb[0].mxu0
  %v1266 = vpop.f32.mrb[0].mxu0
  %v1267 = vadd.f32 %v710, %v1266
  %v1268 = vpop.f32.mrb[0].mxu0
  %1269 = vmatprep.mubr.bf16.mxu0 0
  %1270 = vmatmul.mubr.bf16.gmra.mrb[0].mxu0 %v997
  %v1271 = vpop.f32.mrb[0].mxu0
  %v1272 = vadd.f32 %v715, %v1271
  %v1273 = vpop.f32.mrb[0].mxu0
  %v1274 = vpop.f32.mrb[0].mxu0
  %v1275 = vadd.f32 %v718, %v1274
  %v1276 = vpop.f32.mrb[0].mxu0
  %1277 = vmatprep.mubr.bf16.mxu0 0
  %1278 = vmatmul.mubr.bf16.gmra.mrb[0].mxu0 %v1000
  %v1279 = vpop.f32.mrb[0].mxu0
  %v1280 = vadd.f32 %v723, %v1279
  %v1281 = vpop.f32.mrb[0].mxu0
  %v1282 = vpop.f32.mrb[0].mxu0
  %v1283 = vadd.f32 %v726, %v1282
  %v1284 = vpop.f32.mrb[0].mxu0
  %1285 = vmatprep.mubr.bf16.mxu0 0
  %1286 = vmatmul.mubr.bf16.gmra.mrb[0].mxu0 %v1003
  %v1287 = vpop.f32.mrb[0].mxu0
  %v1288 = vadd.f32 %v731, %v1287
  %v1289 = vpop.f32.mrb[0].mxu0
  %v1290 = vpop.f32.mrb[0].mxu0
  %v1291 = vadd.f32 %v734, %v1290
  %v1292 = vpop.f32.mrb[0].mxu0
  %1293 = vdwg.mxu0
  %v1294 = vld [vmem:[#allocation2] sm:$0x1]
  %v1296 = vlaneseq
  %v1297 = vshrl.u32 %v1296, 7
  %v1298 = vsub.s32 0, %v1297
  %v1299 = vrot.slane %v1294, %v1298
  %v1301 = vadd.f32 %v1040, %v1299
  %v1302 = vadd.f32 %v1043, %v1299
  %v1303 = vadd.f32 %v1048, %v1299
  %v1304 = vadd.f32 %v1051, %v1299
  %v1305 = vadd.f32 %v1056, %v1299
  %v1306 = vadd.f32 %v1059, %v1299
  %v1307 = vadd.f32 %v1064, %v1299
  %v1308 = vadd.f32 %v1067, %v1299
  %v1309 = vadd.f32 %v1072, %v1299
  %v1310 = vadd.f32 %v1075, %v1299
  %v1311 = vadd.f32 %v1080, %v1299
  %v1312 = vadd.f32 %v1083, %v1299
  %v1313 = vadd.f32 %v1088, %v1299
  %v1314 = vadd.f32 %v1091, %v1299
  %v1315 = vadd.f32 %v1096, %v1299
  %v1316 = vadd.f32 %v1099, %v1299
  %v1317 = vadd.f32 %v1104, %v1299
  %v1318 = vadd.f32 %v1107, %v1299
  %v1319 = vadd.f32 %v1112, %v1299
  %v1320 = vadd.f32 %v1115, %v1299
  %v1321 = vadd.f32 %v1120, %v1299
  %v1322 = vadd.f32 %v1123, %v1299
  %v1323 = vadd.f32 %v1128, %v1299
  %v1324 = vadd.f32 %v1131, %v1299
  %v1325 = vadd.f32 %v1136, %v1299
  %v1326 = vadd.f32 %v1139, %v1299
  %v1327 = vadd.f32 %v1144, %v1299
  %v1328 = vadd.f32 %v1147, %v1299
  %v1329 = vadd.f32 %v1152, %v1299
  %v1330 = vadd.f32 %v1155, %v1299
  %v1331 = vadd.f32 %v1160, %v1299
  %v1332 = vadd.f32 %v1163, %v1299
  %v1333 = vadd.f32 %v1168, %v1299
  %v1334 = vadd.f32 %v1171, %v1299
  %v1335 = vadd.f32 %v1176, %v1299
  %v1336 = vadd.f32 %v1179, %v1299
  %v1337 = vadd.f32 %v1184, %v1299
  %v1338 = vadd.f32 %v1187, %v1299
  %v1339 = vadd.f32 %v1192, %v1299
  %v1340 = vadd.f32 %v1195, %v1299
  %v1341 = vadd.f32 %v1200, %v1299
  %v1342 = vadd.f32 %v1203, %v1299
  %v1343 = vadd.f32 %v1208, %v1299
  %v1344 = vadd.f32 %v1211, %v1299
  %v1345 = vadd.f32 %v1216, %v1299
  %v1346 = vadd.f32 %v1219, %v1299
  %v1347 = vadd.f32 %v1224, %v1299
  %v1348 = vadd.f32 %v1227, %v1299
  %v1349 = vadd.f32 %v1232, %v1299
  %v1350 = vadd.f32 %v1235, %v1299
  %v1351 = vadd.f32 %v1240, %v1299
  %v1352 = vadd.f32 %v1243, %v1299
  %v1353 = vadd.f32 %v1248, %v1299
  %v1354 = vadd.f32 %v1251, %v1299
  %v1355 = vadd.f32 %v1256, %v1299
  %v1356 = vadd.f32 %v1259, %v1299
  %v1357 = vadd.f32 %v1264, %v1299
  %v1358 = vadd.f32 %v1267, %v1299
  %v1359 = vadd.f32 %v1272, %v1299
  %v1360 = vadd.f32 %v1275, %v1299
  %v1361 = vadd.f32 %v1280, %v1299
  %v1362 = vadd.f32 %v1283, %v1299
  %v1363 = vadd.f32 %v1288, %v1299
  %v1364 = vadd.f32 %v1291, %v1299
  %v1365 = vld [vmem:[#allocation3] sm:$0x1]
  %v1366 = vmul.f32 %v1365, 0.001953125
  %v1367 = vld [vmem:[#allocation4] sm:$0x1]
  %v1368 = vmul.f32 %v1367, 0.001953125
  %v1369 = vmul.f32 %v1366, %v1366
  %v1370 = vsub.f32 %v1368, %v1369
  %v1371 = vmax.f32 %v1370, 0.0
  %v1372 = vadd.f32 %v1371, 1e-05
  %v1373 = vrsqrt.pop %v1372
  %v1374 = vld [vmem:[#allocation5] sm:$0x1]
  %v1375 = vmul.f32 %v1373, %v1374
  %v1377 = vlaneseq
  %v1378 = vshrl.u32 %v1377, 7
  %v1379 = vsub.s32 0, %v1378
  %v1380 = vrot.slane %v1366, %v1379
  %v1382 = vsub.f32 %v1301, %v1380
  %v1383 = vsub.f32 %v1302, %v1380
  %v1384 = vsub.f32 %v1303, %v1380
  %v1385 = vsub.f32 %v1304, %v1380
  %v1386 = vsub.f32 %v1305, %v1380
  %v1387 = vsub.f32 %v1306, %v1380
  %v1388 = vsub.f32 %v1307, %v1380
  %v1389 = vsub.f32 %v1308, %v1380
  %v1390 = vsub.f32 %v1309, %v1380
  %v1391 = vsub.f32 %v1310, %v1380
  %v1392 = vsub.f32 %v1311, %v1380
  %v1393 = vsub.f32 %v1312, %v1380
  %v1394 = vsub.f32 %v1313, %v1380
  %v1395 = vsub.f32 %v1314, %v1380
  %v1396 = vsub.f32 %v1315, %v1380
  %v1397 = vsub.f32 %v1316, %v1380
  %v1398 = vsub.f32 %v1317, %v1380
  %v1399 = vsub.f32 %v1318, %v1380
  %v1400 = vsub.f32 %v1319, %v1380
  %v1401 = vsub.f32 %v1320, %v1380
  %v1402 = vsub.f32 %v1321, %v1380
  %v1403 = vsub.f32 %v1322, %v1380
  %v1404 = vsub.f32 %v1323, %v1380
  %v1405 = vsub.f32 %v1324, %v1380
  %v1406 = vsub.f32 %v1325, %v1380
  %v1407 = vsub.f32 %v1326, %v1380
  %v1408 = vsub.f32 %v1327, %v1380
  %v1409 = vsub.f32 %v1328, %v1380
  %v1410 = vsub.f32 %v1329, %v1380
  %v1411 = vsub.f32 %v1330, %v1380
  %v1412 = vsub.f32 %v1331, %v1380
  %v1413 = vsub.f32 %v1332, %v1380
  %v1414 = vsub.f32 %v1333, %v1380
  %v1415 = vsub.f32 %v1334, %v1380
  %v1416 = vsub.f32 %v1335, %v1380
  %v1417 = vsub.f32 %v1336, %v1380
  %v1418 = vsub.f32 %v1337, %v1380
  %v1419 = vsub.f32 %v1338, %v1380
  %v1420 = vsub.f32 %v1339, %v1380
  %v1421 = vsub.f32 %v1340, %v1380
  %v1422 = vsub.f32 %v1341, %v1380
  %v1423 = vsub.f32 %v1342, %v1380
  %v1424 = vsub.f32 %v1343, %v1380
  %v1425 = vsub.f32 %v1344, %v1380
  %v1426 = vsub.f32 %v1345, %v1380
  %v1427 = vsub.f32 %v1346, %v1380
  %v1428 = vsub.f32 %v1347, %v1380
  %v1429 = vsub.f32 %v1348, %v1380
  %v1430 = vsub.f32 %v1349, %v1380
  %v1431 = vsub.f32 %v1350, %v1380
  %v1432 = vsub.f32 %v1351, %v1380
  %v1433 = vsub.f32 %v1352, %v1380
  %v1434 = vsub.f32 %v1353, %v1380
  %v1435 = vsub.f32 %v1354, %v1380
  %v1436 = vsub.f32 %v1355, %v1380
  %v1437 = vsub.f32 %v1356, %v1380
  %v1438 = vsub.f32 %v1357, %v1380
  %v1439 = vsub.f32 %v1358, %v1380
  %v1440 = vsub.f32 %v1359, %v1380
  %v1441 = vsub.f32 %v1360, %v1380
  %v1442 = vsub.f32 %v1361, %v1380
  %v1443 = vsub.f32 %v1362, %v1380
  %v1444 = vsub.f32 %v1363, %v1380
  %v1445 = vsub.f32 %v1364, %v1380
  %v1447 = vlaneseq
  %v1448 = vshrl.u32 %v1447, 7
  %v1449 = vsub.s32 0, %v1448
  %v1450 = vrot.slane %v1375, %v1449
  %v1452 = vmul.f32 %v1382, %v1450
  %v1453 = vmul.f32 %v1383, %v1450
  %v1454 = vmul.f32 %v1384, %v1450
  %v1455 = vmul.f32 %v1385, %v1450
  %v1456 = vmul.f32 %v1386, %v1450
  %v1457 = vmul.f32 %v1387, %v1450
  %v1458 = vmul.f32 %v1388, %v1450
  %v1459 = vmul.f32 %v1389, %v1450
  %v1460 = vmul.f32 %v1390, %v1450
  %v1461 = vmul.f32 %v1391, %v1450
  %v1462 = vmul.f32 %v1392, %v1450
  %v1463 = vmul.f32 %v1393, %v1450
  %v1464 = vmul.f32 %v1394, %v1450
  %v1465 = vmul.f32 %v1395, %v1450
  %v1466 = vmul.f32 %v1396, %v1450
  %v1467 = vmul.f32 %v1397, %v1450
  %v1468 = vmul.f32 %v1398, %v1450
  %v1469 = vmul.f32 %v1399, %v1450
  %v1470 = vmul.f32 %v1400, %v1450
  %v1471 = vmul.f32 %v1401, %v1450
  %v1472 = vmul.f32 %v1402, %v1450
  %v1473 = vmul.f32 %v1403, %v1450
  %v1474 = vmul.f32 %v1404, %v1450
  %v1475 = vmul.f32 %v1405, %v1450
  %v1476 = vmul.f32 %v1406, %v1450
  %v1477 = vmul.f32 %v1407, %v1450
  %v1478 = vmul.f32 %v1408, %v1450
  %v1479 = vmul.f32 %v1409, %v1450
  %v1480 = vmul.f32 %v1410, %v1450
  %v1481 = vmul.f32 %v1411, %v1450
  %v1482 = vmul.f32 %v1412, %v1450
  %v1483 = vmul.f32 %v1413, %v1450
  %v1484 = vmul.f32 %v1414, %v1450
  %v1485 = vmul.f32 %v1415, %v1450
  %v1486 = vmul.f32 %v1416, %v1450
  %v1487 = vmul.f32 %v1417, %v1450
  %v1488 = vmul.f32 %v1418, %v1450
  %v1489 = vmul.f32 %v1419, %v1450
  %v1490 = vmul.f32 %v1420, %v1450
  %v1491 = vmul.f32 %v1421, %v1450
  %v1492 = vmul.f32 %v1422, %v1450
  %v1493 = vmul.f32 %v1423, %v1450
  %v1494 = vmul.f32 %v1424, %v1450
  %v1495 = vmul.f32 %v1425, %v1450
  %v1496 = vmul.f32 %v1426, %v1450
  %v1497 = vmul.f32 %v1427, %v1450
  %v1498 = vmul.f32 %v1428, %v1450
  %v1499 = vmul.f32 %v1429, %v1450
  %v1500 = vmul.f32 %v1430, %v1450
  %v1501 = vmul.f32 %v1431, %v1450
  %v1502 = vmul.f32 %v1432, %v1450
  %v1503 = vmul.f32 %v1433, %v1450
  %v1504 = vmul.f32 %v1434, %v1450
  %v1505 = vmul.f32 %v1435, %v1450
  %v1506 = vmul.f32 %v1436, %v1450
  %v1507 = vmul.f32 %v1437, %v1450
  %v1508 = vmul.f32 %v1438, %v1450
  %v1509 = vmul.f32 %v1439, %v1450
  %v1510 = vmul.f32 %v1440, %v1450
  %v1511 = vmul.f32 %v1441, %v1450
  %v1512 = vmul.f32 %v1442, %v1450
  %v1513 = vmul.f32 %v1443, %v1450
  %v1514 = vmul.f32 %v1444, %v1450
  %v1515 = vmul.f32 %v1445, %v1450
  %v1516 = vld [vmem:[#allocation6] sm:$0x1]
  %v1518 = vlaneseq
  %v1519 = vshrl.u32 %v1518, 7
  %v1520 = vsub.s32 0, %v1519
  %v1521 = vrot.slane %v1516, %v1520
  %v1523 = vadd.f32 %v1452, %v1521
  %v1524 = vadd.f32 %v1453, %v1521
  %v1525 = vadd.f32 %v1454, %v1521
  %v1526 = vadd.f32 %v1455, %v1521
  %v1527 = vadd.f32 %v1456, %v1521
  %v1528 = vadd.f32 %v1457, %v1521
  %v1529 = vadd.f32 %v1458, %v1521
  %v1530 = vadd.f32 %v1459, %v1521
  %v1531 = vadd.f32 %v1460, %v1521
  %v1532 = vadd.f32 %v1461, %v1521
  %v1533 = vadd.f32 %v1462, %v1521
  %v1534 = vadd.f32 %v1463, %v1521
  %v1535 = vadd.f32 %v1464, %v1521
  %v1536 = vadd.f32 %v1465, %v1521
  %v1537 = vadd.f32 %v1466, %v1521
  %v1538 = vadd.f32 %v1467, %v1521
  %v1539 = vadd.f32 %v1468, %v1521
  %v1540 = vadd.f32 %v1469, %v1521
  %v1541 = vadd.f32 %v1470, %v1521
  %v1542 = vadd.f32 %v1471, %v1521
  %v1543 = vadd.f32 %v1472, %v1521
  %v1544 = vadd.f32 %v1473, %v1521
  %v1545 = vadd.f32 %v1474, %v1521
  %v1546 = vadd.f32 %v1475, %v1521
  %v1547 = vadd.f32 %v1476, %v1521
  %v1548 = vadd.f32 %v1477, %v1521
  %v1549 = vadd.f32 %v1478, %v1521
  %v1550 = vadd.f32 %v1479, %v1521
  %v1551 = vadd.f32 %v1480, %v1521
  %v1552 = vadd.f32 %v1481, %v1521
  %v1553 = vadd.f32 %v1482, %v1521
  %v1554 = vadd.f32 %v1483, %v1521
  %v1555 = vadd.f32 %v1484, %v1521
  %v1556 = vadd.f32 %v1485, %v1521
  %v1557 = vadd.f32 %v1486, %v1521
  %v1558 = vadd.f32 %v1487, %v1521
  %v1559 = vadd.f32 %v1488, %v1521
  %v1560 = vadd.f32 %v1489, %v1521
  %v1561 = vadd.f32 %v1490, %v1521
  %v1562 = vadd.f32 %v1491, %v1521
  %v1563 = vadd.f32 %v1492, %v1521
  %v1564 = vadd.f32 %v1493, %v1521
  %v1565 = vadd.f32 %v1494, %v1521
  %v1566 = vadd.f32 %v1495, %v1521
  %v1567 = vadd.f32 %v1496, %v1521
  %v1568 = vadd.f32 %v1497, %v1521
  %v1569 = vadd.f32 %v1498, %v1521
  %v1570 = vadd.f32 %v1499, %v1521
  %v1571 = vadd.f32 %v1500, %v1521
  %v1572 = vadd.f32 %v1501, %v1521
  %v1573 = vadd.f32 %v1502, %v1521
  %v1574 = vadd.f32 %v1503, %v1521
  %v1575 = vadd.f32 %v1504, %v1521
  %v1576 = vadd.f32 %v1505, %v1521
  %v1577 = vadd.f32 %v1506, %v1521
  %v1578 = vadd.f32 %v1507, %v1521
  %v1579 = vadd.f32 %v1508, %v1521
  %v1580 = vadd.f32 %v1509, %v1521
  %v1581 = vadd.f32 %v1510, %v1521
  %v1582 = vadd.f32 %v1511, %v1521
  %v1583 = vadd.f32 %v1512, %v1521
  %v1584 = vadd.f32 %v1513, %v1521
  %v1585 = vadd.f32 %v1514, %v1521
  %v1586 = vadd.f32 %v1515, %v1521
  %v1587 = vtanh.pop %v1523
  %v1588 = vtanh.pop %v1524
  %v1589 = vtanh.pop %v1525
  %v1590 = vtanh.pop %v1526
  %v1591 = vtanh.pop %v1527
  %v1592 = vtanh.pop %v1528
  %v1593 = vtanh.pop %v1529
  %v1594 = vtanh.pop %v1530
  %v1595 = vtanh.pop %v1531
  %v1596 = vtanh.pop %v1532
  %v1597 = vtanh.pop %v1533
  %v1598 = vtanh.pop %v1534
  %v1599 = vtanh.pop %v1535
  %v1600 = vtanh.pop %v1536
  %v1601 = vtanh.pop %v1537
  %v1602 = vtanh.pop %v1538
  %v1603 = vtanh.pop %v1539
  %v1604 = vtanh.pop %v1540
  %v1605 = vtanh.pop %v1541
  %v1606 = vtanh.pop %v1542
  %v1607 = vtanh.pop %v1543
  %v1608 = vtanh.pop %v1544
  %v1609 = vtanh.pop %v1545
  %v1610 = vtanh.pop %v1546
  %v1611 = vtanh.pop %v1547
  %v1612 = vtanh.pop %v1548
  %v1613 = vtanh.pop %v1549
  %v1614 = vtanh.pop %v1550
  %v1615 = vtanh.pop %v1551
  %v1616 = vtanh.pop %v1552
  %v1617 = vtanh.pop %v1553
  %v1618 = vtanh.pop %v1554
  %v1619 = vtanh.pop %v1555
  %v1620 = vtanh.pop %v1556
  %v1621 = vtanh.pop %v1557
  %v1622 = vtanh.pop %v1558
  %v1623 = vtanh.pop %v1559
  %v1624 = vtanh.pop %v1560
  %v1625 = vtanh.pop %v1561
  %v1626 = vtanh.pop %v1562
  %v1627 = vtanh.pop %v1563
  %v1628 = vtanh.pop %v1564
  %v1629 = vtanh.pop %v1565
  %v1630 = vtanh.pop %v1566
  %v1631 = vtanh.pop %v1567
  %v1632 = vtanh.pop %v1568
  %v1633 = vtanh.pop %v1569
  %v1634 = vtanh.pop %v1570
  %v1635 = vtanh.pop %v1571
  %v1636 = vtanh.pop %v1572
  %v1637 = vtanh.pop %v1573
  %v1638 = vtanh.pop %v1574
  %v1639 = vtanh.pop %v1575
  %v1640 = vtanh.pop %v1576
  %v1641 = vtanh.pop %v1577
  %v1642 = vtanh.pop %v1578
  %v1643 = vtanh.pop %v1579
  %v1644 = vtanh.pop %v1580
  %v1645 = vtanh.pop %v1581
  %v1646 = vtanh.pop %v1582
  %v1647 = vtanh.pop %v1583
  %v1648 = vtanh.pop %v1584
  %v1649 = vtanh.pop %v1585
  %v1650 = vtanh.pop %v1586
  %v1651 = vpack.c.bf16 %v1588, %v1587
  %v1652 = vpack.c.bf16 %v1590, %v1589
  %v1653 = vpack.c.bf16 %v1592, %v1591
  %v1654 = vpack.c.bf16 %v1594, %v1593
  %v1655 = vpack.c.bf16 %v1596, %v1595
  %v1656 = vpack.c.bf16 %v1598, %v1597
  %v1657 = vpack.c.bf16 %v1600, %v1599
  %v1658 = vpack.c.bf16 %v1602, %v1601
  %v1659 = vpack.c.bf16 %v1604, %v1603
  %v1660 = vpack.c.bf16 %v1606, %v1605
  %v1661 = vpack.c.bf16 %v1608, %v1607
  %v1662 = vpack.c.bf16 %v1610, %v1609
  %v1663 = vpack.c.bf16 %v1612, %v1611
  %v1664 = vpack.c.bf16 %v1614, %v1613
  %v1665 = vpack.c.bf16 %v1616, %v1615
  %v1666 = vpack.c.bf16 %v1618, %v1617
  %v1667 = vpack.c.bf16 %v1620, %v1619
  %v1668 = vpack.c.bf16 %v1622, %v1621
  %v1669 = vpack.c.bf16 %v1624, %v1623
  %v1670 = vpack.c.bf16 %v1626, %v1625
  %v1671 = vpack.c.bf16 %v1628, %v1627
  %v1672 = vpack.c.bf16 %v1630, %v1629
  %v1673 = vpack.c.bf16 %v1632, %v1631
  %v1674 = vpack.c.bf16 %v1634, %v1633
  %v1675 = vpack.c.bf16 %v1636, %v1635
  %v1676 = vpack.c.bf16 %v1638, %v1637
  %v1677 = vpack.c.bf16 %v1640, %v1639
  %v1678 = vpack.c.bf16 %v1642, %v1641
  %v1679 = vpack.c.bf16 %v1644, %v1643
  %v1680 = vpack.c.bf16 %v1646, %v1645
  %v1681 = vpack.c.bf16 %v1648, %v1647
  %v1682 = vpack.c.bf16 %v1650, %v1649
  %v1715 = vunpack.c.l.b16 %v1651
  %v1716 = vunpack.c.h.b16 %v1651
  %v1717 = vunpack.c.l.b16 %v1652
  %v1718 = vunpack.c.h.b16 %v1652
  %v1719 = vunpack.c.l.b16 %v1653
  %v1720 = vunpack.c.h.b16 %v1653
  %v1721 = vunpack.c.l.b16 %v1654
  %v1722 = vunpack.c.h.b16 %v1654
  %v1723 = vunpack.c.l.b16 %v1655
  %v1724 = vunpack.c.h.b16 %v1655
  %v1725 = vunpack.c.l.b16 %v1656
  %v1726 = vunpack.c.h.b16 %v1656
  %v1727 = vunpack.c.l.b16 %v1657
  %v1728 = vunpack.c.h.b16 %v1657
  %v1729 = vunpack.c.l.b16 %v1658
  %v1730 = vunpack.c.h.b16 %v1658
  %v1731 = vunpack.c.l.b16 %v1659
  %v1732 = vunpack.c.h.b16 %v1659
  %v1733 = vunpack.c.l.b16 %v1660
  %v1734 = vunpack.c.h.b16 %v1660
  %v1735 = vunpack.c.l.b16 %v1661
  %v1736 = vunpack.c.h.b16 %v1661
  %v1737 = vunpack.c.l.b16 %v1662
  %v1738 = vunpack.c.h.b16 %v1662
  %v1739 = vunpack.c.l.b16 %v1663
  %v1740 = vunpack.c.h.b16 %v1663
  %v1741 = vunpack.c.l.b16 %v1664
  %v1742 = vunpack.c.h.b16 %v1664
  %v1743 = vunpack.c.l.b16 %v1665
  %v1744 = vunpack.c.h.b16 %v1665
  %v1745 = vunpack.c.l.b16 %v1666
  %v1746 = vunpack.c.h.b16 %v1666
  %v1747 = vunpack.c.l.b16 %v1667
  %v1748 = vunpack.c.h.b16 %v1667
  %v1749 = vunpack.c.l.b16 %v1668
  %v1750 = vunpack.c.h.b16 %v1668
  %v1751 = vunpack.c.l.b16 %v1669
  %v1752 = vunpack.c.h.b16 %v1669
  %v1753 = vunpack.c.l.b16 %v1670
  %v1754 = vunpack.c.h.b16 %v1670
  %v1755 = vunpack.c.l.b16 %v1671
  %v1756 = vunpack.c.h.b16 %v1671
  %v1757 = vunpack.c.l.b16 %v1672
  %v1758 = vunpack.c.h.b16 %v1672
  %v1759 = vunpack.c.l.b16 %v1673
  %v1760 = vunpack.c.h.b16 %v1673
  %v1761 = vunpack.c.l.b16 %v1674
  %v1762 = vunpack.c.h.b16 %v1674
  %v1763 = vunpack.c.l.b16 %v1675
  %v1764 = vunpack.c.h.b16 %v1675
  %v1765 = vunpack.c.l.b16 %v1676
  %v1766 = vunpack.c.h.b16 %v1676
  %v1767 = vunpack.c.l.b16 %v1677
  %v1768 = vunpack.c.h.b16 %v1677
  %v1769 = vunpack.c.l.b16 %v1678
  %v1770 = vunpack.c.h.b16 %v1678
  %v1771 = vunpack.c.l.b16 %v1679
  %v1772 = vunpack.c.h.b16 %v1679
  %v1773 = vunpack.c.l.b16 %v1680
  %v1774 = vunpack.c.h.b16 %v1680
  %v1775 = vunpack.c.l.b16 %v1681
  %v1776 = vunpack.c.h.b16 %v1681
  %v1777 = vunpack.c.l.b16 %v1682
  %v1778 = vunpack.c.h.b16 %v1682
  %v1779 = vpack.c.b16 %v1715, %v1715
  %v1780 = vpack.c.b16 %v1716, %v1716
  %v1781 = vpack.c.b16 %v1717, %v1717
  %v1782 = vpack.c.b16 %v1718, %v1718
  %v1783 = vpack.c.b16 %v1719, %v1719
  %v1784 = vpack.c.b16 %v1720, %v1720
  %v1785 = vpack.c.b16 %v1721, %v1721
  %v1786 = vpack.c.b16 %v1722, %v1722
  %v1787 = vpack.c.b16 %v1723, %v1723
  %v1788 = vpack.c.b16 %v1724, %v1724
  %v1789 = vpack.c.b16 %v1725, %v1725
  %v1790 = vpack.c.b16 %v1726, %v1726
  %v1791 = vpack.c.b16 %v1727, %v1727
  %v1792 = vpack.c.b16 %v1728, %v1728
  %v1793 = vpack.c.b16 %v1729, %v1729
  %v1794 = vpack.c.b16 %v1730, %v1730
  %v1795 = vpack.c.b16 %v1731, %v1731
  %v1796 = vpack.c.b16 %v1732, %v1732
  %v1797 = vpack.c.b16 %v1733, %v1733
  %v1798 = vpack.c.b16 %v1734, %v1734
  %v1799 = vpack.c.b16 %v1735, %v1735
  %v1800 = vpack.c.b16 %v1736, %v1736
  %v1801 = vpack.c.b16 %v1737, %v1737
  %v1802 = vpack.c.b16 %v1738, %v1738
  %v1803 = vpack.c.b16 %v1739, %v1739
  %v1804 = vpack.c.b16 %v1740, %v1740
  %v1805 = vpack.c.b16 %v1741, %v1741
  %v1806 = vpack.c.b16 %v1742, %v1742
  %v1807 = vpack.c.b16 %v1743, %v1743
  %v1808 = vpack.c.b16 %v1744, %v1744
  %v1809 = vpack.c.b16 %v1745, %v1745
  %v1810 = vpack.c.b16 %v1746, %v1746
  %v1811 = vpack.c.b16 %v1747, %v1747
  %v1812 = vpack.c.b16 %v1748, %v1748
  %v1813 = vpack.c.b16 %v1749, %v1749
  %v1814 = vpack.c.b16 %v1750, %v1750
  %v1815 = vpack.c.b16 %v1751, %v1751
  %v1816 = vpack.c.b16 %v1752, %v1752
  %v1817 = vpack.c.b16 %v1753, %v1753
  %v1818 = vpack.c.b16 %v1754, %v1754
  %v1819 = vpack.c.b16 %v1755, %v1755
  %v1820 = vpack.c.b16 %v1756, %v1756
  %v1821 = vpack.c.b16 %v1757, %v1757
  %v1822 = vpack.c.b16 %v1758, %v1758
  %v1823 = vpack.c.b16 %v1759, %v1759
  %v1824 = vpack.c.b16 %v1760, %v1760
  %v1825 = vpack.c.b16 %v1761, %v1761
  %v1826 = vpack.c.b16 %v1762, %v1762
  %v1827 = vpack.c.b16 %v1763, %v1763
  %v1828 = vpack.c.b16 %v1764, %v1764
  %v1829 = vpack.c.b16 %v1765, %v1765
  %v1830 = vpack.c.b16 %v1766, %v1766
  %v1831 = vpack.c.b16 %v1767, %v1767
  %v1832 = vpack.c.b16 %v1768, %v1768
  %v1833 = vpack.c.b16 %v1769, %v1769
  %v1834 = vpack.c.b16 %v1770, %v1770
  %v1835 = vpack.c.b16 %v1771, %v1771
  %v1836 = vpack.c.b16 %v1772, %v1772
  %v1837 = vpack.c.b16 %v1773, %v1773
  %v1838 = vpack.c.b16 %v1774, %v1774
  %v1839 = vpack.c.b16 %v1775, %v1775
  %v1840 = vpack.c.b16 %v1776, %v1776
  %v1841 = vpack.c.b16 %v1777, %v1777
  %v1842 = vpack.c.b16 %v1778, %v1778
  %vm1907 = vcmask 3072
  %1908 = vst.msk [vmem:[%s9] sm:$0xf] %vm1907, %v1779
  %1909 = vst.msk [vmem:[%s9 + $0x4] sm:$0xf] %vm1907, %v1780
  %1910 = vst.msk [vmem:[%s9 + $0x8] sm:$0xf] %vm1907, %v1781
  %1911 = vst.msk [vmem:[%s9 + $0xc] sm:$0xf] %vm1907, %v1782
  %1912 = vst.msk [vmem:[%s9 + $0x10] sm:$0xf] %vm1907, %v1783
  %1913 = vst.msk [vmem:[%s9 + $0x14] sm:$0xf] %vm1907, %v1784
  %1914 = vst.msk [vmem:[%s9 + $0x18] sm:$0xf] %vm1907, %v1785
  %1915 = vst.msk [vmem:[%s9 + $0x1c] sm:$0xf] %vm1907, %v1786
  %1916 = vst.msk [vmem:[%s9 + $0x20] sm:$0xf] %vm1907, %v1787
  %1917 = vst.msk [vmem:[%s9 + $0x24] sm:$0xf] %vm1907, %v1788
  %1918 = vst.msk [vmem:[%s9 + $0x28] sm:$0xf] %vm1907, %v1789
  %1919 = vst.msk [vmem:[%s9 + $0x2c] sm:$0xf] %vm1907, %v1790
  %1920 = vst.msk [vmem:[%s9 + $0x30] sm:$0xf] %vm1907, %v1791
  %1921 = vst.msk [vmem:[%s9 + $0x34] sm:$0xf] %vm1907, %v1792
  %1922 = vst.msk [vmem:[%s9 + $0x38] sm:$0xf] %vm1907, %v1793
  %1923 = vst.msk [vmem:[%s9 + $0x3c] sm:$0xf] %vm1907, %v1794
  %1924 = vst.msk [vmem:[%s9 + $0x40] sm:$0xf] %vm1907, %v1795
  %1925 = vst.msk [vmem:[%s9 + $0x44] sm:$0xf] %vm1907, %v1796
  %1926 = vst.msk [vmem:[%s9 + $0x48] sm:$0xf] %vm1907, %v1797
  %1927 = vst.msk [vmem:[%s9 + $0x4c] sm:$0xf] %vm1907, %v1798
  %1928 = vst.msk [vmem:[%s9 + $0x50] sm:$0xf] %vm1907, %v1799
  %1929 = vst.msk [vmem:[%s9 + $0x54] sm:$0xf] %vm1907, %v1800
  %1930 = vst.msk [vmem:[%s9 + $0x58] sm:$0xf] %vm1907, %v1801
  %1931 = vst.msk [vmem:[%s9 + $0x5c] sm:$0xf] %vm1907, %v1802
  %1932 = vst.msk [vmem:[%s9 + $0x60] sm:$0xf] %vm1907, %v1803
  %1933 = vst.msk [vmem:[%s9 + $0x64] sm:$0xf] %vm1907, %v1804
  %1934 = vst.msk [vmem:[%s9 + $0x68] sm:$0xf] %vm1907, %v1805
  %1935 = vst.msk [vmem:[%s9 + $0x6c] sm:$0xf] %vm1907, %v1806
  %1936 = vst.msk [vmem:[%s9 + $0x70] sm:$0xf] %vm1907, %v1807
  %1937 = vst.msk [vmem:[%s9 + $0x74] sm:$0xf] %vm1907, %v1808
  %1938 = vst.msk [vmem:[%s9 + $0x78] sm:$0xf] %vm1907, %v1809
  %1939 = vst.msk [vmem:[%s9 + $0x7c] sm:$0xf] %vm1907, %v1810
  %1940 = vst.msk [vmem:[%s9 + $0x80] sm:$0xf] %vm1907, %v1811
  %1941 = vst.msk [vmem:[%s9 + $0x84] sm:$0xf] %vm1907, %v1812
  %1942 = vst.msk [vmem:[%s9 + $0x88] sm:$0xf] %vm1907, %v1813
  %1943 = vst.msk [vmem:[%s9 + $0x8c] sm:$0xf] %vm1907, %v1814
  %1944 = vst.msk [vmem:[%s9 + $0x90] sm:$0xf] %vm1907, %v1815
  %1945 = vst.msk [vmem:[%s9 + $0x94] sm:$0xf] %vm1907, %v1816
  %1946 = vst.msk [vmem:[%s9 + $0x98] sm:$0xf] %vm1907, %v1817
  %1947 = vst.msk [vmem:[%s9 + $0x9c] sm:$0xf] %vm1907, %v1818
  %1948 = vst.msk [vmem:[%s9 + $0xa0] sm:$0xf] %vm1907, %v1819
  %1949 = vst.msk [vmem:[%s9 + $0xa4] sm:$0xf] %vm1907, %v1820
  %1950 = vst.msk [vmem:[%s9 + $0xa8] sm:$0xf] %vm1907, %v1821
  %1951 = vst.msk [vmem:[%s9 + $0xac] sm:$0xf] %vm1907, %v1822
  %1952 = vst.msk [vmem:[%s9 + $0xb0] sm:$0xf] %vm1907, %v1823
  %1953 = vst.msk [vmem:[%s9 + $0xb4] sm:$0xf] %vm1907, %v1824
  %1954 = vst.msk [vmem:[%s9 + $0xb8] sm:$0xf] %vm1907, %v1825
  %1955 = vst.msk [vmem:[%s9 + $0xbc] sm:$0xf] %vm1907, %v1826
  %1956 = vst.msk [vmem:[%s9 + $0xc0] sm:$0xf] %vm1907, %v1827
  %1957 = vst.msk [vmem:[%s9 + $0xc4] sm:$0xf] %vm1907, %v1828
  %1958 = vst.msk [vmem:[%s9 + $0xc8] sm:$0xf] %vm1907, %v1829
  %1959 = vst.msk [vmem:[%s9 + $0xcc] sm:$0xf] %vm1907, %v1830
  %1960 = vst.msk [vmem:[%s9 + $0xd0] sm:$0xf] %vm1907, %v1831
  %1961 = vst.msk [vmem:[%s9 + $0xd4] sm:$0xf] %vm1907, %v1832
  %1962 = vst.msk [vmem:[%s9 + $0xd8] sm:$0xf] %vm1907, %v1833
  %1963 = vst.msk [vmem:[%s9 + $0xdc] sm:$0xf] %vm1907, %v1834
  %1964 = vst.msk [vmem:[%s9 + $0xe0] sm:$0xf] %vm1907, %v1835
  %1965 = vst.msk [vmem:[%s9 + $0xe4] sm:$0xf] %vm1907, %v1836
  %1966 = vst.msk [vmem:[%s9 + $0xe8] sm:$0xf] %vm1907, %v1837
  %1967 = vst.msk [vmem:[%s9 + $0xec] sm:$0xf] %vm1907, %v1838
  %1968 = vst.msk [vmem:[%s9 + $0xf0] sm:$0xf] %vm1907, %v1839
  %1969 = vst.msk [vmem:[%s9 + $0xf4] sm:$0xf] %vm1907, %v1840
  %1970 = vst.msk [vmem:[%s9 + $0xf8] sm:$0xf] %vm1907, %v1841
  %1971 = vst.msk [vmem:[%s9 + $0xfc] sm:$0xf] %vm1907, %v1842
  // Predicated region
  $region38: #{generator_forward.23} parent=0 // pred_check
    _
  $region39: #{generator_forward.23} parent=0 // pred_check_branch
    %1973 = sbr.rel (0) target = $region41
  $region40: #{generator_forward.23} parent=0 // pred_region
    _
  $region41: #{generator_forward.23} parent=0 // pred_fallthru
    _
  // Predicated region
  $region42: #{generator_forward.23} parent=0 // pred_check
    _
  $region43: #{generator_forward.23} parent=0 // pred_check_branch
    %1975 = sbr.rel (0) target = $region45
  $region44: #{generator_forward.23} parent=0 // pred_region
    _
  $region45: #{generator_forward.23} parent=0 // pred_fallthru
    _

// kernel: generator_forward.22
$region0: #{generator_forward.22}
  #allocation0 [shape = 'u32[]', space=smem, size = 0x4, offset = 0x4, fixed_abs, tag = 'smem constant byte address 0x4 - core index']
  #allocation1 [shape = 'u32[144,128]{1,0:T(1,128)}', space=vmem, size = 0x12000, scoped, tag = 'internal scratch']
  #allocation2 [shape = 'f32[1,1]{1,0:T(1,128)S(1)}', space=vmem, size = 0x200, scoped, tag = 'scoped memory for generator_forward.22']
  %s0 = inlined_call_operand.vmem [shape: bf16[512,32], index: 0, kind: input, shape index: {}]
  %s1 = inlined_call_operand.vmem [shape: bf16[512,32], index: 1, kind: input, shape index: {}]
  %s2 = inlined_call_operand.vmem [shape: bf16[32,1], index: 2, kind: input, shape index: {}]
  %s3 = inlined_call_operand.vmem [shape: bf16[32,1], index: 3, kind: input, shape index: {}]
  %s4 = inlined_call_operand.<no memory space> [shape: f32[1,1], index: 4, kind: input, shape index: {}]
  %s5 = inlined_call_operand.hbm [shape: f32[1,1], index: 5, kind: output, shape index: {0}]
  %s6 = inlined_call_operand.hbm [shape: f32[1,1], index: 6, kind: output, shape index: {1}]
  %7 = xla_tuple %s5, %s6
  %s8 = sld [smem:[#allocation0]]
  $region42: #{generator_forward.22} parent=0
    _
  %s10 = ssub.s32 1, %s8
  %s11 = scalar_select 0, %s10, %s8
  %v12 = vstv %s4
  %13 = vst [vmem:[#allocation2] sm:$0x1] %v12
  $region1: #{generator_forward.22} parent=0
    #allocation3 [shape = 'u8[512]{0}', space=vmem, size = 0x400, scoped, tag = 'output window, operand 0, single buffered']
    #allocation4 [shape = 's32[1]{0}', space=sflag, size = 0x4, scoped, tag = 'scoped memory for generator_forward.22']
    #allocation5 [shape = 'u8[512]{0}', space=vmem, size = 0x400, scoped, tag = 'output window, operand 1, single buffered']
    #allocation6 [shape = 's32[1]{0}', space=sflag, size = 0x4, scoped, tag = 'scoped memory for generator_forward.22']
    %14 = vsyncpa [#allocation4], 0
    %15 = vsyncpa [#allocation6], 0
    // Predicated region
    $region2: #{generator_forward.22} parent=1 // pred_check
      _
    $region3: #{generator_forward.22} parent=1 // pred_check_branch
      %17 = sbr.rel (0) target = $region5
    $region4: #{generator_forward.22} parent=1 // pred_region
      _
    $region5: #{generator_forward.22} parent=1 // pred_fallthru
      _
    // Predicated region
    $region6: #{generator_forward.22} parent=1 // pred_check
      _
    $region7: #{generator_forward.22} parent=1 // pred_check_branch
      %19 = sbr.rel (0) target = $region9
    $region8: #{generator_forward.22} parent=1 // pred_region
      _
    $region9: #{generator_forward.22} parent=1 // pred_fallthru
      _
    // Predicated region
    $region10: #{generator_forward.22} parent=1 // pred_check
      _
    $region11: #{generator_forward.22} parent=1 // pred_check_branch
      %21 = sbr.rel (0) target = $region13
    $region12: #{generator_forward.22} parent=1 // pred_region
      _
    $region13: #{generator_forward.22} parent=1 // pred_fallthru
      _
    // Predicated region
    $region14: #{generator_forward.22} parent=1 // pred_check
      _
    $region15: #{generator_forward.22} parent=1 // pred_check_branch
      %23 = sbr.rel (0) target = $region17
    $region16: #{generator_forward.22} parent=1 // pred_region
      _
    $region17: #{generator_forward.22} parent=1 // pred_fallthru
      _
    // Predicated region
    $region18: #{generator_forward.22} parent=1 // pred_check
      _
    $region19: #{generator_forward.22} parent=1 // pred_check_branch
      %25 = sbr.rel (0) target = $region21
    $region20: #{generator_forward.22} parent=1 // pred_region
      _
    $region21: #{generator_forward.22} parent=1 // pred_fallthru
      _
    %v27 = vld [vmem:[%s0] sm:$0xf]
    %v28 = vld [vmem:[%s0 + $0x4] sm:$0xf]
    %v29 = vld [vmem:[%s0 + $0x8] sm:$0xf]
    %v30 = vld [vmem:[%s0 + $0xc] sm:$0xf]
    %v31 = vld [vmem:[%s0 + $0x10] sm:$0xf]
    %v32 = vld [vmem:[%s0 + $0x14] sm:$0xf]
    %v33 = vld [vmem:[%s0 + $0x18] sm:$0xf]
    %v34 = vld [vmem:[%s0 + $0x1c] sm:$0xf]
    %v35 = vld [vmem:[%s0 + $0x20] sm:$0xf]
    %v36 = vld [vmem:[%s0 + $0x24] sm:$0xf]
    %v37 = vld [vmem:[%s0 + $0x28] sm:$0xf]
    %v38 = vld [vmem:[%s0 + $0x2c] sm:$0xf]
    %v39 = vld [vmem:[%s0 + $0x30] sm:$0xf]
    %v40 = vld [vmem:[%s0 + $0x34] sm:$0xf]
    %v41 = vld [vmem:[%s0 + $0x38] sm:$0xf]
    %v42 = vld [vmem:[%s0 + $0x3c] sm:$0xf]
    %v43 = vld [vmem:[%s0 + $0x40] sm:$0xf]
    %v44 = vld [vmem:[%s0 + $0x44] sm:$0xf]
    %v45 = vld [vmem:[%s0 + $0x48] sm:$0xf]
    %v46 = vld [vmem:[%s0 + $0x4c] sm:$0xf]
    %v47 = vld [vmem:[%s0 + $0x50] sm:$0xf]
    %v48 = vld [vmem:[%s0 + $0x54] sm:$0xf]
    %v49 = vld [vmem:[%s0 + $0x58] sm:$0xf]
    %v50 = vld [vmem:[%s0 + $0x5c] sm:$0xf]
    %v51 = vld [vmem:[%s0 + $0x60] sm:$0xf]
    %v52 = vld [vmem:[%s0 + $0x64] sm:$0xf]
    %v53 = vld [vmem:[%s0 + $0x68] sm:$0xf]
    %v54 = vld [vmem:[%s0 + $0x6c] sm:$0xf]
    %v55 = vld [vmem:[%s0 + $0x70] sm:$0xf]
    %v56 = vld [vmem:[%s0 + $0x74] sm:$0xf]
    %v57 = vld [vmem:[%s0 + $0x78] sm:$0xf]
    %v58 = vld [vmem:[%s0 + $0x7c] sm:$0xf]
    %v59 = vld [vmem:[%s0 + $0x80] sm:$0xf]
    %v60 = vld [vmem:[%s0 + $0x84] sm:$0xf]
    %v61 = vld [vmem:[%s0 + $0x88] sm:$0xf]
    %v62 = vld [vmem:[%s0 + $0x8c] sm:$0xf]
    %v63 = vld [vmem:[%s0 + $0x90] sm:$0xf]
    %v64 = vld [vmem:[%s0 + $0x94] sm:$0xf]
    %v65 = vld [vmem:[%s0 + $0x98] sm:$0xf]
    %v66 = vld [vmem:[%s0 + $0x9c] sm:$0xf]
    %v67 = vld [vmem:[%s0 + $0xa0] sm:$0xf]
    %v68 = vld [vmem:[%s0 + $0xa4] sm:$0xf]
    %v69 = vld [vmem:[%s0 + $0xa8] sm:$0xf]
    %v70 = vld [vmem:[%s0 + $0xac] sm:$0xf]
    %v71 = vld [vmem:[%s0 + $0xb0] sm:$0xf]
    %v72 = vld [vmem:[%s0 + $0xb4] sm:$0xf]
    %v73 = vld [vmem:[%s0 + $0xb8] sm:$0xf]
    %v74 = vld [vmem:[%s0 + $0xbc] sm:$0xf]
    %v75 = vld [vmem:[%s0 + $0xc0] sm:$0xf]
    %v76 = vld [vmem:[%s0 + $0xc4] sm:$0xf]
    %v77 = vld [vmem:[%s0 + $0xc8] sm:$0xf]
    %v78 = vld [vmem:[%s0 + $0xcc] sm:$0xf]
    %v79 = vld [vmem:[%s0 + $0xd0] sm:$0xf]
    %v80 = vld [vmem:[%s0 + $0xd4] sm:$0xf]
    %v81 = vld [vmem:[%s0 + $0xd8] sm:$0xf]
    %v82 = vld [vmem:[%s0 + $0xdc] sm:$0xf]
    %v83 = vld [vmem:[%s0 + $0xe0] sm:$0xf]
    %v84 = vld [vmem:[%s0 + $0xe4] sm:$0xf]
    %v85 = vld [vmem:[%s0 + $0xe8] sm:$0xf]
    %v86 = vld [vmem:[%s0 + $0xec] sm:$0xf]
    %v87 = vld [vmem:[%s0 + $0xf0] sm:$0xf]
    %v88 = vld [vmem:[%s0 + $0xf4] sm:$0xf]
    %v89 = vld [vmem:[%s0 + $0xf8] sm:$0xf]
    %v90 = vld [vmem:[%s0 + $0xfc] sm:$0xf]
    %v91 = vld [vmem:[%s2] sm:$0xf]
    %v92 = vld [vmem:[%s2 + $0x4] sm:$0xf]
    %v93 = vld [vmem:[%s2 + $0x8] sm:$0xf]
    %v94 = vld [vmem:[%s2 + $0xc] sm:$0xf]
    %v95 = vld [vmem:[%s1] sm:$0xf]
    %v96 = vld [vmem:[%s1 + $0x4] sm:$0xf]
    %v97 = vld [vmem:[%s1 + $0x8] sm:$0xf]
    %v98 = vld [vmem:[%s1 + $0xc] sm:$0xf]
    %v99 = vld [vmem:[%s1 + $0x10] sm:$0xf]
    %v100 = vld [vmem:[%s1 + $0x14] sm:$0xf]
    %v101 = vld [vmem:[%s1 + $0x18] sm:$0xf]
    %v102 = vld [vmem:[%s1 + $0x1c] sm:$0xf]
    %v103 = vld [vmem:[%s1 + $0x20] sm:$0xf]
    %v104 = vld [vmem:[%s1 + $0x24] sm:$0xf]
    %v105 = vld [vmem:[%s1 + $0x28] sm:$0xf]
    %v106 = vld [vmem:[%s1 + $0x2c] sm:$0xf]
    %v107 = vld [vmem:[%s1 + $0x30] sm:$0xf]
    %v108 = vld [vmem:[%s1 + $0x34] sm:$0xf]
    %v109 = vld [vmem:[%s1 + $0x38] sm:$0xf]
    %v110 = vld [vmem:[%s1 + $0x3c] sm:$0xf]
    %v111 = vld [vmem:[%s1 + $0x40] sm:$0xf]
    %v112 = vld [vmem:[%s1 + $0x44] sm:$0xf]
    %v113 = vld [vmem:[%s1 + $0x48] sm:$0xf]
    %v114 = vld [vmem:[%s1 + $0x4c] sm:$0xf]
    %v115 = vld [vmem:[%s1 + $0x50] sm:$0xf]
    %v116 = vld [vmem:[%s1 + $0x54] sm:$0xf]
    %v117 = vld [vmem:[%s1 + $0x58] sm:$0xf]
    %v118 = vld [vmem:[%s1 + $0x5c] sm:$0xf]
    %v119 = vld [vmem:[%s1 + $0x60] sm:$0xf]
    %v120 = vld [vmem:[%s1 + $0x64] sm:$0xf]
    %v121 = vld [vmem:[%s1 + $0x68] sm:$0xf]
    %v122 = vld [vmem:[%s1 + $0x6c] sm:$0xf]
    %v123 = vld [vmem:[%s1 + $0x70] sm:$0xf]
    %v124 = vld [vmem:[%s1 + $0x74] sm:$0xf]
    %v125 = vld [vmem:[%s1 + $0x78] sm:$0xf]
    %v126 = vld [vmem:[%s1 + $0x7c] sm:$0xf]
    %v127 = vld [vmem:[%s1 + $0x80] sm:$0xf]
    %v128 = vld [vmem:[%s1 + $0x84] sm:$0xf]
    %v129 = vld [vmem:[%s1 + $0x88] sm:$0xf]
    %v130 = vld [vmem:[%s1 + $0x8c] sm:$0xf]
    %v131 = vld [vmem:[%s1 + $0x90] sm:$0xf]
    %v132 = vld [vmem:[%s1 + $0x94] sm:$0xf]
    %v133 = vld [vmem:[%s1 + $0x98] sm:$0xf]
    %v134 = vld [vmem:[%s1 + $0x9c] sm:$0xf]
    %v135 = vld [vmem:[%s1 + $0xa0] sm:$0xf]
    %v136 = vld [vmem:[%s1 + $0xa4] sm:$0xf]
    %v137 = vld [vmem:[%s1 + $0xa8] sm:$0xf]
    %v138 = vld [vmem:[%s1 + $0xac] sm:$0xf]
    %v139 = vld [vmem:[%s1 + $0xb0] sm:$0xf]
    %v140 = vld [vmem:[%s1 + $0xb4] sm:$0xf]
    %v141 = vld [vmem:[%s1 + $0xb8] sm:$0xf]
    %v142 = vld [vmem:[%s1 + $0xbc] sm:$0xf]
    %v143 = vld [vmem:[%s1 + $0xc0] sm:$0xf]
    %v144 = vld [vmem:[%s1 + $0xc4] sm:$0xf]
    %v145 = vld [vmem:[%s1 + $0xc8] sm:$0xf]
    %v146 = vld [vmem:[%s1 + $0xcc] sm:$0xf]
    %v147 = vld [vmem:[%s1 + $0xd0] sm:$0xf]
    %v148 = vld [vmem:[%s1 + $0xd4] sm:$0xf]
    %v149 = vld [vmem:[%s1 + $0xd8] sm:$0xf]
    %v150 = vld [vmem:[%s1 + $0xdc] sm:$0xf]
    %v151 = vld [vmem:[%s1 + $0xe0] sm:$0xf]
    %v152 = vld [vmem:[%s1 + $0xe4] sm:$0xf]
    %v153 = vld [vmem:[%s1 + $0xe8] sm:$0xf]
    %v154 = vld [vmem:[%s1 + $0xec] sm:$0xf]
    %v155 = vld [vmem:[%s1 + $0xf0] sm:$0xf]
    %v156 = vld [vmem:[%s1 + $0xf4] sm:$0xf]
    %v157 = vld [vmem:[%s1 + $0xf8] sm:$0xf]
    %v158 = vld [vmem:[%s1 + $0xfc] sm:$0xf]
    %v159 = vld [vmem:[%s3] sm:$0xf]
    %v160 = vld [vmem:[%s3 + $0x4] sm:$0xf]
    %v161 = vld [vmem:[%s3 + $0x8] sm:$0xf]
    %v162 = vld [vmem:[%s3 + $0xc] sm:$0xf]
    %v227 = vunpack.c.l.b16 %v95
    %v228 = vunpack.c.l.b16 %v96
    %v229 = vunpack.c.l.b16 %v97
    %v230 = vunpack.c.l.b16 %v98
    %v231 = vunpack.c.l.b16 %v99
    %v232 = vunpack.c.l.b16 %v100
    %v233 = vunpack.c.l.b16 %v101
    %v234 = vunpack.c.l.b16 %v102
    %v235 = vunpack.c.l.b16 %v103
    %v236 = vunpack.c.l.b16 %v104
    %v237 = vunpack.c.l.b16 %v105
    %v238 = vunpack.c.l.b16 %v106
    %v239 = vunpack.c.l.b16 %v107
    %v240 = vunpack.c.l.b16 %v108
    %v241 = vunpack.c.l.b16 %v109
    %v242 = vunpack.c.l.b16 %v110
    %v243 = vunpack.c.l.b16 %v111
    %v244 = vunpack.c.l.b16 %v112
    %v245 = vunpack.c.l.b16 %v113
    %v246 = vunpack.c.l.b16 %v114
    %v247 = vunpack.c.l.b16 %v115
    %v248 = vunpack.c.l.b16 %v116
    %v249 = vunpack.c.l.b16 %v117
    %v250 = vunpack.c.l.b16 %v118
    %v251 = vunpack.c.l.b16 %v119
    %v252 = vunpack.c.l.b16 %v120
    %v253 = vunpack.c.l.b16 %v121
    %v254 = vunpack.c.l.b16 %v122
    %v255 = vunpack.c.l.b16 %v123
    %v256 = vunpack.c.l.b16 %v124
    %v257 = vunpack.c.l.b16 %v125
    %v258 = vunpack.c.l.b16 %v126
    %v259 = vunpack.c.l.b16 %v127
    %v260 = vunpack.c.l.b16 %v128
    %v261 = vunpack.c.l.b16 %v129
    %v262 = vunpack.c.l.b16 %v130
    %v263 = vunpack.c.l.b16 %v131
    %v264 = vunpack.c.l.b16 %v132
    %v265 = vunpack.c.l.b16 %v133
    %v266 = vunpack.c.l.b16 %v134
    %v267 = vunpack.c.l.b16 %v135
    %v268 = vunpack.c.l.b16 %v136
    %v269 = vunpack.c.l.b16 %v137
    %v270 = vunpack.c.l.b16 %v138
    %v271 = vunpack.c.l.b16 %v139
    %v272 = vunpack.c.l.b16 %v140
    %v273 = vunpack.c.l.b16 %v141
    %v274 = vunpack.c.l.b16 %v142
    %v275 = vunpack.c.l.b16 %v143
    %v276 = vunpack.c.l.b16 %v144
    %v277 = vunpack.c.l.b16 %v145
    %v278 = vunpack.c.l.b16 %v146
    %v279 = vunpack.c.l.b16 %v147
    %v280 = vunpack.c.l.b16 %v148
    %v281 = vunpack.c.l.b16 %v149
    %v282 = vunpack.c.l.b16 %v150
    %v283 = vunpack.c.l.b16 %v151
    %v284 = vunpack.c.l.b16 %v152
    %v285 = vunpack.c.l.b16 %v153
    %v286 = vunpack.c.l.b16 %v154
    %v287 = vunpack.c.l.b16 %v155
    %v288 = vunpack.c.l.b16 %v156
    %v289 = vunpack.c.l.b16 %v157
    %v290 = vunpack.c.l.b16 %v158
    %v291 = vpack.c.b16 %v228, %v227
    %v292 = vpack.c.b16 %v230, %v229
    %v293 = vpack.c.b16 %v232, %v231
    %v294 = vpack.c.b16 %v234, %v233
    %v295 = vpack.c.b16 %v236, %v235
    %v296 = vpack.c.b16 %v238, %v237
    %v297 = vpack.c.b16 %v240, %v239
    %v298 = vpack.c.b16 %v242, %v241
    %v299 = vpack.c.b16 %v244, %v243
    %v300 = vpack.c.b16 %v246, %v245
    %v301 = vpack.c.b16 %v248, %v247
    %v302 = vpack.c.b16 %v250, %v249
    %v303 = vpack.c.b16 %v252, %v251
    %v304 = vpack.c.b16 %v254, %v253
    %v305 = vpack.c.b16 %v256, %v255
    %v306 = vpack.c.b16 %v258, %v257
    %v307 = vpack.c.b16 %v260, %v259
    %v308 = vpack.c.b16 %v262, %v261
    %v309 = vpack.c.b16 %v264, %v263
    %v310 = vpack.c.b16 %v266, %v265
    %v311 = vpack.c.b16 %v268, %v267
    %v312 = vpack.c.b16 %v270, %v269
    %v313 = vpack.c.b16 %v272, %v271
    %v314 = vpack.c.b16 %v274, %v273
    %v315 = vpack.c.b16 %v276, %v275
    %v316 = vpack.c.b16 %v278, %v277
    %v317 = vpack.c.b16 %v280, %v279
    %v318 = vpack.c.b16 %v282, %v281
    %v319 = vpack.c.b16 %v284, %v283
    %v320 = vpack.c.b16 %v286, %v285
    %v321 = vpack.c.b16 %v288, %v287
    %v322 = vpack.c.b16 %v290, %v289
    %v327 = vunpack.c.l.b16 %v159
    %v328 = vunpack.c.l.b16 %v160
    %v329 = vunpack.c.l.b16 %v161
    %v330 = vunpack.c.l.b16 %v162
    %v331 = vpack.c.b16 %v328, %v327
    %v332 = vpack.c.b16 %v330, %v329
    %vm335 = vcmask 261120
    %v337 = vsel %vm335, %v291, 0
    %v340 = vsel %vm335, %v292, 0
    %v343 = vsel %vm335, %v293, 0
    %v346 = vsel %vm335, %v294, 0
    %v349 = vsel %vm335, %v295, 0
    %v352 = vsel %vm335, %v296, 0
    %v355 = vsel %vm335, %v297, 0
    %v358 = vsel %vm335, %v298, 0
    %v361 = vsel %vm335, %v299, 0
    %v364 = vsel %vm335, %v300, 0
    %v367 = vsel %vm335, %v301, 0
    %v370 = vsel %vm335, %v302, 0
    %v373 = vsel %vm335, %v303, 0
    %v376 = vsel %vm335, %v304, 0
    %v379 = vsel %vm335, %v305, 0
    %v382 = vsel %vm335, %v306, 0
    %v385 = vsel %vm335, %v307, 0
    %v388 = vsel %vm335, %v308, 0
    %v391 = vsel %vm335, %v309, 0
    %v394 = vsel %vm335, %v310, 0
    %v397 = vsel %vm335, %v311, 0
    %v400 = vsel %vm335, %v312, 0
    %v403 = vsel %vm335, %v313, 0
    %v406 = vsel %vm335, %v314, 0
    %v409 = vsel %vm335, %v315, 0
    %v412 = vsel %vm335, %v316, 0
    %v415 = vsel %vm335, %v317, 0
    %v418 = vsel %vm335, %v318, 0
    %v421 = vsel %vm335, %v319, 0
    %v424 = vsel %vm335, %v320, 0
    %v427 = vsel %vm335, %v321, 0
    %v430 = vsel %vm335, %v322, 0
    %432 = vmatprep.subr.bf16.mxu0 0
    %433 = vmatpush1.bf16.msra.mxu0 %v331
    %434 = vmatprep.subr.bf16.mxu0 0
    %435 = vmatpush1.bf16.msra.mxu0 %v332
    %436 = vmatprep.subr.bf16.mxu0 0
    %437 = vmatpush1.bf16.msra.mxu0 0
    %438 = vmatprep.subr.bf16.mxu0 0
    %439 = vmatpush1.bf16.msra.mxu0 0
    %440 = vmatprep.subr.bf16.mxu0 0
    %441 = vmatpush1.bf16.msra.mxu0 0
    %442 = vmatprep.subr.bf16.mxu0 0
    %443 = vmatpush1.bf16.msra.mxu0 0
    %444 = vmatprep.subr.bf16.mxu0 0
    %445 = vmatpush1.bf16.msra.mxu0 0
    %446 = vmatprep.subr.bf16.mxu0 0
    %447 = vmatpush1.bf16.msra.mxu0 0
    %448 = vmatprep.subr.bf16.mxu0 0
    %449 = vmatpush1.bf16.msra.mxu0 0
    %450 = vmatprep.subr.bf16.mxu0 0
    %451 = vmatpush1.bf16.msra.mxu0 0
    %452 = vmatprep.subr.bf16.mxu0 0
    %453 = vmatpush1.bf16.msra.mxu0 0
    %454 = vmatprep.subr.bf16.mxu0 0
    %455 = vmatpush1.bf16.msra.mxu0 0
    %456 = vmatprep.subr.bf16.mxu0 0
    %457 = vmatpush1.bf16.msra.mxu0 0
    %458 = vmatprep.subr.bf16.mxu0 0
    %459 = vmatpush1.bf16.msra.mxu0 0
    %460 = vmatprep.subr.bf16.mxu0 0
    %461 = vmatpush1.bf16.msra.mxu0 0
    %462 = vmatprep.subr.bf16.mxu0 0
    %463 = vmatpush1.bf16.msra.mxu0 0
    %464 = vmatprep.mubr.bf16.mxu0 0
    %465 = vmatmul.mubr.bf16.gmra.mrb[0].mxu0 %v337
    %v466 = vpop.f32.mrb[0].mxu0
    %v467 = vadd.f32 0.0, %v466
    %v468 = vpop.f32.mrb[0].mxu0
    %v469 = vpop.f32.mrb[0].mxu0
    %v470 = vadd.f32 0.0, %v469
    %v471 = vpop.f32.mrb[0].mxu0
    %472 = vmatprep.mubr.bf16.mxu0 0
    %473 = vmatmul.mubr.bf16.gmra.mrb[0].mxu0 %v340
    %v474 = vpop.f32.mrb[0].mxu0
    %v475 = vadd.f32 0.0, %v474
    %v476 = vpop.f32.mrb[0].mxu0
    %v477 = vpop.f32.mrb[0].mxu0
    %v478 = vadd.f32 0.0, %v477
    %v479 = vpop.f32.mrb[0].mxu0
    %480 = vmatprep.mubr.bf16.mxu0 0
    %481 = vmatmul.mubr.bf16.gmra.mrb[0].mxu0 %v343
    %v482 = vpop.f32.mrb[0].mxu0
    %v483 = vadd.f32 0.0, %v482
    %v484 = vpop.f32.mrb[0].mxu0
    %v485 = vpop.f32.mrb[0].mxu0
    %v486 = vadd.f32 0.0, %v485
    %v487 = vpop.f32.mrb[0].mxu0
    %488 = vmatprep.mubr.bf16.mxu0 0
    %489 = vmatmul.mubr.bf16.gmra.mrb[0].mxu0 %v346
    %v490 = vpop.f32.mrb[0].mxu0
    %v491 = vadd.f32 0.0, %v490
    %v492 = vpop.f32.mrb[0].mxu0
    %v493 = vpop.f32.mrb[0].mxu0
    %v494 = vadd.f32 0.0, %v493
    %v495 = vpop.f32.mrb[0].mxu0
    %496 = vmatprep.mubr.bf16.mxu0 0
    %497 = vmatmul.mubr.bf16.gmra.mrb[0].mxu0 %v349
    %v498 = vpop.f32.mrb[0].mxu0
    %v499 = vadd.f32 0.0, %v498
    %v500 = vpop.f32.mrb[0].mxu0
    %v501 = vpop.f32.mrb[0].mxu0
    %v502 = vadd.f32 0.0, %v501
    %v503 = vpop.f32.mrb[0].mxu0
    %504 = vmatprep.mubr.bf16.mxu0 0
    %505 = vmatmul.mubr.bf16.gmra.mrb[0].mxu0 %v352
    %v506 = vpop.f32.mrb[0].mxu0
    %v507 = vadd.f32 0.0, %v506
    %v508 = vpop.f32.mrb[0].mxu0
    %v509 = vpop.f32.mrb[0].mxu0
    %v510 = vadd.f32 0.0, %v509
    %v511 = vpop.f32.mrb[0].mxu0
    %512 = vmatprep.mubr.bf16.mxu0 0
    %513 = vmatmul.mubr.bf16.gmra.mrb[0].mxu0 %v355
    %v514 = vpop.f32.mrb[0].mxu0
    %v515 = vadd.f32 0.0, %v514
    %v516 = vpop.f32.mrb[0].mxu0
    %v517 = vpop.f32.mrb[0].mxu0
    %v518 = vadd.f32 0.0, %v517
    %v519 = vpop.f32.mrb[0].mxu0
    %520 = vmatprep.mubr.bf16.mxu0 0
    %521 = vmatmul.mubr.bf16.gmra.mrb[0].mxu0 %v358
    %v522 = vpop.f32.mrb[0].mxu0
    %v523 = vadd.f32 0.0, %v522
    %v524 = vpop.f32.mrb[0].mxu0
    %v525 = vpop.f32.mrb[0].mxu0
    %v526 = vadd.f32 0.0, %v525
    %v527 = vpop.f32.mrb[0].mxu0
    %528 = vmatprep.mubr.bf16.mxu0 0
    %529 = vmatmul.mubr.bf16.gmra.mrb[0].mxu0 %v361
    %v530 = vpop.f32.mrb[0].mxu0
    %v531 = vadd.f32 0.0, %v530
    %v532 = vpop.f32.mrb[0].mxu0
    %v533 = vpop.f32.mrb[0].mxu0
    %v534 = vadd.f32 0.0, %v533
    %v535 = vpop.f32.mrb[0].mxu0
    %536 = vmatprep.mubr.bf16.mxu0 0
    %537 = vmatmul.mubr.bf16.gmra.mrb[0].mxu0 %v364
    %v538 = vpop.f32.mrb[0].mxu0
    %v539 = vadd.f32 0.0, %v538
    %v540 = vpop.f32.mrb[0].mxu0
    %v541 = vpop.f32.mrb[0].mxu0
    %v542 = vadd.f32 0.0, %v541
    %v543 = vpop.f32.mrb[0].mxu0
    %544 = vmatprep.mubr.bf16.mxu0 0
    %545 = vmatmul.mubr.bf16.gmra.mrb[0].mxu0 %v367
    %v546 = vpop.f32.mrb[0].mxu0
    %v547 = vadd.f32 0.0, %v546
    %v548 = vpop.f32.mrb[0].mxu0
    %v549 = vpop.f32.mrb[0].mxu0
    %v550 = vadd.f32 0.0, %v549
    %v551 = vpop.f32.mrb[0].mxu0
    %552 = vmatprep.mubr.bf16.mxu0 0
    %553 = vmatmul.mubr.bf16.gmra.mrb[0].mxu0 %v370
    %v554 = vpop.f32.mrb[0].mxu0
    %v555 = vadd.f32 0.0, %v554
    %v556 = vpop.f32.mrb[0].mxu0
    %v557 = vpop.f32.mrb[0].mxu0
    %v558 = vadd.f32 0.0, %v557
    %v559 = vpop.f32.mrb[0].mxu0
    %560 = vmatprep.mubr.bf16.mxu0 0
    %561 = vmatmul.mubr.bf16.gmra.mrb[0].mxu0 %v373
    %v562 = vpop.f32.mrb[0].mxu0
    %v563 = vadd.f32 0.0, %v562
    %v564 = vpop.f32.mrb[0].mxu0
    %v565 = vpop.f32.mrb[0].mxu0
    %v566 = vadd.f32 0.0, %v565
    %v567 = vpop.f32.mrb[0].mxu0
    %568 = vmatprep.mubr.bf16.mxu0 0
    %569 = vmatmul.mubr.bf16.gmra.mrb[0].mxu0 %v376
    %v570 = vpop.f32.mrb[0].mxu0
    %v571 = vadd.f32 0.0, %v570
    %v572 = vpop.f32.mrb[0].mxu0
    %v573 = vpop.f32.mrb[0].mxu0
    %v574 = vadd.f32 0.0, %v573
    %v575 = vpop.f32.mrb[0].mxu0
    %576 = vmatprep.mubr.bf16.mxu0 0
    %577 = vmatmul.mubr.bf16.gmra.mrb[0].mxu0 %v379
    %v578 = vpop.f32.mrb[0].mxu0
    %v579 = vadd.f32 0.0, %v578
    %v580 = vpop.f32.mrb[0].mxu0
    %v581 = vpop.f32.mrb[0].mxu0
    %v582 = vadd.f32 0.0, %v581
    %v583 = vpop.f32.mrb[0].mxu0
    %584 = vmatprep.mubr.bf16.mxu0 0
    %585 = vmatmul.mubr.bf16.gmra.mrb[0].mxu0 %v382
    %v586 = vpop.f32.mrb[0].mxu0
    %v587 = vadd.f32 0.0, %v586
    %v588 = vpop.f32.mrb[0].mxu0
    %v589 = vpop.f32.mrb[0].mxu0
    %v590 = vadd.f32 0.0, %v589
    %v591 = vpop.f32.mrb[0].mxu0
    %592 = vmatprep.mubr.bf16.mxu0 0
    %593 = vmatmul.mubr.bf16.gmra.mrb[0].mxu0 %v385
    %v594 = vpop.f32.mrb[0].mxu0
    %v595 = vadd.f32 0.0, %v594
    %v596 = vpop.f32.mrb[0].mxu0
    %v597 = vpop.f32.mrb[0].mxu0
    %v598 = vadd.f32 0.0, %v597
    %v599 = vpop.f32.mrb[0].mxu0
    %600 = vmatprep.mubr.bf16.mxu0 0
    %601 = vmatmul.mubr.bf16.gmra.mrb[0].mxu0 %v388
    %v602 = vpop.f32.mrb[0].mxu0
    %v603 = vadd.f32 0.0, %v602
    %v604 = vpop.f32.mrb[0].mxu0
    %v605 = vpop.f32.mrb[0].mxu0
    %v606 = vadd.f32 0.0, %v605
    %v607 = vpop.f32.mrb[0].mxu0
    %608 = vmatprep.mubr.bf16.mxu0 0
    %609 = vmatmul.mubr.bf16.gmra.mrb[0].mxu0 %v391
    %v610 = vpop.f32.mrb[0].mxu0
    %v611 = vadd.f32 0.0, %v610
    %v612 = vpop.f32.mrb[0].mxu0
    %v613 = vpop.f32.mrb[0].mxu0
    %v614 = vadd.f32 0.0, %v613
    %v615 = vpop.f32.mrb[0].mxu0
    %616 = vmatprep.mubr.bf16.mxu0 0
    %617 = vmatmul.mubr.bf16.gmra.mrb[0].mxu0 %v394
    %v618 = vpop.f32.mrb[0].mxu0
    %v619 = vadd.f32 0.0, %v618
    %v620 = vpop.f32.mrb[0].mxu0
    %v621 = vpop.f32.mrb[0].mxu0
    %v622 = vadd.f32 0.0, %v621
    %v623 = vpop.f32.mrb[0].mxu0
    %624 = vmatprep.mubr.bf16.mxu0 0
    %625 = vmatmul.mubr.bf16.gmra.mrb[0].mxu0 %v397
    %v626 = vpop.f32.mrb[0].mxu0
    %v627 = vadd.f32 0.0, %v626
    %v628 = vpop.f32.mrb[0].mxu0
    %v629 = vpop.f32.mrb[0].mxu0
    %v630 = vadd.f32 0.0, %v629
    %v631 = vpop.f32.mrb[0].mxu0
    %632 = vmatprep.mubr.bf16.mxu0 0
    %633 = vmatmul.mubr.bf16.gmra.mrb[0].mxu0 %v400
    %v634 = vpop.f32.mrb[0].mxu0
    %v635 = vadd.f32 0.0, %v634
    %v636 = vpop.f32.mrb[0].mxu0
    %v637 = vpop.f32.mrb[0].mxu0
    %v638 = vadd.f32 0.0, %v637
    %v639 = vpop.f32.mrb[0].mxu0
    %640 = vmatprep.mubr.bf16.mxu0 0
    %641 = vmatmul.mubr.bf16.gmra.mrb[0].mxu0 %v403
    %v642 = vpop.f32.mrb[0].mxu0
    %v643 = vadd.f32 0.0, %v642
    %v644 = vpop.f32.mrb[0].mxu0
    %v645 = vpop.f32.mrb[0].mxu0
    %v646 = vadd.f32 0.0, %v645
    %v647 = vpop.f32.mrb[0].mxu0
    %648 = vmatprep.mubr.bf16.mxu0 0
    %649 = vmatmul.mubr.bf16.gmra.mrb[0].mxu0 %v406
    %v650 = vpop.f32.mrb[0].mxu0
    %v651 = vadd.f32 0.0, %v650
    %v652 = vpop.f32.mrb[0].mxu0
    %v653 = vpop.f32.mrb[0].mxu0
    %v654 = vadd.f32 0.0, %v653
    %v655 = vpop.f32.mrb[0].mxu0
    %656 = vmatprep.mubr.bf16.mxu0 0
    %657 = vmatmul.mubr.bf16.gmra.mrb[0].mxu0 %v409
    %v658 = vpop.f32.mrb[0].mxu0
    %v659 = vadd.f32 0.0, %v658
    %v660 = vpop.f32.mrb[0].mxu0
    %v661 = vpop.f32.mrb[0].mxu0
    %v662 = vadd.f32 0.0, %v661
    %v663 = vpop.f32.mrb[0].mxu0
    %664 = vmatprep.mubr.bf16.mxu0 0
    %665 = vmatmul.mubr.bf16.gmra.mrb[0].mxu0 %v412
    %v666 = vpop.f32.mrb[0].mxu0
    %v667 = vadd.f32 0.0, %v666
    %v668 = vpop.f32.mrb[0].mxu0
    %v669 = vpop.f32.mrb[0].mxu0
    %v670 = vadd.f32 0.0, %v669
    %v671 = vpop.f32.mrb[0].mxu0
    %672 = vmatprep.mubr.bf16.mxu0 0
    %673 = vmatmul.mubr.bf16.gmra.mrb[0].mxu0 %v415
    %v674 = vpop.f32.mrb[0].mxu0
    %v675 = vadd.f32 0.0, %v674
    %v676 = vpop.f32.mrb[0].mxu0
    %v677 = vpop.f32.mrb[0].mxu0
    %v678 = vadd.f32 0.0, %v677
    %v679 = vpop.f32.mrb[0].mxu0
    %680 = vmatprep.mubr.bf16.mxu0 0
    %681 = vmatmul.mubr.bf16.gmra.mrb[0].mxu0 %v418
    %v682 = vpop.f32.mrb[0].mxu0
    %v683 = vadd.f32 0.0, %v682
    %v684 = vpop.f32.mrb[0].mxu0
    %v685 = vpop.f32.mrb[0].mxu0
    %v686 = vadd.f32 0.0, %v685
    %v687 = vpop.f32.mrb[0].mxu0
    %688 = vmatprep.mubr.bf16.mxu0 0
    %689 = vmatmul.mubr.bf16.gmra.mrb[0].mxu0 %v421
    %v690 = vpop.f32.mrb[0].mxu0
    %v691 = vadd.f32 0.0, %v690
    %v692 = vpop.f32.mrb[0].mxu0
    %v693 = vpop.f32.mrb[0].mxu0
    %v694 = vadd.f32 0.0, %v693
    %v695 = vpop.f32.mrb[0].mxu0
    %696 = vmatprep.mubr.bf16.mxu0 0
    %697 = vmatmul.mubr.bf16.gmra.mrb[0].mxu0 %v424
    %v698 = vpop.f32.mrb[0].mxu0
    %v699 = vadd.f32 0.0, %v698
    %v700 = vpop.f32.mrb[0].mxu0
    %v701 = vpop.f32.mrb[0].mxu0
    %v702 = vadd.f32 0.0, %v701
    %v703 = vpop.f32.mrb[0].mxu0
    %704 = vmatprep.mubr.bf16.mxu0 0
    %705 = vmatmul.mubr.bf16.gmra.mrb[0].mxu0 %v427
    %v706 = vpop.f32.mrb[0].mxu0
    %v707 = vadd.f32 0.0, %v706
    %v708 = vpop.f32.mrb[0].mxu0
    %v709 = vpop.f32.mrb[0].mxu0
    %v710 = vadd.f32 0.0, %v709
    %v711 = vpop.f32.mrb[0].mxu0
    %712 = vmatprep.mubr.bf16.mxu0 0
    %713 = vmatmul.mubr.bf16.gmra.mrb[0].mxu0 %v430
    %v714 = vpop.f32.mrb[0].mxu0
    %v715 = vadd.f32 0.0, %v714
    %v716 = vpop.f32.mrb[0].mxu0
    %v717 = vpop.f32.mrb[0].mxu0
    %v718 = vadd.f32 0.0, %v717
    %v719 = vpop.f32.mrb[0].mxu0
    %720 = vdwg.mxu0
    %v785 = vunpack.c.l.b16 %v27
    %v786 = vunpack.c.l.b16 %v28
    %v787 = vunpack.c.l.b16 %v29
    %v788 = vunpack.c.l.b16 %v30
    %v789 = vunpack.c.l.b16 %v31
    %v790 = vunpack.c.l.b16 %v32
    %v791 = vunpack.c.l.b16 %v33
    %v792 = vunpack.c.l.b16 %v34
    %v793 = vunpack.c.l.b16 %v35
    %v794 = vunpack.c.l.b16 %v36
    %v795 = vunpack.c.l.b16 %v37
    %v796 = vunpack.c.l.b16 %v38
    %v797 = vunpack.c.l.b16 %v39
    %v798 = vunpack.c.l.b16 %v40
    %v799 = vunpack.c.l.b16 %v41
    %v800 = vunpack.c.l.b16 %v42
    %v801 = vunpack.c.l.b16 %v43
    %v802 = vunpack.c.l.b16 %v44
    %v803 = vunpack.c.l.b16 %v45
    %v804 = vunpack.c.l.b16 %v46
    %v805 = vunpack.c.l.b16 %v47
    %v806 = vunpack.c.l.b16 %v48
    %v807 = vunpack.c.l.b16 %v49
    %v808 = vunpack.c.l.b16 %v50
    %v809 = vunpack.c.l.b16 %v51
    %v810 = vunpack.c.l.b16 %v52
    %v811 = vunpack.c.l.b16 %v53
    %v812 = vunpack.c.l.b16 %v54
    %v813 = vunpack.c.l.b16 %v55
    %v814 = vunpack.c.l.b16 %v56
    %v815 = vunpack.c.l.b16 %v57
    %v816 = vunpack.c.l.b16 %v58
    %v817 = vunpack.c.l.b16 %v59
    %v818 = vunpack.c.l.b16 %v60
    %v819 = vunpack.c.l.b16 %v61
    %v820 = vunpack.c.l.b16 %v62
    %v821 = vunpack.c.l.b16 %v63
    %v822 = vunpack.c.l.b16 %v64
    %v823 = vunpack.c.l.b16 %v65
    %v824 = vunpack.c.l.b16 %v66
    %v825 = vunpack.c.l.b16 %v67
    %v826 = vunpack.c.l.b16 %v68
    %v827 = vunpack.c.l.b16 %v69
    %v828 = vunpack.c.l.b16 %v70
    %v829 = vunpack.c.l.b16 %v71
    %v830 = vunpack.c.l.b16 %v72
    %v831 = vunpack.c.l.b16 %v73
    %v832 = vunpack.c.l.b16 %v74
    %v833 = vunpack.c.l.b16 %v75
    %v834 = vunpack.c.l.b16 %v76
    %v835 = vunpack.c.l.b16 %v77
    %v836 = vunpack.c.l.b16 %v78
    %v837 = vunpack.c.l.b16 %v79
    %v838 = vunpack.c.l.b16 %v80
    %v839 = vunpack.c.l.b16 %v81
    %v840 = vunpack.c.l.b16 %v82
    %v841 = vunpack.c.l.b16 %v83
    %v842 = vunpack.c.l.b16 %v84
    %v843 = vunpack.c.l.b16 %v85
    %v844 = vunpack.c.l.b16 %v86
    %v845 = vunpack.c.l.b16 %v87
    %v846 = vunpack.c.l.b16 %v88
    %v847 = vunpack.c.l.b16 %v89
    %v848 = vunpack.c.l.b16 %v90
    %v849 = vpack.c.b16 %v786, %v785
    %v850 = vpack.c.b16 %v788, %v787
    %v851 = vpack.c.b16 %v790, %v789
    %v852 = vpack.c.b16 %v792, %v791
    %v853 = vpack.c.b16 %v794, %v793
    %v854 = vpack.c.b16 %v796, %v795
    %v855 = vpack.c.b16 %v798, %v797
    %v856 = vpack.c.b16 %v800, %v799
    %v857 = vpack.c.b16 %v802, %v801
    %v858 = vpack.c.b16 %v804, %v803
    %v859 = vpack.c.b16 %v806, %v805
    %v860 = vpack.c.b16 %v808, %v807
    %v861 = vpack.c.b16 %v810, %v809
    %v862 = vpack.c.b16 %v812, %v811
    %v863 = vpack.c.b16 %v814, %v813
    %v864 = vpack.c.b16 %v816, %v815
    %v865 = vpack.c.b16 %v818, %v817
    %v866 = vpack.c.b16 %v820, %v819
    %v867 = vpack.c.b16 %v822, %v821
    %v868 = vpack.c.b16 %v824, %v823
    %v869 = vpack.c.b16 %v826, %v825
    %v870 = vpack.c.b16 %v828, %v827
    %v871 = vpack.c.b16 %v830, %v829
    %v872 = vpack.c.b16 %v832, %v831
    %v873 = vpack.c.b16 %v834, %v833
    %v874 = vpack.c.b16 %v836, %v835
    %v875 = vpack.c.b16 %v838, %v837
    %v876 = vpack.c.b16 %v840, %v839
    %v877 = vpack.c.b16 %v842, %v841
    %v878 = vpack.c.b16 %v844, %v843
    %v879 = vpack.c.b16 %v846, %v845
    %v880 = vpack.c.b16 %v848, %v847
    %v885 = vunpack.c.l.b16 %v91
    %v886 = vunpack.c.l.b16 %v92
    %v887 = vunpack.c.l.b16 %v93
    %v888 = vunpack.c.l.b16 %v94
    %v889 = vpack.c.b16 %v886, %v885
    %v890 = vpack.c.b16 %v888, %v887
    %v894 = vsel %vm335, %v849, 0
    %v897 = vsel %vm335, %v850, 0
    %v900 = vsel %vm335, %v851, 0
    %v903 = vsel %vm335, %v852, 0
    %v906 = vsel %vm335, %v853, 0
    %v909 = vsel %vm335, %v854, 0
    %v912 = vsel %vm335, %v855, 0
    %v915 = vsel %vm335, %v856, 0
    %v918 = vsel %vm335, %v857, 0
    %v921 = vsel %vm335, %v858, 0
    %v924 = vsel %vm335, %v859, 0
    %v927 = vsel %vm335, %v860, 0
    %v930 = vsel %vm335, %v861, 0
    %v933 = vsel %vm335, %v862, 0
    %v936 = vsel %vm335, %v863, 0
    %v939 = vsel %vm335, %v864, 0
    %v942 = vsel %vm335, %v865, 0
    %v945 = vsel %vm335, %v866, 0
    %v948 = vsel %vm335, %v867, 0
    %v951 = vsel %vm335, %v868, 0
    %v954 = vsel %vm335, %v869, 0
    %v957 = vsel %vm335, %v870, 0
    %v960 = vsel %vm335, %v871, 0
    %v963 = vsel %vm335, %v872, 0
    %v966 = vsel %vm335, %v873, 0
    %v969 = vsel %vm335, %v874, 0
    %v972 = vsel %vm335, %v875, 0
    %v975 = vsel %vm335, %v876, 0
    %v978 = vsel %vm335, %v877, 0
    %v981 = vsel %vm335, %v878, 0
    %v984 = vsel %vm335, %v879, 0
    %v987 = vsel %vm335, %v880, 0
    %989 = vmatprep.subr.bf16.mxu0 0
    %990 = vmatpush1.bf16.msra.mxu0 %v889
    %991 = vmatprep.subr.bf16.mxu0 0
    %992 = vmatpush1.bf16.msra.mxu0 %v890
    %993 = vmatprep.subr.bf16.mxu0 0
    %994 = vmatpush1.bf16.msra.mxu0 0
    %995 = vmatprep.subr.bf16.mxu0 0
    %996 = vmatpush1.bf16.msra.mxu0 0
    %997 = vmatprep.subr.bf16.mxu0 0
    %998 = vmatpush1.bf16.msra.mxu0 0
    %999 = vmatprep.subr.bf16.mxu0 0
    %1000 = vmatpush1.bf16.msra.mxu0 0
    %1001 = vmatprep.subr.bf16.mxu0 0
    %1002 = vmatpush1.bf16.msra.mxu0 0
    %1003 = vmatprep.subr.bf16.mxu0 0
    %1004 = vmatpush1.bf16.msra.mxu0 0
    %1005 = vmatprep.subr.bf16.mxu0 0
    %1006 = vmatpush1.bf16.msra.mxu0 0
    %1007 = vmatprep.subr.bf16.mxu0 0
    %1008 = vmatpush1.bf16.msra.mxu0 0
    %1009 = vmatprep.subr.bf16.mxu0 0
    %1010 = vmatpush1.bf16.msra.mxu0 0
    %1011 = vmatprep.subr.bf16.mxu0 0
    %1012 = vmatpush1.bf16.msra.mxu0 0
    %1013 = vmatprep.subr.bf16.mxu0 0
    %1014 = vmatpush1.bf16.msra.mxu0 0
    %1015 = vmatprep.subr.bf16.mxu0 0
    %1016 = vmatpush1.bf16.msra.mxu0 0
    %1017 = vmatprep.subr.bf16.mxu0 0
    %1018 = vmatpush1.bf16.msra.mxu0 0
    %1019 = vmatprep.subr.bf16.mxu0 0
    %1020 = vmatpush1.bf16.msra.mxu0 0
    %1021 = vmatprep.mubr.bf16.mxu0 0
    %1022 = vmatmul.mubr.bf16.gmra.mrb[0].mxu0 %v894
    %v1023 = vpop.f32.mrb[0].mxu0
    %v1024 = vadd.f32 %v467, %v1023
    %v1025 = vpop.f32.mrb[0].mxu0
    %v1026 = vpop.f32.mrb[0].mxu0
    %v1027 = vadd.f32 %v470, %v1026
    %v1028 = vpop.f32.mrb[0].mxu0
    %1029 = vmatprep.mubr.bf16.mxu0 0
    %1030 = vmatmul.mubr.bf16.gmra.mrb[0].mxu0 %v897
    %v1031 = vpop.f32.mrb[0].mxu0
    %v1032 = vadd.f32 %v475, %v1031
    %v1033 = vpop.f32.mrb[0].mxu0
    %v1034 = vpop.f32.mrb[0].mxu0
    %v1035 = vadd.f32 %v478, %v1034
    %v1036 = vpop.f32.mrb[0].mxu0
    %1037 = vmatprep.mubr.bf16.mxu0 0
    %1038 = vmatmul.mubr.bf16.gmra.mrb[0].mxu0 %v900
    %v1039 = vpop.f32.mrb[0].mxu0
    %v1040 = vadd.f32 %v483, %v1039
    %v1041 = vpop.f32.mrb[0].mxu0
    %v1042 = vpop.f32.mrb[0].mxu0
    %v1043 = vadd.f32 %v486, %v1042
    %v1044 = vpop.f32.mrb[0].mxu0
    %1045 = vmatprep.mubr.bf16.mxu0 0
    %1046 = vmatmul.mubr.bf16.gmra.mrb[0].mxu0 %v903
    %v1047 = vpop.f32.mrb[0].mxu0
    %v1048 = vadd.f32 %v491, %v1047
    %v1049 = vpop.f32.mrb[0].mxu0
    %v1050 = vpop.f32.mrb[0].mxu0
    %v1051 = vadd.f32 %v494, %v1050
    %v1052 = vpop.f32.mrb[0].mxu0
    %1053 = vmatprep.mubr.bf16.mxu0 0
    %1054 = vmatmul.mubr.bf16.gmra.mrb[0].mxu0 %v906
    %v1055 = vpop.f32.mrb[0].mxu0
    %v1056 = vadd.f32 %v499, %v1055
    %v1057 = vpop.f32.mrb[0].mxu0
    %v1058 = vpop.f32.mrb[0].mxu0
    %v1059 = vadd.f32 %v502, %v1058
    %v1060 = vpop.f32.mrb[0].mxu0
    %1061 = vmatprep.mubr.bf16.mxu0 0
    %1062 = vmatmul.mubr.bf16.gmra.mrb[0].mxu0 %v909
    %v1063 = vpop.f32.mrb[0].mxu0
    %v1064 = vadd.f32 %v507, %v1063
    %v1065 = vpop.f32.mrb[0].mxu0
    %v1066 = vpop.f32.mrb[0].mxu0
    %v1067 = vadd.f32 %v510, %v1066
    %v1068 = vpop.f32.mrb[0].mxu0
    %1069 = vmatprep.mubr.bf16.mxu0 0
    %1070 = vmatmul.mubr.bf16.gmra.mrb[0].mxu0 %v912
    %v1071 = vpop.f32.mrb[0].mxu0
    %v1072 = vadd.f32 %v515, %v1071
    %v1073 = vpop.f32.mrb[0].mxu0
    %v1074 = vpop.f32.mrb[0].mxu0
    %v1075 = vadd.f32 %v518, %v1074
    %v1076 = vpop.f32.mrb[0].mxu0
    %1077 = vmatprep.mubr.bf16.mxu0 0
    %1078 = vmatmul.mubr.bf16.gmra.mrb[0].mxu0 %v915
    %v1079 = vpop.f32.mrb[0].mxu0
    %v1080 = vadd.f32 %v523, %v1079
    %v1081 = vpop.f32.mrb[0].mxu0
    %v1082 = vpop.f32.mrb[0].mxu0
    %v1083 = vadd.f32 %v526, %v1082
    %v1084 = vpop.f32.mrb[0].mxu0
    %1085 = vmatprep.mubr.bf16.mxu0 0
    %1086 = vmatmul.mubr.bf16.gmra.mrb[0].mxu0 %v918
    %v1087 = vpop.f32.mrb[0].mxu0
    %v1088 = vadd.f32 %v531, %v1087
    %v1089 = vpop.f32.mrb[0].mxu0
    %v1090 = vpop.f32.mrb[0].mxu0
    %v1091 = vadd.f32 %v534, %v1090
    %v1092 = vpop.f32.mrb[0].mxu0
    %1093 = vmatprep.mubr.bf16.mxu0 0
    %1094 = vmatmul.mubr.bf16.gmra.mrb[0].mxu0 %v921
    %v1095 = vpop.f32.mrb[0].mxu0
    %v1096 = vadd.f32 %v539, %v1095
    %v1097 = vpop.f32.mrb[0].mxu0
    %v1098 = vpop.f32.mrb[0].mxu0
    %v1099 = vadd.f32 %v542, %v1098
    %v1100 = vpop.f32.mrb[0].mxu0
    %1101 = vmatprep.mubr.bf16.mxu0 0
    %1102 = vmatmul.mubr.bf16.gmra.mrb[0].mxu0 %v924
    %v1103 = vpop.f32.mrb[0].mxu0
    %v1104 = vadd.f32 %v547, %v1103
    %v1105 = vpop.f32.mrb[0].mxu0
    %v1106 = vpop.f32.mrb[0].mxu0
    %v1107 = vadd.f32 %v550, %v1106
    %v1108 = vpop.f32.mrb[0].mxu0
    %1109 = vmatprep.mubr.bf16.mxu0 0
    %1110 = vmatmul.mubr.bf16.gmra.mrb[0].mxu0 %v927
    %v1111 = vpop.f32.mrb[0].mxu0
    %v1112 = vadd.f32 %v555, %v1111
    %v1113 = vpop.f32.mrb[0].mxu0
    %v1114 = vpop.f32.mrb[0].mxu0
    %v1115 = vadd.f32 %v558, %v1114
    %v1116 = vpop.f32.mrb[0].mxu0
    %1117 = vmatprep.mubr.bf16.mxu0 0
    %1118 = vmatmul.mubr.bf16.gmra.mrb[0].mxu0 %v930
    %v1119 = vpop.f32.mrb[0].mxu0
    %v1120 = vadd.f32 %v563, %v1119
    %v1121 = vpop.f32.mrb[0].mxu0
    %v1122 = vpop.f32.mrb[0].mxu0
    %v1123 = vadd.f32 %v566, %v1122
    %v1124 = vpop.f32.mrb[0].mxu0
    %1125 = vmatprep.mubr.bf16.mxu0 0
    %1126 = vmatmul.mubr.bf16.gmra.mrb[0].mxu0 %v933
    %v1127 = vpop.f32.mrb[0].mxu0
    %v1128 = vadd.f32 %v571, %v1127
    %v1129 = vpop.f32.mrb[0].mxu0
    %v1130 = vpop.f32.mrb[0].mxu0
    %v1131 = vadd.f32 %v574, %v1130
    %v1132 = vpop.f32.mrb[0].mxu0
    %1133 = vmatprep.mubr.bf16.mxu0 0
    %1134 = vmatmul.mubr.bf16.gmra.mrb[0].mxu0 %v936
    %v1135 = vpop.f32.mrb[0].mxu0
    %v1136 = vadd.f32 %v579, %v1135
    %v1137 = vpop.f32.mrb[0].mxu0
    %v1138 = vpop.f32.mrb[0].mxu0
    %v1139 = vadd.f32 %v582, %v1138
    %v1140 = vpop.f32.mrb[0].mxu0
    %1141 = vmatprep.mubr.bf16.mxu0 0
    %1142 = vmatmul.mubr.bf16.gmra.mrb[0].mxu0 %v939
    %v1143 = vpop.f32.mrb[0].mxu0
    %v1144 = vadd.f32 %v587, %v1143
    %v1145 = vpop.f32.mrb[0].mxu0
    %v1146 = vpop.f32.mrb[0].mxu0
    %v1147 = vadd.f32 %v590, %v1146
    %v1148 = vpop.f32.mrb[0].mxu0
    %1149 = vmatprep.mubr.bf16.mxu0 0
    %1150 = vmatmul.mubr.bf16.gmra.mrb[0].mxu0 %v942
    %v1151 = vpop.f32.mrb[0].mxu0
    %v1152 = vadd.f32 %v595, %v1151
    %v1153 = vpop.f32.mrb[0].mxu0
    %v1154 = vpop.f32.mrb[0].mxu0
    %v1155 = vadd.f32 %v598, %v1154
    %v1156 = vpop.f32.mrb[0].mxu0
    %1157 = vmatprep.mubr.bf16.mxu0 0
    %1158 = vmatmul.mubr.bf16.gmra.mrb[0].mxu0 %v945
    %v1159 = vpop.f32.mrb[0].mxu0
    %v1160 = vadd.f32 %v603, %v1159
    %v1161 = vpop.f32.mrb[0].mxu0
    %v1162 = vpop.f32.mrb[0].mxu0
    %v1163 = vadd.f32 %v606, %v1162
    %v1164 = vpop.f32.mrb[0].mxu0
    %1165 = vmatprep.mubr.bf16.mxu0 0
    %1166 = vmatmul.mubr.bf16.gmra.mrb[0].mxu0 %v948
    %v1167 = vpop.f32.mrb[0].mxu0
    %v1168 = vadd.f32 %v611, %v1167
    %v1169 = vpop.f32.mrb[0].mxu0
    %v1170 = vpop.f32.mrb[0].mxu0
    %v1171 = vadd.f32 %v614, %v1170
    %v1172 = vpop.f32.mrb[0].mxu0
    %1173 = vmatprep.mubr.bf16.mxu0 0
    %1174 = vmatmul.mubr.bf16.gmra.mrb[0].mxu0 %v951
    %v1175 = vpop.f32.mrb[0].mxu0
    %v1176 = vadd.f32 %v619, %v1175
    %v1177 = vpop.f32.mrb[0].mxu0
    %v1178 = vpop.f32.mrb[0].mxu0
    %v1179 = vadd.f32 %v622, %v1178
    %v1180 = vpop.f32.mrb[0].mxu0
    %1181 = vmatprep.mubr.bf16.mxu0 0
    %1182 = vmatmul.mubr.bf16.gmra.mrb[0].mxu0 %v954
    %v1183 = vpop.f32.mrb[0].mxu0
    %v1184 = vadd.f32 %v627, %v1183
    %v1185 = vpop.f32.mrb[0].mxu0
    %v1186 = vpop.f32.mrb[0].mxu0
    %v1187 = vadd.f32 %v630, %v1186
    %v1188 = vpop.f32.mrb[0].mxu0
    %1189 = vmatprep.mubr.bf16.mxu0 0
    %1190 = vmatmul.mubr.bf16.gmra.mrb[0].mxu0 %v957
    %v1191 = vpop.f32.mrb[0].mxu0
    %v1192 = vadd.f32 %v635, %v1191
    %v1193 = vpop.f32.mrb[0].mxu0
    %v1194 = vpop.f32.mrb[0].mxu0
    %v1195 = vadd.f32 %v638, %v1194
    %v1196 = vpop.f32.mrb[0].mxu0
    %1197 = vmatprep.mubr.bf16.mxu0 0
    %1198 = vmatmul.mubr.bf16.gmra.mrb[0].mxu0 %v960
    %v1199 = vpop.f32.mrb[0].mxu0
    %v1200 = vadd.f32 %v643, %v1199
    %v1201 = vpop.f32.mrb[0].mxu0
    %v1202 = vpop.f32.mrb[0].mxu0
    %v1203 = vadd.f32 %v646, %v1202
    %v1204 = vpop.f32.mrb[0].mxu0
    %1205 = vmatprep.mubr.bf16.mxu0 0
    %1206 = vmatmul.mubr.bf16.gmra.mrb[0].mxu0 %v963
    %v1207 = vpop.f32.mrb[0].mxu0
    %v1208 = vadd.f32 %v651, %v1207
    %v1209 = vpop.f32.mrb[0].mxu0
    %v1210 = vpop.f32.mrb[0].mxu0
    %v1211 = vadd.f32 %v654, %v1210
    %v1212 = vpop.f32.mrb[0].mxu0
    %1213 = vmatprep.mubr.bf16.mxu0 0
    %1214 = vmatmul.mubr.bf16.gmra.mrb[0].mxu0 %v966
    %v1215 = vpop.f32.mrb[0].mxu0
    %v1216 = vadd.f32 %v659, %v1215
    %v1217 = vpop.f32.mrb[0].mxu0
    %v1218 = vpop.f32.mrb[0].mxu0
    %v1219 = vadd.f32 %v662, %v1218
    %v1220 = vpop.f32.mrb[0].mxu0
    %1221 = vmatprep.mubr.bf16.mxu0 0
    %1222 = vmatmul.mubr.bf16.gmra.mrb[0].mxu0 %v969
    %v1223 = vpop.f32.mrb[0].mxu0
    %v1224 = vadd.f32 %v667, %v1223
    %v1225 = vpop.f32.mrb[0].mxu0
    %v1226 = vpop.f32.mrb[0].mxu0
    %v1227 = vadd.f32 %v670, %v1226
    %v1228 = vpop.f32.mrb[0].mxu0
    %1229 = vmatprep.mubr.bf16.mxu0 0
    %1230 = vmatmul.mubr.bf16.gmra.mrb[0].mxu0 %v972
    %v1231 = vpop.f32.mrb[0].mxu0
    %v1232 = vadd.f32 %v675, %v1231
    %v1233 = vpop.f32.mrb[0].mxu0
    %v1234 = vpop.f32.mrb[0].mxu0
    %v1235 = vadd.f32 %v678, %v1234
    %v1236 = vpop.f32.mrb[0].mxu0
    %1237 = vmatprep.mubr.bf16.mxu0 0
    %1238 = vmatmul.mubr.bf16.gmra.mrb[0].mxu0 %v975
    %v1239 = vpop.f32.mrb[0].mxu0
    %v1240 = vadd.f32 %v683, %v1239
    %v1241 = vpop.f32.mrb[0].mxu0
    %v1242 = vpop.f32.mrb[0].mxu0
    %v1243 = vadd.f32 %v686, %v1242
    %v1244 = vpop.f32.mrb[0].mxu0
    %1245 = vmatprep.mubr.bf16.mxu0 0
    %1246 = vmatmul.mubr.bf16.gmra.mrb[0].mxu0 %v978
    %v1247 = vpop.f32.mrb[0].mxu0
    %v1248 = vadd.f32 %v691, %v1247
    %v1249 = vpop.f32.mrb[0].mxu0
    %v1250 = vpop.f32.mrb[0].mxu0
    %v1251 = vadd.f32 %v694, %v1250
    %v1252 = vpop.f32.mrb[0].mxu0
    %1253 = vmatprep.mubr.bf16.mxu0 0
    %1254 = vmatmul.mubr.bf16.gmra.mrb[0].mxu0 %v981
    %v1255 = vpop.f32.mrb[0].mxu0
    %v1256 = vadd.f32 %v699, %v1255
    %v1257 = vpop.f32.mrb[0].mxu0
    %v1258 = vpop.f32.mrb[0].mxu0
    %v1259 = vadd.f32 %v702, %v1258
    %v1260 = vpop.f32.mrb[0].mxu0
    %1261 = vmatprep.mubr.bf16.mxu0 0
    %1262 = vmatmul.mubr.bf16.gmra.mrb[0].mxu0 %v984
    %v1263 = vpop.f32.mrb[0].mxu0
    %v1264 = vadd.f32 %v707, %v1263
    %v1265 = vpop.f32.mrb[0].mxu0
    %v1266 = vpop.f32.mrb[0].mxu0
    %v1267 = vadd.f32 %v710, %v1266
    %v1268 = vpop.f32.mrb[0].mxu0
    %1269 = vmatprep.mubr.bf16.mxu0 0
    %1270 = vmatmul.mubr.bf16.gmra.mrb[0].mxu0 %v987
    %v1271 = vpop.f32.mrb[0].mxu0
    %v1272 = vadd.f32 %v715, %v1271
    %v1273 = vpop.f32.mrb[0].mxu0
    %v1274 = vpop.f32.mrb[0].mxu0
    %v1275 = vadd.f32 %v718, %v1274
    %v1276 = vpop.f32.mrb[0].mxu0
    %1277 = vdwg.mxu0
    %v1278 = vld [vmem:[#allocation2] sm:$0x1]
    %v1280 = vlaneseq
    %v1281 = vshrl.u32 %v1280, 7
    %v1282 = vsub.s32 0, %v1281
    %v1283 = vrot.slane %v1278, %v1282
    %v1285 = vadd.f32 %v1024, %v1283
    %v1286 = vadd.f32 %v1027, %v1283
    %v1287 = vadd.f32 %v1032, %v1283
    %v1288 = vadd.f32 %v1035, %v1283
    %v1289 = vadd.f32 %v1040, %v1283
    %v1290 = vadd.f32 %v1043, %v1283
    %v1291 = vadd.f32 %v1048, %v1283
    %v1292 = vadd.f32 %v1051, %v1283
    %v1293 = vadd.f32 %v1056, %v1283
    %v1294 = vadd.f32 %v1059, %v1283
    %v1295 = vadd.f32 %v1064, %v1283
    %v1296 = vadd.f32 %v1067, %v1283
    %v1297 = vadd.f32 %v1072, %v1283
    %v1298 = vadd.f32 %v1075, %v1283
    %v1299 = vadd.f32 %v1080, %v1283
    %v1300 = vadd.f32 %v1083, %v1283
    %v1301 = vadd.f32 %v1088, %v1283
    %v1302 = vadd.f32 %v1091, %v1283
    %v1303 = vadd.f32 %v1096, %v1283
    %v1304 = vadd.f32 %v1099, %v1283
    %v1305 = vadd.f32 %v1104, %v1283
    %v1306 = vadd.f32 %v1107, %v1283
    %v1307 = vadd.f32 %v1112, %v1283
    %v1308 = vadd.f32 %v1115, %v1283
    %v1309 = vadd.f32 %v1120, %v1283
    %v1310 = vadd.f32 %v1123, %v1283
    %v1311 = vadd.f32 %v1128, %v1283
    %v1312 = vadd.f32 %v1131, %v1283
    %v1313 = vadd.f32 %v1136, %v1283
    %v1314 = vadd.f32 %v1139, %v1283
    %v1315 = vadd.f32 %v1144, %v1283
    %v1316 = vadd.f32 %v1147, %v1283
    %v1317 = vadd.f32 %v1152, %v1283
    %v1318 = vadd.f32 %v1155, %v1283
    %v1319 = vadd.f32 %v1160, %v1283
    %v1320 = vadd.f32 %v1163, %v1283
    %v1321 = vadd.f32 %v1168, %v1283
    %v1322 = vadd.f32 %v1171, %v1283
    %v1323 = vadd.f32 %v1176, %v1283
    %v1324 = vadd.f32 %v1179, %v1283
    %v1325 = vadd.f32 %v1184, %v1283
    %v1326 = vadd.f32 %v1187, %v1283
    %v1327 = vadd.f32 %v1192, %v1283
    %v1328 = vadd.f32 %v1195, %v1283
    %v1329 = vadd.f32 %v1200, %v1283
    %v1330 = vadd.f32 %v1203, %v1283
    %v1331 = vadd.f32 %v1208, %v1283
    %v1332 = vadd.f32 %v1211, %v1283
    %v1333 = vadd.f32 %v1216, %v1283
    %v1334 = vadd.f32 %v1219, %v1283
    %v1335 = vadd.f32 %v1224, %v1283
    %v1336 = vadd.f32 %v1227, %v1283
    %v1337 = vadd.f32 %v1232, %v1283
    %v1338 = vadd.f32 %v1235, %v1283
    %v1339 = vadd.f32 %v1240, %v1283
    %v1340 = vadd.f32 %v1243, %v1283
    %v1341 = vadd.f32 %v1248, %v1283
    %v1342 = vadd.f32 %v1251, %v1283
    %v1343 = vadd.f32 %v1256, %v1283
    %v1344 = vadd.f32 %v1259, %v1283
    %v1345 = vadd.f32 %v1264, %v1283
    %v1346 = vadd.f32 %v1267, %v1283
    %v1347 = vadd.f32 %v1272, %v1283
    %v1348 = vadd.f32 %v1275, %v1283
    %p1349 = scmp.eq.s32.totalorder 0, 0
    // Predicated region
    $region22: #{generator_forward.22} parent=1 // pred_check
      %p1350 = pneg %p1349
    $region23: #{generator_forward.22} parent=1 // pred_check_branch
      %1352 = sbr.rel (%p1350) target = $region25
    $region24: #{generator_forward.22} parent=1 // pred_region
      %vm1353 = vcmask 0
      %1354 = vst.msk [vmem:[#allocation3] sm:$0x1] %vm1353, 0.0
      %1355 = vst.msk [vmem:[#allocation5] sm:$0x1] %vm1353, 0.0
    $region25: #{generator_forward.22} parent=1 // pred_fallthru
      _
    %v1356 = vld [vmem:[#allocation3] sm:$0x1]
    %vm1357 = vcmask 7168
    %v1358 = vsel %vm1357, %v1285, 0.0
    %v1359 = vsel %vm1357, %v1286, 0.0
    %v1360 = vadd.f32 %v1358, %v1359
    %v1361 = vsel %vm1357, %v1287, 0.0
    %v1362 = vadd.f32 %v1360, %v1361
    %v1363 = vsel %vm1357, %v1288, 0.0
    %v1364 = vadd.f32 %v1362, %v1363
    %v1365 = vsel %vm1357, %v1289, 0.0
    %v1366 = vadd.f32 %v1364, %v1365
    %v1367 = vsel %vm1357, %v1290, 0.0
    %v1368 = vadd.f32 %v1366, %v1367
    %v1369 = vsel %vm1357, %v1291, 0.0
    %v1370 = vadd.f32 %v1368, %v1369
    %v1371 = vsel %vm1357, %v1292, 0.0
    %v1372 = vadd.f32 %v1370, %v1371
    %v1373 = vsel %vm1357, %v1293, 0.0
    %v1374 = vadd.f32 %v1372, %v1373
    %v1375 = vsel %vm1357, %v1294, 0.0
    %v1376 = vadd.f32 %v1374, %v1375
    %v1377 = vsel %vm1357, %v1295, 0.0
    %v1378 = vadd.f32 %v1376, %v1377
    %v1379 = vsel %vm1357, %v1296, 0.0
    %v1380 = vadd.f32 %v1378, %v1379
    %v1381 = vsel %vm1357, %v1297, 0.0
    %v1382 = vadd.f32 %v1380, %v1381
    %v1383 = vsel %vm1357, %v1298, 0.0
    %v1384 = vadd.f32 %v1382, %v1383
    %v1385 = vsel %vm1357, %v1299, 0.0
    %v1386 = vadd.f32 %v1384, %v1385
    %v1387 = vsel %vm1357, %v1300, 0.0
    %v1388 = vadd.f32 %v1386, %v1387
    %v1389 = vsel %vm1357, %v1301, 0.0
    %v1390 = vadd.f32 %v1388, %v1389
    %v1391 = vsel %vm1357, %v1302, 0.0
    %v1392 = vadd.f32 %v1390, %v1391
    %v1393 = vsel %vm1357, %v1303, 0.0
    %v1394 = vadd.f32 %v1392, %v1393
    %v1395 = vsel %vm1357, %v1304, 0.0
    %v1396 = vadd.f32 %v1394, %v1395
    %v1397 = vsel %vm1357, %v1305, 0.0
    %v1398 = vadd.f32 %v1396, %v1397
    %v1399 = vsel %vm1357, %v1306, 0.0
    %v1400 = vadd.f32 %v1398, %v1399
    %v1401 = vsel %vm1357, %v1307, 0.0
    %v1402 = vadd.f32 %v1400, %v1401
    %v1403 = vsel %vm1357, %v1308, 0.0
    %v1404 = vadd.f32 %v1402, %v1403
    %v1405 = vsel %vm1357, %v1309, 0.0
    %v1406 = vadd.f32 %v1404, %v1405
    %v1407 = vsel %vm1357, %v1310, 0.0
    %v1408 = vadd.f32 %v1406, %v1407
    %v1409 = vsel %vm1357, %v1311, 0.0
    %v1410 = vadd.f32 %v1408, %v1409
    %v1411 = vsel %vm1357, %v1312, 0.0
    %v1412 = vadd.f32 %v1410, %v1411
    %v1413 = vsel %vm1357, %v1313, 0.0
    %v1414 = vadd.f32 %v1412, %v1413
    %v1415 = vsel %vm1357, %v1314, 0.0
    %v1416 = vadd.f32 %v1414, %v1415
    %v1417 = vsel %vm1357, %v1315, 0.0
    %v1418 = vadd.f32 %v1416, %v1417
    %v1419 = vsel %vm1357, %v1316, 0.0
    %v1420 = vadd.f32 %v1418, %v1419
    %v1421 = vsel %vm1357, %v1317, 0.0
    %v1422 = vadd.f32 %v1420, %v1421
    %v1423 = vsel %vm1357, %v1318, 0.0
    %v1424 = vadd.f32 %v1422, %v1423
    %v1425 = vsel %vm1357, %v1319, 0.0
    %v1426 = vadd.f32 %v1424, %v1425
    %v1427 = vsel %vm1357, %v1320, 0.0
    %v1428 = vadd.f32 %v1426, %v1427
    %v1429 = vsel %vm1357, %v1321, 0.0
    %v1430 = vadd.f32 %v1428, %v1429
    %v1431 = vsel %vm1357, %v1322, 0.0
    %v1432 = vadd.f32 %v1430, %v1431
    %v1433 = vsel %vm1357, %v1323, 0.0
    %v1434 = vadd.f32 %v1432, %v1433
    %v1435 = vsel %vm1357, %v1324, 0.0
    %v1436 = vadd.f32 %v1434, %v1435
    %v1437 = vsel %vm1357, %v1325, 0.0
    %v1438 = vadd.f32 %v1436, %v1437
    %v1439 = vsel %vm1357, %v1326, 0.0
    %v1440 = vadd.f32 %v1438, %v1439
    %v1441 = vsel %vm1357, %v1327, 0.0
    %v1442 = vadd.f32 %v1440, %v1441
    %v1443 = vsel %vm1357, %v1328, 0.0
    %v1444 = vadd.f32 %v1442, %v1443
    %v1445 = vsel %vm1357, %v1329, 0.0
    %v1446 = vadd.f32 %v1444, %v1445
    %v1447 = vsel %vm1357, %v1330, 0.0
    %v1448 = vadd.f32 %v1446, %v1447
    %v1449 = vsel %vm1357, %v1331, 0.0
    %v1450 = vadd.f32 %v1448, %v1449
    %v1451 = vsel %vm1357, %v1332, 0.0
    %v1452 = vadd.f32 %v1450, %v1451
    %v1453 = vsel %vm1357, %v1333, 0.0
    %v1454 = vadd.f32 %v1452, %v1453
    %v1455 = vsel %vm1357, %v1334, 0.0
    %v1456 = vadd.f32 %v1454, %v1455
    %v1457 = vsel %vm1357, %v1335, 0.0
    %v1458 = vadd.f32 %v1456, %v1457
    %v1459 = vsel %vm1357, %v1336, 0.0
    %v1460 = vadd.f32 %v1458, %v1459
    %v1461 = vsel %vm1357, %v1337, 0.0
    %v1462 = vadd.f32 %v1460, %v1461
    %v1463 = vsel %vm1357, %v1338, 0.0
    %v1464 = vadd.f32 %v1462, %v1463
    %v1465 = vsel %vm1357, %v1339, 0.0
    %v1466 = vadd.f32 %v1464, %v1465
    %v1467 = vsel %vm1357, %v1340, 0.0
    %v1468 = vadd.f32 %v1466, %v1467
    %v1469 = vsel %vm1357, %v1341, 0.0
    %v1470 = vadd.f32 %v1468, %v1469
    %v1471 = vsel %vm1357, %v1342, 0.0
    %v1472 = vadd.f32 %v1470, %v1471
    %v1473 = vsel %vm1357, %v1343, 0.0
    %v1474 = vadd.f32 %v1472, %v1473
    %v1475 = vsel %vm1357, %v1344, 0.0
    %v1476 = vadd.f32 %v1474, %v1475
    %v1477 = vsel %vm1357, %v1345, 0.0
    %v1478 = vadd.f32 %v1476, %v1477
    %v1479 = vsel %vm1357, %v1346, 0.0
    %v1480 = vadd.f32 %v1478, %v1479
    %v1481 = vsel %vm1357, %v1347, 0.0
    %v1482 = vadd.f32 %v1480, %v1481
    %v1483 = vsel %vm1357, %v1348, 0.0
    %v1484 = vadd.f32 %v1482, %v1483
    %v1485 = vrot.slane %v1484, 4
    %v1486 = vadd.f32 %v1484, %v1485
    %v1487 = vrot.slane %v1486, 2
    %v1488 = vadd.f32 %v1486, %v1487
    %v1489 = vrot.slane %v1488, 1
    %v1490 = vadd.f32 %v1488, %v1489
    %v1491 = vadd.f32 %v1356, %v1490
    %vm1492 = vcmask 0
    %1493 = vst.msk [vmem:[#allocation3] sm:$0x1] %vm1492, %v1491
    %v1494 = vld [vmem:[#allocation5] sm:$0x1]
    %v1495 = vmul.f32 %v1285, %v1285
    %v1496 = vmul.f32 %v1286, %v1286
    %v1497 = vmul.f32 %v1287, %v1287
    %v1498 = vmul.f32 %v1288, %v1288
    %v1499 = vmul.f32 %v1289, %v1289
    %v1500 = vmul.f32 %v1290, %v1290
    %v1501 = vmul.f32 %v1291, %v1291
    %v1502 = vmul.f32 %v1292, %v1292
    %v1503 = vmul.f32 %v1293, %v1293
    %v1504 = vmul.f32 %v1294, %v1294
    %v1505 = vmul.f32 %v1295, %v1295
    %v1506 = vmul.f32 %v1296, %v1296
    %v1507 = vmul.f32 %v1297, %v1297
    %v1508 = vmul.f32 %v1298, %v1298
    %v1509 = vmul.f32 %v1299, %v1299
    %v1510 = vmul.f32 %v1300, %v1300
    %v1511 = vmul.f32 %v1301, %v1301
    %v1512 = vmul.f32 %v1302, %v1302
    %v1513 = vmul.f32 %v1303, %v1303
    %v1514 = vmul.f32 %v1304, %v1304
    %v1515 = vmul.f32 %v1305, %v1305
    %v1516 = vmul.f32 %v1306, %v1306
    %v1517 = vmul.f32 %v1307, %v1307
    %v1518 = vmul.f32 %v1308, %v1308
    %v1519 = vmul.f32 %v1309, %v1309
    %v1520 = vmul.f32 %v1310, %v1310
    %v1521 = vmul.f32 %v1311, %v1311
    %v1522 = vmul.f32 %v1312, %v1312
    %v1523 = vmul.f32 %v1313, %v1313
    %v1524 = vmul.f32 %v1314, %v1314
    %v1525 = vmul.f32 %v1315, %v1315
    %v1526 = vmul.f32 %v1316, %v1316
    %v1527 = vmul.f32 %v1317, %v1317
    %v1528 = vmul.f32 %v1318, %v1318
    %v1529 = vmul.f32 %v1319, %v1319
    %v1530 = vmul.f32 %v1320, %v1320
    %v1531 = vmul.f32 %v1321, %v1321
    %v1532 = vmul.f32 %v1322, %v1322
    %v1533 = vmul.f32 %v1323, %v1323
    %v1534 = vmul.f32 %v1324, %v1324
    %v1535 = vmul.f32 %v1325, %v1325
    %v1536 = vmul.f32 %v1326, %v1326
    %v1537 = vmul.f32 %v1327, %v1327
    %v1538 = vmul.f32 %v1328, %v1328
    %v1539 = vmul.f32 %v1329, %v1329
    %v1540 = vmul.f32 %v1330, %v1330
    %v1541 = vmul.f32 %v1331, %v1331
    %v1542 = vmul.f32 %v1332, %v1332
    %v1543 = vmul.f32 %v1333, %v1333
    %v1544 = vmul.f32 %v1334, %v1334
    %v1545 = vmul.f32 %v1335, %v1335
    %v1546 = vmul.f32 %v1336, %v1336
    %v1547 = vmul.f32 %v1337, %v1337
    %v1548 = vmul.f32 %v1338, %v1338
    %v1549 = vmul.f32 %v1339, %v1339
    %v1550 = vmul.f32 %v1340, %v1340
    %v1551 = vmul.f32 %v1341, %v1341
    %v1552 = vmul.f32 %v1342, %v1342
    %v1553 = vmul.f32 %v1343, %v1343
    %v1554 = vmul.f32 %v1344, %v1344
    %v1555 = vmul.f32 %v1345, %v1345
    %v1556 = vmul.f32 %v1346, %v1346
    %v1557 = vmul.f32 %v1347, %v1347
    %v1558 = vmul.f32 %v1348, %v1348
    %v1559 = vsel %vm1357, %v1495, 0.0
    %v1560 = vsel %vm1357, %v1496, 0.0
    %v1561 = vadd.f32 %v1559, %v1560
    %v1562 = vsel %vm1357, %v1497, 0.0
    %v1563 = vadd.f32 %v1561, %v1562
    %v1564 = vsel %vm1357, %v1498, 0.0
    %v1565 = vadd.f32 %v1563, %v1564
    %v1566 = vsel %vm1357, %v1499, 0.0
    %v1567 = vadd.f32 %v1565, %v1566
    %v1568 = vsel %vm1357, %v1500, 0.0
    %v1569 = vadd.f32 %v1567, %v1568
    %v1570 = vsel %vm1357, %v1501, 0.0
    %v1571 = vadd.f32 %v1569, %v1570
    %v1572 = vsel %vm1357, %v1502, 0.0
    %v1573 = vadd.f32 %v1571, %v1572
    %v1574 = vsel %vm1357, %v1503, 0.0
    %v1575 = vadd.f32 %v1573, %v1574
    %v1576 = vsel %vm1357, %v1504, 0.0
    %v1577 = vadd.f32 %v1575, %v1576
    %v1578 = vsel %vm1357, %v1505, 0.0
    %v1579 = vadd.f32 %v1577, %v1578
    %v1580 = vsel %vm1357, %v1506, 0.0
    %v1581 = vadd.f32 %v1579, %v1580
    %v1582 = vsel %vm1357, %v1507, 0.0
    %v1583 = vadd.f32 %v1581, %v1582
    %v1584 = vsel %vm1357, %v1508, 0.0
    %v1585 = vadd.f32 %v1583, %v1584
    %v1586 = vsel %vm1357, %v1509, 0.0
    %v1587 = vadd.f32 %v1585, %v1586
    %v1588 = vsel %vm1357, %v1510, 0.0
    %v1589 = vadd.f32 %v1587, %v1588
    %v1590 = vsel %vm1357, %v1511, 0.0
    %v1591 = vadd.f32 %v1589, %v1590
    %v1592 = vsel %vm1357, %v1512, 0.0
    %v1593 = vadd.f32 %v1591, %v1592
    %v1594 = vsel %vm1357, %v1513, 0.0
    %v1595 = vadd.f32 %v1593, %v1594
    %v1596 = vsel %vm1357, %v1514, 0.0
    %v1597 = vadd.f32 %v1595, %v1596
    %v1598 = vsel %vm1357, %v1515, 0.0
    %v1599 = vadd.f32 %v1597, %v1598
    %v1600 = vsel %vm1357, %v1516, 0.0
    %v1601 = vadd.f32 %v1599, %v1600
    %v1602 = vsel %vm1357, %v1517, 0.0
    %v1603 = vadd.f32 %v1601, %v1602
    %v1604 = vsel %vm1357, %v1518, 0.0
    %v1605 = vadd.f32 %v1603, %v1604
    %v1606 = vsel %vm1357, %v1519, 0.0
    %v1607 = vadd.f32 %v1605, %v1606
    %v1608 = vsel %vm1357, %v1520, 0.0
    %v1609 = vadd.f32 %v1607, %v1608
    %v1610 = vsel %vm1357, %v1521, 0.0
    %v1611 = vadd.f32 %v1609, %v1610
    %v1612 = vsel %vm1357, %v1522, 0.0
    %v1613 = vadd.f32 %v1611, %v1612
    %v1614 = vsel %vm1357, %v1523, 0.0
    %v1615 = vadd.f32 %v1613, %v1614
    %v1616 = vsel %vm1357, %v1524, 0.0
    %v1617 = vadd.f32 %v1615, %v1616
    %v1618 = vsel %vm1357, %v1525, 0.0
    %v1619 = vadd.f32 %v1617, %v1618
    %v1620 = vsel %vm1357, %v1526, 0.0
    %v1621 = vadd.f32 %v1619, %v1620
    %v1622 = vsel %vm1357, %v1527, 0.0
    %v1623 = vadd.f32 %v1621, %v1622
    %v1624 = vsel %vm1357, %v1528, 0.0
    %v1625 = vadd.f32 %v1623, %v1624
    %v1626 = vsel %vm1357, %v1529, 0.0
    %v1627 = vadd.f32 %v1625, %v1626
    %v1628 = vsel %vm1357, %v1530, 0.0
    %v1629 = vadd.f32 %v1627, %v1628
    %v1630 = vsel %vm1357, %v1531, 0.0
    %v1631 = vadd.f32 %v1629, %v1630
    %v1632 = vsel %vm1357, %v1532, 0.0
    %v1633 = vadd.f32 %v1631, %v1632
    %v1634 = vsel %vm1357, %v1533, 0.0
    %v1635 = vadd.f32 %v1633, %v1634
    %v1636 = vsel %vm1357, %v1534, 0.0
    %v1637 = vadd.f32 %v1635, %v1636
    %v1638 = vsel %vm1357, %v1535, 0.0
    %v1639 = vadd.f32 %v1637, %v1638
    %v1640 = vsel %vm1357, %v1536, 0.0
    %v1641 = vadd.f32 %v1639, %v1640
    %v1642 = vsel %vm1357, %v1537, 0.0
    %v1643 = vadd.f32 %v1641, %v1642
    %v1644 = vsel %vm1357, %v1538, 0.0
    %v1645 = vadd.f32 %v1643, %v1644
    %v1646 = vsel %vm1357, %v1539, 0.0
    %v1647 = vadd.f32 %v1645, %v1646
    %v1648 = vsel %vm1357, %v1540, 0.0
    %v1649 = vadd.f32 %v1647, %v1648
    %v1650 = vsel %vm1357, %v1541, 0.0
    %v1651 = vadd.f32 %v1649, %v1650
    %v1652 = vsel %vm1357, %v1542, 0.0
    %v1653 = vadd.f32 %v1651, %v1652
    %v1654 = vsel %vm1357, %v1543, 0.0
    %v1655 = vadd.f32 %v1653, %v1654
    %v1656 = vsel %vm1357, %v1544, 0.0
    %v1657 = vadd.f32 %v1655, %v1656
    %v1658 = vsel %vm1357, %v1545, 0.0
    %v1659 = vadd.f32 %v1657, %v1658
    %v1660 = vsel %vm1357, %v1546, 0.0
    %v1661 = vadd.f32 %v1659, %v1660
    %v1662 = vsel %vm1357, %v1547, 0.0
    %v1663 = vadd.f32 %v1661, %v1662
    %v1664 = vsel %vm1357, %v1548, 0.0
    %v1665 = vadd.f32 %v1663, %v1664
    %v1666 = vsel %vm1357, %v1549, 0.0
    %v1667 = vadd.f32 %v1665, %v1666
    %v1668 = vsel %vm1357, %v1550, 0.0
    %v1669 = vadd.f32 %v1667, %v1668
    %v1670 = vsel %vm1357, %v1551, 0.0
    %v1671 = vadd.f32 %v1669, %v1670
    %v1672 = vsel %vm1357, %v1552, 0.0
    %v1673 = vadd.f32 %v1671, %v1672
    %v1674 = vsel %vm1357, %v1553, 0.0
    %v1675 = vadd.f32 %v1673, %v1674
    %v1676 = vsel %vm1357, %v1554, 0.0
    %v1677 = vadd.f32 %v1675, %v1676
    %v1678 = vsel %vm1357, %v1555, 0.0
    %v1679 = vadd.f32 %v1677, %v1678
    %v1680 = vsel %vm1357, %v1556, 0.0
    %v1681 = vadd.f32 %v1679, %v1680
    %v1682 = vsel %vm1357, %v1557, 0.0
    %v1683 = vadd.f32 %v1681, %v1682
    %v1684 = vsel %vm1357, %v1558, 0.0
    %v1685 = vadd.f32 %v1683, %v1684
    %v1686 = vrot.slane %v1685, 4
    %v1687 = vadd.f32 %v1685, %v1686
    %v1688 = vrot.slane %v1687, 2
    %v1689 = vadd.f32 %v1687, %v1688
    %v1690 = vrot.slane %v1689, 1
    %v1691 = vadd.f32 %v1689, %v1690
    %v1692 = vadd.f32 %v1494, %v1691
    %1693 = vst.msk [vmem:[#allocation5] sm:$0x1] %vm1492, %v1692
    // Predicated region
    $region26: #{generator_forward.22} parent=1 // pred_check
      _
    $region27: #{generator_forward.22} parent=1 // pred_check_branch
      %1695 = sbr.rel (0) target = $region29
    $region28: #{generator_forward.22} parent=1 // pred_region
      %s1697 = ssub.s32 16, 16
      %1698 = vsyncadd [#allocation4], %s1697
      %s1700 = sshll.u32 [#allocation3], 4
      %s1701 = int_to_ptr.vmem [resolvable:$true] %s1700
      %1703 = dma.vmem_to_hbm [thread:$0]  %s1701, 16, %s5, [#allocation4]
    $region29: #{generator_forward.22} parent=1 // pred_fallthru
      _
    // Predicated region
    $region30: #{generator_forward.22} parent=1 // pred_check
      _
    $region31: #{generator_forward.22} parent=1 // pred_check_branch
      %1705 = sbr.rel (0) target = $region33
    $region32: #{generator_forward.22} parent=1 // pred_region
      %s1707 = ssub.s32 16, 16
      %1708 = vsyncadd [#allocation6], %s1707
      %s1710 = sshll.u32 [#allocation5], 4
      %s1711 = int_to_ptr.vmem [resolvable:$true] %s1710
      %1713 = dma.vmem_to_hbm [thread:$0]  %s1711, 16, %s6, [#allocation6]
    $region33: #{generator_forward.22} parent=1 // pred_fallthru
      _
    // Predicated region
    $region34: #{generator_forward.22} parent=1 // pred_check
      _
    $region35: #{generator_forward.22} parent=1 // pred_check_branch
      %1715 = sbr.rel (0) target = $region37
    $region36: #{generator_forward.22} parent=1 // pred_region
      %1716 = dma.done [#allocation4], 16
    $region37: #{generator_forward.22} parent=1 // pred_fallthru
      _
    // Predicated region
    $region38: #{generator_forward.22} parent=1 // pred_check
      _
    $region39: #{generator_forward.22} parent=1 // pred_check_branch
      %1718 = sbr.rel (0) target = $region41
    $region40: #{generator_forward.22} parent=1 // pred_region
      %1719 = dma.done [#allocation6], 16
    $region41: #{generator_forward.22} parent=1 // pred_fallthru
      _
    %1720 = vsyncpa [#allocation4], 1
    %1721 = vsyncpa [#allocation6], 1

</llo_original>
